<compile_context>
chip_gen: v7x
topology: tpu7x:2x2x1
jax: 0.10.0
libtpu: 0.0.40
codegen_flags: <defaults>
</compile_context>

<pallas_src>
import functools

import jax
import jax.numpy as jnp
from jax.experimental import pallas as pl
from jax.experimental.pallas import tpu as pltpu


def _tpu_config():
    """(nc, th, vmem_limit_bytes, sem_kind) chosen from the TPU generation."""
    try:
        kind = jax.devices()[0].device_kind.lower()
    except Exception:
        kind = ""
    if "v7" in kind or "7x" in kind:
        # 2 TensorCores / chip, 64 MiB VMEM per core: split across cores,
        # keep the double-buffered W1 tiles well under the per-core VMEM.
        return 2, 4096, 48 * 1024 * 1024, "core"
    if "lite" in kind or "v5e" in kind or "v6e" in kind or "v6" in kind:
        # Single TensorCore, 128 MiB VMEM: no split, bigger tiles (fewer steps).
        return 1, 8192, 80 * 1024 * 1024, "single"
    if "v5p" in kind or "v5" in kind or "v4" in kind:
        # Megacore (2 TCs behind one device): "parallel" shards the split axis.
        return 2, 4096, 48 * 1024 * 1024, "mega"
    # Unknown / older chip: conservative tiles, default scoped-VMEM limit.
    return 1, 2048, None, "single"


_NC, _TH, _VMEM_LIMIT, _SEM_KIND = _tpu_config()


def _mlp_kernel(x_ref, w1_ref, b1_ref, w2_ref, b2_ref, o_ref):
    c = pl.program_id(0)   # hidden split (one per TensorCore when nc > 1)
    k = pl.program_id(1)   # hidden tile within this split (reduction axis)

    @pl.when(k == 0)
    def _init():
        # Accumulator lives directly in the resident output block; start it at
        # b2 on split 0 (zero elsewhere) so no JAX-side bias add is needed.
        b2v = jnp.where(c == 0, b2_ref[...], 0.0)        # (1, 1) f32
        o_ref[...] = jnp.zeros_like(o_ref) + b2v

    # fc1 tile: relu(x @ W1[:, tile] + b1[tile]) -- bf16 operands, f32 acc (MXU).
    h = jnp.dot(x_ref[...], w1_ref[0], preferred_element_type=jnp.float32)
    h = jnp.maximum(h + b1_ref[...], 0.0)                # (B, th) f32

    # fc2 partial: lane-dense W2 row tile -> VPU multiply + XLU lane reduce.
    partial = jnp.sum(h * w2_ref[...], axis=-1, keepdims=True)   # (B, 1)
    o_ref[...] += partial[None]


@functools.partial(jax.jit, static_argnames=("nc", "vmem_limit", "sem_kind"))
def _mlp_forward_impl(x, w1_tiled, b1_row, w2_row, b2_2d, *, nc, vmem_limit,
                      sem_kind):
    B = x.shape[0]
    x2d = x.reshape(B, -1).astype(jnp.bfloat16)          # == x.view(x.size(0), -1)
    nt, D, th = w1_tiled.shape
    H = nt * th
    assert x2d.shape[1] == D, (x2d.shape, D)
    assert nt % nc == 0, (nt, nc)
    spc = nt // nc                                       # hidden tiles per split

    if sem_kind == "core":
        dims = (pltpu.CORE_PARALLEL, pltpu.ARBITRARY)    # both v7x TCs stream W1
    elif sem_kind == "mega":
        dims = ("parallel", "arbitrary")                 # megacore sharding
    else:
        dims = ("arbitrary", "arbitrary")                # single TC

    flops = 2 * B * D * H + 4 * B * H
    bytes_accessed = D * H * 2 + nc * B * D * 2 + H * 4 + H * 4 + nc * B * 4

    partials = pl.pallas_call(
        _mlp_kernel,
        out_shape=jax.ShapeDtypeStruct((nc, B, 1), jnp.float32),
        grid_spec=pltpu.PrefetchScalarGridSpec(
            num_scalar_prefetch=0,
            grid=(nc, spc),
            in_specs=[
                pl.BlockSpec((B, D), lambda c, k: (0, 0)),                   # x (resident)
                pl.BlockSpec((1, D, th), lambda c, k: (c * spc + k, 0, 0)),  # contiguous W1 tile
                pl.BlockSpec((1, th), lambda c, k: (0, c * spc + k)),        # b1 row tile
                pl.BlockSpec((1, th), lambda c, k: (0, c * spc + k)),        # W2 row tile
                pl.BlockSpec((1, 1), lambda c, k: (0, 0)),                   # b2 (resident)
            ],
            out_specs=pl.BlockSpec((1, B, 1), lambda c, k: (c, 0, 0)),
        ),
        compiler_params=pltpu.CompilerParams(
            dimension_semantics=dims,
            vmem_limit_bytes=vmem_limit,
        ),
        cost_estimate=pl.CostEstimate(
            flops=flops, transcendentals=0, bytes_accessed=bytes_accessed),
    )(x2d, w1_tiled, b1_row, w2_row, b2_2d)

    if nc == 1:
        return partials[0]                 # (B, 1); b2 already added in-kernel
    return partials.sum(axis=0)            # reduce per-core partials


def mlp_forward(x, params):
    """x: (B, C, H, W) float32 -> (B, 1) float32."""
    w1_tiled, b1_row, w2_row, b2_2d = params
    try:
        return _mlp_forward_impl(x, w1_tiled, b1_row, w2_row, b2_2d,
                                 nc=_NC, vmem_limit=_VMEM_LIMIT,
                                 sem_kind=_SEM_KIND)
    except Exception:
        if _SEM_KIND == "core":
            # Fall back to plain "parallel" sharding if CORE_PARALLEL does not
            # lower on this toolchain.
            return _mlp_forward_impl(x, w1_tiled, b1_row, w2_row, b2_2d,
                                     nc=_NC, vmem_limit=_VMEM_LIMIT,
                                     sem_kind="mega")
        raise


def prepare_params(w1t, b1, w2t, b2, *, th=_TH, nc=_NC):
    """One-time layout prep (outside the hot path).

    w1t: (D, H) fc1 weight already transposed to (in, out).
    Returns (w1_tiled, b1_row, w2_row, b2_2d) with W1 pre-tiled to
    (H/th, D, th) bf16 so each hidden tile is contiguous in HBM.
    """
    D, H = w1t.shape
    while th > 128 and H % (nc * th) != 0:
        th //= 2
    assert H % (nc * th) == 0, (H, nc, th)
    nt = H // th
    w1_tiled = jnp.asarray(w1t, jnp.bfloat16).reshape(D, nt, th).transpose(1, 0, 2)
    b1_row = jnp.asarray(b1, jnp.float32).reshape(1, H)
    w2_row = jnp.asarray(w2t, jnp.float32).reshape(1, H)
    b2_2d = jnp.asarray(b2, jnp.float32).reshape(1, 1)
    return w1_tiled, b1_row, w2_row, b2_2d


if __name__ == "__main__":
    key = jax.random.PRNGKey(0)
    kx, kp = jax.random.split(key)

    # Small NCHW input: B=2, C=4, H=W=16 -> input_size = 4*16*16 = 1024
    B, C, Hs, Ws = 2, 4, 16, 16
    input_size = C * Hs * Ws
    hidden = 40960
    x = jax.random.normal(kx, (B, C, Hs, Ws), dtype=jnp.float32)

    # PyTorch-style Linear init U(-1/sqrt(fan_in), +1/sqrt(fan_in)).
    k1, k2, k3, k4 = jax.random.split(kp, 4)
    bound1 = 1.0 / (float(input_size) ** 0.5)
    bound2 = 1.0 / (float(hidden) ** 0.5)
    w1t = jax.random.uniform(k1, (input_size, hidden), jnp.float32, -bound1, bound1)
    b1 = jax.random.uniform(k2, (hidden,), jnp.float32, -bound1, bound1)
    w2t = jax.random.uniform(k3, (hidden, 1), jnp.float32, -bound2, bound2)
    b2 = jax.random.uniform(k4, (1,), jnp.float32, -bound2, bound2)

    params = prepare_params(w1t, b1, w2t, b2)
    out = jax.block_until_ready(mlp_forward(x, params))

    # Reference in plain JAX on the same bf16-rounded x / W1 (f32 math).
    x2d_bf = x.reshape(B, -1).astype(jnp.bfloat16).astype(jnp.float32)
    w1_bf = w1t.astype(jnp.bfloat16).astype(jnp.float32)
    with jax.default_matmul_precision("float32"):
        ref = jnp.maximum(x2d_bf @ w1_bf + b1, 0.0) @ w2t + b2
    ref = jax.block_until_ready(ref)

    assert out.shape == (B, 1), out.shape
    assert jnp.allclose(out, ref, rtol=2e-3, atol=2e-3), (out, ref)

    print("KERNEL_OK")
</pallas_src>

<mosaic_0001>
module attributes {stable_mosaic.version = 11 : i64} {
  func.func @_mlp_kernel(%arg0: i32, %arg1: i32, %arg2: memref<2x1024xbf16, #tpu.memory_space<vmem>>, %arg3: memref<1x1024x2048xbf16, #tpu.memory_space<vmem>>, %arg4: memref<1x2048xf32, #tpu.memory_space<vmem>>, %arg5: memref<1x2048xf32, #tpu.memory_space<vmem>>, %arg6: memref<1x1xf32, #tpu.memory_space<vmem>>, %arg7: memref<1x2x1xf32, #tpu.memory_space<vmem>>) attributes {dimension_semantics = [#tpu.dimension_semantics<arbitrary>, #tpu.dimension_semantics<arbitrary>], iteration_bounds = array<i64: 1, 20>, scalar_prefetch = 0 : i64, scratch_operands = 0 : i64, tpu.core_type = #tpu.core_type<tc>, window_params = [{pipeline_mode = #tpu.pipeline_mode<synchronous>, transform_indices = @transform_0, window_bounds = array<i64: 2, 1024>}, {transform_indices = @transform_1, window_bounds = array<i64: 1, 1024, 2048>}, {transform_indices = @transform_2, window_bounds = array<i64: 1, 2048>}, {transform_indices = @transform_3, window_bounds = array<i64: 1, 2048>}, {pipeline_mode = #tpu.pipeline_mode<synchronous>, transform_indices = @transform_4, window_bounds = array<i64: 1, 1>}, {transform_indices = @transform_5, window_bounds = array<i64: 1, 2, 1>}]} {
    %c0_i32 = arith.constant 0 : i32
    %0 = arith.cmpi eq, %arg1, %c0_i32 : i32
    %1 = arith.extui %0 : i1 to i32
    %c0_i32_0 = arith.constant 0 : i32
    %2 = arith.cmpi ne, %1, %c0_i32_0 : i32
    scf.if %2 {
      %c0_i32_17 = arith.constant 0 : i32
      %21 = arith.cmpi eq, %arg0, %c0_i32_17 : i32
      %c0_18 = arith.constant 0 : index
      %c0_19 = arith.constant 0 : index
      %22 = vector.load %arg6[%c0_18, %c0_19] : memref<1x1xf32, #tpu.memory_space<vmem>>, vector<1x1xf32>
      %cst_20 = arith.constant 0.000000e+00 : f32
      %23 = vector.broadcast %cst_20 : f32 to vector<1x1xf32>
      %24 = arith.select %21, %22, %23 : vector<1x1xf32>
      %cst_21 = arith.constant 0.000000e+00 : f32
      %25 = vector.broadcast %cst_21 : f32 to vector<1x2x1xf32>
      %26 = vector.shape_cast %24 : vector<1x1xf32> to vector<1x1x1xf32>
      %27 = vector.broadcast %26 : vector<1x1x1xf32> to vector<1x2x1xf32>
      %28 = arith.addf %25, %27 : vector<1x2x1xf32>
      %c0_22 = arith.constant 0 : index
      %c0_23 = arith.constant 0 : index
      %c0_24 = arith.constant 0 : index
      %29 = vector.load %arg7[%c0_22, %c0_23, %c0_24] : memref<1x2x1xf32, #tpu.memory_space<vmem>>, vector<1x2x1xf32>
      tpu.vector_store %arg7[%c0_22, %c0_23, %c0_24], %28 {strides = array<i32>} : memref<1x2x1xf32, #tpu.memory_space<vmem>>, vector<1x2x1xf32>,
    } else {
    }
    %c0 = arith.constant 0 : index
    %c0_1 = arith.constant 0 : index
    %3 = vector.load %arg2[%c0, %c0_1] : memref<2x1024xbf16, #tpu.memory_space<vmem>>, vector<2x1024xbf16>
    %c0_2 = arith.constant 0 : index
    %c0_3 = arith.constant 0 : index
    %c0_4 = arith.constant 0 : index
    %4 = vector.load %arg3[%c0_2, %c0_3, %c0_4] : memref<1x1024x2048xbf16, #tpu.memory_space<vmem>>, vector<1x1024x2048xbf16>
    %5 = vector.shape_cast %4 : vector<1x1024x2048xbf16> to vector<1024x2048xbf16>
    %cst = arith.constant dense<0.000000e+00> : vector<2x2048xf32>
    %6 = tpu.matmul %3, %5, %cst {dimension_numbers = #tpu.dot_dimension_numbers<[1], [0], [0], [1], [0, 0, 1, 1], [], []>} : vector<2x1024xbf16>, vector<1024x2048xbf16>, vector<2x2048xf32> -> vector<2x2048xf32>
    %c0_5 = arith.constant 0 : index
    %c0_6 = arith.constant 0 : index
    %7 = vector.load %arg4[%c0_5, %c0_6] : memref<1x2048xf32, #tpu.memory_space<vmem>>, vector<1x2048xf32>
    %8 = vector.broadcast %7 : vector<1x2048xf32> to vector<2x2048xf32>
    %9 = arith.addf %6, %8 : vector<2x2048xf32>
    %cst_7 = arith.constant 0.000000e+00 : f32
    %10 = vector.broadcast %cst_7 : f32 to vector<2x2048xf32>
    %11 = arith.maximumf %9, %10 : vector<2x2048xf32>
    %c0_8 = arith.constant 0 : index
    %c0_9 = arith.constant 0 : index
    %12 = vector.load %arg5[%c0_8, %c0_9] : memref<1x2048xf32, #tpu.memory_space<vmem>>, vector<1x2048xf32>
    %13 = vector.broadcast %12 : vector<1x2048xf32> to vector<2x2048xf32>
    %14 = arith.mulf %11, %13 : vector<2x2048xf32>
    %cst_10 = arith.constant dense<0.000000e+00> : vector<2xf32>
    %15 = vector.multi_reduction <add>, %14, %cst_10 [1] : vector<2x2048xf32> to vector<2xf32>
    %16 = vector.shape_cast %15 : vector<2xf32> to vector<2x1xf32>
    %c0_11 = arith.constant 0 : index
    %c0_12 = arith.constant 0 : index
    %c0_13 = arith.constant 0 : index
    %17 = vector.load %arg7[%c0_11, %c0_12, %c0_13] : memref<1x2x1xf32, #tpu.memory_space<vmem>>, vector<1x2x1xf32>
    %18 = vector.shape_cast %16 : vector<2x1xf32> to vector<1x2x1xf32>
    %19 = arith.addf %17, %18 : vector<1x2x1xf32>
    %c0_14 = arith.constant 0 : index
    %c0_15 = arith.constant 0 : index
    %c0_16 = arith.constant 0 : index
    %20 = vector.load %arg7[%c0_14, %c0_15, %c0_16] : memref<1x2x1xf32, #tpu.memory_space<vmem>>, vector<1x2x1xf32>
    tpu.vector_store %arg7[%c0_14, %c0_15, %c0_16], %19 {strides = array<i32>} : memref<1x2x1xf32, #tpu.memory_space<vmem>>, vector<1x2x1xf32>,
    return
  }
  func.func @transform_0(%arg0: i32, %arg1: i32) -> (i32, i32) {
    %c0_i32 = arith.constant 0 : i32
    %c0_i32_0 = arith.constant 0 : i32
    %c0_i32_1 = arith.constant 0 : i32
    return %c0_i32, %c0_i32_0 : i32, i32
  }
  func.func @transform_1(%arg0: i32, %arg1: i32) -> (i32, i32, i32) {
    %c20_i32 = arith.constant 20 : i32
    %0 = arith.muli %arg0, %c20_i32 : i32
    %1 = arith.addi %0, %arg1 : i32
    %c0_i32 = arith.constant 0 : i32
    %c0_i32_0 = arith.constant 0 : i32
    %c0_i32_1 = arith.constant 0 : i32
    return %1, %c0_i32, %c0_i32_0 : i32, i32, i32
  }
  func.func @transform_2(%arg0: i32, %arg1: i32) -> (i32, i32) {
    %c20_i32 = arith.constant 20 : i32
    %0 = arith.muli %arg0, %c20_i32 : i32
    %1 = arith.addi %0, %arg1 : i32
    %c0_i32 = arith.constant 0 : i32
    %c0_i32_0 = arith.constant 0 : i32
    return %c0_i32, %1 : i32, i32
  }
  func.func @transform_3(%arg0: i32, %arg1: i32) -> (i32, i32) {
    %c20_i32 = arith.constant 20 : i32
    %0 = arith.muli %arg0, %c20_i32 : i32
    %1 = arith.addi %0, %arg1 : i32
    %c0_i32 = arith.constant 0 : i32
    %c0_i32_0 = arith.constant 0 : i32
    return %c0_i32, %1 : i32, i32
  }
  func.func @transform_4(%arg0: i32, %arg1: i32) -> (i32, i32) {
    %c0_i32 = arith.constant 0 : i32
    %c0_i32_0 = arith.constant 0 : i32
    %c0_i32_1 = arith.constant 0 : i32
    return %c0_i32, %c0_i32_0 : i32, i32
  }
  func.func @transform_5(%arg0: i32, %arg1: i32) -> (i32, i32, i32) {
    %c0_i32 = arith.constant 0 : i32
    %c0_i32_0 = arith.constant 0 : i32
    %c0_i32_1 = arith.constant 0 : i32
    return %arg0, %c0_i32, %c0_i32_0 : i32, i32, i32
  }
}

</mosaic_0001>

<llo_original>
// kernel: _mlp_forward_impl.1
$region0: #{_mlp_forward_impl.1}
  #allocation0 [shape = 'u32[]', space=smem, size = 0x4, offset = 0x4, fixed_abs, tag = 'smem constant byte address 0x4 - core index']
  #allocation1 [shape = 'u32[144,128]{1,0:T(1,128)}', space=vmem, size = 0x12000, scoped, tag = 'internal scratch']
  #allocation2 [shape = 'f32[1,1]{1,0:T(1,128)S(1)}', space=vmem, size = 0x200, scoped, tag = 'scoped memory for _mlp_forward_impl.1']
  %s0 = inlined_call_operand.vmem [shape: bf16[2,1024], index: 0, kind: input, shape index: {}]
  %s1 = inlined_call_operand.hbm [shape: bf16[20,1024,2048], index: 1, kind: input, shape index: {}]
  %s2 = inlined_call_operand.hbm [shape: f32[1,40960], index: 2, kind: input, shape index: {}]
  %s3 = inlined_call_operand.hbm [shape: f32[1,40960], index: 3, kind: input, shape index: {}]
  %s4 = inlined_call_operand.<no memory space> [shape: f32[1,1], index: 4, kind: input, shape index: {}]
  %s5 = inlined_call_operand.vmem [shape: f32[1,2,1], index: 5, kind: output, shape index: {}]
  %s6 = sld [smem:[#allocation0]]
  $region69: #{_mlp_forward_impl.1} parent=0
    _
  %s8 = ssub.s32 1, %s6
  %s9 = scalar_select 0, %s8, %s6
  %v10 = vstv %s4
  %11 = vst [vmem:[#allocation2] sm:$0x1] %v10
  $region1: #{_mlp_forward_impl.1} parent=0
    #allocation3 [shape = 'u8[8388608]{0}', space=vmem, size = 0x800000, scoped, tag = 'input window, operand 1']
    #allocation4 [shape = 's32[2]{0}', space=sflag, size = 0x8, scoped, tag = 'scoped memory for _mlp_forward_impl.1']
    #allocation5 [shape = 'u8[16384]{0}', space=vmem, size = 0x4000, scoped, tag = 'input window, operand 2']
    #allocation6 [shape = 's32[2]{0}', space=sflag, size = 0x8, scoped, tag = 'scoped memory for _mlp_forward_impl.1']
    #allocation7 [shape = 'u8[16384]{0}', space=vmem, size = 0x4000, scoped, tag = 'input window, operand 3']
    %12 = vsyncpa [#allocation4], 0
    %s13 = scalar_lea.sflag [#allocation4], 1
    %14 = vsyncpa %s13, 0
    %15 = vsyncpa [#allocation6], 0
    %s16 = scalar_lea.sflag [#allocation6], 1
    %17 = vsyncpa %s16, 0
    loop: start=0, step=1, limit=22
    $region2: #{_mlp_forward_impl.1} parent=1 // loop_pre_header
      _
    $region3: #{_mlp_forward_impl.1} parent=1 // loop_header
      %s19 = sphi 0, %s23
      %p20 = scmp.ge.s32.totalorder %s19, 22
      %s26 = sphi 0, %s38
      %s27 = sphi 0, %s34
      %s28 = sphi 0, %s26
      %s29 = sphi 0, %s27
      %s30 = sphi 0, %s28
      %s31 = sphi 0, %s29
      %s39 = sphi 0, %s39
      %s41 = sphi 0, %s39
      %s42 = sphi 0, %s41
      %s56 = sphi 0, %s42
      %s66 = sphi 0, %s68
      %s69 = sphi 0, %s66
      %s70 = sphi 0, %s69
      %s86 = sphi 0, %s70
      %s96 = sphi 0, %s98
      %s99 = sphi 0, %s96
      %s100 = sphi 0, %s99
      %s116 = sphi 0, %s100
      %s126 = sphi 0, %s128
      %s129 = sphi 0, %s126
      %s130 = sphi 0, %s129
      %s146 = sphi 0, %s130
      %s150 = sphi 0, %s150
      %s152 = sphi 0, %s150
      %s153 = sphi 0, %s152
      %s167 = sphi 0, %s153
      %s173 = sphi 0, %s175
      %s176 = sphi 0, %s173
      %s177 = sphi 0, %s176
      %s193 = sphi 0, %s177
    $region4: #{_mlp_forward_impl.1} parent=1 // loop_header_branch
      %22 = sbr.rel (%p20) target = $region8
    $region5: #{_mlp_forward_impl.1} parent=1 // loop_body
      %s24 = ssub.s32 %s19, 1
      %s25 = ssub.s32 %s19, 2
      %s32 = sadd.s32 1, %s27
      %p33 = scmp.ge.s32.totalorder %s32, 20
      %s34 = scalar_select %p33, 0, %s32
      %s35 = sadd.s32 1, %s26
      %s36 = scalar_select %p33, %s35, %s26
      %p37 = scmp.ge.s32.totalorder %s36, 1
      %s38 = scalar_select %p37, 0, %s36
      %s40 = sadd.s32 %s39, 1
      %p43 = scmp.eq.s32.totalorder %s19, 19
      %p44 = scmp.ne.s32.totalorder %s39, %s41
      %p45 = scmp.eq.s32.totalorder %s19, 0
      %p46 = por %p44, %p45
      %p47 = scmp.ne.s32.totalorder %s39, %s41
      %p48 = scmp.eq.s32.totalorder %s24, 19
      %p49 = por %p47, %p48
      %p50 = scmp.ne.s32.totalorder %s41, %s42
      %p51 = scmp.eq.s32.totalorder %s24, 0
      %p52 = por %p50, %p51
      %p53 = scmp.ne.s32.totalorder %s41, %s42
      %p54 = scmp.eq.s32.totalorder %s25, 19
      %p55 = por %p53, %p54
      %p57 = scmp.ne.s32.totalorder %s42, %s56
      %p58 = scmp.eq.s32.totalorder %s25, 0
      %p59 = por %p57, %p58
      %s60 = smul.u32 %s26, 20
      %s61 = sadd.s32 %s60, %s27
      %s62 = smul.u32 %s38, 20
      %s63 = sadd.s32 %s62, %s34
      %s64 = ssub.s32 %s61, %s63
      %p65 = scmp.eq.s32.totalorder %s64, 0
      %s67 = sadd.s32 %s66, 1
      %s68 = scalar_select %p65, %s66, %s67
      %p71 = pneg %p65
      %p72 = scmp.eq.s32.totalorder %s19, 19
      %p73 = por %p71, %p72
      %p74 = scmp.ne.s32.totalorder %s66, %s69
      %p75 = scmp.eq.s32.totalorder %s19, 0
      %p76 = por %p74, %p75
      %p77 = scmp.ne.s32.totalorder %s66, %s69
      %p78 = scmp.eq.s32.totalorder %s24, 19
      %p79 = por %p77, %p78
      %p80 = scmp.ne.s32.totalorder %s69, %s70
      %p81 = scmp.eq.s32.totalorder %s24, 0
      %p82 = por %p80, %p81
      %p83 = scmp.ne.s32.totalorder %s69, %s70
      %p84 = scmp.eq.s32.totalorder %s25, 19
      %p85 = por %p83, %p84
      %p87 = scmp.ne.s32.totalorder %s70, %s86
      %p88 = scmp.eq.s32.totalorder %s25, 0
      %p89 = por %p87, %p88
      %s90 = smul.u32 %s26, 20
      %s91 = sadd.s32 %s90, %s27
      %s92 = smul.u32 %s38, 20
      %s93 = sadd.s32 %s92, %s34
      %s94 = ssub.s32 %s91, %s93
      %p95 = scmp.eq.s32.totalorder %s94, 0
      %s97 = sadd.s32 %s96, 1
      %s98 = scalar_select %p95, %s96, %s97
      %p101 = pneg %p95
      %p102 = scmp.eq.s32.totalorder %s19, 19
      %p103 = por %p101, %p102
      %p104 = scmp.ne.s32.totalorder %s96, %s99
      %p105 = scmp.eq.s32.totalorder %s19, 0
      %p106 = por %p104, %p105
      %p107 = scmp.ne.s32.totalorder %s96, %s99
      %p108 = scmp.eq.s32.totalorder %s24, 19
      %p109 = por %p107, %p108
      %p110 = scmp.ne.s32.totalorder %s99, %s100
      %p111 = scmp.eq.s32.totalorder %s24, 0
      %p112 = por %p110, %p111
      %p113 = scmp.ne.s32.totalorder %s99, %s100
      %p114 = scmp.eq.s32.totalorder %s25, 19
      %p115 = por %p113, %p114
      %p117 = scmp.ne.s32.totalorder %s100, %s116
      %p118 = scmp.eq.s32.totalorder %s25, 0
      %p119 = por %p117, %p118
      %s120 = smul.u32 %s26, 20
      %s121 = sadd.s32 %s120, %s27
      %s122 = smul.u32 %s38, 20
      %s123 = sadd.s32 %s122, %s34
      %s124 = ssub.s32 %s121, %s123
      %p125 = scmp.eq.s32.totalorder %s124, 0
      %s127 = sadd.s32 %s126, 1
      %s128 = scalar_select %p125, %s126, %s127
      %p131 = pneg %p125
      %p132 = scmp.eq.s32.totalorder %s19, 19
      %p133 = por %p131, %p132
      %p134 = scmp.ne.s32.totalorder %s126, %s129
      %p135 = scmp.eq.s32.totalorder %s19, 0
      %p136 = por %p134, %p135
      %p137 = scmp.ne.s32.totalorder %s126, %s129
      %p138 = scmp.eq.s32.totalorder %s24, 19
      %p139 = por %p137, %p138
      %p140 = scmp.ne.s32.totalorder %s129, %s130
      %p141 = scmp.eq.s32.totalorder %s24, 0
      %p142 = por %p140, %p141
      %p143 = scmp.ne.s32.totalorder %s129, %s130
      %p144 = scmp.eq.s32.totalorder %s25, 19
      %p145 = por %p143, %p144
      %p147 = scmp.ne.s32.totalorder %s130, %s146
      %p148 = scmp.eq.s32.totalorder %s25, 0
      %p149 = por %p147, %p148
      %s151 = sadd.s32 %s150, 1
      %p154 = scmp.eq.s32.totalorder %s19, 19
      %p155 = scmp.ne.s32.totalorder %s150, %s152
      %p156 = scmp.eq.s32.totalorder %s19, 0
      %p157 = por %p155, %p156
      %p158 = scmp.ne.s32.totalorder %s150, %s152
      %p159 = scmp.eq.s32.totalorder %s24, 19
      %p160 = por %p158, %p159
      %p161 = scmp.ne.s32.totalorder %s152, %s153
      %p162 = scmp.eq.s32.totalorder %s24, 0
      %p163 = por %p161, %p162
      %p164 = scmp.ne.s32.totalorder %s152, %s153
      %p165 = scmp.eq.s32.totalorder %s25, 19
      %p166 = por %p164, %p165
      %p168 = scmp.ne.s32.totalorder %s153, %s167
      %p169 = scmp.eq.s32.totalorder %s25, 0
      %p170 = por %p168, %p169
      %s171 = ssub.s32 %s26, %s38
      %p172 = scmp.eq.s32.totalorder %s171, 0
      %s174 = sadd.s32 %s173, 1
      %s175 = scalar_select %p172, %s173, %s174
      %p178 = pneg %p172
      %p179 = scmp.eq.s32.totalorder %s19, 19
      %p180 = por %p178, %p179
      %p181 = scmp.ne.s32.totalorder %s173, %s176
      %p182 = scmp.eq.s32.totalorder %s19, 0
      %p183 = por %p181, %p182
      %p184 = scmp.ne.s32.totalorder %s173, %s176
      %p185 = scmp.eq.s32.totalorder %s24, 19
      %p186 = por %p184, %p185
      %p187 = scmp.ne.s32.totalorder %s176, %s177
      %p188 = scmp.eq.s32.totalorder %s24, 0
      %p189 = por %p187, %p188
      %p190 = scmp.ne.s32.totalorder %s176, %s177
      %p191 = scmp.eq.s32.totalorder %s25, 19
      %p192 = por %p190, %p191
      %p194 = scmp.ne.s32.totalorder %s177, %s193
      %p195 = scmp.eq.s32.totalorder %s25, 0
      %p196 = por %p194, %p195
      %p197 = scmp.le.s32.totalorder 1, %s19
      %p198 = scmp.lt.s32.totalorder %s19, 21
      %p199 = pnand %p197, %p198
      %p200 = pneg %p199
      // Predicated region
      $region9: #{_mlp_forward_impl.1} parent=5 // pred_check
        _
      $region10: #{_mlp_forward_impl.1} parent=5 // pred_check_branch
        %202 = sbr.rel (%p199) target = $region12
      $region11: #{_mlp_forward_impl.1} parent=5 // pred_region
        %s203 = ssub.s32 %s19, 1
        // Predicated region
        $region13: #{_mlp_forward_impl.1} parent=11 // pred_check
          %p204 = pneg %p52
        $region14: #{_mlp_forward_impl.1} parent=11 // pred_check_branch
          %206 = sbr.rel (%p204) target = $region16
        $region15: #{_mlp_forward_impl.1} parent=11 // pred_region
          _
        $region16: #{_mlp_forward_impl.1} parent=11 // pred_fallthru
          _
        // Predicated region
        $region17: #{_mlp_forward_impl.1} parent=11 // pred_check
          %p207 = pneg %p163
        $region18: #{_mlp_forward_impl.1} parent=11 // pred_check_branch
          %209 = sbr.rel (%p207) target = $region20
        $region19: #{_mlp_forward_impl.1} parent=11 // pred_region
          _
        $region20: #{_mlp_forward_impl.1} parent=11 // pred_fallthru
          _
      $region12: #{_mlp_forward_impl.1} parent=5 // pred_fallthru
        _
      %p210 = scmp.lt.s32.totalorder %s19, 20
      // Predicated region
      $region21: #{_mlp_forward_impl.1} parent=5 // pred_check
        %p211 = pneg %p210
      $region22: #{_mlp_forward_impl.1} parent=5 // pred_check_branch
        %213 = sbr.rel (%p211) target = $region24
      $region23: #{_mlp_forward_impl.1} parent=5 // pred_region
        // Predicated region
        $region25: #{_mlp_forward_impl.1} parent=23 // pred_check
          %p214 = pneg %p76
        $region26: #{_mlp_forward_impl.1} parent=23 // pred_check_branch
          %216 = sbr.rel (%p214) target = $region28
        $region27: #{_mlp_forward_impl.1} parent=23 // pred_region
          %s217 = sand.u32 %s66, 1
          %s218 = scalar_lea.sflag [#allocation4], %s217
          %s219 = sand.u32 %s66, 1
          %s220 = smul.addr %s219, 8192
          %s221 = scalar_lea.vmem [#allocation3], %s220
          %s222 = smul.u32 %s26, 20
          %s223 = sadd.s32 %s222, %s27
          %s225 = ssub.s32 131072, 131072
          %226 = vsyncadd %s218, %s225
          %s227 = smul.addr %s223, 2048
          %s228 = smul.addr %s227, 64
          %s229 = scalar_lea.hbm %s1, %s228
          %s230 = sshll.u32 %s221, 4
          %s231 = int_to_ptr.vmem [resolvable:$true] %s230
          %236 = dma.hbm_to_vmem [thread:$0]  %s229, 131072, %s231, %s218, 1024, 1024, 64
        $region28: #{_mlp_forward_impl.1} parent=23 // pred_fallthru
          _
        // Predicated region
        $region29: #{_mlp_forward_impl.1} parent=23 // pred_check
          %p237 = pneg %p106
        $region30: #{_mlp_forward_impl.1} parent=23 // pred_check_branch
          %239 = sbr.rel (%p237) target = $region32
        $region31: #{_mlp_forward_impl.1} parent=23 // pred_region
          %s240 = sand.u32 %s19, 1
          %s241 = scalar_lea.sflag [#allocation6], %s240
          %s242 = sand.u32 %s96, 1
          %s243 = smul.addr %s242, 16
          %s244 = scalar_lea.vmem [#allocation5], %s243
          %s245 = smul.u32 %s26, 20
          %s246 = sadd.s32 %s245, %s27
          %s247 = smul.u32 16, %s246
          %s249 = ssub.s32 256, 256
          %250 = vsyncadd %s241, %s249
          %s251 = smul.addr %s247, 16
          %s252 = scalar_lea.hbm %s2, %s251
          %s254 = sshll.u32 %s244, 4
          %s255 = int_to_ptr.vmem [resolvable:$true] %s254
          %257 = dma.hbm_to_vmem [thread:$0]  %s252, 256, %s255, %s241
        $region32: #{_mlp_forward_impl.1} parent=23 // pred_fallthru
          _
        // Predicated region
        $region33: #{_mlp_forward_impl.1} parent=23 // pred_check
          %p258 = pneg %p136
        $region34: #{_mlp_forward_impl.1} parent=23 // pred_check_branch
          %260 = sbr.rel (%p258) target = $region36
        $region35: #{_mlp_forward_impl.1} parent=23 // pred_region
          %s261 = sand.u32 %s19, 1
          %s262 = scalar_lea.sflag [#allocation6], %s261
          %s263 = sand.u32 %s126, 1
          %s264 = smul.addr %s263, 16
          %s265 = scalar_lea.vmem [#allocation7], %s264
          %s266 = smul.u32 %s26, 20
          %s267 = sadd.s32 %s266, %s27
          %s268 = smul.u32 16, %s267
          %s270 = ssub.s32 256, 256
          %271 = vsyncadd %s262, %s270
          %s272 = smul.addr %s268, 16
          %s273 = scalar_lea.hbm %s3, %s272
          %s275 = sshll.u32 %s265, 4
          %s276 = int_to_ptr.vmem [resolvable:$true] %s275
          %278 = dma.hbm_to_vmem [thread:$0]  %s273, 256, %s276, %s262
        $region36: #{_mlp_forward_impl.1} parent=23 // pred_fallthru
          _
      $region24: #{_mlp_forward_impl.1} parent=5 // pred_fallthru
        _
      %p279 = scmp.le.s32.totalorder 1, %s19
      %p280 = scmp.lt.s32.totalorder %s19, 21
      %p281 = pnand %p279, %p280
      %p282 = pneg %p281
      // Predicated region
      $region37: #{_mlp_forward_impl.1} parent=5 // pred_check
        _
      $region38: #{_mlp_forward_impl.1} parent=5 // pred_check_branch
        %284 = sbr.rel (%p281) target = $region40
      $region39: #{_mlp_forward_impl.1} parent=5 // pred_region
        %s285 = ssub.s32 %s19, 1
        %s286 = sand.u32 %s69, 1
        %s287 = scalar_lea.sflag [#allocation4], %s286
        %s288 = sand.u32 %s69, 1
        %s289 = smul.addr %s288, 8192
        %s290 = scalar_lea.vmem [#allocation3], %s289
        // Predicated region
        $region41: #{_mlp_forward_impl.1} parent=39 // pred_check
          %p291 = pneg %p82
        $region42: #{_mlp_forward_impl.1} parent=39 // pred_check_branch
          %293 = sbr.rel (%p291) target = $region44
        $region43: #{_mlp_forward_impl.1} parent=39 // pred_region
          %294 = dma.done %s287, 131072
        $region44: #{_mlp_forward_impl.1} parent=39 // pred_fallthru
          _
        %s295 = sand.u32 %s24, 1
        %s296 = scalar_lea.sflag [#allocation6], %s295
        %s297 = sand.u32 %s99, 1
        %s298 = smul.addr %s297, 16
        %s299 = scalar_lea.vmem [#allocation5], %s298
        // Predicated region
        $region45: #{_mlp_forward_impl.1} parent=39 // pred_check
          %p300 = pneg %p112
        $region46: #{_mlp_forward_impl.1} parent=39 // pred_check_branch
          %302 = sbr.rel (%p300) target = $region48
        $region47: #{_mlp_forward_impl.1} parent=39 // pred_region
          %303 = dma.done %s296, 256
        $region48: #{_mlp_forward_impl.1} parent=39 // pred_fallthru
          _
        %s304 = sand.u32 %s24, 1
        %s305 = scalar_lea.sflag [#allocation6], %s304
        %s306 = sand.u32 %s129, 1
        %s307 = smul.addr %s306, 16
        %s308 = scalar_lea.vmem [#allocation7], %s307
        // Predicated region
        $region49: #{_mlp_forward_impl.1} parent=39 // pred_check
          %p309 = pneg %p142
        $region50: #{_mlp_forward_impl.1} parent=39 // pred_check_branch
          %311 = sbr.rel (%p309) target = $region52
        $region51: #{_mlp_forward_impl.1} parent=39 // pred_region
          %312 = dma.done %s305, 256
        $region52: #{_mlp_forward_impl.1} parent=39 // pred_fallthru
          _
        %p313 = pneg %p52
        %p314 = pneg %p49
        %s315 = sand.u32 %s69, 1
        %s316 = scalar_lea.sflag [#allocation4], %s315
        %s317 = sand.u32 %s69, 1
        %s318 = smul.addr %s317, 8192
        %s319 = scalar_lea.vmem [#allocation3], %s318
        %p320 = pneg %p82
        %p321 = pneg %p79
        %s322 = sand.u32 %s24, 1
        %s323 = scalar_lea.sflag [#allocation6], %s322
        %s324 = sand.u32 %s99, 1
        %s325 = smul.addr %s324, 16
        %s326 = scalar_lea.vmem [#allocation5], %s325
        %p327 = pneg %p112
        %p328 = pneg %p109
        %s329 = sand.u32 %s24, 1
        %s330 = scalar_lea.sflag [#allocation6], %s329
        %s331 = sand.u32 %s129, 1
        %s332 = smul.addr %s331, 16
        %s333 = scalar_lea.vmem [#allocation7], %s332
        %p334 = pneg %p142
        %p335 = pneg %p139
        %p336 = pneg %p163
        %p337 = pneg %p160
        %p338 = pneg %p189
        %p339 = pneg %p186
        %p340 = scmp.lt.s32.totalorder %s28, 0
        %s341 = scalar_select %p340, %s28, 0
        %s342 = smul.addr %s341, 2
        %s343 = scalar_lea.vmem %s5, %s342
        %s344 = smul.u32 %s28, 20
        %s345 = sadd.s32 %s344, %s29
        %s346 = smul.u32 %s28, 20
        %s347 = sadd.s32 %s346, %s29
        %s348 = smul.u32 16, %s347
        %s349 = smul.u32 %s28, 20
        %s350 = sadd.s32 %s349, %s29
        %s351 = smul.u32 16, %s350
        %p352 = scmp.lt.s32.totalorder %s28, 0
        %s353 = scalar_select %p352, %s28, 0
        %s354 = smul.addr %s353, 2
        %s355 = scalar_lea.vmem %s5, %s354
        %p356 = scmp.eq.s32.totalorder %s29, 0
        // Predicated region
        $region53: #{_mlp_forward_impl.1} parent=39 // pred_check
          %p357 = pneg %p356
        $region54: #{_mlp_forward_impl.1} parent=39 // pred_check_branch
          %359 = sbr.rel (%p357) target = $region56
        $region55: #{_mlp_forward_impl.1} parent=39 // pred_region
          %p360 = scmp.eq.s32.totalorder %s28, 0
          %v361 = vld [vmem:[#allocation2] sm:$0x1]
          %s362 = scalar_select %p360, 1, 0
          %v363 = vstv %s362
          %vm364 = vcmp.eq.s32.totalorder %v363, 1
          %v365 = vsel %vm364, %v361, 0.0
          %v367 = vlaneseq
          %v368 = vshrl.u32 %v367, 7
          %v369 = vsub.s32 0, %v368
          %v370 = vrot.slane %v365, %v369
          %v372 = vadd.f32 %v370, 0.0
          %vm373 = vcmask 1024
          %374 = vst.msk [vmem:[%s355] sm:$0x3] %vm373, %v372
        $region56: #{_mlp_forward_impl.1} parent=39 // pred_fallthru
          _
        %v375 = vld [vmem:[%s0] sm:$0xff]
        %v376 = vld [vmem:[%s290] sm:$0xff]
        %v377 = vld [vmem:[%s290 + $0x8] sm:$0xff]
        %v378 = vld [vmem:[%s290 + $0x10] sm:$0xff]
        %v379 = vld [vmem:[%s290 + $0x18] sm:$0xff]
        %v380 = vld [vmem:[%s290 + $0x20] sm:$0xff]
        %v381 = vld [vmem:[%s290 + $0x28] sm:$0xff]
        %v382 = vld [vmem:[%s290 + $0x30] sm:$0xff]
        %v383 = vld [vmem:[%s290 + $0x38] sm:$0xff]
        %v384 = vld [vmem:[%s290 + $0x40] sm:$0xff]
        %v385 = vld [vmem:[%s290 + $0x48] sm:$0xff]
        %v386 = vld [vmem:[%s290 + $0x50] sm:$0xff]
        %v387 = vld [vmem:[%s290 + $0x58] sm:$0xff]
        %v388 = vld [vmem:[%s290 + $0x60] sm:$0xff]
        %v389 = vld [vmem:[%s290 + $0x68] sm:$0xff]
        %v390 = vld [vmem:[%s290 + $0x70] sm:$0xff]
        %v391 = vld [vmem:[%s290 + $0x78] sm:$0xff]
        %v392 = vld [vmem:[%s290 + $0x80] sm:$0xff]
        %v393 = vld [vmem:[%s290 + $0x88] sm:$0xff]
        %v394 = vld [vmem:[%s290 + $0x90] sm:$0xff]
        %v395 = vld [vmem:[%s290 + $0x98] sm:$0xff]
        %v396 = vld [vmem:[%s290 + $0xa0] sm:$0xff]
        %v397 = vld [vmem:[%s290 + $0xa8] sm:$0xff]
        %v398 = vld [vmem:[%s290 + $0xb0] sm:$0xff]
        %v399 = vld [vmem:[%s290 + $0xb8] sm:$0xff]
        %v400 = vld [vmem:[%s290 + $0xc0] sm:$0xff]
        %v401 = vld [vmem:[%s290 + $0xc8] sm:$0xff]
        %v402 = vld [vmem:[%s290 + $0xd0] sm:$0xff]
        %v403 = vld [vmem:[%s290 + $0xd8] sm:$0xff]
        %v404 = vld [vmem:[%s290 + $0xe0] sm:$0xff]
        %v405 = vld [vmem:[%s290 + $0xe8] sm:$0xff]
        %v406 = vld [vmem:[%s290 + $0xf0] sm:$0xff]
        %v407 = vld [vmem:[%s290 + $0xf8] sm:$0xff]
        %v408 = vld [vmem:[%s290 + $0x100] sm:$0xff]
        %v409 = vld [vmem:[%s290 + $0x108] sm:$0xff]
        %v410 = vld [vmem:[%s290 + $0x110] sm:$0xff]
        %v411 = vld [vmem:[%s290 + $0x118] sm:$0xff]
        %v412 = vld [vmem:[%s290 + $0x120] sm:$0xff]
        %v413 = vld [vmem:[%s290 + $0x128] sm:$0xff]
        %v414 = vld [vmem:[%s290 + $0x130] sm:$0xff]
        %v415 = vld [vmem:[%s290 + $0x138] sm:$0xff]
        %v416 = vld [vmem:[%s290 + $0x140] sm:$0xff]
        %v417 = vld [vmem:[%s290 + $0x148] sm:$0xff]
        %v418 = vld [vmem:[%s290 + $0x150] sm:$0xff]
        %v419 = vld [vmem:[%s290 + $0x158] sm:$0xff]
        %v420 = vld [vmem:[%s290 + $0x160] sm:$0xff]
        %v421 = vld [vmem:[%s290 + $0x168] sm:$0xff]
        %v422 = vld [vmem:[%s290 + $0x170] sm:$0xff]
        %v423 = vld [vmem:[%s290 + $0x178] sm:$0xff]
        %v424 = vld [vmem:[%s290 + $0x180] sm:$0xff]
        %v425 = vld [vmem:[%s290 + $0x188] sm:$0xff]
        %v426 = vld [vmem:[%s290 + $0x190] sm:$0xff]
        %v427 = vld [vmem:[%s290 + $0x198] sm:$0xff]
        %v428 = vld [vmem:[%s290 + $0x1a0] sm:$0xff]
        %v429 = vld [vmem:[%s290 + $0x1a8] sm:$0xff]
        %v430 = vld [vmem:[%s290 + $0x1b0] sm:$0xff]
        %v431 = vld [vmem:[%s290 + $0x1b8] sm:$0xff]
        %v432 = vld [vmem:[%s290 + $0x1c0] sm:$0xff]
        %v433 = vld [vmem:[%s290 + $0x1c8] sm:$0xff]
        %v434 = vld [vmem:[%s290 + $0x1d0] sm:$0xff]
        %v435 = vld [vmem:[%s290 + $0x1d8] sm:$0xff]
        %v436 = vld [vmem:[%s290 + $0x1e0] sm:$0xff]
        %v437 = vld [vmem:[%s290 + $0x1e8] sm:$0xff]
        %v438 = vld [vmem:[%s290 + $0x1f0] sm:$0xff]
        %v439 = vld [vmem:[%s290 + $0x1f8] sm:$0xff]
        %v440 = vld [vmem:[%s290 + $0x200] sm:$0xff]
        %v441 = vld [vmem:[%s290 + $0x208] sm:$0xff]
        %v442 = vld [vmem:[%s290 + $0x210] sm:$0xff]
        %v443 = vld [vmem:[%s290 + $0x218] sm:$0xff]
        %v444 = vld [vmem:[%s290 + $0x220] sm:$0xff]
        %v445 = vld [vmem:[%s290 + $0x228] sm:$0xff]
        %v446 = vld [vmem:[%s290 + $0x230] sm:$0xff]
        %v447 = vld [vmem:[%s290 + $0x238] sm:$0xff]
        %v448 = vld [vmem:[%s290 + $0x240] sm:$0xff]
        %v449 = vld [vmem:[%s290 + $0x248] sm:$0xff]
        %v450 = vld [vmem:[%s290 + $0x250] sm:$0xff]
        %v451 = vld [vmem:[%s290 + $0x258] sm:$0xff]
        %v452 = vld [vmem:[%s290 + $0x260] sm:$0xff]
        %v453 = vld [vmem:[%s290 + $0x268] sm:$0xff]
        %v454 = vld [vmem:[%s290 + $0x270] sm:$0xff]
        %v455 = vld [vmem:[%s290 + $0x278] sm:$0xff]
        %v456 = vld [vmem:[%s290 + $0x280] sm:$0xff]
        %v457 = vld [vmem:[%s290 + $0x288] sm:$0xff]
        %v458 = vld [vmem:[%s290 + $0x290] sm:$0xff]
        %v459 = vld [vmem:[%s290 + $0x298] sm:$0xff]
        %v460 = vld [vmem:[%s290 + $0x2a0] sm:$0xff]
        %v461 = vld [vmem:[%s290 + $0x2a8] sm:$0xff]
        %v462 = vld [vmem:[%s290 + $0x2b0] sm:$0xff]
        %v463 = vld [vmem:[%s290 + $0x2b8] sm:$0xff]
        %v464 = vld [vmem:[%s290 + $0x2c0] sm:$0xff]
        %v465 = vld [vmem:[%s290 + $0x2c8] sm:$0xff]
        %v466 = vld [vmem:[%s290 + $0x2d0] sm:$0xff]
        %v467 = vld [vmem:[%s290 + $0x2d8] sm:$0xff]
        %v468 = vld [vmem:[%s290 + $0x2e0] sm:$0xff]
        %v469 = vld [vmem:[%s290 + $0x2e8] sm:$0xff]
        %v470 = vld [vmem:[%s290 + $0x2f0] sm:$0xff]
        %v471 = vld [vmem:[%s290 + $0x2f8] sm:$0xff]
        %v472 = vld [vmem:[%s290 + $0x300] sm:$0xff]
        %v473 = vld [vmem:[%s290 + $0x308] sm:$0xff]
        %v474 = vld [vmem:[%s290 + $0x310] sm:$0xff]
        %v475 = vld [vmem:[%s290 + $0x318] sm:$0xff]
        %v476 = vld [vmem:[%s290 + $0x320] sm:$0xff]
        %v477 = vld [vmem:[%s290 + $0x328] sm:$0xff]
        %v478 = vld [vmem:[%s290 + $0x330] sm:$0xff]
        %v479 = vld [vmem:[%s290 + $0x338] sm:$0xff]
        %v480 = vld [vmem:[%s290 + $0x340] sm:$0xff]
        %v481 = vld [vmem:[%s290 + $0x348] sm:$0xff]
        %v482 = vld [vmem:[%s290 + $0x350] sm:$0xff]
        %v483 = vld [vmem:[%s290 + $0x358] sm:$0xff]
        %v484 = vld [vmem:[%s290 + $0x360] sm:$0xff]
        %v485 = vld [vmem:[%s290 + $0x368] sm:$0xff]
        %v486 = vld [vmem:[%s290 + $0x370] sm:$0xff]
        %v487 = vld [vmem:[%s290 + $0x378] sm:$0xff]
        %v488 = vld [vmem:[%s290 + $0x380] sm:$0xff]
        %v489 = vld [vmem:[%s290 + $0x388] sm:$0xff]
        %v490 = vld [vmem:[%s290 + $0x390] sm:$0xff]
        %v491 = vld [vmem:[%s290 + $0x398] sm:$0xff]
        %v492 = vld [vmem:[%s290 + $0x3a0] sm:$0xff]
        %v493 = vld [vmem:[%s290 + $0x3a8] sm:$0xff]
        %v494 = vld [vmem:[%s290 + $0x3b0] sm:$0xff]
        %v495 = vld [vmem:[%s290 + $0x3b8] sm:$0xff]
        %v496 = vld [vmem:[%s290 + $0x3c0] sm:$0xff]
        %v497 = vld [vmem:[%s290 + $0x3c8] sm:$0xff]
        %v498 = vld [vmem:[%s290 + $0x3d0] sm:$0xff]
        %v499 = vld [vmem:[%s290 + $0x3d8] sm:$0xff]
        %v500 = vld [vmem:[%s290 + $0x3e0] sm:$0xff]
        %v501 = vld [vmem:[%s290 + $0x3e8] sm:$0xff]
        %v502 = vld [vmem:[%s290 + $0x3f0] sm:$0xff]
        %v503 = vld [vmem:[%s290 + $0x3f8] sm:$0xff]
        %v504 = vld [vmem:[%s290 + $0x400] sm:$0xff]
        %v505 = vld [vmem:[%s290 + $0x408] sm:$0xff]
        %v506 = vld [vmem:[%s290 + $0x410] sm:$0xff]
        %v507 = vld [vmem:[%s290 + $0x418] sm:$0xff]
        %v508 = vld [vmem:[%s290 + $0x420] sm:$0xff]
        %v509 = vld [vmem:[%s290 + $0x428] sm:$0xff]
        %v510 = vld [vmem:[%s290 + $0x430] sm:$0xff]
        %v511 = vld [vmem:[%s290 + $0x438] sm:$0xff]
        %v512 = vld [vmem:[%s290 + $0x440] sm:$0xff]
        %v513 = vld [vmem:[%s290 + $0x448] sm:$0xff]
        %v514 = vld [vmem:[%s290 + $0x450] sm:$0xff]
        %v515 = vld [vmem:[%s290 + $0x458] sm:$0xff]
        %v516 = vld [vmem:[%s290 + $0x460] sm:$0xff]
        %v517 = vld [vmem:[%s290 + $0x468] sm:$0xff]
        %v518 = vld [vmem:[%s290 + $0x470] sm:$0xff]
        %v519 = vld [vmem:[%s290 + $0x478] sm:$0xff]
        %v520 = vld [vmem:[%s290 + $0x480] sm:$0xff]
        %v521 = vld [vmem:[%s290 + $0x488] sm:$0xff]
        %v522 = vld [vmem:[%s290 + $0x490] sm:$0xff]
        %v523 = vld [vmem:[%s290 + $0x498] sm:$0xff]
        %v524 = vld [vmem:[%s290 + $0x4a0] sm:$0xff]
        %v525 = vld [vmem:[%s290 + $0x4a8] sm:$0xff]
        %v526 = vld [vmem:[%s290 + $0x4b0] sm:$0xff]
        %v527 = vld [vmem:[%s290 + $0x4b8] sm:$0xff]
        %v528 = vld [vmem:[%s290 + $0x4c0] sm:$0xff]
        %v529 = vld [vmem:[%s290 + $0x4c8] sm:$0xff]
        %v530 = vld [vmem:[%s290 + $0x4d0] sm:$0xff]
        %v531 = vld [vmem:[%s290 + $0x4d8] sm:$0xff]
        %v532 = vld [vmem:[%s290 + $0x4e0] sm:$0xff]
        %v533 = vld [vmem:[%s290 + $0x4e8] sm:$0xff]
        %v534 = vld [vmem:[%s290 + $0x4f0] sm:$0xff]
        %v535 = vld [vmem:[%s290 + $0x4f8] sm:$0xff]
        %v536 = vld [vmem:[%s290 + $0x500] sm:$0xff]
        %v537 = vld [vmem:[%s290 + $0x508] sm:$0xff]
        %v538 = vld [vmem:[%s290 + $0x510] sm:$0xff]
        %v539 = vld [vmem:[%s290 + $0x518] sm:$0xff]
        %v540 = vld [vmem:[%s290 + $0x520] sm:$0xff]
        %v541 = vld [vmem:[%s290 + $0x528] sm:$0xff]
        %v542 = vld [vmem:[%s290 + $0x530] sm:$0xff]
        %v543 = vld [vmem:[%s290 + $0x538] sm:$0xff]
        %v544 = vld [vmem:[%s290 + $0x540] sm:$0xff]
        %v545 = vld [vmem:[%s290 + $0x548] sm:$0xff]
        %v546 = vld [vmem:[%s290 + $0x550] sm:$0xff]
        %v547 = vld [vmem:[%s290 + $0x558] sm:$0xff]
        %v548 = vld [vmem:[%s290 + $0x560] sm:$0xff]
        %v549 = vld [vmem:[%s290 + $0x568] sm:$0xff]
        %v550 = vld [vmem:[%s290 + $0x570] sm:$0xff]
        %v551 = vld [vmem:[%s290 + $0x578] sm:$0xff]
        %v552 = vld [vmem:[%s290 + $0x580] sm:$0xff]
        %v553 = vld [vmem:[%s290 + $0x588] sm:$0xff]
        %v554 = vld [vmem:[%s290 + $0x590] sm:$0xff]
        %v555 = vld [vmem:[%s290 + $0x598] sm:$0xff]
        %v556 = vld [vmem:[%s290 + $0x5a0] sm:$0xff]
        %v557 = vld [vmem:[%s290 + $0x5a8] sm:$0xff]
        %v558 = vld [vmem:[%s290 + $0x5b0] sm:$0xff]
        %v559 = vld [vmem:[%s290 + $0x5b8] sm:$0xff]
        %v560 = vld [vmem:[%s290 + $0x5c0] sm:$0xff]
        %v561 = vld [vmem:[%s290 + $0x5c8] sm:$0xff]
        %v562 = vld [vmem:[%s290 + $0x5d0] sm:$0xff]
        %v563 = vld [vmem:[%s290 + $0x5d8] sm:$0xff]
        %v564 = vld [vmem:[%s290 + $0x5e0] sm:$0xff]
        %v565 = vld [vmem:[%s290 + $0x5e8] sm:$0xff]
        %v566 = vld [vmem:[%s290 + $0x5f0] sm:$0xff]
        %v567 = vld [vmem:[%s290 + $0x5f8] sm:$0xff]
        %v568 = vld [vmem:[%s290 + $0x600] sm:$0xff]
        %v569 = vld [vmem:[%s290 + $0x608] sm:$0xff]
        %v570 = vld [vmem:[%s290 + $0x610] sm:$0xff]
        %v571 = vld [vmem:[%s290 + $0x618] sm:$0xff]
        %v572 = vld [vmem:[%s290 + $0x620] sm:$0xff]
        %v573 = vld [vmem:[%s290 + $0x628] sm:$0xff]
        %v574 = vld [vmem:[%s290 + $0x630] sm:$0xff]
        %v575 = vld [vmem:[%s290 + $0x638] sm:$0xff]
        %v576 = vld [vmem:[%s290 + $0x640] sm:$0xff]
        %v577 = vld [vmem:[%s290 + $0x648] sm:$0xff]
        %v578 = vld [vmem:[%s290 + $0x650] sm:$0xff]
        %v579 = vld [vmem:[%s290 + $0x658] sm:$0xff]
        %v580 = vld [vmem:[%s290 + $0x660] sm:$0xff]
        %v581 = vld [vmem:[%s290 + $0x668] sm:$0xff]
        %v582 = vld [vmem:[%s290 + $0x670] sm:$0xff]
        %v583 = vld [vmem:[%s290 + $0x678] sm:$0xff]
        %v584 = vld [vmem:[%s290 + $0x680] sm:$0xff]
        %v585 = vld [vmem:[%s290 + $0x688] sm:$0xff]
        %v586 = vld [vmem:[%s290 + $0x690] sm:$0xff]
        %v587 = vld [vmem:[%s290 + $0x698] sm:$0xff]
        %v588 = vld [vmem:[%s290 + $0x6a0] sm:$0xff]
        %v589 = vld [vmem:[%s290 + $0x6a8] sm:$0xff]
        %v590 = vld [vmem:[%s290 + $0x6b0] sm:$0xff]
        %v591 = vld [vmem:[%s290 + $0x6b8] sm:$0xff]
        %v592 = vld [vmem:[%s290 + $0x6c0] sm:$0xff]
        %v593 = vld [vmem:[%s290 + $0x6c8] sm:$0xff]
        %v594 = vld [vmem:[%s290 + $0x6d0] sm:$0xff]
        %v595 = vld [vmem:[%s290 + $0x6d8] sm:$0xff]
        %v596 = vld [vmem:[%s290 + $0x6e0] sm:$0xff]
        %v597 = vld [vmem:[%s290 + $0x6e8] sm:$0xff]
        %v598 = vld [vmem:[%s290 + $0x6f0] sm:$0xff]
        %v599 = vld [vmem:[%s290 + $0x6f8] sm:$0xff]
        %v600 = vld [vmem:[%s290 + $0x700] sm:$0xff]
        %v601 = vld [vmem:[%s290 + $0x708] sm:$0xff]
        %v602 = vld [vmem:[%s290 + $0x710] sm:$0xff]
        %v603 = vld [vmem:[%s290 + $0x718] sm:$0xff]
        %v604 = vld [vmem:[%s290 + $0x720] sm:$0xff]
        %v605 = vld [vmem:[%s290 + $0x728] sm:$0xff]
        %v606 = vld [vmem:[%s290 + $0x730] sm:$0xff]
        %v607 = vld [vmem:[%s290 + $0x738] sm:$0xff]
        %v608 = vld [vmem:[%s290 + $0x740] sm:$0xff]
        %v609 = vld [vmem:[%s290 + $0x748] sm:$0xff]
        %v610 = vld [vmem:[%s290 + $0x750] sm:$0xff]
        %v611 = vld [vmem:[%s290 + $0x758] sm:$0xff]
        %v612 = vld [vmem:[%s290 + $0x760] sm:$0xff]
        %v613 = vld [vmem:[%s290 + $0x768] sm:$0xff]
        %v614 = vld [vmem:[%s290 + $0x770] sm:$0xff]
        %v615 = vld [vmem:[%s290 + $0x778] sm:$0xff]
        %v616 = vld [vmem:[%s290 + $0x780] sm:$0xff]
        %v617 = vld [vmem:[%s290 + $0x788] sm:$0xff]
        %v618 = vld [vmem:[%s290 + $0x790] sm:$0xff]
        %v619 = vld [vmem:[%s290 + $0x798] sm:$0xff]
        %v620 = vld [vmem:[%s290 + $0x7a0] sm:$0xff]
        %v621 = vld [vmem:[%s290 + $0x7a8] sm:$0xff]
        %v622 = vld [vmem:[%s290 + $0x7b0] sm:$0xff]
        %v623 = vld [vmem:[%s290 + $0x7b8] sm:$0xff]
        %v624 = vld [vmem:[%s290 + $0x7c0] sm:$0xff]
        %v625 = vld [vmem:[%s290 + $0x7c8] sm:$0xff]
        %v626 = vld [vmem:[%s290 + $0x7d0] sm:$0xff]
        %v627 = vld [vmem:[%s290 + $0x7d8] sm:$0xff]
        %v628 = vld [vmem:[%s290 + $0x7e0] sm:$0xff]
        %v629 = vld [vmem:[%s290 + $0x7e8] sm:$0xff]
        %v630 = vld [vmem:[%s290 + $0x7f0] sm:$0xff]
        %v631 = vld [vmem:[%s290 + $0x7f8] sm:$0xff]
        %v632 = vld [vmem:[%s290 + $0x800] sm:$0xff]
        %v633 = vld [vmem:[%s290 + $0x808] sm:$0xff]
        %v634 = vld [vmem:[%s290 + $0x810] sm:$0xff]
        %v635 = vld [vmem:[%s290 + $0x818] sm:$0xff]
        %v636 = vld [vmem:[%s290 + $0x820] sm:$0xff]
        %v637 = vld [vmem:[%s290 + $0x828] sm:$0xff]
        %v638 = vld [vmem:[%s290 + $0x830] sm:$0xff]
        %v639 = vld [vmem:[%s290 + $0x838] sm:$0xff]
        %v640 = vld [vmem:[%s290 + $0x840] sm:$0xff]
        %v641 = vld [vmem:[%s290 + $0x848] sm:$0xff]
        %v642 = vld [vmem:[%s290 + $0x850] sm:$0xff]
        %v643 = vld [vmem:[%s290 + $0x858] sm:$0xff]
        %v644 = vld [vmem:[%s290 + $0x860] sm:$0xff]
        %v645 = vld [vmem:[%s290 + $0x868] sm:$0xff]
        %v646 = vld [vmem:[%s290 + $0x870] sm:$0xff]
        %v647 = vld [vmem:[%s290 + $0x878] sm:$0xff]
        %v648 = vld [vmem:[%s290 + $0x880] sm:$0xff]
        %v649 = vld [vmem:[%s290 + $0x888] sm:$0xff]
        %v650 = vld [vmem:[%s290 + $0x890] sm:$0xff]
        %v651 = vld [vmem:[%s290 + $0x898] sm:$0xff]
        %v652 = vld [vmem:[%s290 + $0x8a0] sm:$0xff]
        %v653 = vld [vmem:[%s290 + $0x8a8] sm:$0xff]
        %v654 = vld [vmem:[%s290 + $0x8b0] sm:$0xff]
        %v655 = vld [vmem:[%s290 + $0x8b8] sm:$0xff]
        %v656 = vld [vmem:[%s290 + $0x8c0] sm:$0xff]
        %v657 = vld [vmem:[%s290 + $0x8c8] sm:$0xff]
        %v658 = vld [vmem:[%s290 + $0x8d0] sm:$0xff]
        %v659 = vld [vmem:[%s290 + $0x8d8] sm:$0xff]
        %v660 = vld [vmem:[%s290 + $0x8e0] sm:$0xff]
        %v661 = vld [vmem:[%s290 + $0x8e8] sm:$0xff]
        %v662 = vld [vmem:[%s290 + $0x8f0] sm:$0xff]
        %v663 = vld [vmem:[%s290 + $0x8f8] sm:$0xff]
        %v664 = vld [vmem:[%s290 + $0x900] sm:$0xff]
        %v665 = vld [vmem:[%s290 + $0x908] sm:$0xff]
        %v666 = vld [vmem:[%s290 + $0x910] sm:$0xff]
        %v667 = vld [vmem:[%s290 + $0x918] sm:$0xff]
        %v668 = vld [vmem:[%s290 + $0x920] sm:$0xff]
        %v669 = vld [vmem:[%s290 + $0x928] sm:$0xff]
        %v670 = vld [vmem:[%s290 + $0x930] sm:$0xff]
        %v671 = vld [vmem:[%s290 + $0x938] sm:$0xff]
        %v672 = vld [vmem:[%s290 + $0x940] sm:$0xff]
        %v673 = vld [vmem:[%s290 + $0x948] sm:$0xff]
        %v674 = vld [vmem:[%s290 + $0x950] sm:$0xff]
        %v675 = vld [vmem:[%s290 + $0x958] sm:$0xff]
        %v676 = vld [vmem:[%s290 + $0x960] sm:$0xff]
        %v677 = vld [vmem:[%s290 + $0x968] sm:$0xff]
        %v678 = vld [vmem:[%s290 + $0x970] sm:$0xff]
        %v679 = vld [vmem:[%s290 + $0x978] sm:$0xff]
        %v680 = vld [vmem:[%s290 + $0x980] sm:$0xff]
        %v681 = vld [vmem:[%s290 + $0x988] sm:$0xff]
        %v682 = vld [vmem:[%s290 + $0x990] sm:$0xff]
        %v683 = vld [vmem:[%s290 + $0x998] sm:$0xff]
        %v684 = vld [vmem:[%s290 + $0x9a0] sm:$0xff]
        %v685 = vld [vmem:[%s290 + $0x9a8] sm:$0xff]
        %v686 = vld [vmem:[%s290 + $0x9b0] sm:$0xff]
        %v687 = vld [vmem:[%s290 + $0x9b8] sm:$0xff]
        %v688 = vld [vmem:[%s290 + $0x9c0] sm:$0xff]
        %v689 = vld [vmem:[%s290 + $0x9c8] sm:$0xff]
        %v690 = vld [vmem:[%s290 + $0x9d0] sm:$0xff]
        %v691 = vld [vmem:[%s290 + $0x9d8] sm:$0xff]
        %v692 = vld [vmem:[%s290 + $0x9e0] sm:$0xff]
        %v693 = vld [vmem:[%s290 + $0x9e8] sm:$0xff]
        %v694 = vld [vmem:[%s290 + $0x9f0] sm:$0xff]
        %v695 = vld [vmem:[%s290 + $0x9f8] sm:$0xff]
        %v696 = vld [vmem:[%s290 + $0xa00] sm:$0xff]
        %v697 = vld [vmem:[%s290 + $0xa08] sm:$0xff]
        %v698 = vld [vmem:[%s290 + $0xa10] sm:$0xff]
        %v699 = vld [vmem:[%s290 + $0xa18] sm:$0xff]
        %v700 = vld [vmem:[%s290 + $0xa20] sm:$0xff]
        %v701 = vld [vmem:[%s290 + $0xa28] sm:$0xff]
        %v702 = vld [vmem:[%s290 + $0xa30] sm:$0xff]
        %v703 = vld [vmem:[%s290 + $0xa38] sm:$0xff]
        %v704 = vld [vmem:[%s290 + $0xa40] sm:$0xff]
        %v705 = vld [vmem:[%s290 + $0xa48] sm:$0xff]
        %v706 = vld [vmem:[%s290 + $0xa50] sm:$0xff]
        %v707 = vld [vmem:[%s290 + $0xa58] sm:$0xff]
        %v708 = vld [vmem:[%s290 + $0xa60] sm:$0xff]
        %v709 = vld [vmem:[%s290 + $0xa68] sm:$0xff]
        %v710 = vld [vmem:[%s290 + $0xa70] sm:$0xff]
        %v711 = vld [vmem:[%s290 + $0xa78] sm:$0xff]
        %v712 = vld [vmem:[%s290 + $0xa80] sm:$0xff]
        %v713 = vld [vmem:[%s290 + $0xa88] sm:$0xff]
        %v714 = vld [vmem:[%s290 + $0xa90] sm:$0xff]
        %v715 = vld [vmem:[%s290 + $0xa98] sm:$0xff]
        %v716 = vld [vmem:[%s290 + $0xaa0] sm:$0xff]
        %v717 = vld [vmem:[%s290 + $0xaa8] sm:$0xff]
        %v718 = vld [vmem:[%s290 + $0xab0] sm:$0xff]
        %v719 = vld [vmem:[%s290 + $0xab8] sm:$0xff]
        %v720 = vld [vmem:[%s290 + $0xac0] sm:$0xff]
        %v721 = vld [vmem:[%s290 + $0xac8] sm:$0xff]
        %v722 = vld [vmem:[%s290 + $0xad0] sm:$0xff]
        %v723 = vld [vmem:[%s290 + $0xad8] sm:$0xff]
        %v724 = vld [vmem:[%s290 + $0xae0] sm:$0xff]
        %v725 = vld [vmem:[%s290 + $0xae8] sm:$0xff]
        %v726 = vld [vmem:[%s290 + $0xaf0] sm:$0xff]
        %v727 = vld [vmem:[%s290 + $0xaf8] sm:$0xff]
        %v728 = vld [vmem:[%s290 + $0xb00] sm:$0xff]
        %v729 = vld [vmem:[%s290 + $0xb08] sm:$0xff]
        %v730 = vld [vmem:[%s290 + $0xb10] sm:$0xff]
        %v731 = vld [vmem:[%s290 + $0xb18] sm:$0xff]
        %v732 = vld [vmem:[%s290 + $0xb20] sm:$0xff]
        %v733 = vld [vmem:[%s290 + $0xb28] sm:$0xff]
        %v734 = vld [vmem:[%s290 + $0xb30] sm:$0xff]
        %v735 = vld [vmem:[%s290 + $0xb38] sm:$0xff]
        %v736 = vld [vmem:[%s290 + $0xb40] sm:$0xff]
        %v737 = vld [vmem:[%s290 + $0xb48] sm:$0xff]
        %v738 = vld [vmem:[%s290 + $0xb50] sm:$0xff]
        %v739 = vld [vmem:[%s290 + $0xb58] sm:$0xff]
        %v740 = vld [vmem:[%s290 + $0xb60] sm:$0xff]
        %v741 = vld [vmem:[%s290 + $0xb68] sm:$0xff]
        %v742 = vld [vmem:[%s290 + $0xb70] sm:$0xff]
        %v743 = vld [vmem:[%s290 + $0xb78] sm:$0xff]
        %v744 = vld [vmem:[%s290 + $0xb80] sm:$0xff]
        %v745 = vld [vmem:[%s290 + $0xb88] sm:$0xff]
        %v746 = vld [vmem:[%s290 + $0xb90] sm:$0xff]
        %v747 = vld [vmem:[%s290 + $0xb98] sm:$0xff]
        %v748 = vld [vmem:[%s290 + $0xba0] sm:$0xff]
        %v749 = vld [vmem:[%s290 + $0xba8] sm:$0xff]
        %v750 = vld [vmem:[%s290 + $0xbb0] sm:$0xff]
        %v751 = vld [vmem:[%s290 + $0xbb8] sm:$0xff]
        %v752 = vld [vmem:[%s290 + $0xbc0] sm:$0xff]
        %v753 = vld [vmem:[%s290 + $0xbc8] sm:$0xff]
        %v754 = vld [vmem:[%s290 + $0xbd0] sm:$0xff]
        %v755 = vld [vmem:[%s290 + $0xbd8] sm:$0xff]
        %v756 = vld [vmem:[%s290 + $0xbe0] sm:$0xff]
        %v757 = vld [vmem:[%s290 + $0xbe8] sm:$0xff]
        %v758 = vld [vmem:[%s290 + $0xbf0] sm:$0xff]
        %v759 = vld [vmem:[%s290 + $0xbf8] sm:$0xff]
        %v760 = vld [vmem:[%s290 + $0xc00] sm:$0xff]
        %v761 = vld [vmem:[%s290 + $0xc08] sm:$0xff]
        %v762 = vld [vmem:[%s290 + $0xc10] sm:$0xff]
        %v763 = vld [vmem:[%s290 + $0xc18] sm:$0xff]
        %v764 = vld [vmem:[%s290 + $0xc20] sm:$0xff]
        %v765 = vld [vmem:[%s290 + $0xc28] sm:$0xff]
        %v766 = vld [vmem:[%s290 + $0xc30] sm:$0xff]
        %v767 = vld [vmem:[%s290 + $0xc38] sm:$0xff]
        %v768 = vld [vmem:[%s290 + $0xc40] sm:$0xff]
        %v769 = vld [vmem:[%s290 + $0xc48] sm:$0xff]
        %v770 = vld [vmem:[%s290 + $0xc50] sm:$0xff]
        %v771 = vld [vmem:[%s290 + $0xc58] sm:$0xff]
        %v772 = vld [vmem:[%s290 + $0xc60] sm:$0xff]
        %v773 = vld [vmem:[%s290 + $0xc68] sm:$0xff]
        %v774 = vld [vmem:[%s290 + $0xc70] sm:$0xff]
        %v775 = vld [vmem:[%s290 + $0xc78] sm:$0xff]
        %v776 = vld [vmem:[%s290 + $0xc80] sm:$0xff]
        %v777 = vld [vmem:[%s290 + $0xc88] sm:$0xff]
        %v778 = vld [vmem:[%s290 + $0xc90] sm:$0xff]
        %v779 = vld [vmem:[%s290 + $0xc98] sm:$0xff]
        %v780 = vld [vmem:[%s290 + $0xca0] sm:$0xff]
        %v781 = vld [vmem:[%s290 + $0xca8] sm:$0xff]
        %v782 = vld [vmem:[%s290 + $0xcb0] sm:$0xff]
        %v783 = vld [vmem:[%s290 + $0xcb8] sm:$0xff]
        %v784 = vld [vmem:[%s290 + $0xcc0] sm:$0xff]
        %v785 = vld [vmem:[%s290 + $0xcc8] sm:$0xff]
        %v786 = vld [vmem:[%s290 + $0xcd0] sm:$0xff]
        %v787 = vld [vmem:[%s290 + $0xcd8] sm:$0xff]
        %v788 = vld [vmem:[%s290 + $0xce0] sm:$0xff]
        %v789 = vld [vmem:[%s290 + $0xce8] sm:$0xff]
        %v790 = vld [vmem:[%s290 + $0xcf0] sm:$0xff]
        %v791 = vld [vmem:[%s290 + $0xcf8] sm:$0xff]
        %v792 = vld [vmem:[%s290 + $0xd00] sm:$0xff]
        %v793 = vld [vmem:[%s290 + $0xd08] sm:$0xff]
        %v794 = vld [vmem:[%s290 + $0xd10] sm:$0xff]
        %v795 = vld [vmem:[%s290 + $0xd18] sm:$0xff]
        %v796 = vld [vmem:[%s290 + $0xd20] sm:$0xff]
        %v797 = vld [vmem:[%s290 + $0xd28] sm:$0xff]
        %v798 = vld [vmem:[%s290 + $0xd30] sm:$0xff]
        %v799 = vld [vmem:[%s290 + $0xd38] sm:$0xff]
        %v800 = vld [vmem:[%s290 + $0xd40] sm:$0xff]
        %v801 = vld [vmem:[%s290 + $0xd48] sm:$0xff]
        %v802 = vld [vmem:[%s290 + $0xd50] sm:$0xff]
        %v803 = vld [vmem:[%s290 + $0xd58] sm:$0xff]
        %v804 = vld [vmem:[%s290 + $0xd60] sm:$0xff]
        %v805 = vld [vmem:[%s290 + $0xd68] sm:$0xff]
        %v806 = vld [vmem:[%s290 + $0xd70] sm:$0xff]
        %v807 = vld [vmem:[%s290 + $0xd78] sm:$0xff]
        %v808 = vld [vmem:[%s290 + $0xd80] sm:$0xff]
        %v809 = vld [vmem:[%s290 + $0xd88] sm:$0xff]
        %v810 = vld [vmem:[%s290 + $0xd90] sm:$0xff]
        %v811 = vld [vmem:[%s290 + $0xd98] sm:$0xff]
        %v812 = vld [vmem:[%s290 + $0xda0] sm:$0xff]
        %v813 = vld [vmem:[%s290 + $0xda8] sm:$0xff]
        %v814 = vld [vmem:[%s290 + $0xdb0] sm:$0xff]
        %v815 = vld [vmem:[%s290 + $0xdb8] sm:$0xff]
        %v816 = vld [vmem:[%s290 + $0xdc0] sm:$0xff]
        %v817 = vld [vmem:[%s290 + $0xdc8] sm:$0xff]
        %v818 = vld [vmem:[%s290 + $0xdd0] sm:$0xff]
        %v819 = vld [vmem:[%s290 + $0xdd8] sm:$0xff]
        %v820 = vld [vmem:[%s290 + $0xde0] sm:$0xff]
        %v821 = vld [vmem:[%s290 + $0xde8] sm:$0xff]
        %v822 = vld [vmem:[%s290 + $0xdf0] sm:$0xff]
        %v823 = vld [vmem:[%s290 + $0xdf8] sm:$0xff]
        %v824 = vld [vmem:[%s290 + $0xe00] sm:$0xff]
        %v825 = vld [vmem:[%s290 + $0xe08] sm:$0xff]
        %v826 = vld [vmem:[%s290 + $0xe10] sm:$0xff]
        %v827 = vld [vmem:[%s290 + $0xe18] sm:$0xff]
        %v828 = vld [vmem:[%s290 + $0xe20] sm:$0xff]
        %v829 = vld [vmem:[%s290 + $0xe28] sm:$0xff]
        %v830 = vld [vmem:[%s290 + $0xe30] sm:$0xff]
        %v831 = vld [vmem:[%s290 + $0xe38] sm:$0xff]
        %v832 = vld [vmem:[%s290 + $0xe40] sm:$0xff]
        %v833 = vld [vmem:[%s290 + $0xe48] sm:$0xff]
        %v834 = vld [vmem:[%s290 + $0xe50] sm:$0xff]
        %v835 = vld [vmem:[%s290 + $0xe58] sm:$0xff]
        %v836 = vld [vmem:[%s290 + $0xe60] sm:$0xff]
        %v837 = vld [vmem:[%s290 + $0xe68] sm:$0xff]
        %v838 = vld [vmem:[%s290 + $0xe70] sm:$0xff]
        %v839 = vld [vmem:[%s290 + $0xe78] sm:$0xff]
        %v840 = vld [vmem:[%s290 + $0xe80] sm:$0xff]
        %v841 = vld [vmem:[%s290 + $0xe88] sm:$0xff]
        %v842 = vld [vmem:[%s290 + $0xe90] sm:$0xff]
        %v843 = vld [vmem:[%s290 + $0xe98] sm:$0xff]
        %v844 = vld [vmem:[%s290 + $0xea0] sm:$0xff]
        %v845 = vld [vmem:[%s290 + $0xea8] sm:$0xff]
        %v846 = vld [vmem:[%s290 + $0xeb0] sm:$0xff]
        %v847 = vld [vmem:[%s290 + $0xeb8] sm:$0xff]
        %v848 = vld [vmem:[%s290 + $0xec0] sm:$0xff]
        %v849 = vld [vmem:[%s290 + $0xec8] sm:$0xff]
        %v850 = vld [vmem:[%s290 + $0xed0] sm:$0xff]
        %v851 = vld [vmem:[%s290 + $0xed8] sm:$0xff]
        %v852 = vld [vmem:[%s290 + $0xee0] sm:$0xff]
        %v853 = vld [vmem:[%s290 + $0xee8] sm:$0xff]
        %v854 = vld [vmem:[%s290 + $0xef0] sm:$0xff]
        %v855 = vld [vmem:[%s290 + $0xef8] sm:$0xff]
        %v856 = vld [vmem:[%s290 + $0xf00] sm:$0xff]
        %v857 = vld [vmem:[%s290 + $0xf08] sm:$0xff]
        %v858 = vld [vmem:[%s290 + $0xf10] sm:$0xff]
        %v859 = vld [vmem:[%s290 + $0xf18] sm:$0xff]
        %v860 = vld [vmem:[%s290 + $0xf20] sm:$0xff]
        %v861 = vld [vmem:[%s290 + $0xf28] sm:$0xff]
        %v862 = vld [vmem:[%s290 + $0xf30] sm:$0xff]
        %v863 = vld [vmem:[%s290 + $0xf38] sm:$0xff]
        %v864 = vld [vmem:[%s290 + $0xf40] sm:$0xff]
        %v865 = vld [vmem:[%s290 + $0xf48] sm:$0xff]
        %v866 = vld [vmem:[%s290 + $0xf50] sm:$0xff]
        %v867 = vld [vmem:[%s290 + $0xf58] sm:$0xff]
        %v868 = vld [vmem:[%s290 + $0xf60] sm:$0xff]
        %v869 = vld [vmem:[%s290 + $0xf68] sm:$0xff]
        %v870 = vld [vmem:[%s290 + $0xf70] sm:$0xff]
        %v871 = vld [vmem:[%s290 + $0xf78] sm:$0xff]
        %v872 = vld [vmem:[%s290 + $0xf80] sm:$0xff]
        %v873 = vld [vmem:[%s290 + $0xf88] sm:$0xff]
        %v874 = vld [vmem:[%s290 + $0xf90] sm:$0xff]
        %v875 = vld [vmem:[%s290 + $0xf98] sm:$0xff]
        %v876 = vld [vmem:[%s290 + $0xfa0] sm:$0xff]
        %v877 = vld [vmem:[%s290 + $0xfa8] sm:$0xff]
        %v878 = vld [vmem:[%s290 + $0xfb0] sm:$0xff]
        %v879 = vld [vmem:[%s290 + $0xfb8] sm:$0xff]
        %v880 = vld [vmem:[%s290 + $0xfc0] sm:$0xff]
        %v881 = vld [vmem:[%s290 + $0xfc8] sm:$0xff]
        %v882 = vld [vmem:[%s290 + $0xfd0] sm:$0xff]
        %v883 = vld [vmem:[%s290 + $0xfd8] sm:$0xff]
        %v884 = vld [vmem:[%s290 + $0xfe0] sm:$0xff]
        %v885 = vld [vmem:[%s290 + $0xfe8] sm:$0xff]
        %v886 = vld [vmem:[%s290 + $0xff0] sm:$0xff]
        %v887 = vld [vmem:[%s290 + $0xff8] sm:$0xff]
        %v888 = vld [vmem:[%s290 + $0x1000] sm:$0xff]
        %v889 = vld [vmem:[%s290 + $0x1008] sm:$0xff]
        %v890 = vld [vmem:[%s290 + $0x1010] sm:$0xff]
        %v891 = vld [vmem:[%s290 + $0x1018] sm:$0xff]
        %v892 = vld [vmem:[%s290 + $0x1020] sm:$0xff]
        %v893 = vld [vmem:[%s290 + $0x1028] sm:$0xff]
        %v894 = vld [vmem:[%s290 + $0x1030] sm:$0xff]
        %v895 = vld [vmem:[%s290 + $0x1038] sm:$0xff]
        %v896 = vld [vmem:[%s290 + $0x1040] sm:$0xff]
        %v897 = vld [vmem:[%s290 + $0x1048] sm:$0xff]
        %v898 = vld [vmem:[%s290 + $0x1050] sm:$0xff]
        %v899 = vld [vmem:[%s290 + $0x1058] sm:$0xff]
        %v900 = vld [vmem:[%s290 + $0x1060] sm:$0xff]
        %v901 = vld [vmem:[%s290 + $0x1068] sm:$0xff]
        %v902 = vld [vmem:[%s290 + $0x1070] sm:$0xff]
        %v903 = vld [vmem:[%s290 + $0x1078] sm:$0xff]
        %v904 = vld [vmem:[%s290 + $0x1080] sm:$0xff]
        %v905 = vld [vmem:[%s290 + $0x1088] sm:$0xff]
        %v906 = vld [vmem:[%s290 + $0x1090] sm:$0xff]
        %v907 = vld [vmem:[%s290 + $0x1098] sm:$0xff]
        %v908 = vld [vmem:[%s290 + $0x10a0] sm:$0xff]
        %v909 = vld [vmem:[%s290 + $0x10a8] sm:$0xff]
        %v910 = vld [vmem:[%s290 + $0x10b0] sm:$0xff]
        %v911 = vld [vmem:[%s290 + $0x10b8] sm:$0xff]
        %v912 = vld [vmem:[%s290 + $0x10c0] sm:$0xff]
        %v913 = vld [vmem:[%s290 + $0x10c8] sm:$0xff]
        %v914 = vld [vmem:[%s290 + $0x10d0] sm:$0xff]
        %v915 = vld [vmem:[%s290 + $0x10d8] sm:$0xff]
        %v916 = vld [vmem:[%s290 + $0x10e0] sm:$0xff]
        %v917 = vld [vmem:[%s290 + $0x10e8] sm:$0xff]
        %v918 = vld [vmem:[%s290 + $0x10f0] sm:$0xff]
        %v919 = vld [vmem:[%s290 + $0x10f8] sm:$0xff]
        %v920 = vld [vmem:[%s290 + $0x1100] sm:$0xff]
        %v921 = vld [vmem:[%s290 + $0x1108] sm:$0xff]
        %v922 = vld [vmem:[%s290 + $0x1110] sm:$0xff]
        %v923 = vld [vmem:[%s290 + $0x1118] sm:$0xff]
        %v924 = vld [vmem:[%s290 + $0x1120] sm:$0xff]
        %v925 = vld [vmem:[%s290 + $0x1128] sm:$0xff]
        %v926 = vld [vmem:[%s290 + $0x1130] sm:$0xff]
        %v927 = vld [vmem:[%s290 + $0x1138] sm:$0xff]
        %v928 = vld [vmem:[%s290 + $0x1140] sm:$0xff]
        %v929 = vld [vmem:[%s290 + $0x1148] sm:$0xff]
        %v930 = vld [vmem:[%s290 + $0x1150] sm:$0xff]
        %v931 = vld [vmem:[%s290 + $0x1158] sm:$0xff]
        %v932 = vld [vmem:[%s290 + $0x1160] sm:$0xff]
        %v933 = vld [vmem:[%s290 + $0x1168] sm:$0xff]
        %v934 = vld [vmem:[%s290 + $0x1170] sm:$0xff]
        %v935 = vld [vmem:[%s290 + $0x1178] sm:$0xff]
        %v936 = vld [vmem:[%s290 + $0x1180] sm:$0xff]
        %v937 = vld [vmem:[%s290 + $0x1188] sm:$0xff]
        %v938 = vld [vmem:[%s290 + $0x1190] sm:$0xff]
        %v939 = vld [vmem:[%s290 + $0x1198] sm:$0xff]
        %v940 = vld [vmem:[%s290 + $0x11a0] sm:$0xff]
        %v941 = vld [vmem:[%s290 + $0x11a8] sm:$0xff]
        %v942 = vld [vmem:[%s290 + $0x11b0] sm:$0xff]
        %v943 = vld [vmem:[%s290 + $0x11b8] sm:$0xff]
        %v944 = vld [vmem:[%s290 + $0x11c0] sm:$0xff]
        %v945 = vld [vmem:[%s290 + $0x11c8] sm:$0xff]
        %v946 = vld [vmem:[%s290 + $0x11d0] sm:$0xff]
        %v947 = vld [vmem:[%s290 + $0x11d8] sm:$0xff]
        %v948 = vld [vmem:[%s290 + $0x11e0] sm:$0xff]
        %v949 = vld [vmem:[%s290 + $0x11e8] sm:$0xff]
        %v950 = vld [vmem:[%s290 + $0x11f0] sm:$0xff]
        %v951 = vld [vmem:[%s290 + $0x11f8] sm:$0xff]
        %v952 = vld [vmem:[%s290 + $0x1200] sm:$0xff]
        %v953 = vld [vmem:[%s290 + $0x1208] sm:$0xff]
        %v954 = vld [vmem:[%s290 + $0x1210] sm:$0xff]
        %v955 = vld [vmem:[%s290 + $0x1218] sm:$0xff]
        %v956 = vld [vmem:[%s290 + $0x1220] sm:$0xff]
        %v957 = vld [vmem:[%s290 + $0x1228] sm:$0xff]
        %v958 = vld [vmem:[%s290 + $0x1230] sm:$0xff]
        %v959 = vld [vmem:[%s290 + $0x1238] sm:$0xff]
        %v960 = vld [vmem:[%s290 + $0x1240] sm:$0xff]
        %v961 = vld [vmem:[%s290 + $0x1248] sm:$0xff]
        %v962 = vld [vmem:[%s290 + $0x1250] sm:$0xff]
        %v963 = vld [vmem:[%s290 + $0x1258] sm:$0xff]
        %v964 = vld [vmem:[%s290 + $0x1260] sm:$0xff]
        %v965 = vld [vmem:[%s290 + $0x1268] sm:$0xff]
        %v966 = vld [vmem:[%s290 + $0x1270] sm:$0xff]
        %v967 = vld [vmem:[%s290 + $0x1278] sm:$0xff]
        %v968 = vld [vmem:[%s290 + $0x1280] sm:$0xff]
        %v969 = vld [vmem:[%s290 + $0x1288] sm:$0xff]
        %v970 = vld [vmem:[%s290 + $0x1290] sm:$0xff]
        %v971 = vld [vmem:[%s290 + $0x1298] sm:$0xff]
        %v972 = vld [vmem:[%s290 + $0x12a0] sm:$0xff]
        %v973 = vld [vmem:[%s290 + $0x12a8] sm:$0xff]
        %v974 = vld [vmem:[%s290 + $0x12b0] sm:$0xff]
        %v975 = vld [vmem:[%s290 + $0x12b8] sm:$0xff]
        %v976 = vld [vmem:[%s290 + $0x12c0] sm:$0xff]
        %v977 = vld [vmem:[%s290 + $0x12c8] sm:$0xff]
        %v978 = vld [vmem:[%s290 + $0x12d0] sm:$0xff]
        %v979 = vld [vmem:[%s290 + $0x12d8] sm:$0xff]
        %v980 = vld [vmem:[%s290 + $0x12e0] sm:$0xff]
        %v981 = vld [vmem:[%s290 + $0x12e8] sm:$0xff]
        %v982 = vld [vmem:[%s290 + $0x12f0] sm:$0xff]
        %v983 = vld [vmem:[%s290 + $0x12f8] sm:$0xff]
        %v984 = vld [vmem:[%s290 + $0x1300] sm:$0xff]
        %v985 = vld [vmem:[%s290 + $0x1308] sm:$0xff]
        %v986 = vld [vmem:[%s290 + $0x1310] sm:$0xff]
        %v987 = vld [vmem:[%s290 + $0x1318] sm:$0xff]
        %v988 = vld [vmem:[%s290 + $0x1320] sm:$0xff]
        %v989 = vld [vmem:[%s290 + $0x1328] sm:$0xff]
        %v990 = vld [vmem:[%s290 + $0x1330] sm:$0xff]
        %v991 = vld [vmem:[%s290 + $0x1338] sm:$0xff]
        %v992 = vld [vmem:[%s290 + $0x1340] sm:$0xff]
        %v993 = vld [vmem:[%s290 + $0x1348] sm:$0xff]
        %v994 = vld [vmem:[%s290 + $0x1350] sm:$0xff]
        %v995 = vld [vmem:[%s290 + $0x1358] sm:$0xff]
        %v996 = vld [vmem:[%s290 + $0x1360] sm:$0xff]
        %v997 = vld [vmem:[%s290 + $0x1368] sm:$0xff]
        %v998 = vld [vmem:[%s290 + $0x1370] sm:$0xff]
        %v999 = vld [vmem:[%s290 + $0x1378] sm:$0xff]
        %v1000 = vld [vmem:[%s290 + $0x1380] sm:$0xff]
        %v1001 = vld [vmem:[%s290 + $0x1388] sm:$0xff]
        %v1002 = vld [vmem:[%s290 + $0x1390] sm:$0xff]
        %v1003 = vld [vmem:[%s290 + $0x1398] sm:$0xff]
        %v1004 = vld [vmem:[%s290 + $0x13a0] sm:$0xff]
        %v1005 = vld [vmem:[%s290 + $0x13a8] sm:$0xff]
        %v1006 = vld [vmem:[%s290 + $0x13b0] sm:$0xff]
        %v1007 = vld [vmem:[%s290 + $0x13b8] sm:$0xff]
        %v1008 = vld [vmem:[%s290 + $0x13c0] sm:$0xff]
        %v1009 = vld [vmem:[%s290 + $0x13c8] sm:$0xff]
        %v1010 = vld [vmem:[%s290 + $0x13d0] sm:$0xff]
        %v1011 = vld [vmem:[%s290 + $0x13d8] sm:$0xff]
        %v1012 = vld [vmem:[%s290 + $0x13e0] sm:$0xff]
        %v1013 = vld [vmem:[%s290 + $0x13e8] sm:$0xff]
        %v1014 = vld [vmem:[%s290 + $0x13f0] sm:$0xff]
        %v1015 = vld [vmem:[%s290 + $0x13f8] sm:$0xff]
        %v1016 = vld [vmem:[%s290 + $0x1400] sm:$0xff]
        %v1017 = vld [vmem:[%s290 + $0x1408] sm:$0xff]
        %v1018 = vld [vmem:[%s290 + $0x1410] sm:$0xff]
        %v1019 = vld [vmem:[%s290 + $0x1418] sm:$0xff]
        %v1020 = vld [vmem:[%s290 + $0x1420] sm:$0xff]
        %v1021 = vld [vmem:[%s290 + $0x1428] sm:$0xff]
        %v1022 = vld [vmem:[%s290 + $0x1430] sm:$0xff]
        %v1023 = vld [vmem:[%s290 + $0x1438] sm:$0xff]
        %v1024 = vld [vmem:[%s290 + $0x1440] sm:$0xff]
        %v1025 = vld [vmem:[%s290 + $0x1448] sm:$0xff]
        %v1026 = vld [vmem:[%s290 + $0x1450] sm:$0xff]
        %v1027 = vld [vmem:[%s290 + $0x1458] sm:$0xff]
        %v1028 = vld [vmem:[%s290 + $0x1460] sm:$0xff]
        %v1029 = vld [vmem:[%s290 + $0x1468] sm:$0xff]
        %v1030 = vld [vmem:[%s290 + $0x1470] sm:$0xff]
        %v1031 = vld [vmem:[%s290 + $0x1478] sm:$0xff]
        %v1032 = vld [vmem:[%s290 + $0x1480] sm:$0xff]
        %v1033 = vld [vmem:[%s290 + $0x1488] sm:$0xff]
        %v1034 = vld [vmem:[%s290 + $0x1490] sm:$0xff]
        %v1035 = vld [vmem:[%s290 + $0x1498] sm:$0xff]
        %v1036 = vld [vmem:[%s290 + $0x14a0] sm:$0xff]
        %v1037 = vld [vmem:[%s290 + $0x14a8] sm:$0xff]
        %v1038 = vld [vmem:[%s290 + $0x14b0] sm:$0xff]
        %v1039 = vld [vmem:[%s290 + $0x14b8] sm:$0xff]
        %v1040 = vld [vmem:[%s290 + $0x14c0] sm:$0xff]
        %v1041 = vld [vmem:[%s290 + $0x14c8] sm:$0xff]
        %v1042 = vld [vmem:[%s290 + $0x14d0] sm:$0xff]
        %v1043 = vld [vmem:[%s290 + $0x14d8] sm:$0xff]
        %v1044 = vld [vmem:[%s290 + $0x14e0] sm:$0xff]
        %v1045 = vld [vmem:[%s290 + $0x14e8] sm:$0xff]
        %v1046 = vld [vmem:[%s290 + $0x14f0] sm:$0xff]
        %v1047 = vld [vmem:[%s290 + $0x14f8] sm:$0xff]
        %v1048 = vld [vmem:[%s290 + $0x1500] sm:$0xff]
        %v1049 = vld [vmem:[%s290 + $0x1508] sm:$0xff]
        %v1050 = vld [vmem:[%s290 + $0x1510] sm:$0xff]
        %v1051 = vld [vmem:[%s290 + $0x1518] sm:$0xff]
        %v1052 = vld [vmem:[%s290 + $0x1520] sm:$0xff]
        %v1053 = vld [vmem:[%s290 + $0x1528] sm:$0xff]
        %v1054 = vld [vmem:[%s290 + $0x1530] sm:$0xff]
        %v1055 = vld [vmem:[%s290 + $0x1538] sm:$0xff]
        %v1056 = vld [vmem:[%s290 + $0x1540] sm:$0xff]
        %v1057 = vld [vmem:[%s290 + $0x1548] sm:$0xff]
        %v1058 = vld [vmem:[%s290 + $0x1550] sm:$0xff]
        %v1059 = vld [vmem:[%s290 + $0x1558] sm:$0xff]
        %v1060 = vld [vmem:[%s290 + $0x1560] sm:$0xff]
        %v1061 = vld [vmem:[%s290 + $0x1568] sm:$0xff]
        %v1062 = vld [vmem:[%s290 + $0x1570] sm:$0xff]
        %v1063 = vld [vmem:[%s290 + $0x1578] sm:$0xff]
        %v1064 = vld [vmem:[%s290 + $0x1580] sm:$0xff]
        %v1065 = vld [vmem:[%s290 + $0x1588] sm:$0xff]
        %v1066 = vld [vmem:[%s290 + $0x1590] sm:$0xff]
        %v1067 = vld [vmem:[%s290 + $0x1598] sm:$0xff]
        %v1068 = vld [vmem:[%s290 + $0x15a0] sm:$0xff]
        %v1069 = vld [vmem:[%s290 + $0x15a8] sm:$0xff]
        %v1070 = vld [vmem:[%s290 + $0x15b0] sm:$0xff]
        %v1071 = vld [vmem:[%s290 + $0x15b8] sm:$0xff]
        %v1072 = vld [vmem:[%s290 + $0x15c0] sm:$0xff]
        %v1073 = vld [vmem:[%s290 + $0x15c8] sm:$0xff]
        %v1074 = vld [vmem:[%s290 + $0x15d0] sm:$0xff]
        %v1075 = vld [vmem:[%s290 + $0x15d8] sm:$0xff]
        %v1076 = vld [vmem:[%s290 + $0x15e0] sm:$0xff]
        %v1077 = vld [vmem:[%s290 + $0x15e8] sm:$0xff]
        %v1078 = vld [vmem:[%s290 + $0x15f0] sm:$0xff]
        %v1079 = vld [vmem:[%s290 + $0x15f8] sm:$0xff]
        %v1080 = vld [vmem:[%s290 + $0x1600] sm:$0xff]
        %v1081 = vld [vmem:[%s290 + $0x1608] sm:$0xff]
        %v1082 = vld [vmem:[%s290 + $0x1610] sm:$0xff]
        %v1083 = vld [vmem:[%s290 + $0x1618] sm:$0xff]
        %v1084 = vld [vmem:[%s290 + $0x1620] sm:$0xff]
        %v1085 = vld [vmem:[%s290 + $0x1628] sm:$0xff]
        %v1086 = vld [vmem:[%s290 + $0x1630] sm:$0xff]
        %v1087 = vld [vmem:[%s290 + $0x1638] sm:$0xff]
        %v1088 = vld [vmem:[%s290 + $0x1640] sm:$0xff]
        %v1089 = vld [vmem:[%s290 + $0x1648] sm:$0xff]
        %v1090 = vld [vmem:[%s290 + $0x1650] sm:$0xff]
        %v1091 = vld [vmem:[%s290 + $0x1658] sm:$0xff]
        %v1092 = vld [vmem:[%s290 + $0x1660] sm:$0xff]
        %v1093 = vld [vmem:[%s290 + $0x1668] sm:$0xff]
        %v1094 = vld [vmem:[%s290 + $0x1670] sm:$0xff]
        %v1095 = vld [vmem:[%s290 + $0x1678] sm:$0xff]
        %v1096 = vld [vmem:[%s290 + $0x1680] sm:$0xff]
        %v1097 = vld [vmem:[%s290 + $0x1688] sm:$0xff]
        %v1098 = vld [vmem:[%s290 + $0x1690] sm:$0xff]
        %v1099 = vld [vmem:[%s290 + $0x1698] sm:$0xff]
        %v1100 = vld [vmem:[%s290 + $0x16a0] sm:$0xff]
        %v1101 = vld [vmem:[%s290 + $0x16a8] sm:$0xff]
        %v1102 = vld [vmem:[%s290 + $0x16b0] sm:$0xff]
        %v1103 = vld [vmem:[%s290 + $0x16b8] sm:$0xff]
        %v1104 = vld [vmem:[%s290 + $0x16c0] sm:$0xff]
        %v1105 = vld [vmem:[%s290 + $0x16c8] sm:$0xff]
        %v1106 = vld [vmem:[%s290 + $0x16d0] sm:$0xff]
        %v1107 = vld [vmem:[%s290 + $0x16d8] sm:$0xff]
        %v1108 = vld [vmem:[%s290 + $0x16e0] sm:$0xff]
        %v1109 = vld [vmem:[%s290 + $0x16e8] sm:$0xff]
        %v1110 = vld [vmem:[%s290 + $0x16f0] sm:$0xff]
        %v1111 = vld [vmem:[%s290 + $0x16f8] sm:$0xff]
        %v1112 = vld [vmem:[%s290 + $0x1700] sm:$0xff]
        %v1113 = vld [vmem:[%s290 + $0x1708] sm:$0xff]
        %v1114 = vld [vmem:[%s290 + $0x1710] sm:$0xff]
        %v1115 = vld [vmem:[%s290 + $0x1718] sm:$0xff]
        %v1116 = vld [vmem:[%s290 + $0x1720] sm:$0xff]
        %v1117 = vld [vmem:[%s290 + $0x1728] sm:$0xff]
        %v1118 = vld [vmem:[%s290 + $0x1730] sm:$0xff]
        %v1119 = vld [vmem:[%s290 + $0x1738] sm:$0xff]
        %v1120 = vld [vmem:[%s290 + $0x1740] sm:$0xff]
        %v1121 = vld [vmem:[%s290 + $0x1748] sm:$0xff]
        %v1122 = vld [vmem:[%s290 + $0x1750] sm:$0xff]
        %v1123 = vld [vmem:[%s290 + $0x1758] sm:$0xff]
        %v1124 = vld [vmem:[%s290 + $0x1760] sm:$0xff]
        %v1125 = vld [vmem:[%s290 + $0x1768] sm:$0xff]
        %v1126 = vld [vmem:[%s290 + $0x1770] sm:$0xff]
        %v1127 = vld [vmem:[%s290 + $0x1778] sm:$0xff]
        %v1128 = vld [vmem:[%s290 + $0x1780] sm:$0xff]
        %v1129 = vld [vmem:[%s290 + $0x1788] sm:$0xff]
        %v1130 = vld [vmem:[%s290 + $0x1790] sm:$0xff]
        %v1131 = vld [vmem:[%s290 + $0x1798] sm:$0xff]
        %v1132 = vld [vmem:[%s290 + $0x17a0] sm:$0xff]
        %v1133 = vld [vmem:[%s290 + $0x17a8] sm:$0xff]
        %v1134 = vld [vmem:[%s290 + $0x17b0] sm:$0xff]
        %v1135 = vld [vmem:[%s290 + $0x17b8] sm:$0xff]
        %v1136 = vld [vmem:[%s290 + $0x17c0] sm:$0xff]
        %v1137 = vld [vmem:[%s290 + $0x17c8] sm:$0xff]
        %v1138 = vld [vmem:[%s290 + $0x17d0] sm:$0xff]
        %v1139 = vld [vmem:[%s290 + $0x17d8] sm:$0xff]
        %v1140 = vld [vmem:[%s290 + $0x17e0] sm:$0xff]
        %v1141 = vld [vmem:[%s290 + $0x17e8] sm:$0xff]
        %v1142 = vld [vmem:[%s290 + $0x17f0] sm:$0xff]
        %v1143 = vld [vmem:[%s290 + $0x17f8] sm:$0xff]
        %v1144 = vld [vmem:[%s290 + $0x1800] sm:$0xff]
        %v1145 = vld [vmem:[%s290 + $0x1808] sm:$0xff]
        %v1146 = vld [vmem:[%s290 + $0x1810] sm:$0xff]
        %v1147 = vld [vmem:[%s290 + $0x1818] sm:$0xff]
        %v1148 = vld [vmem:[%s290 + $0x1820] sm:$0xff]
        %v1149 = vld [vmem:[%s290 + $0x1828] sm:$0xff]
        %v1150 = vld [vmem:[%s290 + $0x1830] sm:$0xff]
        %v1151 = vld [vmem:[%s290 + $0x1838] sm:$0xff]
        %v1152 = vld [vmem:[%s290 + $0x1840] sm:$0xff]
        %v1153 = vld [vmem:[%s290 + $0x1848] sm:$0xff]
        %v1154 = vld [vmem:[%s290 + $0x1850] sm:$0xff]
        %v1155 = vld [vmem:[%s290 + $0x1858] sm:$0xff]
        %v1156 = vld [vmem:[%s290 + $0x1860] sm:$0xff]
        %v1157 = vld [vmem:[%s290 + $0x1868] sm:$0xff]
        %v1158 = vld [vmem:[%s290 + $0x1870] sm:$0xff]
        %v1159 = vld [vmem:[%s290 + $0x1878] sm:$0xff]
        %v1160 = vld [vmem:[%s290 + $0x1880] sm:$0xff]
        %v1161 = vld [vmem:[%s290 + $0x1888] sm:$0xff]
        %v1162 = vld [vmem:[%s290 + $0x1890] sm:$0xff]
        %v1163 = vld [vmem:[%s290 + $0x1898] sm:$0xff]
        %v1164 = vld [vmem:[%s290 + $0x18a0] sm:$0xff]
        %v1165 = vld [vmem:[%s290 + $0x18a8] sm:$0xff]
        %v1166 = vld [vmem:[%s290 + $0x18b0] sm:$0xff]
        %v1167 = vld [vmem:[%s290 + $0x18b8] sm:$0xff]
        %v1168 = vld [vmem:[%s290 + $0x18c0] sm:$0xff]
        %v1169 = vld [vmem:[%s290 + $0x18c8] sm:$0xff]
        %v1170 = vld [vmem:[%s290 + $0x18d0] sm:$0xff]
        %v1171 = vld [vmem:[%s290 + $0x18d8] sm:$0xff]
        %v1172 = vld [vmem:[%s290 + $0x18e0] sm:$0xff]
        %v1173 = vld [vmem:[%s290 + $0x18e8] sm:$0xff]
        %v1174 = vld [vmem:[%s290 + $0x18f0] sm:$0xff]
        %v1175 = vld [vmem:[%s290 + $0x18f8] sm:$0xff]
        %v1176 = vld [vmem:[%s290 + $0x1900] sm:$0xff]
        %v1177 = vld [vmem:[%s290 + $0x1908] sm:$0xff]
        %v1178 = vld [vmem:[%s290 + $0x1910] sm:$0xff]
        %v1179 = vld [vmem:[%s290 + $0x1918] sm:$0xff]
        %v1180 = vld [vmem:[%s290 + $0x1920] sm:$0xff]
        %v1181 = vld [vmem:[%s290 + $0x1928] sm:$0xff]
        %v1182 = vld [vmem:[%s290 + $0x1930] sm:$0xff]
        %v1183 = vld [vmem:[%s290 + $0x1938] sm:$0xff]
        %v1184 = vld [vmem:[%s290 + $0x1940] sm:$0xff]
        %v1185 = vld [vmem:[%s290 + $0x1948] sm:$0xff]
        %v1186 = vld [vmem:[%s290 + $0x1950] sm:$0xff]
        %v1187 = vld [vmem:[%s290 + $0x1958] sm:$0xff]
        %v1188 = vld [vmem:[%s290 + $0x1960] sm:$0xff]
        %v1189 = vld [vmem:[%s290 + $0x1968] sm:$0xff]
        %v1190 = vld [vmem:[%s290 + $0x1970] sm:$0xff]
        %v1191 = vld [vmem:[%s290 + $0x1978] sm:$0xff]
        %v1192 = vld [vmem:[%s290 + $0x1980] sm:$0xff]
        %v1193 = vld [vmem:[%s290 + $0x1988] sm:$0xff]
        %v1194 = vld [vmem:[%s290 + $0x1990] sm:$0xff]
        %v1195 = vld [vmem:[%s290 + $0x1998] sm:$0xff]
        %v1196 = vld [vmem:[%s290 + $0x19a0] sm:$0xff]
        %v1197 = vld [vmem:[%s290 + $0x19a8] sm:$0xff]
        %v1198 = vld [vmem:[%s290 + $0x19b0] sm:$0xff]
        %v1199 = vld [vmem:[%s290 + $0x19b8] sm:$0xff]
        %v1200 = vld [vmem:[%s290 + $0x19c0] sm:$0xff]
        %v1201 = vld [vmem:[%s290 + $0x19c8] sm:$0xff]
        %v1202 = vld [vmem:[%s290 + $0x19d0] sm:$0xff]
        %v1203 = vld [vmem:[%s290 + $0x19d8] sm:$0xff]
        %v1204 = vld [vmem:[%s290 + $0x19e0] sm:$0xff]
        %v1205 = vld [vmem:[%s290 + $0x19e8] sm:$0xff]
        %v1206 = vld [vmem:[%s290 + $0x19f0] sm:$0xff]
        %v1207 = vld [vmem:[%s290 + $0x19f8] sm:$0xff]
        %v1208 = vld [vmem:[%s290 + $0x1a00] sm:$0xff]
        %v1209 = vld [vmem:[%s290 + $0x1a08] sm:$0xff]
        %v1210 = vld [vmem:[%s290 + $0x1a10] sm:$0xff]
        %v1211 = vld [vmem:[%s290 + $0x1a18] sm:$0xff]
        %v1212 = vld [vmem:[%s290 + $0x1a20] sm:$0xff]
        %v1213 = vld [vmem:[%s290 + $0x1a28] sm:$0xff]
        %v1214 = vld [vmem:[%s290 + $0x1a30] sm:$0xff]
        %v1215 = vld [vmem:[%s290 + $0x1a38] sm:$0xff]
        %v1216 = vld [vmem:[%s290 + $0x1a40] sm:$0xff]
        %v1217 = vld [vmem:[%s290 + $0x1a48] sm:$0xff]
        %v1218 = vld [vmem:[%s290 + $0x1a50] sm:$0xff]
        %v1219 = vld [vmem:[%s290 + $0x1a58] sm:$0xff]
        %v1220 = vld [vmem:[%s290 + $0x1a60] sm:$0xff]
        %v1221 = vld [vmem:[%s290 + $0x1a68] sm:$0xff]
        %v1222 = vld [vmem:[%s290 + $0x1a70] sm:$0xff]
        %v1223 = vld [vmem:[%s290 + $0x1a78] sm:$0xff]
        %v1224 = vld [vmem:[%s290 + $0x1a80] sm:$0xff]
        %v1225 = vld [vmem:[%s290 + $0x1a88] sm:$0xff]
        %v1226 = vld [vmem:[%s290 + $0x1a90] sm:$0xff]
        %v1227 = vld [vmem:[%s290 + $0x1a98] sm:$0xff]
        %v1228 = vld [vmem:[%s290 + $0x1aa0] sm:$0xff]
        %v1229 = vld [vmem:[%s290 + $0x1aa8] sm:$0xff]
        %v1230 = vld [vmem:[%s290 + $0x1ab0] sm:$0xff]
        %v1231 = vld [vmem:[%s290 + $0x1ab8] sm:$0xff]
        %v1232 = vld [vmem:[%s290 + $0x1ac0] sm:$0xff]
        %v1233 = vld [vmem:[%s290 + $0x1ac8] sm:$0xff]
        %v1234 = vld [vmem:[%s290 + $0x1ad0] sm:$0xff]
        %v1235 = vld [vmem:[%s290 + $0x1ad8] sm:$0xff]
        %v1236 = vld [vmem:[%s290 + $0x1ae0] sm:$0xff]
        %v1237 = vld [vmem:[%s290 + $0x1ae8] sm:$0xff]
        %v1238 = vld [vmem:[%s290 + $0x1af0] sm:$0xff]
        %v1239 = vld [vmem:[%s290 + $0x1af8] sm:$0xff]
        %v1240 = vld [vmem:[%s290 + $0x1b00] sm:$0xff]
        %v1241 = vld [vmem:[%s290 + $0x1b08] sm:$0xff]
        %v1242 = vld [vmem:[%s290 + $0x1b10] sm:$0xff]
        %v1243 = vld [vmem:[%s290 + $0x1b18] sm:$0xff]
        %v1244 = vld [vmem:[%s290 + $0x1b20] sm:$0xff]
        %v1245 = vld [vmem:[%s290 + $0x1b28] sm:$0xff]
        %v1246 = vld [vmem:[%s290 + $0x1b30] sm:$0xff]
        %v1247 = vld [vmem:[%s290 + $0x1b38] sm:$0xff]
        %v1248 = vld [vmem:[%s290 + $0x1b40] sm:$0xff]
        %v1249 = vld [vmem:[%s290 + $0x1b48] sm:$0xff]
        %v1250 = vld [vmem:[%s290 + $0x1b50] sm:$0xff]
        %v1251 = vld [vmem:[%s290 + $0x1b58] sm:$0xff]
        %v1252 = vld [vmem:[%s290 + $0x1b60] sm:$0xff]
        %v1253 = vld [vmem:[%s290 + $0x1b68] sm:$0xff]
        %v1254 = vld [vmem:[%s290 + $0x1b70] sm:$0xff]
        %v1255 = vld [vmem:[%s290 + $0x1b78] sm:$0xff]
        %v1256 = vld [vmem:[%s290 + $0x1b80] sm:$0xff]
        %v1257 = vld [vmem:[%s290 + $0x1b88] sm:$0xff]
        %v1258 = vld [vmem:[%s290 + $0x1b90] sm:$0xff]
        %v1259 = vld [vmem:[%s290 + $0x1b98] sm:$0xff]
        %v1260 = vld [vmem:[%s290 + $0x1ba0] sm:$0xff]
        %v1261 = vld [vmem:[%s290 + $0x1ba8] sm:$0xff]
        %v1262 = vld [vmem:[%s290 + $0x1bb0] sm:$0xff]
        %v1263 = vld [vmem:[%s290 + $0x1bb8] sm:$0xff]
        %v1264 = vld [vmem:[%s290 + $0x1bc0] sm:$0xff]
        %v1265 = vld [vmem:[%s290 + $0x1bc8] sm:$0xff]
        %v1266 = vld [vmem:[%s290 + $0x1bd0] sm:$0xff]
        %v1267 = vld [vmem:[%s290 + $0x1bd8] sm:$0xff]
        %v1268 = vld [vmem:[%s290 + $0x1be0] sm:$0xff]
        %v1269 = vld [vmem:[%s290 + $0x1be8] sm:$0xff]
        %v1270 = vld [vmem:[%s290 + $0x1bf0] sm:$0xff]
        %v1271 = vld [vmem:[%s290 + $0x1bf8] sm:$0xff]
        %v1272 = vld [vmem:[%s290 + $0x1c00] sm:$0xff]
        %v1273 = vld [vmem:[%s290 + $0x1c08] sm:$0xff]
        %v1274 = vld [vmem:[%s290 + $0x1c10] sm:$0xff]
        %v1275 = vld [vmem:[%s290 + $0x1c18] sm:$0xff]
        %v1276 = vld [vmem:[%s290 + $0x1c20] sm:$0xff]
        %v1277 = vld [vmem:[%s290 + $0x1c28] sm:$0xff]
        %v1278 = vld [vmem:[%s290 + $0x1c30] sm:$0xff]
        %v1279 = vld [vmem:[%s290 + $0x1c38] sm:$0xff]
        %v1280 = vld [vmem:[%s290 + $0x1c40] sm:$0xff]
        %v1281 = vld [vmem:[%s290 + $0x1c48] sm:$0xff]
        %v1282 = vld [vmem:[%s290 + $0x1c50] sm:$0xff]
        %v1283 = vld [vmem:[%s290 + $0x1c58] sm:$0xff]
        %v1284 = vld [vmem:[%s290 + $0x1c60] sm:$0xff]
        %v1285 = vld [vmem:[%s290 + $0x1c68] sm:$0xff]
        %v1286 = vld [vmem:[%s290 + $0x1c70] sm:$0xff]
        %v1287 = vld [vmem:[%s290 + $0x1c78] sm:$0xff]
        %v1288 = vld [vmem:[%s290 + $0x1c80] sm:$0xff]
        %v1289 = vld [vmem:[%s290 + $0x1c88] sm:$0xff]
        %v1290 = vld [vmem:[%s290 + $0x1c90] sm:$0xff]
        %v1291 = vld [vmem:[%s290 + $0x1c98] sm:$0xff]
        %v1292 = vld [vmem:[%s290 + $0x1ca0] sm:$0xff]
        %v1293 = vld [vmem:[%s290 + $0x1ca8] sm:$0xff]
        %v1294 = vld [vmem:[%s290 + $0x1cb0] sm:$0xff]
        %v1295 = vld [vmem:[%s290 + $0x1cb8] sm:$0xff]
        %v1296 = vld [vmem:[%s290 + $0x1cc0] sm:$0xff]
        %v1297 = vld [vmem:[%s290 + $0x1cc8] sm:$0xff]
        %v1298 = vld [vmem:[%s290 + $0x1cd0] sm:$0xff]
        %v1299 = vld [vmem:[%s290 + $0x1cd8] sm:$0xff]
        %v1300 = vld [vmem:[%s290 + $0x1ce0] sm:$0xff]
        %v1301 = vld [vmem:[%s290 + $0x1ce8] sm:$0xff]
        %v1302 = vld [vmem:[%s290 + $0x1cf0] sm:$0xff]
        %v1303 = vld [vmem:[%s290 + $0x1cf8] sm:$0xff]
        %v1304 = vld [vmem:[%s290 + $0x1d00] sm:$0xff]
        %v1305 = vld [vmem:[%s290 + $0x1d08] sm:$0xff]
        %v1306 = vld [vmem:[%s290 + $0x1d10] sm:$0xff]
        %v1307 = vld [vmem:[%s290 + $0x1d18] sm:$0xff]
        %v1308 = vld [vmem:[%s290 + $0x1d20] sm:$0xff]
        %v1309 = vld [vmem:[%s290 + $0x1d28] sm:$0xff]
        %v1310 = vld [vmem:[%s290 + $0x1d30] sm:$0xff]
        %v1311 = vld [vmem:[%s290 + $0x1d38] sm:$0xff]
        %v1312 = vld [vmem:[%s290 + $0x1d40] sm:$0xff]
        %v1313 = vld [vmem:[%s290 + $0x1d48] sm:$0xff]
        %v1314 = vld [vmem:[%s290 + $0x1d50] sm:$0xff]
        %v1315 = vld [vmem:[%s290 + $0x1d58] sm:$0xff]
        %v1316 = vld [vmem:[%s290 + $0x1d60] sm:$0xff]
        %v1317 = vld [vmem:[%s290 + $0x1d68] sm:$0xff]
        %v1318 = vld [vmem:[%s290 + $0x1d70] sm:$0xff]
        %v1319 = vld [vmem:[%s290 + $0x1d78] sm:$0xff]
        %v1320 = vld [vmem:[%s290 + $0x1d80] sm:$0xff]
        %v1321 = vld [vmem:[%s290 + $0x1d88] sm:$0xff]
        %v1322 = vld [vmem:[%s290 + $0x1d90] sm:$0xff]
        %v1323 = vld [vmem:[%s290 + $0x1d98] sm:$0xff]
        %v1324 = vld [vmem:[%s290 + $0x1da0] sm:$0xff]
        %v1325 = vld [vmem:[%s290 + $0x1da8] sm:$0xff]
        %v1326 = vld [vmem:[%s290 + $0x1db0] sm:$0xff]
        %v1327 = vld [vmem:[%s290 + $0x1db8] sm:$0xff]
        %v1328 = vld [vmem:[%s290 + $0x1dc0] sm:$0xff]
        %v1329 = vld [vmem:[%s290 + $0x1dc8] sm:$0xff]
        %v1330 = vld [vmem:[%s290 + $0x1dd0] sm:$0xff]
        %v1331 = vld [vmem:[%s290 + $0x1dd8] sm:$0xff]
        %v1332 = vld [vmem:[%s290 + $0x1de0] sm:$0xff]
        %v1333 = vld [vmem:[%s290 + $0x1de8] sm:$0xff]
        %v1334 = vld [vmem:[%s290 + $0x1df0] sm:$0xff]
        %v1335 = vld [vmem:[%s290 + $0x1df8] sm:$0xff]
        %v1336 = vld [vmem:[%s290 + $0x1e00] sm:$0xff]
        %v1337 = vld [vmem:[%s290 + $0x1e08] sm:$0xff]
        %v1338 = vld [vmem:[%s290 + $0x1e10] sm:$0xff]
        %v1339 = vld [vmem:[%s290 + $0x1e18] sm:$0xff]
        %v1340 = vld [vmem:[%s290 + $0x1e20] sm:$0xff]
        %v1341 = vld [vmem:[%s290 + $0x1e28] sm:$0xff]
        %v1342 = vld [vmem:[%s290 + $0x1e30] sm:$0xff]
        %v1343 = vld [vmem:[%s290 + $0x1e38] sm:$0xff]
        %v1344 = vld [vmem:[%s290 + $0x1e40] sm:$0xff]
        %v1345 = vld [vmem:[%s290 + $0x1e48] sm:$0xff]
        %v1346 = vld [vmem:[%s290 + $0x1e50] sm:$0xff]
        %v1347 = vld [vmem:[%s290 + $0x1e58] sm:$0xff]
        %v1348 = vld [vmem:[%s290 + $0x1e60] sm:$0xff]
        %v1349 = vld [vmem:[%s290 + $0x1e68] sm:$0xff]
        %v1350 = vld [vmem:[%s290 + $0x1e70] sm:$0xff]
        %v1351 = vld [vmem:[%s290 + $0x1e78] sm:$0xff]
        %v1352 = vld [vmem:[%s290 + $0x1e80] sm:$0xff]
        %v1353 = vld [vmem:[%s290 + $0x1e88] sm:$0xff]
        %v1354 = vld [vmem:[%s290 + $0x1e90] sm:$0xff]
        %v1355 = vld [vmem:[%s290 + $0x1e98] sm:$0xff]
        %v1356 = vld [vmem:[%s290 + $0x1ea0] sm:$0xff]
        %v1357 = vld [vmem:[%s290 + $0x1ea8] sm:$0xff]
        %v1358 = vld [vmem:[%s290 + $0x1eb0] sm:$0xff]
        %v1359 = vld [vmem:[%s290 + $0x1eb8] sm:$0xff]
        %v1360 = vld [vmem:[%s290 + $0x1ec0] sm:$0xff]
        %v1361 = vld [vmem:[%s290 + $0x1ec8] sm:$0xff]
        %v1362 = vld [vmem:[%s290 + $0x1ed0] sm:$0xff]
        %v1363 = vld [vmem:[%s290 + $0x1ed8] sm:$0xff]
        %v1364 = vld [vmem:[%s290 + $0x1ee0] sm:$0xff]
        %v1365 = vld [vmem:[%s290 + $0x1ee8] sm:$0xff]
        %v1366 = vld [vmem:[%s290 + $0x1ef0] sm:$0xff]
        %v1367 = vld [vmem:[%s290 + $0x1ef8] sm:$0xff]
        %v1368 = vld [vmem:[%s290 + $0x1f00] sm:$0xff]
        %v1369 = vld [vmem:[%s290 + $0x1f08] sm:$0xff]
        %v1370 = vld [vmem:[%s290 + $0x1f10] sm:$0xff]
        %v1371 = vld [vmem:[%s290 + $0x1f18] sm:$0xff]
        %v1372 = vld [vmem:[%s290 + $0x1f20] sm:$0xff]
        %v1373 = vld [vmem:[%s290 + $0x1f28] sm:$0xff]
        %v1374 = vld [vmem:[%s290 + $0x1f30] sm:$0xff]
        %v1375 = vld [vmem:[%s290 + $0x1f38] sm:$0xff]
        %v1376 = vld [vmem:[%s290 + $0x1f40] sm:$0xff]
        %v1377 = vld [vmem:[%s290 + $0x1f48] sm:$0xff]
        %v1378 = vld [vmem:[%s290 + $0x1f50] sm:$0xff]
        %v1379 = vld [vmem:[%s290 + $0x1f58] sm:$0xff]
        %v1380 = vld [vmem:[%s290 + $0x1f60] sm:$0xff]
        %v1381 = vld [vmem:[%s290 + $0x1f68] sm:$0xff]
        %v1382 = vld [vmem:[%s290 + $0x1f70] sm:$0xff]
        %v1383 = vld [vmem:[%s290 + $0x1f78] sm:$0xff]
        %v1384 = vld [vmem:[%s290 + $0x1f80] sm:$0xff]
        %v1385 = vld [vmem:[%s290 + $0x1f88] sm:$0xff]
        %v1386 = vld [vmem:[%s290 + $0x1f90] sm:$0xff]
        %v1387 = vld [vmem:[%s290 + $0x1f98] sm:$0xff]
        %v1388 = vld [vmem:[%s290 + $0x1fa0] sm:$0xff]
        %v1389 = vld [vmem:[%s290 + $0x1fa8] sm:$0xff]
        %v1390 = vld [vmem:[%s290 + $0x1fb0] sm:$0xff]
        %v1391 = vld [vmem:[%s290 + $0x1fb8] sm:$0xff]
        %v1392 = vld [vmem:[%s290 + $0x1fc0] sm:$0xff]
        %v1393 = vld [vmem:[%s290 + $0x1fc8] sm:$0xff]
        %v1394 = vld [vmem:[%s290 + $0x1fd0] sm:$0xff]
        %v1395 = vld [vmem:[%s290 + $0x1fd8] sm:$0xff]
        %v1396 = vld [vmem:[%s290 + $0x1fe0] sm:$0xff]
        %v1397 = vld [vmem:[%s290 + $0x1fe8] sm:$0xff]
        %v1398 = vld [vmem:[%s290 + $0x1ff0] sm:$0xff]
        %v1399 = vld [vmem:[%s290 + $0x1ff8] sm:$0xff]
        %v1400 = vld [vmem:[%s299] sm:$0xff]
        %v1401 = vld [vmem:[%s299 + $0x8] sm:$0xff]
        %v1404 = vlaneseq
        %v1405 = vshrl.u32 %v1404, 7
        %v1406 = vsub.s32 0, %v1405
        %v1407 = vrot.slane %v1400, %v1406
        %v1408 = vlaneseq
        %v1409 = vshrl.u32 %v1408, 7
        %v1410 = vsub.s32 1, %v1409
        %v1411 = vrot.slane %v1400, %v1410
        %v1412 = vlaneseq
        %v1413 = vshrl.u32 %v1412, 7
        %v1414 = vsub.s32 2, %v1413
        %v1415 = vrot.slane %v1400, %v1414
        %v1416 = vlaneseq
        %v1417 = vshrl.u32 %v1416, 7
        %v1418 = vsub.s32 3, %v1417
        %v1419 = vrot.slane %v1400, %v1418
        %v1420 = vlaneseq
        %v1421 = vshrl.u32 %v1420, 7
        %v1422 = vsub.s32 4, %v1421
        %v1423 = vrot.slane %v1400, %v1422
        %v1424 = vlaneseq
        %v1425 = vshrl.u32 %v1424, 7
        %v1426 = vsub.s32 5, %v1425
        %v1427 = vrot.slane %v1400, %v1426
        %v1428 = vlaneseq
        %v1429 = vshrl.u32 %v1428, 7
        %v1430 = vsub.s32 6, %v1429
        %v1431 = vrot.slane %v1400, %v1430
        %v1432 = vlaneseq
        %v1433 = vshrl.u32 %v1432, 7
        %v1434 = vsub.s32 7, %v1433
        %v1435 = vrot.slane %v1400, %v1434
        %v1436 = vlaneseq
        %v1437 = vshrl.u32 %v1436, 7
        %v1438 = vsub.s32 0, %v1437
        %v1439 = vrot.slane %v1401, %v1438
        %v1440 = vlaneseq
        %v1441 = vshrl.u32 %v1440, 7
        %v1442 = vsub.s32 1, %v1441
        %v1443 = vrot.slane %v1401, %v1442
        %v1444 = vlaneseq
        %v1445 = vshrl.u32 %v1444, 7
        %v1446 = vsub.s32 2, %v1445
        %v1447 = vrot.slane %v1401, %v1446
        %v1448 = vlaneseq
        %v1449 = vshrl.u32 %v1448, 7
        %v1450 = vsub.s32 3, %v1449
        %v1451 = vrot.slane %v1401, %v1450
        %v1452 = vlaneseq
        %v1453 = vshrl.u32 %v1452, 7
        %v1454 = vsub.s32 4, %v1453
        %v1455 = vrot.slane %v1401, %v1454
        %v1456 = vlaneseq
        %v1457 = vshrl.u32 %v1456, 7
        %v1458 = vsub.s32 5, %v1457
        %v1459 = vrot.slane %v1401, %v1458
        %v1460 = vlaneseq
        %v1461 = vshrl.u32 %v1460, 7
        %v1462 = vsub.s32 6, %v1461
        %v1463 = vrot.slane %v1401, %v1462
        %v1464 = vlaneseq
        %v1465 = vshrl.u32 %v1464, 7
        %v1466 = vsub.s32 7, %v1465
        %v1467 = vrot.slane %v1401, %v1466
        %v1485 = vcombine.high %v375, %v375
        %v1487 = vunpack.c.l.s4 1966171168
        %v1488 = vunpack.c.0.s8 %v1487
        %v1489 = vlaneseq
        %v1490 = vshrl.u32 %v1489, 7
        %v1491 = vsub.s32 %v1488, %v1490
        %v1492 = vrot.slane %v375, %v1491
        %v1494 = vunpack.c.l.s4 1966171168
        %v1495 = vunpack.c.0.s8 %v1494
        %v1496 = vlaneseq
        %v1497 = vshrl.u32 %v1496, 7
        %v1498 = vsub.s32 %v1495, %v1497
        %v1499 = vrot.slane %v1485, %v1498
        %v1500 = vcombine.high %v1492, %v1492
        %v1501 = vcombine.high %v1499, %v1499
        %v1503 = vunpack.c.l.s4 1966171168
        %v1504 = vunpack.c.0.s8 %v1503
        %v1505 = vlaneseq
        %v1506 = vshrl.u32 %v1505, 7
        %v1507 = vsub.s32 %v1504, %v1506
        %v1508 = vrot.slane %v1492, %v1507
        %v1510 = vunpack.c.l.s4 1966171168
        %v1511 = vunpack.c.0.s8 %v1510
        %v1512 = vlaneseq
        %v1513 = vshrl.u32 %v1512, 7
        %v1514 = vsub.s32 %v1511, %v1513
        %v1515 = vrot.slane %v1499, %v1514
        %v1517 = vunpack.c.l.s4 1966171168
        %v1518 = vunpack.c.0.s8 %v1517
        %v1519 = vlaneseq
        %v1520 = vshrl.u32 %v1519, 7
        %v1521 = vsub.s32 %v1518, %v1520
        %v1522 = vrot.slane %v1500, %v1521
        %v1524 = vunpack.c.l.s4 1966171168
        %v1525 = vunpack.c.0.s8 %v1524
        %v1526 = vlaneseq
        %v1527 = vshrl.u32 %v1526, 7
        %v1528 = vsub.s32 %v1525, %v1527
        %v1529 = vrot.slane %v1501, %v1528
        %v1530 = vcombine.high %v1508, %v1508
        %v1531 = vcombine.high %v1515, %v1515
        %v1532 = vcombine.high %v1522, %v1522
        %v1533 = vcombine.high %v1529, %v1529
        %v2566 = vunpack.c.l.b16 %v376
        %v2567 = vunpack.c.h.b16 %v376
        %v2568 = vunpack.c.l.b16 %v377
        %v2569 = vunpack.c.h.b16 %v377
        %v2570 = vunpack.c.l.b16 %v378
        %v2571 = vunpack.c.h.b16 %v378
        %v2572 = vunpack.c.l.b16 %v379
        %v2573 = vunpack.c.h.b16 %v379
        %v2574 = vunpack.c.l.b16 %v380
        %v2575 = vunpack.c.h.b16 %v380
        %v2576 = vunpack.c.l.b16 %v381
        %v2577 = vunpack.c.h.b16 %v381
        %v2578 = vunpack.c.l.b16 %v382
        %v2579 = vunpack.c.h.b16 %v382
        %v2580 = vunpack.c.l.b16 %v383
        %v2581 = vunpack.c.h.b16 %v383
        %v2582 = vunpack.c.l.b16 %v384
        %v2583 = vunpack.c.h.b16 %v384
        %v2584 = vunpack.c.l.b16 %v385
        %v2585 = vunpack.c.h.b16 %v385
        %v2586 = vunpack.c.l.b16 %v386
        %v2587 = vunpack.c.h.b16 %v386
        %v2588 = vunpack.c.l.b16 %v387
        %v2589 = vunpack.c.h.b16 %v387
        %v2590 = vunpack.c.l.b16 %v388
        %v2591 = vunpack.c.h.b16 %v388
        %v2592 = vunpack.c.l.b16 %v389
        %v2593 = vunpack.c.h.b16 %v389
        %v2594 = vunpack.c.l.b16 %v390
        %v2595 = vunpack.c.h.b16 %v390
        %v2596 = vunpack.c.l.b16 %v391
        %v2597 = vunpack.c.h.b16 %v391
        %v2598 = vunpack.c.l.b16 %v392
        %v2599 = vunpack.c.h.b16 %v392
        %v2600 = vunpack.c.l.b16 %v393
        %v2601 = vunpack.c.h.b16 %v393
        %v2602 = vunpack.c.l.b16 %v394
        %v2603 = vunpack.c.h.b16 %v394
        %v2604 = vunpack.c.l.b16 %v395
        %v2605 = vunpack.c.h.b16 %v395
        %v2606 = vunpack.c.l.b16 %v396
        %v2607 = vunpack.c.h.b16 %v396
        %v2608 = vunpack.c.l.b16 %v397
        %v2609 = vunpack.c.h.b16 %v397
        %v2610 = vunpack.c.l.b16 %v398
        %v2611 = vunpack.c.h.b16 %v398
        %v2612 = vunpack.c.l.b16 %v399
        %v2613 = vunpack.c.h.b16 %v399
        %v2614 = vunpack.c.l.b16 %v400
        %v2615 = vunpack.c.h.b16 %v400
        %v2616 = vunpack.c.l.b16 %v401
        %v2617 = vunpack.c.h.b16 %v401
        %v2618 = vunpack.c.l.b16 %v402
        %v2619 = vunpack.c.h.b16 %v402
        %v2620 = vunpack.c.l.b16 %v403
        %v2621 = vunpack.c.h.b16 %v403
        %v2622 = vunpack.c.l.b16 %v404
        %v2623 = vunpack.c.h.b16 %v404
        %v2624 = vunpack.c.l.b16 %v405
        %v2625 = vunpack.c.h.b16 %v405
        %v2626 = vunpack.c.l.b16 %v406
        %v2627 = vunpack.c.h.b16 %v406
        %v2628 = vunpack.c.l.b16 %v407
        %v2629 = vunpack.c.h.b16 %v407
        %v2630 = vunpack.c.l.b16 %v408
        %v2631 = vunpack.c.h.b16 %v408
        %v2632 = vunpack.c.l.b16 %v409
        %v2633 = vunpack.c.h.b16 %v409
        %v2634 = vunpack.c.l.b16 %v410
        %v2635 = vunpack.c.h.b16 %v410
        %v2636 = vunpack.c.l.b16 %v411
        %v2637 = vunpack.c.h.b16 %v411
        %v2638 = vunpack.c.l.b16 %v412
        %v2639 = vunpack.c.h.b16 %v412
        %v2640 = vunpack.c.l.b16 %v413
        %v2641 = vunpack.c.h.b16 %v413
        %v2642 = vunpack.c.l.b16 %v414
        %v2643 = vunpack.c.h.b16 %v414
        %v2644 = vunpack.c.l.b16 %v415
        %v2645 = vunpack.c.h.b16 %v415
        %v2646 = vunpack.c.l.b16 %v416
        %v2647 = vunpack.c.h.b16 %v416
        %v2648 = vunpack.c.l.b16 %v417
        %v2649 = vunpack.c.h.b16 %v417
        %v2650 = vunpack.c.l.b16 %v418
        %v2651 = vunpack.c.h.b16 %v418
        %v2652 = vunpack.c.l.b16 %v419
        %v2653 = vunpack.c.h.b16 %v419
        %v2654 = vunpack.c.l.b16 %v420
        %v2655 = vunpack.c.h.b16 %v420
        %v2656 = vunpack.c.l.b16 %v421
        %v2657 = vunpack.c.h.b16 %v421
        %v2658 = vunpack.c.l.b16 %v422
        %v2659 = vunpack.c.h.b16 %v422
        %v2660 = vunpack.c.l.b16 %v423
        %v2661 = vunpack.c.h.b16 %v423
        %v2662 = vunpack.c.l.b16 %v424
        %v2663 = vunpack.c.h.b16 %v424
        %v2664 = vunpack.c.l.b16 %v425
        %v2665 = vunpack.c.h.b16 %v425
        %v2666 = vunpack.c.l.b16 %v426
        %v2667 = vunpack.c.h.b16 %v426
        %v2668 = vunpack.c.l.b16 %v427
        %v2669 = vunpack.c.h.b16 %v427
        %v2670 = vunpack.c.l.b16 %v428
        %v2671 = vunpack.c.h.b16 %v428
        %v2672 = vunpack.c.l.b16 %v429
        %v2673 = vunpack.c.h.b16 %v429
        %v2674 = vunpack.c.l.b16 %v430
        %v2675 = vunpack.c.h.b16 %v430
        %v2676 = vunpack.c.l.b16 %v431
        %v2677 = vunpack.c.h.b16 %v431
        %v2678 = vunpack.c.l.b16 %v432
        %v2679 = vunpack.c.h.b16 %v432
        %v2680 = vunpack.c.l.b16 %v433
        %v2681 = vunpack.c.h.b16 %v433
        %v2682 = vunpack.c.l.b16 %v434
        %v2683 = vunpack.c.h.b16 %v434
        %v2684 = vunpack.c.l.b16 %v435
        %v2685 = vunpack.c.h.b16 %v435
        %v2686 = vunpack.c.l.b16 %v436
        %v2687 = vunpack.c.h.b16 %v436
        %v2688 = vunpack.c.l.b16 %v437
        %v2689 = vunpack.c.h.b16 %v437
        %v2690 = vunpack.c.l.b16 %v438
        %v2691 = vunpack.c.h.b16 %v438
        %v2692 = vunpack.c.l.b16 %v439
        %v2693 = vunpack.c.h.b16 %v439
        %v2694 = vunpack.c.l.b16 %v440
        %v2695 = vunpack.c.h.b16 %v440
        %v2696 = vunpack.c.l.b16 %v441
        %v2697 = vunpack.c.h.b16 %v441
        %v2698 = vunpack.c.l.b16 %v442
        %v2699 = vunpack.c.h.b16 %v442
        %v2700 = vunpack.c.l.b16 %v443
        %v2701 = vunpack.c.h.b16 %v443
        %v2702 = vunpack.c.l.b16 %v444
        %v2703 = vunpack.c.h.b16 %v444
        %v2704 = vunpack.c.l.b16 %v445
        %v2705 = vunpack.c.h.b16 %v445
        %v2706 = vunpack.c.l.b16 %v446
        %v2707 = vunpack.c.h.b16 %v446
        %v2708 = vunpack.c.l.b16 %v447
        %v2709 = vunpack.c.h.b16 %v447
        %v2710 = vunpack.c.l.b16 %v448
        %v2711 = vunpack.c.h.b16 %v448
        %v2712 = vunpack.c.l.b16 %v449
        %v2713 = vunpack.c.h.b16 %v449
        %v2714 = vunpack.c.l.b16 %v450
        %v2715 = vunpack.c.h.b16 %v450
        %v2716 = vunpack.c.l.b16 %v451
        %v2717 = vunpack.c.h.b16 %v451
        %v2718 = vunpack.c.l.b16 %v452
        %v2719 = vunpack.c.h.b16 %v452
        %v2720 = vunpack.c.l.b16 %v453
        %v2721 = vunpack.c.h.b16 %v453
        %v2722 = vunpack.c.l.b16 %v454
        %v2723 = vunpack.c.h.b16 %v454
        %v2724 = vunpack.c.l.b16 %v455
        %v2725 = vunpack.c.h.b16 %v455
        %v2726 = vunpack.c.l.b16 %v456
        %v2727 = vunpack.c.h.b16 %v456
        %v2728 = vunpack.c.l.b16 %v457
        %v2729 = vunpack.c.h.b16 %v457
        %v2730 = vunpack.c.l.b16 %v458
        %v2731 = vunpack.c.h.b16 %v458
        %v2732 = vunpack.c.l.b16 %v459
        %v2733 = vunpack.c.h.b16 %v459
        %v2734 = vunpack.c.l.b16 %v460
        %v2735 = vunpack.c.h.b16 %v460
        %v2736 = vunpack.c.l.b16 %v461
        %v2737 = vunpack.c.h.b16 %v461
        %v2738 = vunpack.c.l.b16 %v462
        %v2739 = vunpack.c.h.b16 %v462
        %v2740 = vunpack.c.l.b16 %v463
        %v2741 = vunpack.c.h.b16 %v463
        %v2742 = vunpack.c.l.b16 %v464
        %v2743 = vunpack.c.h.b16 %v464
        %v2744 = vunpack.c.l.b16 %v465
        %v2745 = vunpack.c.h.b16 %v465
        %v2746 = vunpack.c.l.b16 %v466
        %v2747 = vunpack.c.h.b16 %v466
        %v2748 = vunpack.c.l.b16 %v467
        %v2749 = vunpack.c.h.b16 %v467
        %v2750 = vunpack.c.l.b16 %v468
        %v2751 = vunpack.c.h.b16 %v468
        %v2752 = vunpack.c.l.b16 %v469
        %v2753 = vunpack.c.h.b16 %v469
        %v2754 = vunpack.c.l.b16 %v470
        %v2755 = vunpack.c.h.b16 %v470
        %v2756 = vunpack.c.l.b16 %v471
        %v2757 = vunpack.c.h.b16 %v471
        %v2758 = vunpack.c.l.b16 %v472
        %v2759 = vunpack.c.h.b16 %v472
        %v2760 = vunpack.c.l.b16 %v473
        %v2761 = vunpack.c.h.b16 %v473
        %v2762 = vunpack.c.l.b16 %v474
        %v2763 = vunpack.c.h.b16 %v474
        %v2764 = vunpack.c.l.b16 %v475
        %v2765 = vunpack.c.h.b16 %v475
        %v2766 = vunpack.c.l.b16 %v476
        %v2767 = vunpack.c.h.b16 %v476
        %v2768 = vunpack.c.l.b16 %v477
        %v2769 = vunpack.c.h.b16 %v477
        %v2770 = vunpack.c.l.b16 %v478
        %v2771 = vunpack.c.h.b16 %v478
        %v2772 = vunpack.c.l.b16 %v479
        %v2773 = vunpack.c.h.b16 %v479
        %v2774 = vunpack.c.l.b16 %v480
        %v2775 = vunpack.c.h.b16 %v480
        %v2776 = vunpack.c.l.b16 %v481
        %v2777 = vunpack.c.h.b16 %v481
        %v2778 = vunpack.c.l.b16 %v482
        %v2779 = vunpack.c.h.b16 %v482
        %v2780 = vunpack.c.l.b16 %v483
        %v2781 = vunpack.c.h.b16 %v483
        %v2782 = vunpack.c.l.b16 %v484
        %v2783 = vunpack.c.h.b16 %v484
        %v2784 = vunpack.c.l.b16 %v485
        %v2785 = vunpack.c.h.b16 %v485
        %v2786 = vunpack.c.l.b16 %v486
        %v2787 = vunpack.c.h.b16 %v486
        %v2788 = vunpack.c.l.b16 %v487
        %v2789 = vunpack.c.h.b16 %v487
        %v2790 = vunpack.c.l.b16 %v488
        %v2791 = vunpack.c.h.b16 %v488
        %v2792 = vunpack.c.l.b16 %v489
        %v2793 = vunpack.c.h.b16 %v489
        %v2794 = vunpack.c.l.b16 %v490
        %v2795 = vunpack.c.h.b16 %v490
        %v2796 = vunpack.c.l.b16 %v491
        %v2797 = vunpack.c.h.b16 %v491
        %v2798 = vunpack.c.l.b16 %v492
        %v2799 = vunpack.c.h.b16 %v492
        %v2800 = vunpack.c.l.b16 %v493
        %v2801 = vunpack.c.h.b16 %v493
        %v2802 = vunpack.c.l.b16 %v494
        %v2803 = vunpack.c.h.b16 %v494
        %v2804 = vunpack.c.l.b16 %v495
        %v2805 = vunpack.c.h.b16 %v495
        %v2806 = vunpack.c.l.b16 %v496
        %v2807 = vunpack.c.h.b16 %v496
        %v2808 = vunpack.c.l.b16 %v497
        %v2809 = vunpack.c.h.b16 %v497
        %v2810 = vunpack.c.l.b16 %v498
        %v2811 = vunpack.c.h.b16 %v498
        %v2812 = vunpack.c.l.b16 %v499
        %v2813 = vunpack.c.h.b16 %v499
        %v2814 = vunpack.c.l.b16 %v500
        %v2815 = vunpack.c.h.b16 %v500
        %v2816 = vunpack.c.l.b16 %v501
        %v2817 = vunpack.c.h.b16 %v501
        %v2818 = vunpack.c.l.b16 %v502
        %v2819 = vunpack.c.h.b16 %v502
        %v2820 = vunpack.c.l.b16 %v503
        %v2821 = vunpack.c.h.b16 %v503
        %v2822 = vunpack.c.l.b16 %v504
        %v2823 = vunpack.c.h.b16 %v504
        %v2824 = vunpack.c.l.b16 %v505
        %v2825 = vunpack.c.h.b16 %v505
        %v2826 = vunpack.c.l.b16 %v506
        %v2827 = vunpack.c.h.b16 %v506
        %v2828 = vunpack.c.l.b16 %v507
        %v2829 = vunpack.c.h.b16 %v507
        %v2830 = vunpack.c.l.b16 %v508
        %v2831 = vunpack.c.h.b16 %v508
        %v2832 = vunpack.c.l.b16 %v509
        %v2833 = vunpack.c.h.b16 %v509
        %v2834 = vunpack.c.l.b16 %v510
        %v2835 = vunpack.c.h.b16 %v510
        %v2836 = vunpack.c.l.b16 %v511
        %v2837 = vunpack.c.h.b16 %v511
        %v2838 = vunpack.c.l.b16 %v512
        %v2839 = vunpack.c.h.b16 %v512
        %v2840 = vunpack.c.l.b16 %v513
        %v2841 = vunpack.c.h.b16 %v513
        %v2842 = vunpack.c.l.b16 %v514
        %v2843 = vunpack.c.h.b16 %v514
        %v2844 = vunpack.c.l.b16 %v515
        %v2845 = vunpack.c.h.b16 %v515
        %v2846 = vunpack.c.l.b16 %v516
        %v2847 = vunpack.c.h.b16 %v516
        %v2848 = vunpack.c.l.b16 %v517
        %v2849 = vunpack.c.h.b16 %v517
        %v2850 = vunpack.c.l.b16 %v518
        %v2851 = vunpack.c.h.b16 %v518
        %v2852 = vunpack.c.l.b16 %v519
        %v2853 = vunpack.c.h.b16 %v519
        %v2854 = vunpack.c.l.b16 %v520
        %v2855 = vunpack.c.h.b16 %v520
        %v2856 = vunpack.c.l.b16 %v521
        %v2857 = vunpack.c.h.b16 %v521
        %v2858 = vunpack.c.l.b16 %v522
        %v2859 = vunpack.c.h.b16 %v522
        %v2860 = vunpack.c.l.b16 %v523
        %v2861 = vunpack.c.h.b16 %v523
        %v2862 = vunpack.c.l.b16 %v524
        %v2863 = vunpack.c.h.b16 %v524
        %v2864 = vunpack.c.l.b16 %v525
        %v2865 = vunpack.c.h.b16 %v525
        %v2866 = vunpack.c.l.b16 %v526
        %v2867 = vunpack.c.h.b16 %v526
        %v2868 = vunpack.c.l.b16 %v527
        %v2869 = vunpack.c.h.b16 %v527
        %v2870 = vunpack.c.l.b16 %v528
        %v2871 = vunpack.c.h.b16 %v528
        %v2872 = vunpack.c.l.b16 %v529
        %v2873 = vunpack.c.h.b16 %v529
        %v2874 = vunpack.c.l.b16 %v530
        %v2875 = vunpack.c.h.b16 %v530
        %v2876 = vunpack.c.l.b16 %v531
        %v2877 = vunpack.c.h.b16 %v531
        %v2878 = vunpack.c.l.b16 %v532
        %v2879 = vunpack.c.h.b16 %v532
        %v2880 = vunpack.c.l.b16 %v533
        %v2881 = vunpack.c.h.b16 %v533
        %v2882 = vunpack.c.l.b16 %v534
        %v2883 = vunpack.c.h.b16 %v534
        %v2884 = vunpack.c.l.b16 %v535
        %v2885 = vunpack.c.h.b16 %v535
        %v2886 = vunpack.c.l.b16 %v536
        %v2887 = vunpack.c.h.b16 %v536
        %v2888 = vunpack.c.l.b16 %v537
        %v2889 = vunpack.c.h.b16 %v537
        %v2890 = vunpack.c.l.b16 %v538
        %v2891 = vunpack.c.h.b16 %v538
        %v2892 = vunpack.c.l.b16 %v539
        %v2893 = vunpack.c.h.b16 %v539
        %v2894 = vunpack.c.l.b16 %v540
        %v2895 = vunpack.c.h.b16 %v540
        %v2896 = vunpack.c.l.b16 %v541
        %v2897 = vunpack.c.h.b16 %v541
        %v2898 = vunpack.c.l.b16 %v542
        %v2899 = vunpack.c.h.b16 %v542
        %v2900 = vunpack.c.l.b16 %v543
        %v2901 = vunpack.c.h.b16 %v543
        %v2902 = vunpack.c.l.b16 %v544
        %v2903 = vunpack.c.h.b16 %v544
        %v2904 = vunpack.c.l.b16 %v545
        %v2905 = vunpack.c.h.b16 %v545
        %v2906 = vunpack.c.l.b16 %v546
        %v2907 = vunpack.c.h.b16 %v546
        %v2908 = vunpack.c.l.b16 %v547
        %v2909 = vunpack.c.h.b16 %v547
        %v2910 = vunpack.c.l.b16 %v548
        %v2911 = vunpack.c.h.b16 %v548
        %v2912 = vunpack.c.l.b16 %v549
        %v2913 = vunpack.c.h.b16 %v549
        %v2914 = vunpack.c.l.b16 %v550
        %v2915 = vunpack.c.h.b16 %v550
        %v2916 = vunpack.c.l.b16 %v551
        %v2917 = vunpack.c.h.b16 %v551
        %v2918 = vunpack.c.l.b16 %v552
        %v2919 = vunpack.c.h.b16 %v552
        %v2920 = vunpack.c.l.b16 %v553
        %v2921 = vunpack.c.h.b16 %v553
        %v2922 = vunpack.c.l.b16 %v554
        %v2923 = vunpack.c.h.b16 %v554
        %v2924 = vunpack.c.l.b16 %v555
        %v2925 = vunpack.c.h.b16 %v555
        %v2926 = vunpack.c.l.b16 %v556
        %v2927 = vunpack.c.h.b16 %v556
        %v2928 = vunpack.c.l.b16 %v557
        %v2929 = vunpack.c.h.b16 %v557
        %v2930 = vunpack.c.l.b16 %v558
        %v2931 = vunpack.c.h.b16 %v558
        %v2932 = vunpack.c.l.b16 %v559
        %v2933 = vunpack.c.h.b16 %v559
        %v2934 = vunpack.c.l.b16 %v560
        %v2935 = vunpack.c.h.b16 %v560
        %v2936 = vunpack.c.l.b16 %v561
        %v2937 = vunpack.c.h.b16 %v561
        %v2938 = vunpack.c.l.b16 %v562
        %v2939 = vunpack.c.h.b16 %v562
        %v2940 = vunpack.c.l.b16 %v563
        %v2941 = vunpack.c.h.b16 %v563
        %v2942 = vunpack.c.l.b16 %v564
        %v2943 = vunpack.c.h.b16 %v564
        %v2944 = vunpack.c.l.b16 %v565
        %v2945 = vunpack.c.h.b16 %v565
        %v2946 = vunpack.c.l.b16 %v566
        %v2947 = vunpack.c.h.b16 %v566
        %v2948 = vunpack.c.l.b16 %v567
        %v2949 = vunpack.c.h.b16 %v567
        %v2950 = vunpack.c.l.b16 %v568
        %v2951 = vunpack.c.h.b16 %v568
        %v2952 = vunpack.c.l.b16 %v569
        %v2953 = vunpack.c.h.b16 %v569
        %v2954 = vunpack.c.l.b16 %v570
        %v2955 = vunpack.c.h.b16 %v570
        %v2956 = vunpack.c.l.b16 %v571
        %v2957 = vunpack.c.h.b16 %v571
        %v2958 = vunpack.c.l.b16 %v572
        %v2959 = vunpack.c.h.b16 %v572
        %v2960 = vunpack.c.l.b16 %v573
        %v2961 = vunpack.c.h.b16 %v573
        %v2962 = vunpack.c.l.b16 %v574
        %v2963 = vunpack.c.h.b16 %v574
        %v2964 = vunpack.c.l.b16 %v575
        %v2965 = vunpack.c.h.b16 %v575
        %v2966 = vunpack.c.l.b16 %v576
        %v2967 = vunpack.c.h.b16 %v576
        %v2968 = vunpack.c.l.b16 %v577
        %v2969 = vunpack.c.h.b16 %v577
        %v2970 = vunpack.c.l.b16 %v578
        %v2971 = vunpack.c.h.b16 %v578
        %v2972 = vunpack.c.l.b16 %v579
        %v2973 = vunpack.c.h.b16 %v579
        %v2974 = vunpack.c.l.b16 %v580
        %v2975 = vunpack.c.h.b16 %v580
        %v2976 = vunpack.c.l.b16 %v581
        %v2977 = vunpack.c.h.b16 %v581
        %v2978 = vunpack.c.l.b16 %v582
        %v2979 = vunpack.c.h.b16 %v582
        %v2980 = vunpack.c.l.b16 %v583
        %v2981 = vunpack.c.h.b16 %v583
        %v2982 = vunpack.c.l.b16 %v584
        %v2983 = vunpack.c.h.b16 %v584
        %v2984 = vunpack.c.l.b16 %v585
        %v2985 = vunpack.c.h.b16 %v585
        %v2986 = vunpack.c.l.b16 %v586
        %v2987 = vunpack.c.h.b16 %v586
        %v2988 = vunpack.c.l.b16 %v587
        %v2989 = vunpack.c.h.b16 %v587
        %v2990 = vunpack.c.l.b16 %v588
        %v2991 = vunpack.c.h.b16 %v588
        %v2992 = vunpack.c.l.b16 %v589
        %v2993 = vunpack.c.h.b16 %v589
        %v2994 = vunpack.c.l.b16 %v590
        %v2995 = vunpack.c.h.b16 %v590
        %v2996 = vunpack.c.l.b16 %v591
        %v2997 = vunpack.c.h.b16 %v591
        %v2998 = vunpack.c.l.b16 %v592
        %v2999 = vunpack.c.h.b16 %v592
        %v3000 = vunpack.c.l.b16 %v593
        %v3001 = vunpack.c.h.b16 %v593
        %v3002 = vunpack.c.l.b16 %v594
        %v3003 = vunpack.c.h.b16 %v594
        %v3004 = vunpack.c.l.b16 %v595
        %v3005 = vunpack.c.h.b16 %v595
        %v3006 = vunpack.c.l.b16 %v596
        %v3007 = vunpack.c.h.b16 %v596
        %v3008 = vunpack.c.l.b16 %v597
        %v3009 = vunpack.c.h.b16 %v597
        %v3010 = vunpack.c.l.b16 %v598
        %v3011 = vunpack.c.h.b16 %v598
        %v3012 = vunpack.c.l.b16 %v599
        %v3013 = vunpack.c.h.b16 %v599
        %v3014 = vunpack.c.l.b16 %v600
        %v3015 = vunpack.c.h.b16 %v600
        %v3016 = vunpack.c.l.b16 %v601
        %v3017 = vunpack.c.h.b16 %v601
        %v3018 = vunpack.c.l.b16 %v602
        %v3019 = vunpack.c.h.b16 %v602
        %v3020 = vunpack.c.l.b16 %v603
        %v3021 = vunpack.c.h.b16 %v603
        %v3022 = vunpack.c.l.b16 %v604
        %v3023 = vunpack.c.h.b16 %v604
        %v3024 = vunpack.c.l.b16 %v605
        %v3025 = vunpack.c.h.b16 %v605
        %v3026 = vunpack.c.l.b16 %v606
        %v3027 = vunpack.c.h.b16 %v606
        %v3028 = vunpack.c.l.b16 %v607
        %v3029 = vunpack.c.h.b16 %v607
        %v3030 = vunpack.c.l.b16 %v608
        %v3031 = vunpack.c.h.b16 %v608
        %v3032 = vunpack.c.l.b16 %v609
        %v3033 = vunpack.c.h.b16 %v609
        %v3034 = vunpack.c.l.b16 %v610
        %v3035 = vunpack.c.h.b16 %v610
        %v3036 = vunpack.c.l.b16 %v611
        %v3037 = vunpack.c.h.b16 %v611
        %v3038 = vunpack.c.l.b16 %v612
        %v3039 = vunpack.c.h.b16 %v612
        %v3040 = vunpack.c.l.b16 %v613
        %v3041 = vunpack.c.h.b16 %v613
        %v3042 = vunpack.c.l.b16 %v614
        %v3043 = vunpack.c.h.b16 %v614
        %v3044 = vunpack.c.l.b16 %v615
        %v3045 = vunpack.c.h.b16 %v615
        %v3046 = vunpack.c.l.b16 %v616
        %v3047 = vunpack.c.h.b16 %v616
        %v3048 = vunpack.c.l.b16 %v617
        %v3049 = vunpack.c.h.b16 %v617
        %v3050 = vunpack.c.l.b16 %v618
        %v3051 = vunpack.c.h.b16 %v618
        %v3052 = vunpack.c.l.b16 %v619
        %v3053 = vunpack.c.h.b16 %v619
        %v3054 = vunpack.c.l.b16 %v620
        %v3055 = vunpack.c.h.b16 %v620
        %v3056 = vunpack.c.l.b16 %v621
        %v3057 = vunpack.c.h.b16 %v621
        %v3058 = vunpack.c.l.b16 %v622
        %v3059 = vunpack.c.h.b16 %v622
        %v3060 = vunpack.c.l.b16 %v623
        %v3061 = vunpack.c.h.b16 %v623
        %v3062 = vunpack.c.l.b16 %v624
        %v3063 = vunpack.c.h.b16 %v624
        %v3064 = vunpack.c.l.b16 %v625
        %v3065 = vunpack.c.h.b16 %v625
        %v3066 = vunpack.c.l.b16 %v626
        %v3067 = vunpack.c.h.b16 %v626
        %v3068 = vunpack.c.l.b16 %v627
        %v3069 = vunpack.c.h.b16 %v627
        %v3070 = vunpack.c.l.b16 %v628
        %v3071 = vunpack.c.h.b16 %v628
        %v3072 = vunpack.c.l.b16 %v629
        %v3073 = vunpack.c.h.b16 %v629
        %v3074 = vunpack.c.l.b16 %v630
        %v3075 = vunpack.c.h.b16 %v630
        %v3076 = vunpack.c.l.b16 %v631
        %v3077 = vunpack.c.h.b16 %v631
        %v3078 = vunpack.c.l.b16 %v632
        %v3079 = vunpack.c.h.b16 %v632
        %v3080 = vunpack.c.l.b16 %v633
        %v3081 = vunpack.c.h.b16 %v633
        %v3082 = vunpack.c.l.b16 %v634
        %v3083 = vunpack.c.h.b16 %v634
        %v3084 = vunpack.c.l.b16 %v635
        %v3085 = vunpack.c.h.b16 %v635
        %v3086 = vunpack.c.l.b16 %v636
        %v3087 = vunpack.c.h.b16 %v636
        %v3088 = vunpack.c.l.b16 %v637
        %v3089 = vunpack.c.h.b16 %v637
        %v3090 = vunpack.c.l.b16 %v638
        %v3091 = vunpack.c.h.b16 %v638
        %v3092 = vunpack.c.l.b16 %v639
        %v3093 = vunpack.c.h.b16 %v639
        %v3094 = vunpack.c.l.b16 %v640
        %v3095 = vunpack.c.h.b16 %v640
        %v3096 = vunpack.c.l.b16 %v641
        %v3097 = vunpack.c.h.b16 %v641
        %v3098 = vunpack.c.l.b16 %v642
        %v3099 = vunpack.c.h.b16 %v642
        %v3100 = vunpack.c.l.b16 %v643
        %v3101 = vunpack.c.h.b16 %v643
        %v3102 = vunpack.c.l.b16 %v644
        %v3103 = vunpack.c.h.b16 %v644
        %v3104 = vunpack.c.l.b16 %v645
        %v3105 = vunpack.c.h.b16 %v645
        %v3106 = vunpack.c.l.b16 %v646
        %v3107 = vunpack.c.h.b16 %v646
        %v3108 = vunpack.c.l.b16 %v647
        %v3109 = vunpack.c.h.b16 %v647
        %v3110 = vunpack.c.l.b16 %v648
        %v3111 = vunpack.c.h.b16 %v648
        %v3112 = vunpack.c.l.b16 %v649
        %v3113 = vunpack.c.h.b16 %v649
        %v3114 = vunpack.c.l.b16 %v650
        %v3115 = vunpack.c.h.b16 %v650
        %v3116 = vunpack.c.l.b16 %v651
        %v3117 = vunpack.c.h.b16 %v651
        %v3118 = vunpack.c.l.b16 %v652
        %v3119 = vunpack.c.h.b16 %v652
        %v3120 = vunpack.c.l.b16 %v653
        %v3121 = vunpack.c.h.b16 %v653
        %v3122 = vunpack.c.l.b16 %v654
        %v3123 = vunpack.c.h.b16 %v654
        %v3124 = vunpack.c.l.b16 %v655
        %v3125 = vunpack.c.h.b16 %v655
        %v3126 = vunpack.c.l.b16 %v656
        %v3127 = vunpack.c.h.b16 %v656
        %v3128 = vunpack.c.l.b16 %v657
        %v3129 = vunpack.c.h.b16 %v657
        %v3130 = vunpack.c.l.b16 %v658
        %v3131 = vunpack.c.h.b16 %v658
        %v3132 = vunpack.c.l.b16 %v659
        %v3133 = vunpack.c.h.b16 %v659
        %v3134 = vunpack.c.l.b16 %v660
        %v3135 = vunpack.c.h.b16 %v660
        %v3136 = vunpack.c.l.b16 %v661
        %v3137 = vunpack.c.h.b16 %v661
        %v3138 = vunpack.c.l.b16 %v662
        %v3139 = vunpack.c.h.b16 %v662
        %v3140 = vunpack.c.l.b16 %v663
        %v3141 = vunpack.c.h.b16 %v663
        %v3142 = vunpack.c.l.b16 %v664
        %v3143 = vunpack.c.h.b16 %v664
        %v3144 = vunpack.c.l.b16 %v665
        %v3145 = vunpack.c.h.b16 %v665
        %v3146 = vunpack.c.l.b16 %v666
        %v3147 = vunpack.c.h.b16 %v666
        %v3148 = vunpack.c.l.b16 %v667
        %v3149 = vunpack.c.h.b16 %v667
        %v3150 = vunpack.c.l.b16 %v668
        %v3151 = vunpack.c.h.b16 %v668
        %v3152 = vunpack.c.l.b16 %v669
        %v3153 = vunpack.c.h.b16 %v669
        %v3154 = vunpack.c.l.b16 %v670
        %v3155 = vunpack.c.h.b16 %v670
        %v3156 = vunpack.c.l.b16 %v671
        %v3157 = vunpack.c.h.b16 %v671
        %v3158 = vunpack.c.l.b16 %v672
        %v3159 = vunpack.c.h.b16 %v672
        %v3160 = vunpack.c.l.b16 %v673
        %v3161 = vunpack.c.h.b16 %v673
        %v3162 = vunpack.c.l.b16 %v674
        %v3163 = vunpack.c.h.b16 %v674
        %v3164 = vunpack.c.l.b16 %v675
        %v3165 = vunpack.c.h.b16 %v675
        %v3166 = vunpack.c.l.b16 %v676
        %v3167 = vunpack.c.h.b16 %v676
        %v3168 = vunpack.c.l.b16 %v677
        %v3169 = vunpack.c.h.b16 %v677
        %v3170 = vunpack.c.l.b16 %v678
        %v3171 = vunpack.c.h.b16 %v678
        %v3172 = vunpack.c.l.b16 %v679
        %v3173 = vunpack.c.h.b16 %v679
        %v3174 = vunpack.c.l.b16 %v680
        %v3175 = vunpack.c.h.b16 %v680
        %v3176 = vunpack.c.l.b16 %v681
        %v3177 = vunpack.c.h.b16 %v681
        %v3178 = vunpack.c.l.b16 %v682
        %v3179 = vunpack.c.h.b16 %v682
        %v3180 = vunpack.c.l.b16 %v683
        %v3181 = vunpack.c.h.b16 %v683
        %v3182 = vunpack.c.l.b16 %v684
        %v3183 = vunpack.c.h.b16 %v684
        %v3184 = vunpack.c.l.b16 %v685
        %v3185 = vunpack.c.h.b16 %v685
        %v3186 = vunpack.c.l.b16 %v686
        %v3187 = vunpack.c.h.b16 %v686
        %v3188 = vunpack.c.l.b16 %v687
        %v3189 = vunpack.c.h.b16 %v687
        %v3190 = vunpack.c.l.b16 %v688
        %v3191 = vunpack.c.h.b16 %v688
        %v3192 = vunpack.c.l.b16 %v689
        %v3193 = vunpack.c.h.b16 %v689
        %v3194 = vunpack.c.l.b16 %v690
        %v3195 = vunpack.c.h.b16 %v690
        %v3196 = vunpack.c.l.b16 %v691
        %v3197 = vunpack.c.h.b16 %v691
        %v3198 = vunpack.c.l.b16 %v692
        %v3199 = vunpack.c.h.b16 %v692
        %v3200 = vunpack.c.l.b16 %v693
        %v3201 = vunpack.c.h.b16 %v693
        %v3202 = vunpack.c.l.b16 %v694
        %v3203 = vunpack.c.h.b16 %v694
        %v3204 = vunpack.c.l.b16 %v695
        %v3205 = vunpack.c.h.b16 %v695
        %v3206 = vunpack.c.l.b16 %v696
        %v3207 = vunpack.c.h.b16 %v696
        %v3208 = vunpack.c.l.b16 %v697
        %v3209 = vunpack.c.h.b16 %v697
        %v3210 = vunpack.c.l.b16 %v698
        %v3211 = vunpack.c.h.b16 %v698
        %v3212 = vunpack.c.l.b16 %v699
        %v3213 = vunpack.c.h.b16 %v699
        %v3214 = vunpack.c.l.b16 %v700
        %v3215 = vunpack.c.h.b16 %v700
        %v3216 = vunpack.c.l.b16 %v701
        %v3217 = vunpack.c.h.b16 %v701
        %v3218 = vunpack.c.l.b16 %v702
        %v3219 = vunpack.c.h.b16 %v702
        %v3220 = vunpack.c.l.b16 %v703
        %v3221 = vunpack.c.h.b16 %v703
        %v3222 = vunpack.c.l.b16 %v704
        %v3223 = vunpack.c.h.b16 %v704
        %v3224 = vunpack.c.l.b16 %v705
        %v3225 = vunpack.c.h.b16 %v705
        %v3226 = vunpack.c.l.b16 %v706
        %v3227 = vunpack.c.h.b16 %v706
        %v3228 = vunpack.c.l.b16 %v707
        %v3229 = vunpack.c.h.b16 %v707
        %v3230 = vunpack.c.l.b16 %v708
        %v3231 = vunpack.c.h.b16 %v708
        %v3232 = vunpack.c.l.b16 %v709
        %v3233 = vunpack.c.h.b16 %v709
        %v3234 = vunpack.c.l.b16 %v710
        %v3235 = vunpack.c.h.b16 %v710
        %v3236 = vunpack.c.l.b16 %v711
        %v3237 = vunpack.c.h.b16 %v711
        %v3238 = vunpack.c.l.b16 %v712
        %v3239 = vunpack.c.h.b16 %v712
        %v3240 = vunpack.c.l.b16 %v713
        %v3241 = vunpack.c.h.b16 %v713
        %v3242 = vunpack.c.l.b16 %v714
        %v3243 = vunpack.c.h.b16 %v714
        %v3244 = vunpack.c.l.b16 %v715
        %v3245 = vunpack.c.h.b16 %v715
        %v3246 = vunpack.c.l.b16 %v716
        %v3247 = vunpack.c.h.b16 %v716
        %v3248 = vunpack.c.l.b16 %v717
        %v3249 = vunpack.c.h.b16 %v717
        %v3250 = vunpack.c.l.b16 %v718
        %v3251 = vunpack.c.h.b16 %v718
        %v3252 = vunpack.c.l.b16 %v719
        %v3253 = vunpack.c.h.b16 %v719
        %v3254 = vunpack.c.l.b16 %v720
        %v3255 = vunpack.c.h.b16 %v720
        %v3256 = vunpack.c.l.b16 %v721
        %v3257 = vunpack.c.h.b16 %v721
        %v3258 = vunpack.c.l.b16 %v722
        %v3259 = vunpack.c.h.b16 %v722
        %v3260 = vunpack.c.l.b16 %v723
        %v3261 = vunpack.c.h.b16 %v723
        %v3262 = vunpack.c.l.b16 %v724
        %v3263 = vunpack.c.h.b16 %v724
        %v3264 = vunpack.c.l.b16 %v725
        %v3265 = vunpack.c.h.b16 %v725
        %v3266 = vunpack.c.l.b16 %v726
        %v3267 = vunpack.c.h.b16 %v726
        %v3268 = vunpack.c.l.b16 %v727
        %v3269 = vunpack.c.h.b16 %v727
        %v3270 = vunpack.c.l.b16 %v728
        %v3271 = vunpack.c.h.b16 %v728
        %v3272 = vunpack.c.l.b16 %v729
        %v3273 = vunpack.c.h.b16 %v729
        %v3274 = vunpack.c.l.b16 %v730
        %v3275 = vunpack.c.h.b16 %v730
        %v3276 = vunpack.c.l.b16 %v731
        %v3277 = vunpack.c.h.b16 %v731
        %v3278 = vunpack.c.l.b16 %v732
        %v3279 = vunpack.c.h.b16 %v732
        %v3280 = vunpack.c.l.b16 %v733
        %v3281 = vunpack.c.h.b16 %v733
        %v3282 = vunpack.c.l.b16 %v734
        %v3283 = vunpack.c.h.b16 %v734
        %v3284 = vunpack.c.l.b16 %v735
        %v3285 = vunpack.c.h.b16 %v735
        %v3286 = vunpack.c.l.b16 %v736
        %v3287 = vunpack.c.h.b16 %v736
        %v3288 = vunpack.c.l.b16 %v737
        %v3289 = vunpack.c.h.b16 %v737
        %v3290 = vunpack.c.l.b16 %v738
        %v3291 = vunpack.c.h.b16 %v738
        %v3292 = vunpack.c.l.b16 %v739
        %v3293 = vunpack.c.h.b16 %v739
        %v3294 = vunpack.c.l.b16 %v740
        %v3295 = vunpack.c.h.b16 %v740
        %v3296 = vunpack.c.l.b16 %v741
        %v3297 = vunpack.c.h.b16 %v741
        %v3298 = vunpack.c.l.b16 %v742
        %v3299 = vunpack.c.h.b16 %v742
        %v3300 = vunpack.c.l.b16 %v743
        %v3301 = vunpack.c.h.b16 %v743
        %v3302 = vunpack.c.l.b16 %v744
        %v3303 = vunpack.c.h.b16 %v744
        %v3304 = vunpack.c.l.b16 %v745
        %v3305 = vunpack.c.h.b16 %v745
        %v3306 = vunpack.c.l.b16 %v746
        %v3307 = vunpack.c.h.b16 %v746
        %v3308 = vunpack.c.l.b16 %v747
        %v3309 = vunpack.c.h.b16 %v747
        %v3310 = vunpack.c.l.b16 %v748
        %v3311 = vunpack.c.h.b16 %v748
        %v3312 = vunpack.c.l.b16 %v749
        %v3313 = vunpack.c.h.b16 %v749
        %v3314 = vunpack.c.l.b16 %v750
        %v3315 = vunpack.c.h.b16 %v750
        %v3316 = vunpack.c.l.b16 %v751
        %v3317 = vunpack.c.h.b16 %v751
        %v3318 = vunpack.c.l.b16 %v752
        %v3319 = vunpack.c.h.b16 %v752
        %v3320 = vunpack.c.l.b16 %v753
        %v3321 = vunpack.c.h.b16 %v753
        %v3322 = vunpack.c.l.b16 %v754
        %v3323 = vunpack.c.h.b16 %v754
        %v3324 = vunpack.c.l.b16 %v755
        %v3325 = vunpack.c.h.b16 %v755
        %v3326 = vunpack.c.l.b16 %v756
        %v3327 = vunpack.c.h.b16 %v756
        %v3328 = vunpack.c.l.b16 %v757
        %v3329 = vunpack.c.h.b16 %v757
        %v3330 = vunpack.c.l.b16 %v758
        %v3331 = vunpack.c.h.b16 %v758
        %v3332 = vunpack.c.l.b16 %v759
        %v3333 = vunpack.c.h.b16 %v759
        %v3334 = vunpack.c.l.b16 %v760
        %v3335 = vunpack.c.h.b16 %v760
        %v3336 = vunpack.c.l.b16 %v761
        %v3337 = vunpack.c.h.b16 %v761
        %v3338 = vunpack.c.l.b16 %v762
        %v3339 = vunpack.c.h.b16 %v762
        %v3340 = vunpack.c.l.b16 %v763
        %v3341 = vunpack.c.h.b16 %v763
        %v3342 = vunpack.c.l.b16 %v764
        %v3343 = vunpack.c.h.b16 %v764
        %v3344 = vunpack.c.l.b16 %v765
        %v3345 = vunpack.c.h.b16 %v765
        %v3346 = vunpack.c.l.b16 %v766
        %v3347 = vunpack.c.h.b16 %v766
        %v3348 = vunpack.c.l.b16 %v767
        %v3349 = vunpack.c.h.b16 %v767
        %v3350 = vunpack.c.l.b16 %v768
        %v3351 = vunpack.c.h.b16 %v768
        %v3352 = vunpack.c.l.b16 %v769
        %v3353 = vunpack.c.h.b16 %v769
        %v3354 = vunpack.c.l.b16 %v770
        %v3355 = vunpack.c.h.b16 %v770
        %v3356 = vunpack.c.l.b16 %v771
        %v3357 = vunpack.c.h.b16 %v771
        %v3358 = vunpack.c.l.b16 %v772
        %v3359 = vunpack.c.h.b16 %v772
        %v3360 = vunpack.c.l.b16 %v773
        %v3361 = vunpack.c.h.b16 %v773
        %v3362 = vunpack.c.l.b16 %v774
        %v3363 = vunpack.c.h.b16 %v774
        %v3364 = vunpack.c.l.b16 %v775
        %v3365 = vunpack.c.h.b16 %v775
        %v3366 = vunpack.c.l.b16 %v776
        %v3367 = vunpack.c.h.b16 %v776
        %v3368 = vunpack.c.l.b16 %v777
        %v3369 = vunpack.c.h.b16 %v777
        %v3370 = vunpack.c.l.b16 %v778
        %v3371 = vunpack.c.h.b16 %v778
        %v3372 = vunpack.c.l.b16 %v779
        %v3373 = vunpack.c.h.b16 %v779
        %v3374 = vunpack.c.l.b16 %v780
        %v3375 = vunpack.c.h.b16 %v780
        %v3376 = vunpack.c.l.b16 %v781
        %v3377 = vunpack.c.h.b16 %v781
        %v3378 = vunpack.c.l.b16 %v782
        %v3379 = vunpack.c.h.b16 %v782
        %v3380 = vunpack.c.l.b16 %v783
        %v3381 = vunpack.c.h.b16 %v783
        %v3382 = vunpack.c.l.b16 %v784
        %v3383 = vunpack.c.h.b16 %v784
        %v3384 = vunpack.c.l.b16 %v785
        %v3385 = vunpack.c.h.b16 %v785
        %v3386 = vunpack.c.l.b16 %v786
        %v3387 = vunpack.c.h.b16 %v786
        %v3388 = vunpack.c.l.b16 %v787
        %v3389 = vunpack.c.h.b16 %v787
        %v3390 = vunpack.c.l.b16 %v788
        %v3391 = vunpack.c.h.b16 %v788
        %v3392 = vunpack.c.l.b16 %v789
        %v3393 = vunpack.c.h.b16 %v789
        %v3394 = vunpack.c.l.b16 %v790
        %v3395 = vunpack.c.h.b16 %v790
        %v3396 = vunpack.c.l.b16 %v791
        %v3397 = vunpack.c.h.b16 %v791
        %v3398 = vunpack.c.l.b16 %v792
        %v3399 = vunpack.c.h.b16 %v792
        %v3400 = vunpack.c.l.b16 %v793
        %v3401 = vunpack.c.h.b16 %v793
        %v3402 = vunpack.c.l.b16 %v794
        %v3403 = vunpack.c.h.b16 %v794
        %v3404 = vunpack.c.l.b16 %v795
        %v3405 = vunpack.c.h.b16 %v795
        %v3406 = vunpack.c.l.b16 %v796
        %v3407 = vunpack.c.h.b16 %v796
        %v3408 = vunpack.c.l.b16 %v797
        %v3409 = vunpack.c.h.b16 %v797
        %v3410 = vunpack.c.l.b16 %v798
        %v3411 = vunpack.c.h.b16 %v798
        %v3412 = vunpack.c.l.b16 %v799
        %v3413 = vunpack.c.h.b16 %v799
        %v3414 = vunpack.c.l.b16 %v800
        %v3415 = vunpack.c.h.b16 %v800
        %v3416 = vunpack.c.l.b16 %v801
        %v3417 = vunpack.c.h.b16 %v801
        %v3418 = vunpack.c.l.b16 %v802
        %v3419 = vunpack.c.h.b16 %v802
        %v3420 = vunpack.c.l.b16 %v803
        %v3421 = vunpack.c.h.b16 %v803
        %v3422 = vunpack.c.l.b16 %v804
        %v3423 = vunpack.c.h.b16 %v804
        %v3424 = vunpack.c.l.b16 %v805
        %v3425 = vunpack.c.h.b16 %v805
        %v3426 = vunpack.c.l.b16 %v806
        %v3427 = vunpack.c.h.b16 %v806
        %v3428 = vunpack.c.l.b16 %v807
        %v3429 = vunpack.c.h.b16 %v807
        %v3430 = vunpack.c.l.b16 %v808
        %v3431 = vunpack.c.h.b16 %v808
        %v3432 = vunpack.c.l.b16 %v809
        %v3433 = vunpack.c.h.b16 %v809
        %v3434 = vunpack.c.l.b16 %v810
        %v3435 = vunpack.c.h.b16 %v810
        %v3436 = vunpack.c.l.b16 %v811
        %v3437 = vunpack.c.h.b16 %v811
        %v3438 = vunpack.c.l.b16 %v812
        %v3439 = vunpack.c.h.b16 %v812
        %v3440 = vunpack.c.l.b16 %v813
        %v3441 = vunpack.c.h.b16 %v813
        %v3442 = vunpack.c.l.b16 %v814
        %v3443 = vunpack.c.h.b16 %v814
        %v3444 = vunpack.c.l.b16 %v815
        %v3445 = vunpack.c.h.b16 %v815
        %v3446 = vunpack.c.l.b16 %v816
        %v3447 = vunpack.c.h.b16 %v816
        %v3448 = vunpack.c.l.b16 %v817
        %v3449 = vunpack.c.h.b16 %v817
        %v3450 = vunpack.c.l.b16 %v818
        %v3451 = vunpack.c.h.b16 %v818
        %v3452 = vunpack.c.l.b16 %v819
        %v3453 = vunpack.c.h.b16 %v819
        %v3454 = vunpack.c.l.b16 %v820
        %v3455 = vunpack.c.h.b16 %v820
        %v3456 = vunpack.c.l.b16 %v821
        %v3457 = vunpack.c.h.b16 %v821
        %v3458 = vunpack.c.l.b16 %v822
        %v3459 = vunpack.c.h.b16 %v822
        %v3460 = vunpack.c.l.b16 %v823
        %v3461 = vunpack.c.h.b16 %v823
        %v3462 = vunpack.c.l.b16 %v824
        %v3463 = vunpack.c.h.b16 %v824
        %v3464 = vunpack.c.l.b16 %v825
        %v3465 = vunpack.c.h.b16 %v825
        %v3466 = vunpack.c.l.b16 %v826
        %v3467 = vunpack.c.h.b16 %v826
        %v3468 = vunpack.c.l.b16 %v827
        %v3469 = vunpack.c.h.b16 %v827
        %v3470 = vunpack.c.l.b16 %v828
        %v3471 = vunpack.c.h.b16 %v828
        %v3472 = vunpack.c.l.b16 %v829
        %v3473 = vunpack.c.h.b16 %v829
        %v3474 = vunpack.c.l.b16 %v830
        %v3475 = vunpack.c.h.b16 %v830
        %v3476 = vunpack.c.l.b16 %v831
        %v3477 = vunpack.c.h.b16 %v831
        %v3478 = vunpack.c.l.b16 %v832
        %v3479 = vunpack.c.h.b16 %v832
        %v3480 = vunpack.c.l.b16 %v833
        %v3481 = vunpack.c.h.b16 %v833
        %v3482 = vunpack.c.l.b16 %v834
        %v3483 = vunpack.c.h.b16 %v834
        %v3484 = vunpack.c.l.b16 %v835
        %v3485 = vunpack.c.h.b16 %v835
        %v3486 = vunpack.c.l.b16 %v836
        %v3487 = vunpack.c.h.b16 %v836
        %v3488 = vunpack.c.l.b16 %v837
        %v3489 = vunpack.c.h.b16 %v837
        %v3490 = vunpack.c.l.b16 %v838
        %v3491 = vunpack.c.h.b16 %v838
        %v3492 = vunpack.c.l.b16 %v839
        %v3493 = vunpack.c.h.b16 %v839
        %v3494 = vunpack.c.l.b16 %v840
        %v3495 = vunpack.c.h.b16 %v840
        %v3496 = vunpack.c.l.b16 %v841
        %v3497 = vunpack.c.h.b16 %v841
        %v3498 = vunpack.c.l.b16 %v842
        %v3499 = vunpack.c.h.b16 %v842
        %v3500 = vunpack.c.l.b16 %v843
        %v3501 = vunpack.c.h.b16 %v843
        %v3502 = vunpack.c.l.b16 %v844
        %v3503 = vunpack.c.h.b16 %v844
        %v3504 = vunpack.c.l.b16 %v845
        %v3505 = vunpack.c.h.b16 %v845
        %v3506 = vunpack.c.l.b16 %v846
        %v3507 = vunpack.c.h.b16 %v846
        %v3508 = vunpack.c.l.b16 %v847
        %v3509 = vunpack.c.h.b16 %v847
        %v3510 = vunpack.c.l.b16 %v848
        %v3511 = vunpack.c.h.b16 %v848
        %v3512 = vunpack.c.l.b16 %v849
        %v3513 = vunpack.c.h.b16 %v849
        %v3514 = vunpack.c.l.b16 %v850
        %v3515 = vunpack.c.h.b16 %v850
        %v3516 = vunpack.c.l.b16 %v851
        %v3517 = vunpack.c.h.b16 %v851
        %v3518 = vunpack.c.l.b16 %v852
        %v3519 = vunpack.c.h.b16 %v852
        %v3520 = vunpack.c.l.b16 %v853
        %v3521 = vunpack.c.h.b16 %v853
        %v3522 = vunpack.c.l.b16 %v854
        %v3523 = vunpack.c.h.b16 %v854
        %v3524 = vunpack.c.l.b16 %v855
        %v3525 = vunpack.c.h.b16 %v855
        %v3526 = vunpack.c.l.b16 %v856
        %v3527 = vunpack.c.h.b16 %v856
        %v3528 = vunpack.c.l.b16 %v857
        %v3529 = vunpack.c.h.b16 %v857
        %v3530 = vunpack.c.l.b16 %v858
        %v3531 = vunpack.c.h.b16 %v858
        %v3532 = vunpack.c.l.b16 %v859
        %v3533 = vunpack.c.h.b16 %v859
        %v3534 = vunpack.c.l.b16 %v860
        %v3535 = vunpack.c.h.b16 %v860
        %v3536 = vunpack.c.l.b16 %v861
        %v3537 = vunpack.c.h.b16 %v861
        %v3538 = vunpack.c.l.b16 %v862
        %v3539 = vunpack.c.h.b16 %v862
        %v3540 = vunpack.c.l.b16 %v863
        %v3541 = vunpack.c.h.b16 %v863
        %v3542 = vunpack.c.l.b16 %v864
        %v3543 = vunpack.c.h.b16 %v864
        %v3544 = vunpack.c.l.b16 %v865
        %v3545 = vunpack.c.h.b16 %v865
        %v3546 = vunpack.c.l.b16 %v866
        %v3547 = vunpack.c.h.b16 %v866
        %v3548 = vunpack.c.l.b16 %v867
        %v3549 = vunpack.c.h.b16 %v867
        %v3550 = vunpack.c.l.b16 %v868
        %v3551 = vunpack.c.h.b16 %v868
        %v3552 = vunpack.c.l.b16 %v869
        %v3553 = vunpack.c.h.b16 %v869
        %v3554 = vunpack.c.l.b16 %v870
        %v3555 = vunpack.c.h.b16 %v870
        %v3556 = vunpack.c.l.b16 %v871
        %v3557 = vunpack.c.h.b16 %v871
        %v3558 = vunpack.c.l.b16 %v872
        %v3559 = vunpack.c.h.b16 %v872
        %v3560 = vunpack.c.l.b16 %v873
        %v3561 = vunpack.c.h.b16 %v873
        %v3562 = vunpack.c.l.b16 %v874
        %v3563 = vunpack.c.h.b16 %v874
        %v3564 = vunpack.c.l.b16 %v875
        %v3565 = vunpack.c.h.b16 %v875
        %v3566 = vunpack.c.l.b16 %v876
        %v3567 = vunpack.c.h.b16 %v876
        %v3568 = vunpack.c.l.b16 %v877
        %v3569 = vunpack.c.h.b16 %v877
        %v3570 = vunpack.c.l.b16 %v878
        %v3571 = vunpack.c.h.b16 %v878
        %v3572 = vunpack.c.l.b16 %v879
        %v3573 = vunpack.c.h.b16 %v879
        %v3574 = vunpack.c.l.b16 %v880
        %v3575 = vunpack.c.h.b16 %v880
        %v3576 = vunpack.c.l.b16 %v881
        %v3577 = vunpack.c.h.b16 %v881
        %v3578 = vunpack.c.l.b16 %v882
        %v3579 = vunpack.c.h.b16 %v882
        %v3580 = vunpack.c.l.b16 %v883
        %v3581 = vunpack.c.h.b16 %v883
        %v3582 = vunpack.c.l.b16 %v884
        %v3583 = vunpack.c.h.b16 %v884
        %v3584 = vunpack.c.l.b16 %v885
        %v3585 = vunpack.c.h.b16 %v885
        %v3586 = vunpack.c.l.b16 %v886
        %v3587 = vunpack.c.h.b16 %v886
        %v3588 = vunpack.c.l.b16 %v887
        %v3589 = vunpack.c.h.b16 %v887
        %v3590 = vunpack.c.l.b16 %v888
        %v3591 = vunpack.c.h.b16 %v888
        %v3592 = vunpack.c.l.b16 %v889
        %v3593 = vunpack.c.h.b16 %v889
        %v3594 = vunpack.c.l.b16 %v890
        %v3595 = vunpack.c.h.b16 %v890
        %v3596 = vunpack.c.l.b16 %v891
        %v3597 = vunpack.c.h.b16 %v891
        %v3598 = vunpack.c.l.b16 %v892
        %v3599 = vunpack.c.h.b16 %v892
        %v3600 = vunpack.c.l.b16 %v893
        %v3601 = vunpack.c.h.b16 %v893
        %v3602 = vunpack.c.l.b16 %v894
        %v3603 = vunpack.c.h.b16 %v894
        %v3604 = vunpack.c.l.b16 %v895
        %v3605 = vunpack.c.h.b16 %v895
        %v3606 = vunpack.c.l.b16 %v896
        %v3607 = vunpack.c.h.b16 %v896
        %v3608 = vunpack.c.l.b16 %v897
        %v3609 = vunpack.c.h.b16 %v897
        %v3610 = vunpack.c.l.b16 %v898
        %v3611 = vunpack.c.h.b16 %v898
        %v3612 = vunpack.c.l.b16 %v899
        %v3613 = vunpack.c.h.b16 %v899
        %v3614 = vunpack.c.l.b16 %v900
        %v3615 = vunpack.c.h.b16 %v900
        %v3616 = vunpack.c.l.b16 %v901
        %v3617 = vunpack.c.h.b16 %v901
        %v3618 = vunpack.c.l.b16 %v902
        %v3619 = vunpack.c.h.b16 %v902
        %v3620 = vunpack.c.l.b16 %v903
        %v3621 = vunpack.c.h.b16 %v903
        %v3622 = vunpack.c.l.b16 %v904
        %v3623 = vunpack.c.h.b16 %v904
        %v3624 = vunpack.c.l.b16 %v905
        %v3625 = vunpack.c.h.b16 %v905
        %v3626 = vunpack.c.l.b16 %v906
        %v3627 = vunpack.c.h.b16 %v906
        %v3628 = vunpack.c.l.b16 %v907
        %v3629 = vunpack.c.h.b16 %v907
        %v3630 = vunpack.c.l.b16 %v908
        %v3631 = vunpack.c.h.b16 %v908
        %v3632 = vunpack.c.l.b16 %v909
        %v3633 = vunpack.c.h.b16 %v909
        %v3634 = vunpack.c.l.b16 %v910
        %v3635 = vunpack.c.h.b16 %v910
        %v3636 = vunpack.c.l.b16 %v911
        %v3637 = vunpack.c.h.b16 %v911
        %v3638 = vunpack.c.l.b16 %v912
        %v3639 = vunpack.c.h.b16 %v912
        %v3640 = vunpack.c.l.b16 %v913
        %v3641 = vunpack.c.h.b16 %v913
        %v3642 = vunpack.c.l.b16 %v914
        %v3643 = vunpack.c.h.b16 %v914
        %v3644 = vunpack.c.l.b16 %v915
        %v3645 = vunpack.c.h.b16 %v915
        %v3646 = vunpack.c.l.b16 %v916
        %v3647 = vunpack.c.h.b16 %v916
        %v3648 = vunpack.c.l.b16 %v917
        %v3649 = vunpack.c.h.b16 %v917
        %v3650 = vunpack.c.l.b16 %v918
        %v3651 = vunpack.c.h.b16 %v918
        %v3652 = vunpack.c.l.b16 %v919
        %v3653 = vunpack.c.h.b16 %v919
        %v3654 = vunpack.c.l.b16 %v920
        %v3655 = vunpack.c.h.b16 %v920
        %v3656 = vunpack.c.l.b16 %v921
        %v3657 = vunpack.c.h.b16 %v921
        %v3658 = vunpack.c.l.b16 %v922
        %v3659 = vunpack.c.h.b16 %v922
        %v3660 = vunpack.c.l.b16 %v923
        %v3661 = vunpack.c.h.b16 %v923
        %v3662 = vunpack.c.l.b16 %v924
        %v3663 = vunpack.c.h.b16 %v924
        %v3664 = vunpack.c.l.b16 %v925
        %v3665 = vunpack.c.h.b16 %v925
        %v3666 = vunpack.c.l.b16 %v926
        %v3667 = vunpack.c.h.b16 %v926
        %v3668 = vunpack.c.l.b16 %v927
        %v3669 = vunpack.c.h.b16 %v927
        %v3670 = vunpack.c.l.b16 %v928
        %v3671 = vunpack.c.h.b16 %v928
        %v3672 = vunpack.c.l.b16 %v929
        %v3673 = vunpack.c.h.b16 %v929
        %v3674 = vunpack.c.l.b16 %v930
        %v3675 = vunpack.c.h.b16 %v930
        %v3676 = vunpack.c.l.b16 %v931
        %v3677 = vunpack.c.h.b16 %v931
        %v3678 = vunpack.c.l.b16 %v932
        %v3679 = vunpack.c.h.b16 %v932
        %v3680 = vunpack.c.l.b16 %v933
        %v3681 = vunpack.c.h.b16 %v933
        %v3682 = vunpack.c.l.b16 %v934
        %v3683 = vunpack.c.h.b16 %v934
        %v3684 = vunpack.c.l.b16 %v935
        %v3685 = vunpack.c.h.b16 %v935
        %v3686 = vunpack.c.l.b16 %v936
        %v3687 = vunpack.c.h.b16 %v936
        %v3688 = vunpack.c.l.b16 %v937
        %v3689 = vunpack.c.h.b16 %v937
        %v3690 = vunpack.c.l.b16 %v938
        %v3691 = vunpack.c.h.b16 %v938
        %v3692 = vunpack.c.l.b16 %v939
        %v3693 = vunpack.c.h.b16 %v939
        %v3694 = vunpack.c.l.b16 %v940
        %v3695 = vunpack.c.h.b16 %v940
        %v3696 = vunpack.c.l.b16 %v941
        %v3697 = vunpack.c.h.b16 %v941
        %v3698 = vunpack.c.l.b16 %v942
        %v3699 = vunpack.c.h.b16 %v942
        %v3700 = vunpack.c.l.b16 %v943
        %v3701 = vunpack.c.h.b16 %v943
        %v3702 = vunpack.c.l.b16 %v944
        %v3703 = vunpack.c.h.b16 %v944
        %v3704 = vunpack.c.l.b16 %v945
        %v3705 = vunpack.c.h.b16 %v945
        %v3706 = vunpack.c.l.b16 %v946
        %v3707 = vunpack.c.h.b16 %v946
        %v3708 = vunpack.c.l.b16 %v947
        %v3709 = vunpack.c.h.b16 %v947
        %v3710 = vunpack.c.l.b16 %v948
        %v3711 = vunpack.c.h.b16 %v948
        %v3712 = vunpack.c.l.b16 %v949
        %v3713 = vunpack.c.h.b16 %v949
        %v3714 = vunpack.c.l.b16 %v950
        %v3715 = vunpack.c.h.b16 %v950
        %v3716 = vunpack.c.l.b16 %v951
        %v3717 = vunpack.c.h.b16 %v951
        %v3718 = vunpack.c.l.b16 %v952
        %v3719 = vunpack.c.h.b16 %v952
        %v3720 = vunpack.c.l.b16 %v953
        %v3721 = vunpack.c.h.b16 %v953
        %v3722 = vunpack.c.l.b16 %v954
        %v3723 = vunpack.c.h.b16 %v954
        %v3724 = vunpack.c.l.b16 %v955
        %v3725 = vunpack.c.h.b16 %v955
        %v3726 = vunpack.c.l.b16 %v956
        %v3727 = vunpack.c.h.b16 %v956
        %v3728 = vunpack.c.l.b16 %v957
        %v3729 = vunpack.c.h.b16 %v957
        %v3730 = vunpack.c.l.b16 %v958
        %v3731 = vunpack.c.h.b16 %v958
        %v3732 = vunpack.c.l.b16 %v959
        %v3733 = vunpack.c.h.b16 %v959
        %v3734 = vunpack.c.l.b16 %v960
        %v3735 = vunpack.c.h.b16 %v960
        %v3736 = vunpack.c.l.b16 %v961
        %v3737 = vunpack.c.h.b16 %v961
        %v3738 = vunpack.c.l.b16 %v962
        %v3739 = vunpack.c.h.b16 %v962
        %v3740 = vunpack.c.l.b16 %v963
        %v3741 = vunpack.c.h.b16 %v963
        %v3742 = vunpack.c.l.b16 %v964
        %v3743 = vunpack.c.h.b16 %v964
        %v3744 = vunpack.c.l.b16 %v965
        %v3745 = vunpack.c.h.b16 %v965
        %v3746 = vunpack.c.l.b16 %v966
        %v3747 = vunpack.c.h.b16 %v966
        %v3748 = vunpack.c.l.b16 %v967
        %v3749 = vunpack.c.h.b16 %v967
        %v3750 = vunpack.c.l.b16 %v968
        %v3751 = vunpack.c.h.b16 %v968
        %v3752 = vunpack.c.l.b16 %v969
        %v3753 = vunpack.c.h.b16 %v969
        %v3754 = vunpack.c.l.b16 %v970
        %v3755 = vunpack.c.h.b16 %v970
        %v3756 = vunpack.c.l.b16 %v971
        %v3757 = vunpack.c.h.b16 %v971
        %v3758 = vunpack.c.l.b16 %v972
        %v3759 = vunpack.c.h.b16 %v972
        %v3760 = vunpack.c.l.b16 %v973
        %v3761 = vunpack.c.h.b16 %v973
        %v3762 = vunpack.c.l.b16 %v974
        %v3763 = vunpack.c.h.b16 %v974
        %v3764 = vunpack.c.l.b16 %v975
        %v3765 = vunpack.c.h.b16 %v975
        %v3766 = vunpack.c.l.b16 %v976
        %v3767 = vunpack.c.h.b16 %v976
        %v3768 = vunpack.c.l.b16 %v977
        %v3769 = vunpack.c.h.b16 %v977
        %v3770 = vunpack.c.l.b16 %v978
        %v3771 = vunpack.c.h.b16 %v978
        %v3772 = vunpack.c.l.b16 %v979
        %v3773 = vunpack.c.h.b16 %v979
        %v3774 = vunpack.c.l.b16 %v980
        %v3775 = vunpack.c.h.b16 %v980
        %v3776 = vunpack.c.l.b16 %v981
        %v3777 = vunpack.c.h.b16 %v981
        %v3778 = vunpack.c.l.b16 %v982
        %v3779 = vunpack.c.h.b16 %v982
        %v3780 = vunpack.c.l.b16 %v983
        %v3781 = vunpack.c.h.b16 %v983
        %v3782 = vunpack.c.l.b16 %v984
        %v3783 = vunpack.c.h.b16 %v984
        %v3784 = vunpack.c.l.b16 %v985
        %v3785 = vunpack.c.h.b16 %v985
        %v3786 = vunpack.c.l.b16 %v986
        %v3787 = vunpack.c.h.b16 %v986
        %v3788 = vunpack.c.l.b16 %v987
        %v3789 = vunpack.c.h.b16 %v987
        %v3790 = vunpack.c.l.b16 %v988
        %v3791 = vunpack.c.h.b16 %v988
        %v3792 = vunpack.c.l.b16 %v989
        %v3793 = vunpack.c.h.b16 %v989
        %v3794 = vunpack.c.l.b16 %v990
        %v3795 = vunpack.c.h.b16 %v990
        %v3796 = vunpack.c.l.b16 %v991
        %v3797 = vunpack.c.h.b16 %v991
        %v3798 = vunpack.c.l.b16 %v992
        %v3799 = vunpack.c.h.b16 %v992
        %v3800 = vunpack.c.l.b16 %v993
        %v3801 = vunpack.c.h.b16 %v993
        %v3802 = vunpack.c.l.b16 %v994
        %v3803 = vunpack.c.h.b16 %v994
        %v3804 = vunpack.c.l.b16 %v995
        %v3805 = vunpack.c.h.b16 %v995
        %v3806 = vunpack.c.l.b16 %v996
        %v3807 = vunpack.c.h.b16 %v996
        %v3808 = vunpack.c.l.b16 %v997
        %v3809 = vunpack.c.h.b16 %v997
        %v3810 = vunpack.c.l.b16 %v998
        %v3811 = vunpack.c.h.b16 %v998
        %v3812 = vunpack.c.l.b16 %v999
        %v3813 = vunpack.c.h.b16 %v999
        %v3814 = vunpack.c.l.b16 %v1000
        %v3815 = vunpack.c.h.b16 %v1000
        %v3816 = vunpack.c.l.b16 %v1001
        %v3817 = vunpack.c.h.b16 %v1001
        %v3818 = vunpack.c.l.b16 %v1002
        %v3819 = vunpack.c.h.b16 %v1002
        %v3820 = vunpack.c.l.b16 %v1003
        %v3821 = vunpack.c.h.b16 %v1003
        %v3822 = vunpack.c.l.b16 %v1004
        %v3823 = vunpack.c.h.b16 %v1004
        %v3824 = vunpack.c.l.b16 %v1005
        %v3825 = vunpack.c.h.b16 %v1005
        %v3826 = vunpack.c.l.b16 %v1006
        %v3827 = vunpack.c.h.b16 %v1006
        %v3828 = vunpack.c.l.b16 %v1007
        %v3829 = vunpack.c.h.b16 %v1007
        %v3830 = vunpack.c.l.b16 %v1008
        %v3831 = vunpack.c.h.b16 %v1008
        %v3832 = vunpack.c.l.b16 %v1009
        %v3833 = vunpack.c.h.b16 %v1009
        %v3834 = vunpack.c.l.b16 %v1010
        %v3835 = vunpack.c.h.b16 %v1010
        %v3836 = vunpack.c.l.b16 %v1011
        %v3837 = vunpack.c.h.b16 %v1011
        %v3838 = vunpack.c.l.b16 %v1012
        %v3839 = vunpack.c.h.b16 %v1012
        %v3840 = vunpack.c.l.b16 %v1013
        %v3841 = vunpack.c.h.b16 %v1013
        %v3842 = vunpack.c.l.b16 %v1014
        %v3843 = vunpack.c.h.b16 %v1014
        %v3844 = vunpack.c.l.b16 %v1015
        %v3845 = vunpack.c.h.b16 %v1015
        %v3846 = vunpack.c.l.b16 %v1016
        %v3847 = vunpack.c.h.b16 %v1016
        %v3848 = vunpack.c.l.b16 %v1017
        %v3849 = vunpack.c.h.b16 %v1017
        %v3850 = vunpack.c.l.b16 %v1018
        %v3851 = vunpack.c.h.b16 %v1018
        %v3852 = vunpack.c.l.b16 %v1019
        %v3853 = vunpack.c.h.b16 %v1019
        %v3854 = vunpack.c.l.b16 %v1020
        %v3855 = vunpack.c.h.b16 %v1020
        %v3856 = vunpack.c.l.b16 %v1021
        %v3857 = vunpack.c.h.b16 %v1021
        %v3858 = vunpack.c.l.b16 %v1022
        %v3859 = vunpack.c.h.b16 %v1022
        %v3860 = vunpack.c.l.b16 %v1023
        %v3861 = vunpack.c.h.b16 %v1023
        %v3862 = vunpack.c.l.b16 %v1024
        %v3863 = vunpack.c.h.b16 %v1024
        %v3864 = vunpack.c.l.b16 %v1025
        %v3865 = vunpack.c.h.b16 %v1025
        %v3866 = vunpack.c.l.b16 %v1026
        %v3867 = vunpack.c.h.b16 %v1026
        %v3868 = vunpack.c.l.b16 %v1027
        %v3869 = vunpack.c.h.b16 %v1027
        %v3870 = vunpack.c.l.b16 %v1028
        %v3871 = vunpack.c.h.b16 %v1028
        %v3872 = vunpack.c.l.b16 %v1029
        %v3873 = vunpack.c.h.b16 %v1029
        %v3874 = vunpack.c.l.b16 %v1030
        %v3875 = vunpack.c.h.b16 %v1030
        %v3876 = vunpack.c.l.b16 %v1031
        %v3877 = vunpack.c.h.b16 %v1031
        %v3878 = vunpack.c.l.b16 %v1032
        %v3879 = vunpack.c.h.b16 %v1032
        %v3880 = vunpack.c.l.b16 %v1033
        %v3881 = vunpack.c.h.b16 %v1033
        %v3882 = vunpack.c.l.b16 %v1034
        %v3883 = vunpack.c.h.b16 %v1034
        %v3884 = vunpack.c.l.b16 %v1035
        %v3885 = vunpack.c.h.b16 %v1035
        %v3886 = vunpack.c.l.b16 %v1036
        %v3887 = vunpack.c.h.b16 %v1036
        %v3888 = vunpack.c.l.b16 %v1037
        %v3889 = vunpack.c.h.b16 %v1037
        %v3890 = vunpack.c.l.b16 %v1038
        %v3891 = vunpack.c.h.b16 %v1038
        %v3892 = vunpack.c.l.b16 %v1039
        %v3893 = vunpack.c.h.b16 %v1039
        %v3894 = vunpack.c.l.b16 %v1040
        %v3895 = vunpack.c.h.b16 %v1040
        %v3896 = vunpack.c.l.b16 %v1041
        %v3897 = vunpack.c.h.b16 %v1041
        %v3898 = vunpack.c.l.b16 %v1042
        %v3899 = vunpack.c.h.b16 %v1042
        %v3900 = vunpack.c.l.b16 %v1043
        %v3901 = vunpack.c.h.b16 %v1043
        %v3902 = vunpack.c.l.b16 %v1044
        %v3903 = vunpack.c.h.b16 %v1044
        %v3904 = vunpack.c.l.b16 %v1045
        %v3905 = vunpack.c.h.b16 %v1045
        %v3906 = vunpack.c.l.b16 %v1046
        %v3907 = vunpack.c.h.b16 %v1046
        %v3908 = vunpack.c.l.b16 %v1047
        %v3909 = vunpack.c.h.b16 %v1047
        %v3910 = vunpack.c.l.b16 %v1048
        %v3911 = vunpack.c.h.b16 %v1048
        %v3912 = vunpack.c.l.b16 %v1049
        %v3913 = vunpack.c.h.b16 %v1049
        %v3914 = vunpack.c.l.b16 %v1050
        %v3915 = vunpack.c.h.b16 %v1050
        %v3916 = vunpack.c.l.b16 %v1051
        %v3917 = vunpack.c.h.b16 %v1051
        %v3918 = vunpack.c.l.b16 %v1052
        %v3919 = vunpack.c.h.b16 %v1052
        %v3920 = vunpack.c.l.b16 %v1053
        %v3921 = vunpack.c.h.b16 %v1053
        %v3922 = vunpack.c.l.b16 %v1054
        %v3923 = vunpack.c.h.b16 %v1054
        %v3924 = vunpack.c.l.b16 %v1055
        %v3925 = vunpack.c.h.b16 %v1055
        %v3926 = vunpack.c.l.b16 %v1056
        %v3927 = vunpack.c.h.b16 %v1056
        %v3928 = vunpack.c.l.b16 %v1057
        %v3929 = vunpack.c.h.b16 %v1057
        %v3930 = vunpack.c.l.b16 %v1058
        %v3931 = vunpack.c.h.b16 %v1058
        %v3932 = vunpack.c.l.b16 %v1059
        %v3933 = vunpack.c.h.b16 %v1059
        %v3934 = vunpack.c.l.b16 %v1060
        %v3935 = vunpack.c.h.b16 %v1060
        %v3936 = vunpack.c.l.b16 %v1061
        %v3937 = vunpack.c.h.b16 %v1061
        %v3938 = vunpack.c.l.b16 %v1062
        %v3939 = vunpack.c.h.b16 %v1062
        %v3940 = vunpack.c.l.b16 %v1063
        %v3941 = vunpack.c.h.b16 %v1063
        %v3942 = vunpack.c.l.b16 %v1064
        %v3943 = vunpack.c.h.b16 %v1064
        %v3944 = vunpack.c.l.b16 %v1065
        %v3945 = vunpack.c.h.b16 %v1065
        %v3946 = vunpack.c.l.b16 %v1066
        %v3947 = vunpack.c.h.b16 %v1066
        %v3948 = vunpack.c.l.b16 %v1067
        %v3949 = vunpack.c.h.b16 %v1067
        %v3950 = vunpack.c.l.b16 %v1068
        %v3951 = vunpack.c.h.b16 %v1068
        %v3952 = vunpack.c.l.b16 %v1069
        %v3953 = vunpack.c.h.b16 %v1069
        %v3954 = vunpack.c.l.b16 %v1070
        %v3955 = vunpack.c.h.b16 %v1070
        %v3956 = vunpack.c.l.b16 %v1071
        %v3957 = vunpack.c.h.b16 %v1071
        %v3958 = vunpack.c.l.b16 %v1072
        %v3959 = vunpack.c.h.b16 %v1072
        %v3960 = vunpack.c.l.b16 %v1073
        %v3961 = vunpack.c.h.b16 %v1073
        %v3962 = vunpack.c.l.b16 %v1074
        %v3963 = vunpack.c.h.b16 %v1074
        %v3964 = vunpack.c.l.b16 %v1075
        %v3965 = vunpack.c.h.b16 %v1075
        %v3966 = vunpack.c.l.b16 %v1076
        %v3967 = vunpack.c.h.b16 %v1076
        %v3968 = vunpack.c.l.b16 %v1077
        %v3969 = vunpack.c.h.b16 %v1077
        %v3970 = vunpack.c.l.b16 %v1078
        %v3971 = vunpack.c.h.b16 %v1078
        %v3972 = vunpack.c.l.b16 %v1079
        %v3973 = vunpack.c.h.b16 %v1079
        %v3974 = vunpack.c.l.b16 %v1080
        %v3975 = vunpack.c.h.b16 %v1080
        %v3976 = vunpack.c.l.b16 %v1081
        %v3977 = vunpack.c.h.b16 %v1081
        %v3978 = vunpack.c.l.b16 %v1082
        %v3979 = vunpack.c.h.b16 %v1082
        %v3980 = vunpack.c.l.b16 %v1083
        %v3981 = vunpack.c.h.b16 %v1083
        %v3982 = vunpack.c.l.b16 %v1084
        %v3983 = vunpack.c.h.b16 %v1084
        %v3984 = vunpack.c.l.b16 %v1085
        %v3985 = vunpack.c.h.b16 %v1085
        %v3986 = vunpack.c.l.b16 %v1086
        %v3987 = vunpack.c.h.b16 %v1086
        %v3988 = vunpack.c.l.b16 %v1087
        %v3989 = vunpack.c.h.b16 %v1087
        %v3990 = vunpack.c.l.b16 %v1088
        %v3991 = vunpack.c.h.b16 %v1088
        %v3992 = vunpack.c.l.b16 %v1089
        %v3993 = vunpack.c.h.b16 %v1089
        %v3994 = vunpack.c.l.b16 %v1090
        %v3995 = vunpack.c.h.b16 %v1090
        %v3996 = vunpack.c.l.b16 %v1091
        %v3997 = vunpack.c.h.b16 %v1091
        %v3998 = vunpack.c.l.b16 %v1092
        %v3999 = vunpack.c.h.b16 %v1092
        %v4000 = vunpack.c.l.b16 %v1093
        %v4001 = vunpack.c.h.b16 %v1093
        %v4002 = vunpack.c.l.b16 %v1094
        %v4003 = vunpack.c.h.b16 %v1094
        %v4004 = vunpack.c.l.b16 %v1095
        %v4005 = vunpack.c.h.b16 %v1095
        %v4006 = vunpack.c.l.b16 %v1096
        %v4007 = vunpack.c.h.b16 %v1096
        %v4008 = vunpack.c.l.b16 %v1097
        %v4009 = vunpack.c.h.b16 %v1097
        %v4010 = vunpack.c.l.b16 %v1098
        %v4011 = vunpack.c.h.b16 %v1098
        %v4012 = vunpack.c.l.b16 %v1099
        %v4013 = vunpack.c.h.b16 %v1099
        %v4014 = vunpack.c.l.b16 %v1100
        %v4015 = vunpack.c.h.b16 %v1100
        %v4016 = vunpack.c.l.b16 %v1101
        %v4017 = vunpack.c.h.b16 %v1101
        %v4018 = vunpack.c.l.b16 %v1102
        %v4019 = vunpack.c.h.b16 %v1102
        %v4020 = vunpack.c.l.b16 %v1103
        %v4021 = vunpack.c.h.b16 %v1103
        %v4022 = vunpack.c.l.b16 %v1104
        %v4023 = vunpack.c.h.b16 %v1104
        %v4024 = vunpack.c.l.b16 %v1105
        %v4025 = vunpack.c.h.b16 %v1105
        %v4026 = vunpack.c.l.b16 %v1106
        %v4027 = vunpack.c.h.b16 %v1106
        %v4028 = vunpack.c.l.b16 %v1107
        %v4029 = vunpack.c.h.b16 %v1107
        %v4030 = vunpack.c.l.b16 %v1108
        %v4031 = vunpack.c.h.b16 %v1108
        %v4032 = vunpack.c.l.b16 %v1109
        %v4033 = vunpack.c.h.b16 %v1109
        %v4034 = vunpack.c.l.b16 %v1110
        %v4035 = vunpack.c.h.b16 %v1110
        %v4036 = vunpack.c.l.b16 %v1111
        %v4037 = vunpack.c.h.b16 %v1111
        %v4038 = vunpack.c.l.b16 %v1112
        %v4039 = vunpack.c.h.b16 %v1112
        %v4040 = vunpack.c.l.b16 %v1113
        %v4041 = vunpack.c.h.b16 %v1113
        %v4042 = vunpack.c.l.b16 %v1114
        %v4043 = vunpack.c.h.b16 %v1114
        %v4044 = vunpack.c.l.b16 %v1115
        %v4045 = vunpack.c.h.b16 %v1115
        %v4046 = vunpack.c.l.b16 %v1116
        %v4047 = vunpack.c.h.b16 %v1116
        %v4048 = vunpack.c.l.b16 %v1117
        %v4049 = vunpack.c.h.b16 %v1117
        %v4050 = vunpack.c.l.b16 %v1118
        %v4051 = vunpack.c.h.b16 %v1118
        %v4052 = vunpack.c.l.b16 %v1119
        %v4053 = vunpack.c.h.b16 %v1119
        %v4054 = vunpack.c.l.b16 %v1120
        %v4055 = vunpack.c.h.b16 %v1120
        %v4056 = vunpack.c.l.b16 %v1121
        %v4057 = vunpack.c.h.b16 %v1121
        %v4058 = vunpack.c.l.b16 %v1122
        %v4059 = vunpack.c.h.b16 %v1122
        %v4060 = vunpack.c.l.b16 %v1123
        %v4061 = vunpack.c.h.b16 %v1123
        %v4062 = vunpack.c.l.b16 %v1124
        %v4063 = vunpack.c.h.b16 %v1124
        %v4064 = vunpack.c.l.b16 %v1125
        %v4065 = vunpack.c.h.b16 %v1125
        %v4066 = vunpack.c.l.b16 %v1126
        %v4067 = vunpack.c.h.b16 %v1126
        %v4068 = vunpack.c.l.b16 %v1127
        %v4069 = vunpack.c.h.b16 %v1127
        %v4070 = vunpack.c.l.b16 %v1128
        %v4071 = vunpack.c.h.b16 %v1128
        %v4072 = vunpack.c.l.b16 %v1129
        %v4073 = vunpack.c.h.b16 %v1129
        %v4074 = vunpack.c.l.b16 %v1130
        %v4075 = vunpack.c.h.b16 %v1130
        %v4076 = vunpack.c.l.b16 %v1131
        %v4077 = vunpack.c.h.b16 %v1131
        %v4078 = vunpack.c.l.b16 %v1132
        %v4079 = vunpack.c.h.b16 %v1132
        %v4080 = vunpack.c.l.b16 %v1133
        %v4081 = vunpack.c.h.b16 %v1133
        %v4082 = vunpack.c.l.b16 %v1134
        %v4083 = vunpack.c.h.b16 %v1134
        %v4084 = vunpack.c.l.b16 %v1135
        %v4085 = vunpack.c.h.b16 %v1135
        %v4086 = vunpack.c.l.b16 %v1136
        %v4087 = vunpack.c.h.b16 %v1136
        %v4088 = vunpack.c.l.b16 %v1137
        %v4089 = vunpack.c.h.b16 %v1137
        %v4090 = vunpack.c.l.b16 %v1138
        %v4091 = vunpack.c.h.b16 %v1138
        %v4092 = vunpack.c.l.b16 %v1139
        %v4093 = vunpack.c.h.b16 %v1139
        %v4094 = vunpack.c.l.b16 %v1140
        %v4095 = vunpack.c.h.b16 %v1140
        %v4096 = vunpack.c.l.b16 %v1141
        %v4097 = vunpack.c.h.b16 %v1141
        %v4098 = vunpack.c.l.b16 %v1142
        %v4099 = vunpack.c.h.b16 %v1142
        %v4100 = vunpack.c.l.b16 %v1143
        %v4101 = vunpack.c.h.b16 %v1143
        %v4102 = vunpack.c.l.b16 %v1144
        %v4103 = vunpack.c.h.b16 %v1144
        %v4104 = vunpack.c.l.b16 %v1145
        %v4105 = vunpack.c.h.b16 %v1145
        %v4106 = vunpack.c.l.b16 %v1146
        %v4107 = vunpack.c.h.b16 %v1146
        %v4108 = vunpack.c.l.b16 %v1147
        %v4109 = vunpack.c.h.b16 %v1147
        %v4110 = vunpack.c.l.b16 %v1148
        %v4111 = vunpack.c.h.b16 %v1148
        %v4112 = vunpack.c.l.b16 %v1149
        %v4113 = vunpack.c.h.b16 %v1149
        %v4114 = vunpack.c.l.b16 %v1150
        %v4115 = vunpack.c.h.b16 %v1150
        %v4116 = vunpack.c.l.b16 %v1151
        %v4117 = vunpack.c.h.b16 %v1151
        %v4118 = vunpack.c.l.b16 %v1152
        %v4119 = vunpack.c.h.b16 %v1152
        %v4120 = vunpack.c.l.b16 %v1153
        %v4121 = vunpack.c.h.b16 %v1153
        %v4122 = vunpack.c.l.b16 %v1154
        %v4123 = vunpack.c.h.b16 %v1154
        %v4124 = vunpack.c.l.b16 %v1155
        %v4125 = vunpack.c.h.b16 %v1155
        %v4126 = vunpack.c.l.b16 %v1156
        %v4127 = vunpack.c.h.b16 %v1156
        %v4128 = vunpack.c.l.b16 %v1157
        %v4129 = vunpack.c.h.b16 %v1157
        %v4130 = vunpack.c.l.b16 %v1158
        %v4131 = vunpack.c.h.b16 %v1158
        %v4132 = vunpack.c.l.b16 %v1159
        %v4133 = vunpack.c.h.b16 %v1159
        %v4134 = vunpack.c.l.b16 %v1160
        %v4135 = vunpack.c.h.b16 %v1160
        %v4136 = vunpack.c.l.b16 %v1161
        %v4137 = vunpack.c.h.b16 %v1161
        %v4138 = vunpack.c.l.b16 %v1162
        %v4139 = vunpack.c.h.b16 %v1162
        %v4140 = vunpack.c.l.b16 %v1163
        %v4141 = vunpack.c.h.b16 %v1163
        %v4142 = vunpack.c.l.b16 %v1164
        %v4143 = vunpack.c.h.b16 %v1164
        %v4144 = vunpack.c.l.b16 %v1165
        %v4145 = vunpack.c.h.b16 %v1165
        %v4146 = vunpack.c.l.b16 %v1166
        %v4147 = vunpack.c.h.b16 %v1166
        %v4148 = vunpack.c.l.b16 %v1167
        %v4149 = vunpack.c.h.b16 %v1167
        %v4150 = vunpack.c.l.b16 %v1168
        %v4151 = vunpack.c.h.b16 %v1168
        %v4152 = vunpack.c.l.b16 %v1169
        %v4153 = vunpack.c.h.b16 %v1169
        %v4154 = vunpack.c.l.b16 %v1170
        %v4155 = vunpack.c.h.b16 %v1170
        %v4156 = vunpack.c.l.b16 %v1171
        %v4157 = vunpack.c.h.b16 %v1171
        %v4158 = vunpack.c.l.b16 %v1172
        %v4159 = vunpack.c.h.b16 %v1172
        %v4160 = vunpack.c.l.b16 %v1173
        %v4161 = vunpack.c.h.b16 %v1173
        %v4162 = vunpack.c.l.b16 %v1174
        %v4163 = vunpack.c.h.b16 %v1174
        %v4164 = vunpack.c.l.b16 %v1175
        %v4165 = vunpack.c.h.b16 %v1175
        %v4166 = vunpack.c.l.b16 %v1176
        %v4167 = vunpack.c.h.b16 %v1176
        %v4168 = vunpack.c.l.b16 %v1177
        %v4169 = vunpack.c.h.b16 %v1177
        %v4170 = vunpack.c.l.b16 %v1178
        %v4171 = vunpack.c.h.b16 %v1178
        %v4172 = vunpack.c.l.b16 %v1179
        %v4173 = vunpack.c.h.b16 %v1179
        %v4174 = vunpack.c.l.b16 %v1180
        %v4175 = vunpack.c.h.b16 %v1180
        %v4176 = vunpack.c.l.b16 %v1181
        %v4177 = vunpack.c.h.b16 %v1181
        %v4178 = vunpack.c.l.b16 %v1182
        %v4179 = vunpack.c.h.b16 %v1182
        %v4180 = vunpack.c.l.b16 %v1183
        %v4181 = vunpack.c.h.b16 %v1183
        %v4182 = vunpack.c.l.b16 %v1184
        %v4183 = vunpack.c.h.b16 %v1184
        %v4184 = vunpack.c.l.b16 %v1185
        %v4185 = vunpack.c.h.b16 %v1185
        %v4186 = vunpack.c.l.b16 %v1186
        %v4187 = vunpack.c.h.b16 %v1186
        %v4188 = vunpack.c.l.b16 %v1187
        %v4189 = vunpack.c.h.b16 %v1187
        %v4190 = vunpack.c.l.b16 %v1188
        %v4191 = vunpack.c.h.b16 %v1188
        %v4192 = vunpack.c.l.b16 %v1189
        %v4193 = vunpack.c.h.b16 %v1189
        %v4194 = vunpack.c.l.b16 %v1190
        %v4195 = vunpack.c.h.b16 %v1190
        %v4196 = vunpack.c.l.b16 %v1191
        %v4197 = vunpack.c.h.b16 %v1191
        %v4198 = vunpack.c.l.b16 %v1192
        %v4199 = vunpack.c.h.b16 %v1192
        %v4200 = vunpack.c.l.b16 %v1193
        %v4201 = vunpack.c.h.b16 %v1193
        %v4202 = vunpack.c.l.b16 %v1194
        %v4203 = vunpack.c.h.b16 %v1194
        %v4204 = vunpack.c.l.b16 %v1195
        %v4205 = vunpack.c.h.b16 %v1195
        %v4206 = vunpack.c.l.b16 %v1196
        %v4207 = vunpack.c.h.b16 %v1196
        %v4208 = vunpack.c.l.b16 %v1197
        %v4209 = vunpack.c.h.b16 %v1197
        %v4210 = vunpack.c.l.b16 %v1198
        %v4211 = vunpack.c.h.b16 %v1198
        %v4212 = vunpack.c.l.b16 %v1199
        %v4213 = vunpack.c.h.b16 %v1199
        %v4214 = vunpack.c.l.b16 %v1200
        %v4215 = vunpack.c.h.b16 %v1200
        %v4216 = vunpack.c.l.b16 %v1201
        %v4217 = vunpack.c.h.b16 %v1201
        %v4218 = vunpack.c.l.b16 %v1202
        %v4219 = vunpack.c.h.b16 %v1202
        %v4220 = vunpack.c.l.b16 %v1203
        %v4221 = vunpack.c.h.b16 %v1203
        %v4222 = vunpack.c.l.b16 %v1204
        %v4223 = vunpack.c.h.b16 %v1204
        %v4224 = vunpack.c.l.b16 %v1205
        %v4225 = vunpack.c.h.b16 %v1205
        %v4226 = vunpack.c.l.b16 %v1206
        %v4227 = vunpack.c.h.b16 %v1206
        %v4228 = vunpack.c.l.b16 %v1207
        %v4229 = vunpack.c.h.b16 %v1207
        %v4230 = vunpack.c.l.b16 %v1208
        %v4231 = vunpack.c.h.b16 %v1208
        %v4232 = vunpack.c.l.b16 %v1209
        %v4233 = vunpack.c.h.b16 %v1209
        %v4234 = vunpack.c.l.b16 %v1210
        %v4235 = vunpack.c.h.b16 %v1210
        %v4236 = vunpack.c.l.b16 %v1211
        %v4237 = vunpack.c.h.b16 %v1211
        %v4238 = vunpack.c.l.b16 %v1212
        %v4239 = vunpack.c.h.b16 %v1212
        %v4240 = vunpack.c.l.b16 %v1213
        %v4241 = vunpack.c.h.b16 %v1213
        %v4242 = vunpack.c.l.b16 %v1214
        %v4243 = vunpack.c.h.b16 %v1214
        %v4244 = vunpack.c.l.b16 %v1215
        %v4245 = vunpack.c.h.b16 %v1215
        %v4246 = vunpack.c.l.b16 %v1216
        %v4247 = vunpack.c.h.b16 %v1216
        %v4248 = vunpack.c.l.b16 %v1217
        %v4249 = vunpack.c.h.b16 %v1217
        %v4250 = vunpack.c.l.b16 %v1218
        %v4251 = vunpack.c.h.b16 %v1218
        %v4252 = vunpack.c.l.b16 %v1219
        %v4253 = vunpack.c.h.b16 %v1219
        %v4254 = vunpack.c.l.b16 %v1220
        %v4255 = vunpack.c.h.b16 %v1220
        %v4256 = vunpack.c.l.b16 %v1221
        %v4257 = vunpack.c.h.b16 %v1221
        %v4258 = vunpack.c.l.b16 %v1222
        %v4259 = vunpack.c.h.b16 %v1222
        %v4260 = vunpack.c.l.b16 %v1223
        %v4261 = vunpack.c.h.b16 %v1223
        %v4262 = vunpack.c.l.b16 %v1224
        %v4263 = vunpack.c.h.b16 %v1224
        %v4264 = vunpack.c.l.b16 %v1225
        %v4265 = vunpack.c.h.b16 %v1225
        %v4266 = vunpack.c.l.b16 %v1226
        %v4267 = vunpack.c.h.b16 %v1226
        %v4268 = vunpack.c.l.b16 %v1227
        %v4269 = vunpack.c.h.b16 %v1227
        %v4270 = vunpack.c.l.b16 %v1228
        %v4271 = vunpack.c.h.b16 %v1228
        %v4272 = vunpack.c.l.b16 %v1229
        %v4273 = vunpack.c.h.b16 %v1229
        %v4274 = vunpack.c.l.b16 %v1230
        %v4275 = vunpack.c.h.b16 %v1230
        %v4276 = vunpack.c.l.b16 %v1231
        %v4277 = vunpack.c.h.b16 %v1231
        %v4278 = vunpack.c.l.b16 %v1232
        %v4279 = vunpack.c.h.b16 %v1232
        %v4280 = vunpack.c.l.b16 %v1233
        %v4281 = vunpack.c.h.b16 %v1233
        %v4282 = vunpack.c.l.b16 %v1234
        %v4283 = vunpack.c.h.b16 %v1234
        %v4284 = vunpack.c.l.b16 %v1235
        %v4285 = vunpack.c.h.b16 %v1235
        %v4286 = vunpack.c.l.b16 %v1236
        %v4287 = vunpack.c.h.b16 %v1236
        %v4288 = vunpack.c.l.b16 %v1237
        %v4289 = vunpack.c.h.b16 %v1237
        %v4290 = vunpack.c.l.b16 %v1238
        %v4291 = vunpack.c.h.b16 %v1238
        %v4292 = vunpack.c.l.b16 %v1239
        %v4293 = vunpack.c.h.b16 %v1239
        %v4294 = vunpack.c.l.b16 %v1240
        %v4295 = vunpack.c.h.b16 %v1240
        %v4296 = vunpack.c.l.b16 %v1241
        %v4297 = vunpack.c.h.b16 %v1241
        %v4298 = vunpack.c.l.b16 %v1242
        %v4299 = vunpack.c.h.b16 %v1242
        %v4300 = vunpack.c.l.b16 %v1243
        %v4301 = vunpack.c.h.b16 %v1243
        %v4302 = vunpack.c.l.b16 %v1244
        %v4303 = vunpack.c.h.b16 %v1244
        %v4304 = vunpack.c.l.b16 %v1245
        %v4305 = vunpack.c.h.b16 %v1245
        %v4306 = vunpack.c.l.b16 %v1246
        %v4307 = vunpack.c.h.b16 %v1246
        %v4308 = vunpack.c.l.b16 %v1247
        %v4309 = vunpack.c.h.b16 %v1247
        %v4310 = vunpack.c.l.b16 %v1248
        %v4311 = vunpack.c.h.b16 %v1248
        %v4312 = vunpack.c.l.b16 %v1249
        %v4313 = vunpack.c.h.b16 %v1249
        %v4314 = vunpack.c.l.b16 %v1250
        %v4315 = vunpack.c.h.b16 %v1250
        %v4316 = vunpack.c.l.b16 %v1251
        %v4317 = vunpack.c.h.b16 %v1251
        %v4318 = vunpack.c.l.b16 %v1252
        %v4319 = vunpack.c.h.b16 %v1252
        %v4320 = vunpack.c.l.b16 %v1253
        %v4321 = vunpack.c.h.b16 %v1253
        %v4322 = vunpack.c.l.b16 %v1254
        %v4323 = vunpack.c.h.b16 %v1254
        %v4324 = vunpack.c.l.b16 %v1255
        %v4325 = vunpack.c.h.b16 %v1255
        %v4326 = vunpack.c.l.b16 %v1256
        %v4327 = vunpack.c.h.b16 %v1256
        %v4328 = vunpack.c.l.b16 %v1257
        %v4329 = vunpack.c.h.b16 %v1257
        %v4330 = vunpack.c.l.b16 %v1258
        %v4331 = vunpack.c.h.b16 %v1258
        %v4332 = vunpack.c.l.b16 %v1259
        %v4333 = vunpack.c.h.b16 %v1259
        %v4334 = vunpack.c.l.b16 %v1260
        %v4335 = vunpack.c.h.b16 %v1260
        %v4336 = vunpack.c.l.b16 %v1261
        %v4337 = vunpack.c.h.b16 %v1261
        %v4338 = vunpack.c.l.b16 %v1262
        %v4339 = vunpack.c.h.b16 %v1262
        %v4340 = vunpack.c.l.b16 %v1263
        %v4341 = vunpack.c.h.b16 %v1263
        %v4342 = vunpack.c.l.b16 %v1264
        %v4343 = vunpack.c.h.b16 %v1264
        %v4344 = vunpack.c.l.b16 %v1265
        %v4345 = vunpack.c.h.b16 %v1265
        %v4346 = vunpack.c.l.b16 %v1266
        %v4347 = vunpack.c.h.b16 %v1266
        %v4348 = vunpack.c.l.b16 %v1267
        %v4349 = vunpack.c.h.b16 %v1267
        %v4350 = vunpack.c.l.b16 %v1268
        %v4351 = vunpack.c.h.b16 %v1268
        %v4352 = vunpack.c.l.b16 %v1269
        %v4353 = vunpack.c.h.b16 %v1269
        %v4354 = vunpack.c.l.b16 %v1270
        %v4355 = vunpack.c.h.b16 %v1270
        %v4356 = vunpack.c.l.b16 %v1271
        %v4357 = vunpack.c.h.b16 %v1271
        %v4358 = vunpack.c.l.b16 %v1272
        %v4359 = vunpack.c.h.b16 %v1272
        %v4360 = vunpack.c.l.b16 %v1273
        %v4361 = vunpack.c.h.b16 %v1273
        %v4362 = vunpack.c.l.b16 %v1274
        %v4363 = vunpack.c.h.b16 %v1274
        %v4364 = vunpack.c.l.b16 %v1275
        %v4365 = vunpack.c.h.b16 %v1275
        %v4366 = vunpack.c.l.b16 %v1276
        %v4367 = vunpack.c.h.b16 %v1276
        %v4368 = vunpack.c.l.b16 %v1277
        %v4369 = vunpack.c.h.b16 %v1277
        %v4370 = vunpack.c.l.b16 %v1278
        %v4371 = vunpack.c.h.b16 %v1278
        %v4372 = vunpack.c.l.b16 %v1279
        %v4373 = vunpack.c.h.b16 %v1279
        %v4374 = vunpack.c.l.b16 %v1280
        %v4375 = vunpack.c.h.b16 %v1280
        %v4376 = vunpack.c.l.b16 %v1281
        %v4377 = vunpack.c.h.b16 %v1281
        %v4378 = vunpack.c.l.b16 %v1282
        %v4379 = vunpack.c.h.b16 %v1282
        %v4380 = vunpack.c.l.b16 %v1283
        %v4381 = vunpack.c.h.b16 %v1283
        %v4382 = vunpack.c.l.b16 %v1284
        %v4383 = vunpack.c.h.b16 %v1284
        %v4384 = vunpack.c.l.b16 %v1285
        %v4385 = vunpack.c.h.b16 %v1285
        %v4386 = vunpack.c.l.b16 %v1286
        %v4387 = vunpack.c.h.b16 %v1286
        %v4388 = vunpack.c.l.b16 %v1287
        %v4389 = vunpack.c.h.b16 %v1287
        %v4390 = vunpack.c.l.b16 %v1288
        %v4391 = vunpack.c.h.b16 %v1288
        %v4392 = vunpack.c.l.b16 %v1289
        %v4393 = vunpack.c.h.b16 %v1289
        %v4394 = vunpack.c.l.b16 %v1290
        %v4395 = vunpack.c.h.b16 %v1290
        %v4396 = vunpack.c.l.b16 %v1291
        %v4397 = vunpack.c.h.b16 %v1291
        %v4398 = vunpack.c.l.b16 %v1292
        %v4399 = vunpack.c.h.b16 %v1292
        %v4400 = vunpack.c.l.b16 %v1293
        %v4401 = vunpack.c.h.b16 %v1293
        %v4402 = vunpack.c.l.b16 %v1294
        %v4403 = vunpack.c.h.b16 %v1294
        %v4404 = vunpack.c.l.b16 %v1295
        %v4405 = vunpack.c.h.b16 %v1295
        %v4406 = vunpack.c.l.b16 %v1296
        %v4407 = vunpack.c.h.b16 %v1296
        %v4408 = vunpack.c.l.b16 %v1297
        %v4409 = vunpack.c.h.b16 %v1297
        %v4410 = vunpack.c.l.b16 %v1298
        %v4411 = vunpack.c.h.b16 %v1298
        %v4412 = vunpack.c.l.b16 %v1299
        %v4413 = vunpack.c.h.b16 %v1299
        %v4414 = vunpack.c.l.b16 %v1300
        %v4415 = vunpack.c.h.b16 %v1300
        %v4416 = vunpack.c.l.b16 %v1301
        %v4417 = vunpack.c.h.b16 %v1301
        %v4418 = vunpack.c.l.b16 %v1302
        %v4419 = vunpack.c.h.b16 %v1302
        %v4420 = vunpack.c.l.b16 %v1303
        %v4421 = vunpack.c.h.b16 %v1303
        %v4422 = vunpack.c.l.b16 %v1304
        %v4423 = vunpack.c.h.b16 %v1304
        %v4424 = vunpack.c.l.b16 %v1305
        %v4425 = vunpack.c.h.b16 %v1305
        %v4426 = vunpack.c.l.b16 %v1306
        %v4427 = vunpack.c.h.b16 %v1306
        %v4428 = vunpack.c.l.b16 %v1307
        %v4429 = vunpack.c.h.b16 %v1307
        %v4430 = vunpack.c.l.b16 %v1308
        %v4431 = vunpack.c.h.b16 %v1308
        %v4432 = vunpack.c.l.b16 %v1309
        %v4433 = vunpack.c.h.b16 %v1309
        %v4434 = vunpack.c.l.b16 %v1310
        %v4435 = vunpack.c.h.b16 %v1310
        %v4436 = vunpack.c.l.b16 %v1311
        %v4437 = vunpack.c.h.b16 %v1311
        %v4438 = vunpack.c.l.b16 %v1312
        %v4439 = vunpack.c.h.b16 %v1312
        %v4440 = vunpack.c.l.b16 %v1313
        %v4441 = vunpack.c.h.b16 %v1313
        %v4442 = vunpack.c.l.b16 %v1314
        %v4443 = vunpack.c.h.b16 %v1314
        %v4444 = vunpack.c.l.b16 %v1315
        %v4445 = vunpack.c.h.b16 %v1315
        %v4446 = vunpack.c.l.b16 %v1316
        %v4447 = vunpack.c.h.b16 %v1316
        %v4448 = vunpack.c.l.b16 %v1317
        %v4449 = vunpack.c.h.b16 %v1317
        %v4450 = vunpack.c.l.b16 %v1318
        %v4451 = vunpack.c.h.b16 %v1318
        %v4452 = vunpack.c.l.b16 %v1319
        %v4453 = vunpack.c.h.b16 %v1319
        %v4454 = vunpack.c.l.b16 %v1320
        %v4455 = vunpack.c.h.b16 %v1320
        %v4456 = vunpack.c.l.b16 %v1321
        %v4457 = vunpack.c.h.b16 %v1321
        %v4458 = vunpack.c.l.b16 %v1322
        %v4459 = vunpack.c.h.b16 %v1322
        %v4460 = vunpack.c.l.b16 %v1323
        %v4461 = vunpack.c.h.b16 %v1323
        %v4462 = vunpack.c.l.b16 %v1324
        %v4463 = vunpack.c.h.b16 %v1324
        %v4464 = vunpack.c.l.b16 %v1325
        %v4465 = vunpack.c.h.b16 %v1325
        %v4466 = vunpack.c.l.b16 %v1326
        %v4467 = vunpack.c.h.b16 %v1326
        %v4468 = vunpack.c.l.b16 %v1327
        %v4469 = vunpack.c.h.b16 %v1327
        %v4470 = vunpack.c.l.b16 %v1328
        %v4471 = vunpack.c.h.b16 %v1328
        %v4472 = vunpack.c.l.b16 %v1329
        %v4473 = vunpack.c.h.b16 %v1329
        %v4474 = vunpack.c.l.b16 %v1330
        %v4475 = vunpack.c.h.b16 %v1330
        %v4476 = vunpack.c.l.b16 %v1331
        %v4477 = vunpack.c.h.b16 %v1331
        %v4478 = vunpack.c.l.b16 %v1332
        %v4479 = vunpack.c.h.b16 %v1332
        %v4480 = vunpack.c.l.b16 %v1333
        %v4481 = vunpack.c.h.b16 %v1333
        %v4482 = vunpack.c.l.b16 %v1334
        %v4483 = vunpack.c.h.b16 %v1334
        %v4484 = vunpack.c.l.b16 %v1335
        %v4485 = vunpack.c.h.b16 %v1335
        %v4486 = vunpack.c.l.b16 %v1336
        %v4487 = vunpack.c.h.b16 %v1336
        %v4488 = vunpack.c.l.b16 %v1337
        %v4489 = vunpack.c.h.b16 %v1337
        %v4490 = vunpack.c.l.b16 %v1338
        %v4491 = vunpack.c.h.b16 %v1338
        %v4492 = vunpack.c.l.b16 %v1339
        %v4493 = vunpack.c.h.b16 %v1339
        %v4494 = vunpack.c.l.b16 %v1340
        %v4495 = vunpack.c.h.b16 %v1340
        %v4496 = vunpack.c.l.b16 %v1341
        %v4497 = vunpack.c.h.b16 %v1341
        %v4498 = vunpack.c.l.b16 %v1342
        %v4499 = vunpack.c.h.b16 %v1342
        %v4500 = vunpack.c.l.b16 %v1343
        %v4501 = vunpack.c.h.b16 %v1343
        %v4502 = vunpack.c.l.b16 %v1344
        %v4503 = vunpack.c.h.b16 %v1344
        %v4504 = vunpack.c.l.b16 %v1345
        %v4505 = vunpack.c.h.b16 %v1345
        %v4506 = vunpack.c.l.b16 %v1346
        %v4507 = vunpack.c.h.b16 %v1346
        %v4508 = vunpack.c.l.b16 %v1347
        %v4509 = vunpack.c.h.b16 %v1347
        %v4510 = vunpack.c.l.b16 %v1348
        %v4511 = vunpack.c.h.b16 %v1348
        %v4512 = vunpack.c.l.b16 %v1349
        %v4513 = vunpack.c.h.b16 %v1349
        %v4514 = vunpack.c.l.b16 %v1350
        %v4515 = vunpack.c.h.b16 %v1350
        %v4516 = vunpack.c.l.b16 %v1351
        %v4517 = vunpack.c.h.b16 %v1351
        %v4518 = vunpack.c.l.b16 %v1352
        %v4519 = vunpack.c.h.b16 %v1352
        %v4520 = vunpack.c.l.b16 %v1353
        %v4521 = vunpack.c.h.b16 %v1353
        %v4522 = vunpack.c.l.b16 %v1354
        %v4523 = vunpack.c.h.b16 %v1354
        %v4524 = vunpack.c.l.b16 %v1355
        %v4525 = vunpack.c.h.b16 %v1355
        %v4526 = vunpack.c.l.b16 %v1356
        %v4527 = vunpack.c.h.b16 %v1356
        %v4528 = vunpack.c.l.b16 %v1357
        %v4529 = vunpack.c.h.b16 %v1357
        %v4530 = vunpack.c.l.b16 %v1358
        %v4531 = vunpack.c.h.b16 %v1358
        %v4532 = vunpack.c.l.b16 %v1359
        %v4533 = vunpack.c.h.b16 %v1359
        %v4534 = vunpack.c.l.b16 %v1360
        %v4535 = vunpack.c.h.b16 %v1360
        %v4536 = vunpack.c.l.b16 %v1361
        %v4537 = vunpack.c.h.b16 %v1361
        %v4538 = vunpack.c.l.b16 %v1362
        %v4539 = vunpack.c.h.b16 %v1362
        %v4540 = vunpack.c.l.b16 %v1363
        %v4541 = vunpack.c.h.b16 %v1363
        %v4542 = vunpack.c.l.b16 %v1364
        %v4543 = vunpack.c.h.b16 %v1364
        %v4544 = vunpack.c.l.b16 %v1365
        %v4545 = vunpack.c.h.b16 %v1365
        %v4546 = vunpack.c.l.b16 %v1366
        %v4547 = vunpack.c.h.b16 %v1366
        %v4548 = vunpack.c.l.b16 %v1367
        %v4549 = vunpack.c.h.b16 %v1367
        %v4550 = vunpack.c.l.b16 %v1368
        %v4551 = vunpack.c.h.b16 %v1368
        %v4552 = vunpack.c.l.b16 %v1369
        %v4553 = vunpack.c.h.b16 %v1369
        %v4554 = vunpack.c.l.b16 %v1370
        %v4555 = vunpack.c.h.b16 %v1370
        %v4556 = vunpack.c.l.b16 %v1371
        %v4557 = vunpack.c.h.b16 %v1371
        %v4558 = vunpack.c.l.b16 %v1372
        %v4559 = vunpack.c.h.b16 %v1372
        %v4560 = vunpack.c.l.b16 %v1373
        %v4561 = vunpack.c.h.b16 %v1373
        %v4562 = vunpack.c.l.b16 %v1374
        %v4563 = vunpack.c.h.b16 %v1374
        %v4564 = vunpack.c.l.b16 %v1375
        %v4565 = vunpack.c.h.b16 %v1375
        %v4566 = vunpack.c.l.b16 %v1376
        %v4567 = vunpack.c.h.b16 %v1376
        %v4568 = vunpack.c.l.b16 %v1377
        %v4569 = vunpack.c.h.b16 %v1377
        %v4570 = vunpack.c.l.b16 %v1378
        %v4571 = vunpack.c.h.b16 %v1378
        %v4572 = vunpack.c.l.b16 %v1379
        %v4573 = vunpack.c.h.b16 %v1379
        %v4574 = vunpack.c.l.b16 %v1380
        %v4575 = vunpack.c.h.b16 %v1380
        %v4576 = vunpack.c.l.b16 %v1381
        %v4577 = vunpack.c.h.b16 %v1381
        %v4578 = vunpack.c.l.b16 %v1382
        %v4579 = vunpack.c.h.b16 %v1382
        %v4580 = vunpack.c.l.b16 %v1383
        %v4581 = vunpack.c.h.b16 %v1383
        %v4582 = vunpack.c.l.b16 %v1384
        %v4583 = vunpack.c.h.b16 %v1384
        %v4584 = vunpack.c.l.b16 %v1385
        %v4585 = vunpack.c.h.b16 %v1385
        %v4586 = vunpack.c.l.b16 %v1386
        %v4587 = vunpack.c.h.b16 %v1386
        %v4588 = vunpack.c.l.b16 %v1387
        %v4589 = vunpack.c.h.b16 %v1387
        %v4590 = vunpack.c.l.b16 %v1388
        %v4591 = vunpack.c.h.b16 %v1388
        %v4592 = vunpack.c.l.b16 %v1389
        %v4593 = vunpack.c.h.b16 %v1389
        %v4594 = vunpack.c.l.b16 %v1390
        %v4595 = vunpack.c.h.b16 %v1390
        %v4596 = vunpack.c.l.b16 %v1391
        %v4597 = vunpack.c.h.b16 %v1391
        %v4598 = vunpack.c.l.b16 %v1392
        %v4599 = vunpack.c.h.b16 %v1392
        %v4600 = vunpack.c.l.b16 %v1393
        %v4601 = vunpack.c.h.b16 %v1393
        %v4602 = vunpack.c.l.b16 %v1394
        %v4603 = vunpack.c.h.b16 %v1394
        %v4604 = vunpack.c.l.b16 %v1395
        %v4605 = vunpack.c.h.b16 %v1395
        %v4606 = vunpack.c.l.b16 %v1396
        %v4607 = vunpack.c.h.b16 %v1396
        %v4608 = vunpack.c.l.b16 %v1397
        %v4609 = vunpack.c.h.b16 %v1397
        %v4610 = vunpack.c.l.b16 %v1398
        %v4611 = vunpack.c.h.b16 %v1398
        %v4612 = vunpack.c.l.b16 %v1399
        %v4613 = vunpack.c.h.b16 %v1399
        %v4614 = vpack.c.b16 %v2582, %v2566
        %v4615 = vpack.c.b16 %v2583, %v2567
        %v4616 = vpack.c.b16 %v2584, %v2568
        %v4617 = vpack.c.b16 %v2585, %v2569
        %v4618 = vpack.c.b16 %v2586, %v2570
        %v4619 = vpack.c.b16 %v2587, %v2571
        %v4620 = vpack.c.b16 %v2588, %v2572
        %v4621 = vpack.c.b16 %v2589, %v2573
        %v4622 = vpack.c.b16 %v2590, %v2574
        %v4623 = vpack.c.b16 %v2591, %v2575
        %v4624 = vpack.c.b16 %v2592, %v2576
        %v4625 = vpack.c.b16 %v2593, %v2577
        %v4626 = vpack.c.b16 %v2594, %v2578
        %v4627 = vpack.c.b16 %v2595, %v2579
        %v4628 = vpack.c.b16 %v2596, %v2580
        %v4629 = vpack.c.b16 %v2597, %v2581
        %v4630 = vpack.c.b16 %v2614, %v2598
        %v4631 = vpack.c.b16 %v2615, %v2599
        %v4632 = vpack.c.b16 %v2616, %v2600
        %v4633 = vpack.c.b16 %v2617, %v2601
        %v4634 = vpack.c.b16 %v2618, %v2602
        %v4635 = vpack.c.b16 %v2619, %v2603
        %v4636 = vpack.c.b16 %v2620, %v2604
        %v4637 = vpack.c.b16 %v2621, %v2605
        %v4638 = vpack.c.b16 %v2622, %v2606
        %v4639 = vpack.c.b16 %v2623, %v2607
        %v4640 = vpack.c.b16 %v2624, %v2608
        %v4641 = vpack.c.b16 %v2625, %v2609
        %v4642 = vpack.c.b16 %v2626, %v2610
        %v4643 = vpack.c.b16 %v2627, %v2611
        %v4644 = vpack.c.b16 %v2628, %v2612
        %v4645 = vpack.c.b16 %v2629, %v2613
        %v4646 = vpack.c.b16 %v2646, %v2630
        %v4647 = vpack.c.b16 %v2647, %v2631
        %v4648 = vpack.c.b16 %v2648, %v2632
        %v4649 = vpack.c.b16 %v2649, %v2633
        %v4650 = vpack.c.b16 %v2650, %v2634
        %v4651 = vpack.c.b16 %v2651, %v2635
        %v4652 = vpack.c.b16 %v2652, %v2636
        %v4653 = vpack.c.b16 %v2653, %v2637
        %v4654 = vpack.c.b16 %v2654, %v2638
        %v4655 = vpack.c.b16 %v2655, %v2639
        %v4656 = vpack.c.b16 %v2656, %v2640
        %v4657 = vpack.c.b16 %v2657, %v2641
        %v4658 = vpack.c.b16 %v2658, %v2642
        %v4659 = vpack.c.b16 %v2659, %v2643
        %v4660 = vpack.c.b16 %v2660, %v2644
        %v4661 = vpack.c.b16 %v2661, %v2645
        %v4662 = vpack.c.b16 %v2678, %v2662
        %v4663 = vpack.c.b16 %v2679, %v2663
        %v4664 = vpack.c.b16 %v2680, %v2664
        %v4665 = vpack.c.b16 %v2681, %v2665
        %v4666 = vpack.c.b16 %v2682, %v2666
        %v4667 = vpack.c.b16 %v2683, %v2667
        %v4668 = vpack.c.b16 %v2684, %v2668
        %v4669 = vpack.c.b16 %v2685, %v2669
        %v4670 = vpack.c.b16 %v2686, %v2670
        %v4671 = vpack.c.b16 %v2687, %v2671
        %v4672 = vpack.c.b16 %v2688, %v2672
        %v4673 = vpack.c.b16 %v2689, %v2673
        %v4674 = vpack.c.b16 %v2690, %v2674
        %v4675 = vpack.c.b16 %v2691, %v2675
        %v4676 = vpack.c.b16 %v2692, %v2676
        %v4677 = vpack.c.b16 %v2693, %v2677
        %v4678 = vpack.c.b16 %v2710, %v2694
        %v4679 = vpack.c.b16 %v2711, %v2695
        %v4680 = vpack.c.b16 %v2712, %v2696
        %v4681 = vpack.c.b16 %v2713, %v2697
        %v4682 = vpack.c.b16 %v2714, %v2698
        %v4683 = vpack.c.b16 %v2715, %v2699
        %v4684 = vpack.c.b16 %v2716, %v2700
        %v4685 = vpack.c.b16 %v2717, %v2701
        %v4686 = vpack.c.b16 %v2718, %v2702
        %v4687 = vpack.c.b16 %v2719, %v2703
        %v4688 = vpack.c.b16 %v2720, %v2704
        %v4689 = vpack.c.b16 %v2721, %v2705
        %v4690 = vpack.c.b16 %v2722, %v2706
        %v4691 = vpack.c.b16 %v2723, %v2707
        %v4692 = vpack.c.b16 %v2724, %v2708
        %v4693 = vpack.c.b16 %v2725, %v2709
        %v4694 = vpack.c.b16 %v2742, %v2726
        %v4695 = vpack.c.b16 %v2743, %v2727
        %v4696 = vpack.c.b16 %v2744, %v2728
        %v4697 = vpack.c.b16 %v2745, %v2729
        %v4698 = vpack.c.b16 %v2746, %v2730
        %v4699 = vpack.c.b16 %v2747, %v2731
        %v4700 = vpack.c.b16 %v2748, %v2732
        %v4701 = vpack.c.b16 %v2749, %v2733
        %v4702 = vpack.c.b16 %v2750, %v2734
        %v4703 = vpack.c.b16 %v2751, %v2735
        %v4704 = vpack.c.b16 %v2752, %v2736
        %v4705 = vpack.c.b16 %v2753, %v2737
        %v4706 = vpack.c.b16 %v2754, %v2738
        %v4707 = vpack.c.b16 %v2755, %v2739
        %v4708 = vpack.c.b16 %v2756, %v2740
        %v4709 = vpack.c.b16 %v2757, %v2741
        %v4710 = vpack.c.b16 %v2774, %v2758
        %v4711 = vpack.c.b16 %v2775, %v2759
        %v4712 = vpack.c.b16 %v2776, %v2760
        %v4713 = vpack.c.b16 %v2777, %v2761
        %v4714 = vpack.c.b16 %v2778, %v2762
        %v4715 = vpack.c.b16 %v2779, %v2763
        %v4716 = vpack.c.b16 %v2780, %v2764
        %v4717 = vpack.c.b16 %v2781, %v2765
        %v4718 = vpack.c.b16 %v2782, %v2766
        %v4719 = vpack.c.b16 %v2783, %v2767
        %v4720 = vpack.c.b16 %v2784, %v2768
        %v4721 = vpack.c.b16 %v2785, %v2769
        %v4722 = vpack.c.b16 %v2786, %v2770
        %v4723 = vpack.c.b16 %v2787, %v2771
        %v4724 = vpack.c.b16 %v2788, %v2772
        %v4725 = vpack.c.b16 %v2789, %v2773
        %v4726 = vpack.c.b16 %v2806, %v2790
        %v4727 = vpack.c.b16 %v2807, %v2791
        %v4728 = vpack.c.b16 %v2808, %v2792
        %v4729 = vpack.c.b16 %v2809, %v2793
        %v4730 = vpack.c.b16 %v2810, %v2794
        %v4731 = vpack.c.b16 %v2811, %v2795
        %v4732 = vpack.c.b16 %v2812, %v2796
        %v4733 = vpack.c.b16 %v2813, %v2797
        %v4734 = vpack.c.b16 %v2814, %v2798
        %v4735 = vpack.c.b16 %v2815, %v2799
        %v4736 = vpack.c.b16 %v2816, %v2800
        %v4737 = vpack.c.b16 %v2817, %v2801
        %v4738 = vpack.c.b16 %v2818, %v2802
        %v4739 = vpack.c.b16 %v2819, %v2803
        %v4740 = vpack.c.b16 %v2820, %v2804
        %v4741 = vpack.c.b16 %v2821, %v2805
        %v4742 = vpack.c.b16 %v2838, %v2822
        %v4743 = vpack.c.b16 %v2839, %v2823
        %v4744 = vpack.c.b16 %v2840, %v2824
        %v4745 = vpack.c.b16 %v2841, %v2825
        %v4746 = vpack.c.b16 %v2842, %v2826
        %v4747 = vpack.c.b16 %v2843, %v2827
        %v4748 = vpack.c.b16 %v2844, %v2828
        %v4749 = vpack.c.b16 %v2845, %v2829
        %v4750 = vpack.c.b16 %v2846, %v2830
        %v4751 = vpack.c.b16 %v2847, %v2831
        %v4752 = vpack.c.b16 %v2848, %v2832
        %v4753 = vpack.c.b16 %v2849, %v2833
        %v4754 = vpack.c.b16 %v2850, %v2834
        %v4755 = vpack.c.b16 %v2851, %v2835
        %v4756 = vpack.c.b16 %v2852, %v2836
        %v4757 = vpack.c.b16 %v2853, %v2837
        %v4758 = vpack.c.b16 %v2870, %v2854
        %v4759 = vpack.c.b16 %v2871, %v2855
        %v4760 = vpack.c.b16 %v2872, %v2856
        %v4761 = vpack.c.b16 %v2873, %v2857
        %v4762 = vpack.c.b16 %v2874, %v2858
        %v4763 = vpack.c.b16 %v2875, %v2859
        %v4764 = vpack.c.b16 %v2876, %v2860
        %v4765 = vpack.c.b16 %v2877, %v2861
        %v4766 = vpack.c.b16 %v2878, %v2862
        %v4767 = vpack.c.b16 %v2879, %v2863
        %v4768 = vpack.c.b16 %v2880, %v2864
        %v4769 = vpack.c.b16 %v2881, %v2865
        %v4770 = vpack.c.b16 %v2882, %v2866
        %v4771 = vpack.c.b16 %v2883, %v2867
        %v4772 = vpack.c.b16 %v2884, %v2868
        %v4773 = vpack.c.b16 %v2885, %v2869
        %v4774 = vpack.c.b16 %v2902, %v2886
        %v4775 = vpack.c.b16 %v2903, %v2887
        %v4776 = vpack.c.b16 %v2904, %v2888
        %v4777 = vpack.c.b16 %v2905, %v2889
        %v4778 = vpack.c.b16 %v2906, %v2890
        %v4779 = vpack.c.b16 %v2907, %v2891
        %v4780 = vpack.c.b16 %v2908, %v2892
        %v4781 = vpack.c.b16 %v2909, %v2893
        %v4782 = vpack.c.b16 %v2910, %v2894
        %v4783 = vpack.c.b16 %v2911, %v2895
        %v4784 = vpack.c.b16 %v2912, %v2896
        %v4785 = vpack.c.b16 %v2913, %v2897
        %v4786 = vpack.c.b16 %v2914, %v2898
        %v4787 = vpack.c.b16 %v2915, %v2899
        %v4788 = vpack.c.b16 %v2916, %v2900
        %v4789 = vpack.c.b16 %v2917, %v2901
        %v4790 = vpack.c.b16 %v2934, %v2918
        %v4791 = vpack.c.b16 %v2935, %v2919
        %v4792 = vpack.c.b16 %v2936, %v2920
        %v4793 = vpack.c.b16 %v2937, %v2921
        %v4794 = vpack.c.b16 %v2938, %v2922
        %v4795 = vpack.c.b16 %v2939, %v2923
        %v4796 = vpack.c.b16 %v2940, %v2924
        %v4797 = vpack.c.b16 %v2941, %v2925
        %v4798 = vpack.c.b16 %v2942, %v2926
        %v4799 = vpack.c.b16 %v2943, %v2927
        %v4800 = vpack.c.b16 %v2944, %v2928
        %v4801 = vpack.c.b16 %v2945, %v2929
        %v4802 = vpack.c.b16 %v2946, %v2930
        %v4803 = vpack.c.b16 %v2947, %v2931
        %v4804 = vpack.c.b16 %v2948, %v2932
        %v4805 = vpack.c.b16 %v2949, %v2933
        %v4806 = vpack.c.b16 %v2966, %v2950
        %v4807 = vpack.c.b16 %v2967, %v2951
        %v4808 = vpack.c.b16 %v2968, %v2952
        %v4809 = vpack.c.b16 %v2969, %v2953
        %v4810 = vpack.c.b16 %v2970, %v2954
        %v4811 = vpack.c.b16 %v2971, %v2955
        %v4812 = vpack.c.b16 %v2972, %v2956
        %v4813 = vpack.c.b16 %v2973, %v2957
        %v4814 = vpack.c.b16 %v2974, %v2958
        %v4815 = vpack.c.b16 %v2975, %v2959
        %v4816 = vpack.c.b16 %v2976, %v2960
        %v4817 = vpack.c.b16 %v2977, %v2961
        %v4818 = vpack.c.b16 %v2978, %v2962
        %v4819 = vpack.c.b16 %v2979, %v2963
        %v4820 = vpack.c.b16 %v2980, %v2964
        %v4821 = vpack.c.b16 %v2981, %v2965
        %v4822 = vpack.c.b16 %v2998, %v2982
        %v4823 = vpack.c.b16 %v2999, %v2983
        %v4824 = vpack.c.b16 %v3000, %v2984
        %v4825 = vpack.c.b16 %v3001, %v2985
        %v4826 = vpack.c.b16 %v3002, %v2986
        %v4827 = vpack.c.b16 %v3003, %v2987
        %v4828 = vpack.c.b16 %v3004, %v2988
        %v4829 = vpack.c.b16 %v3005, %v2989
        %v4830 = vpack.c.b16 %v3006, %v2990
        %v4831 = vpack.c.b16 %v3007, %v2991
        %v4832 = vpack.c.b16 %v3008, %v2992
        %v4833 = vpack.c.b16 %v3009, %v2993
        %v4834 = vpack.c.b16 %v3010, %v2994
        %v4835 = vpack.c.b16 %v3011, %v2995
        %v4836 = vpack.c.b16 %v3012, %v2996
        %v4837 = vpack.c.b16 %v3013, %v2997
        %v4838 = vpack.c.b16 %v3030, %v3014
        %v4839 = vpack.c.b16 %v3031, %v3015
        %v4840 = vpack.c.b16 %v3032, %v3016
        %v4841 = vpack.c.b16 %v3033, %v3017
        %v4842 = vpack.c.b16 %v3034, %v3018
        %v4843 = vpack.c.b16 %v3035, %v3019
        %v4844 = vpack.c.b16 %v3036, %v3020
        %v4845 = vpack.c.b16 %v3037, %v3021
        %v4846 = vpack.c.b16 %v3038, %v3022
        %v4847 = vpack.c.b16 %v3039, %v3023
        %v4848 = vpack.c.b16 %v3040, %v3024
        %v4849 = vpack.c.b16 %v3041, %v3025
        %v4850 = vpack.c.b16 %v3042, %v3026
        %v4851 = vpack.c.b16 %v3043, %v3027
        %v4852 = vpack.c.b16 %v3044, %v3028
        %v4853 = vpack.c.b16 %v3045, %v3029
        %v4854 = vpack.c.b16 %v3062, %v3046
        %v4855 = vpack.c.b16 %v3063, %v3047
        %v4856 = vpack.c.b16 %v3064, %v3048
        %v4857 = vpack.c.b16 %v3065, %v3049
        %v4858 = vpack.c.b16 %v3066, %v3050
        %v4859 = vpack.c.b16 %v3067, %v3051
        %v4860 = vpack.c.b16 %v3068, %v3052
        %v4861 = vpack.c.b16 %v3069, %v3053
        %v4862 = vpack.c.b16 %v3070, %v3054
        %v4863 = vpack.c.b16 %v3071, %v3055
        %v4864 = vpack.c.b16 %v3072, %v3056
        %v4865 = vpack.c.b16 %v3073, %v3057
        %v4866 = vpack.c.b16 %v3074, %v3058
        %v4867 = vpack.c.b16 %v3075, %v3059
        %v4868 = vpack.c.b16 %v3076, %v3060
        %v4869 = vpack.c.b16 %v3077, %v3061
        %v4870 = vpack.c.b16 %v3094, %v3078
        %v4871 = vpack.c.b16 %v3095, %v3079
        %v4872 = vpack.c.b16 %v3096, %v3080
        %v4873 = vpack.c.b16 %v3097, %v3081
        %v4874 = vpack.c.b16 %v3098, %v3082
        %v4875 = vpack.c.b16 %v3099, %v3083
        %v4876 = vpack.c.b16 %v3100, %v3084
        %v4877 = vpack.c.b16 %v3101, %v3085
        %v4878 = vpack.c.b16 %v3102, %v3086
        %v4879 = vpack.c.b16 %v3103, %v3087
        %v4880 = vpack.c.b16 %v3104, %v3088
        %v4881 = vpack.c.b16 %v3105, %v3089
        %v4882 = vpack.c.b16 %v3106, %v3090
        %v4883 = vpack.c.b16 %v3107, %v3091
        %v4884 = vpack.c.b16 %v3108, %v3092
        %v4885 = vpack.c.b16 %v3109, %v3093
        %v4886 = vpack.c.b16 %v3126, %v3110
        %v4887 = vpack.c.b16 %v3127, %v3111
        %v4888 = vpack.c.b16 %v3128, %v3112
        %v4889 = vpack.c.b16 %v3129, %v3113
        %v4890 = vpack.c.b16 %v3130, %v3114
        %v4891 = vpack.c.b16 %v3131, %v3115
        %v4892 = vpack.c.b16 %v3132, %v3116
        %v4893 = vpack.c.b16 %v3133, %v3117
        %v4894 = vpack.c.b16 %v3134, %v3118
        %v4895 = vpack.c.b16 %v3135, %v3119
        %v4896 = vpack.c.b16 %v3136, %v3120
        %v4897 = vpack.c.b16 %v3137, %v3121
        %v4898 = vpack.c.b16 %v3138, %v3122
        %v4899 = vpack.c.b16 %v3139, %v3123
        %v4900 = vpack.c.b16 %v3140, %v3124
        %v4901 = vpack.c.b16 %v3141, %v3125
        %v4902 = vpack.c.b16 %v3158, %v3142
        %v4903 = vpack.c.b16 %v3159, %v3143
        %v4904 = vpack.c.b16 %v3160, %v3144
        %v4905 = vpack.c.b16 %v3161, %v3145
        %v4906 = vpack.c.b16 %v3162, %v3146
        %v4907 = vpack.c.b16 %v3163, %v3147
        %v4908 = vpack.c.b16 %v3164, %v3148
        %v4909 = vpack.c.b16 %v3165, %v3149
        %v4910 = vpack.c.b16 %v3166, %v3150
        %v4911 = vpack.c.b16 %v3167, %v3151
        %v4912 = vpack.c.b16 %v3168, %v3152
        %v4913 = vpack.c.b16 %v3169, %v3153
        %v4914 = vpack.c.b16 %v3170, %v3154
        %v4915 = vpack.c.b16 %v3171, %v3155
        %v4916 = vpack.c.b16 %v3172, %v3156
        %v4917 = vpack.c.b16 %v3173, %v3157
        %v4918 = vpack.c.b16 %v3190, %v3174
        %v4919 = vpack.c.b16 %v3191, %v3175
        %v4920 = vpack.c.b16 %v3192, %v3176
        %v4921 = vpack.c.b16 %v3193, %v3177
        %v4922 = vpack.c.b16 %v3194, %v3178
        %v4923 = vpack.c.b16 %v3195, %v3179
        %v4924 = vpack.c.b16 %v3196, %v3180
        %v4925 = vpack.c.b16 %v3197, %v3181
        %v4926 = vpack.c.b16 %v3198, %v3182
        %v4927 = vpack.c.b16 %v3199, %v3183
        %v4928 = vpack.c.b16 %v3200, %v3184
        %v4929 = vpack.c.b16 %v3201, %v3185
        %v4930 = vpack.c.b16 %v3202, %v3186
        %v4931 = vpack.c.b16 %v3203, %v3187
        %v4932 = vpack.c.b16 %v3204, %v3188
        %v4933 = vpack.c.b16 %v3205, %v3189
        %v4934 = vpack.c.b16 %v3222, %v3206
        %v4935 = vpack.c.b16 %v3223, %v3207
        %v4936 = vpack.c.b16 %v3224, %v3208
        %v4937 = vpack.c.b16 %v3225, %v3209
        %v4938 = vpack.c.b16 %v3226, %v3210
        %v4939 = vpack.c.b16 %v3227, %v3211
        %v4940 = vpack.c.b16 %v3228, %v3212
        %v4941 = vpack.c.b16 %v3229, %v3213
        %v4942 = vpack.c.b16 %v3230, %v3214
        %v4943 = vpack.c.b16 %v3231, %v3215
        %v4944 = vpack.c.b16 %v3232, %v3216
        %v4945 = vpack.c.b16 %v3233, %v3217
        %v4946 = vpack.c.b16 %v3234, %v3218
        %v4947 = vpack.c.b16 %v3235, %v3219
        %v4948 = vpack.c.b16 %v3236, %v3220
        %v4949 = vpack.c.b16 %v3237, %v3221
        %v4950 = vpack.c.b16 %v3254, %v3238
        %v4951 = vpack.c.b16 %v3255, %v3239
        %v4952 = vpack.c.b16 %v3256, %v3240
        %v4953 = vpack.c.b16 %v3257, %v3241
        %v4954 = vpack.c.b16 %v3258, %v3242
        %v4955 = vpack.c.b16 %v3259, %v3243
        %v4956 = vpack.c.b16 %v3260, %v3244
        %v4957 = vpack.c.b16 %v3261, %v3245
        %v4958 = vpack.c.b16 %v3262, %v3246
        %v4959 = vpack.c.b16 %v3263, %v3247
        %v4960 = vpack.c.b16 %v3264, %v3248
        %v4961 = vpack.c.b16 %v3265, %v3249
        %v4962 = vpack.c.b16 %v3266, %v3250
        %v4963 = vpack.c.b16 %v3267, %v3251
        %v4964 = vpack.c.b16 %v3268, %v3252
        %v4965 = vpack.c.b16 %v3269, %v3253
        %v4966 = vpack.c.b16 %v3286, %v3270
        %v4967 = vpack.c.b16 %v3287, %v3271
        %v4968 = vpack.c.b16 %v3288, %v3272
        %v4969 = vpack.c.b16 %v3289, %v3273
        %v4970 = vpack.c.b16 %v3290, %v3274
        %v4971 = vpack.c.b16 %v3291, %v3275
        %v4972 = vpack.c.b16 %v3292, %v3276
        %v4973 = vpack.c.b16 %v3293, %v3277
        %v4974 = vpack.c.b16 %v3294, %v3278
        %v4975 = vpack.c.b16 %v3295, %v3279
        %v4976 = vpack.c.b16 %v3296, %v3280
        %v4977 = vpack.c.b16 %v3297, %v3281
        %v4978 = vpack.c.b16 %v3298, %v3282
        %v4979 = vpack.c.b16 %v3299, %v3283
        %v4980 = vpack.c.b16 %v3300, %v3284
        %v4981 = vpack.c.b16 %v3301, %v3285
        %v4982 = vpack.c.b16 %v3318, %v3302
        %v4983 = vpack.c.b16 %v3319, %v3303
        %v4984 = vpack.c.b16 %v3320, %v3304
        %v4985 = vpack.c.b16 %v3321, %v3305
        %v4986 = vpack.c.b16 %v3322, %v3306
        %v4987 = vpack.c.b16 %v3323, %v3307
        %v4988 = vpack.c.b16 %v3324, %v3308
        %v4989 = vpack.c.b16 %v3325, %v3309
        %v4990 = vpack.c.b16 %v3326, %v3310
        %v4991 = vpack.c.b16 %v3327, %v3311
        %v4992 = vpack.c.b16 %v3328, %v3312
        %v4993 = vpack.c.b16 %v3329, %v3313
        %v4994 = vpack.c.b16 %v3330, %v3314
        %v4995 = vpack.c.b16 %v3331, %v3315
        %v4996 = vpack.c.b16 %v3332, %v3316
        %v4997 = vpack.c.b16 %v3333, %v3317
        %v4998 = vpack.c.b16 %v3350, %v3334
        %v4999 = vpack.c.b16 %v3351, %v3335
        %v5000 = vpack.c.b16 %v3352, %v3336
        %v5001 = vpack.c.b16 %v3353, %v3337
        %v5002 = vpack.c.b16 %v3354, %v3338
        %v5003 = vpack.c.b16 %v3355, %v3339
        %v5004 = vpack.c.b16 %v3356, %v3340
        %v5005 = vpack.c.b16 %v3357, %v3341
        %v5006 = vpack.c.b16 %v3358, %v3342
        %v5007 = vpack.c.b16 %v3359, %v3343
        %v5008 = vpack.c.b16 %v3360, %v3344
        %v5009 = vpack.c.b16 %v3361, %v3345
        %v5010 = vpack.c.b16 %v3362, %v3346
        %v5011 = vpack.c.b16 %v3363, %v3347
        %v5012 = vpack.c.b16 %v3364, %v3348
        %v5013 = vpack.c.b16 %v3365, %v3349
        %v5014 = vpack.c.b16 %v3382, %v3366
        %v5015 = vpack.c.b16 %v3383, %v3367
        %v5016 = vpack.c.b16 %v3384, %v3368
        %v5017 = vpack.c.b16 %v3385, %v3369
        %v5018 = vpack.c.b16 %v3386, %v3370
        %v5019 = vpack.c.b16 %v3387, %v3371
        %v5020 = vpack.c.b16 %v3388, %v3372
        %v5021 = vpack.c.b16 %v3389, %v3373
        %v5022 = vpack.c.b16 %v3390, %v3374
        %v5023 = vpack.c.b16 %v3391, %v3375
        %v5024 = vpack.c.b16 %v3392, %v3376
        %v5025 = vpack.c.b16 %v3393, %v3377
        %v5026 = vpack.c.b16 %v3394, %v3378
        %v5027 = vpack.c.b16 %v3395, %v3379
        %v5028 = vpack.c.b16 %v3396, %v3380
        %v5029 = vpack.c.b16 %v3397, %v3381
        %v5030 = vpack.c.b16 %v3414, %v3398
        %v5031 = vpack.c.b16 %v3415, %v3399
        %v5032 = vpack.c.b16 %v3416, %v3400
        %v5033 = vpack.c.b16 %v3417, %v3401
        %v5034 = vpack.c.b16 %v3418, %v3402
        %v5035 = vpack.c.b16 %v3419, %v3403
        %v5036 = vpack.c.b16 %v3420, %v3404
        %v5037 = vpack.c.b16 %v3421, %v3405
        %v5038 = vpack.c.b16 %v3422, %v3406
        %v5039 = vpack.c.b16 %v3423, %v3407
        %v5040 = vpack.c.b16 %v3424, %v3408
        %v5041 = vpack.c.b16 %v3425, %v3409
        %v5042 = vpack.c.b16 %v3426, %v3410
        %v5043 = vpack.c.b16 %v3427, %v3411
        %v5044 = vpack.c.b16 %v3428, %v3412
        %v5045 = vpack.c.b16 %v3429, %v3413
        %v5046 = vpack.c.b16 %v3446, %v3430
        %v5047 = vpack.c.b16 %v3447, %v3431
        %v5048 = vpack.c.b16 %v3448, %v3432
        %v5049 = vpack.c.b16 %v3449, %v3433
        %v5050 = vpack.c.b16 %v3450, %v3434
        %v5051 = vpack.c.b16 %v3451, %v3435
        %v5052 = vpack.c.b16 %v3452, %v3436
        %v5053 = vpack.c.b16 %v3453, %v3437
        %v5054 = vpack.c.b16 %v3454, %v3438
        %v5055 = vpack.c.b16 %v3455, %v3439
        %v5056 = vpack.c.b16 %v3456, %v3440
        %v5057 = vpack.c.b16 %v3457, %v3441
        %v5058 = vpack.c.b16 %v3458, %v3442
        %v5059 = vpack.c.b16 %v3459, %v3443
        %v5060 = vpack.c.b16 %v3460, %v3444
        %v5061 = vpack.c.b16 %v3461, %v3445
        %v5062 = vpack.c.b16 %v3478, %v3462
        %v5063 = vpack.c.b16 %v3479, %v3463
        %v5064 = vpack.c.b16 %v3480, %v3464
        %v5065 = vpack.c.b16 %v3481, %v3465
        %v5066 = vpack.c.b16 %v3482, %v3466
        %v5067 = vpack.c.b16 %v3483, %v3467
        %v5068 = vpack.c.b16 %v3484, %v3468
        %v5069 = vpack.c.b16 %v3485, %v3469
        %v5070 = vpack.c.b16 %v3486, %v3470
        %v5071 = vpack.c.b16 %v3487, %v3471
        %v5072 = vpack.c.b16 %v3488, %v3472
        %v5073 = vpack.c.b16 %v3489, %v3473
        %v5074 = vpack.c.b16 %v3490, %v3474
        %v5075 = vpack.c.b16 %v3491, %v3475
        %v5076 = vpack.c.b16 %v3492, %v3476
        %v5077 = vpack.c.b16 %v3493, %v3477
        %v5078 = vpack.c.b16 %v3510, %v3494
        %v5079 = vpack.c.b16 %v3511, %v3495
        %v5080 = vpack.c.b16 %v3512, %v3496
        %v5081 = vpack.c.b16 %v3513, %v3497
        %v5082 = vpack.c.b16 %v3514, %v3498
        %v5083 = vpack.c.b16 %v3515, %v3499
        %v5084 = vpack.c.b16 %v3516, %v3500
        %v5085 = vpack.c.b16 %v3517, %v3501
        %v5086 = vpack.c.b16 %v3518, %v3502
        %v5087 = vpack.c.b16 %v3519, %v3503
        %v5088 = vpack.c.b16 %v3520, %v3504
        %v5089 = vpack.c.b16 %v3521, %v3505
        %v5090 = vpack.c.b16 %v3522, %v3506
        %v5091 = vpack.c.b16 %v3523, %v3507
        %v5092 = vpack.c.b16 %v3524, %v3508
        %v5093 = vpack.c.b16 %v3525, %v3509
        %v5094 = vpack.c.b16 %v3542, %v3526
        %v5095 = vpack.c.b16 %v3543, %v3527
        %v5096 = vpack.c.b16 %v3544, %v3528
        %v5097 = vpack.c.b16 %v3545, %v3529
        %v5098 = vpack.c.b16 %v3546, %v3530
        %v5099 = vpack.c.b16 %v3547, %v3531
        %v5100 = vpack.c.b16 %v3548, %v3532
        %v5101 = vpack.c.b16 %v3549, %v3533
        %v5102 = vpack.c.b16 %v3550, %v3534
        %v5103 = vpack.c.b16 %v3551, %v3535
        %v5104 = vpack.c.b16 %v3552, %v3536
        %v5105 = vpack.c.b16 %v3553, %v3537
        %v5106 = vpack.c.b16 %v3554, %v3538
        %v5107 = vpack.c.b16 %v3555, %v3539
        %v5108 = vpack.c.b16 %v3556, %v3540
        %v5109 = vpack.c.b16 %v3557, %v3541
        %v5110 = vpack.c.b16 %v3574, %v3558
        %v5111 = vpack.c.b16 %v3575, %v3559
        %v5112 = vpack.c.b16 %v3576, %v3560
        %v5113 = vpack.c.b16 %v3577, %v3561
        %v5114 = vpack.c.b16 %v3578, %v3562
        %v5115 = vpack.c.b16 %v3579, %v3563
        %v5116 = vpack.c.b16 %v3580, %v3564
        %v5117 = vpack.c.b16 %v3581, %v3565
        %v5118 = vpack.c.b16 %v3582, %v3566
        %v5119 = vpack.c.b16 %v3583, %v3567
        %v5120 = vpack.c.b16 %v3584, %v3568
        %v5121 = vpack.c.b16 %v3585, %v3569
        %v5122 = vpack.c.b16 %v3586, %v3570
        %v5123 = vpack.c.b16 %v3587, %v3571
        %v5124 = vpack.c.b16 %v3588, %v3572
        %v5125 = vpack.c.b16 %v3589, %v3573
        %v5126 = vpack.c.b16 %v3606, %v3590
        %v5127 = vpack.c.b16 %v3607, %v3591
        %v5128 = vpack.c.b16 %v3608, %v3592
        %v5129 = vpack.c.b16 %v3609, %v3593
        %v5130 = vpack.c.b16 %v3610, %v3594
        %v5131 = vpack.c.b16 %v3611, %v3595
        %v5132 = vpack.c.b16 %v3612, %v3596
        %v5133 = vpack.c.b16 %v3613, %v3597
        %v5134 = vpack.c.b16 %v3614, %v3598
        %v5135 = vpack.c.b16 %v3615, %v3599
        %v5136 = vpack.c.b16 %v3616, %v3600
        %v5137 = vpack.c.b16 %v3617, %v3601
        %v5138 = vpack.c.b16 %v3618, %v3602
        %v5139 = vpack.c.b16 %v3619, %v3603
        %v5140 = vpack.c.b16 %v3620, %v3604
        %v5141 = vpack.c.b16 %v3621, %v3605
        %v5142 = vpack.c.b16 %v3638, %v3622
        %v5143 = vpack.c.b16 %v3639, %v3623
        %v5144 = vpack.c.b16 %v3640, %v3624
        %v5145 = vpack.c.b16 %v3641, %v3625
        %v5146 = vpack.c.b16 %v3642, %v3626
        %v5147 = vpack.c.b16 %v3643, %v3627
        %v5148 = vpack.c.b16 %v3644, %v3628
        %v5149 = vpack.c.b16 %v3645, %v3629
        %v5150 = vpack.c.b16 %v3646, %v3630
        %v5151 = vpack.c.b16 %v3647, %v3631
        %v5152 = vpack.c.b16 %v3648, %v3632
        %v5153 = vpack.c.b16 %v3649, %v3633
        %v5154 = vpack.c.b16 %v3650, %v3634
        %v5155 = vpack.c.b16 %v3651, %v3635
        %v5156 = vpack.c.b16 %v3652, %v3636
        %v5157 = vpack.c.b16 %v3653, %v3637
        %v5158 = vpack.c.b16 %v3670, %v3654
        %v5159 = vpack.c.b16 %v3671, %v3655
        %v5160 = vpack.c.b16 %v3672, %v3656
        %v5161 = vpack.c.b16 %v3673, %v3657
        %v5162 = vpack.c.b16 %v3674, %v3658
        %v5163 = vpack.c.b16 %v3675, %v3659
        %v5164 = vpack.c.b16 %v3676, %v3660
        %v5165 = vpack.c.b16 %v3677, %v3661
        %v5166 = vpack.c.b16 %v3678, %v3662
        %v5167 = vpack.c.b16 %v3679, %v3663
        %v5168 = vpack.c.b16 %v3680, %v3664
        %v5169 = vpack.c.b16 %v3681, %v3665
        %v5170 = vpack.c.b16 %v3682, %v3666
        %v5171 = vpack.c.b16 %v3683, %v3667
        %v5172 = vpack.c.b16 %v3684, %v3668
        %v5173 = vpack.c.b16 %v3685, %v3669
        %v5174 = vpack.c.b16 %v3702, %v3686
        %v5175 = vpack.c.b16 %v3703, %v3687
        %v5176 = vpack.c.b16 %v3704, %v3688
        %v5177 = vpack.c.b16 %v3705, %v3689
        %v5178 = vpack.c.b16 %v3706, %v3690
        %v5179 = vpack.c.b16 %v3707, %v3691
        %v5180 = vpack.c.b16 %v3708, %v3692
        %v5181 = vpack.c.b16 %v3709, %v3693
        %v5182 = vpack.c.b16 %v3710, %v3694
        %v5183 = vpack.c.b16 %v3711, %v3695
        %v5184 = vpack.c.b16 %v3712, %v3696
        %v5185 = vpack.c.b16 %v3713, %v3697
        %v5186 = vpack.c.b16 %v3714, %v3698
        %v5187 = vpack.c.b16 %v3715, %v3699
        %v5188 = vpack.c.b16 %v3716, %v3700
        %v5189 = vpack.c.b16 %v3717, %v3701
        %v5190 = vpack.c.b16 %v3734, %v3718
        %v5191 = vpack.c.b16 %v3735, %v3719
        %v5192 = vpack.c.b16 %v3736, %v3720
        %v5193 = vpack.c.b16 %v3737, %v3721
        %v5194 = vpack.c.b16 %v3738, %v3722
        %v5195 = vpack.c.b16 %v3739, %v3723
        %v5196 = vpack.c.b16 %v3740, %v3724
        %v5197 = vpack.c.b16 %v3741, %v3725
        %v5198 = vpack.c.b16 %v3742, %v3726
        %v5199 = vpack.c.b16 %v3743, %v3727
        %v5200 = vpack.c.b16 %v3744, %v3728
        %v5201 = vpack.c.b16 %v3745, %v3729
        %v5202 = vpack.c.b16 %v3746, %v3730
        %v5203 = vpack.c.b16 %v3747, %v3731
        %v5204 = vpack.c.b16 %v3748, %v3732
        %v5205 = vpack.c.b16 %v3749, %v3733
        %v5206 = vpack.c.b16 %v3766, %v3750
        %v5207 = vpack.c.b16 %v3767, %v3751
        %v5208 = vpack.c.b16 %v3768, %v3752
        %v5209 = vpack.c.b16 %v3769, %v3753
        %v5210 = vpack.c.b16 %v3770, %v3754
        %v5211 = vpack.c.b16 %v3771, %v3755
        %v5212 = vpack.c.b16 %v3772, %v3756
        %v5213 = vpack.c.b16 %v3773, %v3757
        %v5214 = vpack.c.b16 %v3774, %v3758
        %v5215 = vpack.c.b16 %v3775, %v3759
        %v5216 = vpack.c.b16 %v3776, %v3760
        %v5217 = vpack.c.b16 %v3777, %v3761
        %v5218 = vpack.c.b16 %v3778, %v3762
        %v5219 = vpack.c.b16 %v3779, %v3763
        %v5220 = vpack.c.b16 %v3780, %v3764
        %v5221 = vpack.c.b16 %v3781, %v3765
        %v5222 = vpack.c.b16 %v3798, %v3782
        %v5223 = vpack.c.b16 %v3799, %v3783
        %v5224 = vpack.c.b16 %v3800, %v3784
        %v5225 = vpack.c.b16 %v3801, %v3785
        %v5226 = vpack.c.b16 %v3802, %v3786
        %v5227 = vpack.c.b16 %v3803, %v3787
        %v5228 = vpack.c.b16 %v3804, %v3788
        %v5229 = vpack.c.b16 %v3805, %v3789
        %v5230 = vpack.c.b16 %v3806, %v3790
        %v5231 = vpack.c.b16 %v3807, %v3791
        %v5232 = vpack.c.b16 %v3808, %v3792
        %v5233 = vpack.c.b16 %v3809, %v3793
        %v5234 = vpack.c.b16 %v3810, %v3794
        %v5235 = vpack.c.b16 %v3811, %v3795
        %v5236 = vpack.c.b16 %v3812, %v3796
        %v5237 = vpack.c.b16 %v3813, %v3797
        %v5238 = vpack.c.b16 %v3830, %v3814
        %v5239 = vpack.c.b16 %v3831, %v3815
        %v5240 = vpack.c.b16 %v3832, %v3816
        %v5241 = vpack.c.b16 %v3833, %v3817
        %v5242 = vpack.c.b16 %v3834, %v3818
        %v5243 = vpack.c.b16 %v3835, %v3819
        %v5244 = vpack.c.b16 %v3836, %v3820
        %v5245 = vpack.c.b16 %v3837, %v3821
        %v5246 = vpack.c.b16 %v3838, %v3822
        %v5247 = vpack.c.b16 %v3839, %v3823
        %v5248 = vpack.c.b16 %v3840, %v3824
        %v5249 = vpack.c.b16 %v3841, %v3825
        %v5250 = vpack.c.b16 %v3842, %v3826
        %v5251 = vpack.c.b16 %v3843, %v3827
        %v5252 = vpack.c.b16 %v3844, %v3828
        %v5253 = vpack.c.b16 %v3845, %v3829
        %v5254 = vpack.c.b16 %v3862, %v3846
        %v5255 = vpack.c.b16 %v3863, %v3847
        %v5256 = vpack.c.b16 %v3864, %v3848
        %v5257 = vpack.c.b16 %v3865, %v3849
        %v5258 = vpack.c.b16 %v3866, %v3850
        %v5259 = vpack.c.b16 %v3867, %v3851
        %v5260 = vpack.c.b16 %v3868, %v3852
        %v5261 = vpack.c.b16 %v3869, %v3853
        %v5262 = vpack.c.b16 %v3870, %v3854
        %v5263 = vpack.c.b16 %v3871, %v3855
        %v5264 = vpack.c.b16 %v3872, %v3856
        %v5265 = vpack.c.b16 %v3873, %v3857
        %v5266 = vpack.c.b16 %v3874, %v3858
        %v5267 = vpack.c.b16 %v3875, %v3859
        %v5268 = vpack.c.b16 %v3876, %v3860
        %v5269 = vpack.c.b16 %v3877, %v3861
        %v5270 = vpack.c.b16 %v3894, %v3878
        %v5271 = vpack.c.b16 %v3895, %v3879
        %v5272 = vpack.c.b16 %v3896, %v3880
        %v5273 = vpack.c.b16 %v3897, %v3881
        %v5274 = vpack.c.b16 %v3898, %v3882
        %v5275 = vpack.c.b16 %v3899, %v3883
        %v5276 = vpack.c.b16 %v3900, %v3884
        %v5277 = vpack.c.b16 %v3901, %v3885
        %v5278 = vpack.c.b16 %v3902, %v3886
        %v5279 = vpack.c.b16 %v3903, %v3887
        %v5280 = vpack.c.b16 %v3904, %v3888
        %v5281 = vpack.c.b16 %v3905, %v3889
        %v5282 = vpack.c.b16 %v3906, %v3890
        %v5283 = vpack.c.b16 %v3907, %v3891
        %v5284 = vpack.c.b16 %v3908, %v3892
        %v5285 = vpack.c.b16 %v3909, %v3893
        %v5286 = vpack.c.b16 %v3926, %v3910
        %v5287 = vpack.c.b16 %v3927, %v3911
        %v5288 = vpack.c.b16 %v3928, %v3912
        %v5289 = vpack.c.b16 %v3929, %v3913
        %v5290 = vpack.c.b16 %v3930, %v3914
        %v5291 = vpack.c.b16 %v3931, %v3915
        %v5292 = vpack.c.b16 %v3932, %v3916
        %v5293 = vpack.c.b16 %v3933, %v3917
        %v5294 = vpack.c.b16 %v3934, %v3918
        %v5295 = vpack.c.b16 %v3935, %v3919
        %v5296 = vpack.c.b16 %v3936, %v3920
        %v5297 = vpack.c.b16 %v3937, %v3921
        %v5298 = vpack.c.b16 %v3938, %v3922
        %v5299 = vpack.c.b16 %v3939, %v3923
        %v5300 = vpack.c.b16 %v3940, %v3924
        %v5301 = vpack.c.b16 %v3941, %v3925
        %v5302 = vpack.c.b16 %v3958, %v3942
        %v5303 = vpack.c.b16 %v3959, %v3943
        %v5304 = vpack.c.b16 %v3960, %v3944
        %v5305 = vpack.c.b16 %v3961, %v3945
        %v5306 = vpack.c.b16 %v3962, %v3946
        %v5307 = vpack.c.b16 %v3963, %v3947
        %v5308 = vpack.c.b16 %v3964, %v3948
        %v5309 = vpack.c.b16 %v3965, %v3949
        %v5310 = vpack.c.b16 %v3966, %v3950
        %v5311 = vpack.c.b16 %v3967, %v3951
        %v5312 = vpack.c.b16 %v3968, %v3952
        %v5313 = vpack.c.b16 %v3969, %v3953
        %v5314 = vpack.c.b16 %v3970, %v3954
        %v5315 = vpack.c.b16 %v3971, %v3955
        %v5316 = vpack.c.b16 %v3972, %v3956
        %v5317 = vpack.c.b16 %v3973, %v3957
        %v5318 = vpack.c.b16 %v3990, %v3974
        %v5319 = vpack.c.b16 %v3991, %v3975
        %v5320 = vpack.c.b16 %v3992, %v3976
        %v5321 = vpack.c.b16 %v3993, %v3977
        %v5322 = vpack.c.b16 %v3994, %v3978
        %v5323 = vpack.c.b16 %v3995, %v3979
        %v5324 = vpack.c.b16 %v3996, %v3980
        %v5325 = vpack.c.b16 %v3997, %v3981
        %v5326 = vpack.c.b16 %v3998, %v3982
        %v5327 = vpack.c.b16 %v3999, %v3983
        %v5328 = vpack.c.b16 %v4000, %v3984
        %v5329 = vpack.c.b16 %v4001, %v3985
        %v5330 = vpack.c.b16 %v4002, %v3986
        %v5331 = vpack.c.b16 %v4003, %v3987
        %v5332 = vpack.c.b16 %v4004, %v3988
        %v5333 = vpack.c.b16 %v4005, %v3989
        %v5334 = vpack.c.b16 %v4022, %v4006
        %v5335 = vpack.c.b16 %v4023, %v4007
        %v5336 = vpack.c.b16 %v4024, %v4008
        %v5337 = vpack.c.b16 %v4025, %v4009
        %v5338 = vpack.c.b16 %v4026, %v4010
        %v5339 = vpack.c.b16 %v4027, %v4011
        %v5340 = vpack.c.b16 %v4028, %v4012
        %v5341 = vpack.c.b16 %v4029, %v4013
        %v5342 = vpack.c.b16 %v4030, %v4014
        %v5343 = vpack.c.b16 %v4031, %v4015
        %v5344 = vpack.c.b16 %v4032, %v4016
        %v5345 = vpack.c.b16 %v4033, %v4017
        %v5346 = vpack.c.b16 %v4034, %v4018
        %v5347 = vpack.c.b16 %v4035, %v4019
        %v5348 = vpack.c.b16 %v4036, %v4020
        %v5349 = vpack.c.b16 %v4037, %v4021
        %v5350 = vpack.c.b16 %v4054, %v4038
        %v5351 = vpack.c.b16 %v4055, %v4039
        %v5352 = vpack.c.b16 %v4056, %v4040
        %v5353 = vpack.c.b16 %v4057, %v4041
        %v5354 = vpack.c.b16 %v4058, %v4042
        %v5355 = vpack.c.b16 %v4059, %v4043
        %v5356 = vpack.c.b16 %v4060, %v4044
        %v5357 = vpack.c.b16 %v4061, %v4045
        %v5358 = vpack.c.b16 %v4062, %v4046
        %v5359 = vpack.c.b16 %v4063, %v4047
        %v5360 = vpack.c.b16 %v4064, %v4048
        %v5361 = vpack.c.b16 %v4065, %v4049
        %v5362 = vpack.c.b16 %v4066, %v4050
        %v5363 = vpack.c.b16 %v4067, %v4051
        %v5364 = vpack.c.b16 %v4068, %v4052
        %v5365 = vpack.c.b16 %v4069, %v4053
        %v5366 = vpack.c.b16 %v4086, %v4070
        %v5367 = vpack.c.b16 %v4087, %v4071
        %v5368 = vpack.c.b16 %v4088, %v4072
        %v5369 = vpack.c.b16 %v4089, %v4073
        %v5370 = vpack.c.b16 %v4090, %v4074
        %v5371 = vpack.c.b16 %v4091, %v4075
        %v5372 = vpack.c.b16 %v4092, %v4076
        %v5373 = vpack.c.b16 %v4093, %v4077
        %v5374 = vpack.c.b16 %v4094, %v4078
        %v5375 = vpack.c.b16 %v4095, %v4079
        %v5376 = vpack.c.b16 %v4096, %v4080
        %v5377 = vpack.c.b16 %v4097, %v4081
        %v5378 = vpack.c.b16 %v4098, %v4082
        %v5379 = vpack.c.b16 %v4099, %v4083
        %v5380 = vpack.c.b16 %v4100, %v4084
        %v5381 = vpack.c.b16 %v4101, %v4085
        %v5382 = vpack.c.b16 %v4118, %v4102
        %v5383 = vpack.c.b16 %v4119, %v4103
        %v5384 = vpack.c.b16 %v4120, %v4104
        %v5385 = vpack.c.b16 %v4121, %v4105
        %v5386 = vpack.c.b16 %v4122, %v4106
        %v5387 = vpack.c.b16 %v4123, %v4107
        %v5388 = vpack.c.b16 %v4124, %v4108
        %v5389 = vpack.c.b16 %v4125, %v4109
        %v5390 = vpack.c.b16 %v4126, %v4110
        %v5391 = vpack.c.b16 %v4127, %v4111
        %v5392 = vpack.c.b16 %v4128, %v4112
        %v5393 = vpack.c.b16 %v4129, %v4113
        %v5394 = vpack.c.b16 %v4130, %v4114
        %v5395 = vpack.c.b16 %v4131, %v4115
        %v5396 = vpack.c.b16 %v4132, %v4116
        %v5397 = vpack.c.b16 %v4133, %v4117
        %v5398 = vpack.c.b16 %v4150, %v4134
        %v5399 = vpack.c.b16 %v4151, %v4135
        %v5400 = vpack.c.b16 %v4152, %v4136
        %v5401 = vpack.c.b16 %v4153, %v4137
        %v5402 = vpack.c.b16 %v4154, %v4138
        %v5403 = vpack.c.b16 %v4155, %v4139
        %v5404 = vpack.c.b16 %v4156, %v4140
        %v5405 = vpack.c.b16 %v4157, %v4141
        %v5406 = vpack.c.b16 %v4158, %v4142
        %v5407 = vpack.c.b16 %v4159, %v4143
        %v5408 = vpack.c.b16 %v4160, %v4144
        %v5409 = vpack.c.b16 %v4161, %v4145
        %v5410 = vpack.c.b16 %v4162, %v4146
        %v5411 = vpack.c.b16 %v4163, %v4147
        %v5412 = vpack.c.b16 %v4164, %v4148
        %v5413 = vpack.c.b16 %v4165, %v4149
        %v5414 = vpack.c.b16 %v4182, %v4166
        %v5415 = vpack.c.b16 %v4183, %v4167
        %v5416 = vpack.c.b16 %v4184, %v4168
        %v5417 = vpack.c.b16 %v4185, %v4169
        %v5418 = vpack.c.b16 %v4186, %v4170
        %v5419 = vpack.c.b16 %v4187, %v4171
        %v5420 = vpack.c.b16 %v4188, %v4172
        %v5421 = vpack.c.b16 %v4189, %v4173
        %v5422 = vpack.c.b16 %v4190, %v4174
        %v5423 = vpack.c.b16 %v4191, %v4175
        %v5424 = vpack.c.b16 %v4192, %v4176
        %v5425 = vpack.c.b16 %v4193, %v4177
        %v5426 = vpack.c.b16 %v4194, %v4178
        %v5427 = vpack.c.b16 %v4195, %v4179
        %v5428 = vpack.c.b16 %v4196, %v4180
        %v5429 = vpack.c.b16 %v4197, %v4181
        %v5430 = vpack.c.b16 %v4214, %v4198
        %v5431 = vpack.c.b16 %v4215, %v4199
        %v5432 = vpack.c.b16 %v4216, %v4200
        %v5433 = vpack.c.b16 %v4217, %v4201
        %v5434 = vpack.c.b16 %v4218, %v4202
        %v5435 = vpack.c.b16 %v4219, %v4203
        %v5436 = vpack.c.b16 %v4220, %v4204
        %v5437 = vpack.c.b16 %v4221, %v4205
        %v5438 = vpack.c.b16 %v4222, %v4206
        %v5439 = vpack.c.b16 %v4223, %v4207
        %v5440 = vpack.c.b16 %v4224, %v4208
        %v5441 = vpack.c.b16 %v4225, %v4209
        %v5442 = vpack.c.b16 %v4226, %v4210
        %v5443 = vpack.c.b16 %v4227, %v4211
        %v5444 = vpack.c.b16 %v4228, %v4212
        %v5445 = vpack.c.b16 %v4229, %v4213
        %v5446 = vpack.c.b16 %v4246, %v4230
        %v5447 = vpack.c.b16 %v4247, %v4231
        %v5448 = vpack.c.b16 %v4248, %v4232
        %v5449 = vpack.c.b16 %v4249, %v4233
        %v5450 = vpack.c.b16 %v4250, %v4234
        %v5451 = vpack.c.b16 %v4251, %v4235
        %v5452 = vpack.c.b16 %v4252, %v4236
        %v5453 = vpack.c.b16 %v4253, %v4237
        %v5454 = vpack.c.b16 %v4254, %v4238
        %v5455 = vpack.c.b16 %v4255, %v4239
        %v5456 = vpack.c.b16 %v4256, %v4240
        %v5457 = vpack.c.b16 %v4257, %v4241
        %v5458 = vpack.c.b16 %v4258, %v4242
        %v5459 = vpack.c.b16 %v4259, %v4243
        %v5460 = vpack.c.b16 %v4260, %v4244
        %v5461 = vpack.c.b16 %v4261, %v4245
        %v5462 = vpack.c.b16 %v4278, %v4262
        %v5463 = vpack.c.b16 %v4279, %v4263
        %v5464 = vpack.c.b16 %v4280, %v4264
        %v5465 = vpack.c.b16 %v4281, %v4265
        %v5466 = vpack.c.b16 %v4282, %v4266
        %v5467 = vpack.c.b16 %v4283, %v4267
        %v5468 = vpack.c.b16 %v4284, %v4268
        %v5469 = vpack.c.b16 %v4285, %v4269
        %v5470 = vpack.c.b16 %v4286, %v4270
        %v5471 = vpack.c.b16 %v4287, %v4271
        %v5472 = vpack.c.b16 %v4288, %v4272
        %v5473 = vpack.c.b16 %v4289, %v4273
        %v5474 = vpack.c.b16 %v4290, %v4274
        %v5475 = vpack.c.b16 %v4291, %v4275
        %v5476 = vpack.c.b16 %v4292, %v4276
        %v5477 = vpack.c.b16 %v4293, %v4277
        %v5478 = vpack.c.b16 %v4310, %v4294
        %v5479 = vpack.c.b16 %v4311, %v4295
        %v5480 = vpack.c.b16 %v4312, %v4296
        %v5481 = vpack.c.b16 %v4313, %v4297
        %v5482 = vpack.c.b16 %v4314, %v4298
        %v5483 = vpack.c.b16 %v4315, %v4299
        %v5484 = vpack.c.b16 %v4316, %v4300
        %v5485 = vpack.c.b16 %v4317, %v4301
        %v5486 = vpack.c.b16 %v4318, %v4302
        %v5487 = vpack.c.b16 %v4319, %v4303
        %v5488 = vpack.c.b16 %v4320, %v4304
        %v5489 = vpack.c.b16 %v4321, %v4305
        %v5490 = vpack.c.b16 %v4322, %v4306
        %v5491 = vpack.c.b16 %v4323, %v4307
        %v5492 = vpack.c.b16 %v4324, %v4308
        %v5493 = vpack.c.b16 %v4325, %v4309
        %v5494 = vpack.c.b16 %v4342, %v4326
        %v5495 = vpack.c.b16 %v4343, %v4327
        %v5496 = vpack.c.b16 %v4344, %v4328
        %v5497 = vpack.c.b16 %v4345, %v4329
        %v5498 = vpack.c.b16 %v4346, %v4330
        %v5499 = vpack.c.b16 %v4347, %v4331
        %v5500 = vpack.c.b16 %v4348, %v4332
        %v5501 = vpack.c.b16 %v4349, %v4333
        %v5502 = vpack.c.b16 %v4350, %v4334
        %v5503 = vpack.c.b16 %v4351, %v4335
        %v5504 = vpack.c.b16 %v4352, %v4336
        %v5505 = vpack.c.b16 %v4353, %v4337
        %v5506 = vpack.c.b16 %v4354, %v4338
        %v5507 = vpack.c.b16 %v4355, %v4339
        %v5508 = vpack.c.b16 %v4356, %v4340
        %v5509 = vpack.c.b16 %v4357, %v4341
        %v5510 = vpack.c.b16 %v4374, %v4358
        %v5511 = vpack.c.b16 %v4375, %v4359
        %v5512 = vpack.c.b16 %v4376, %v4360
        %v5513 = vpack.c.b16 %v4377, %v4361
        %v5514 = vpack.c.b16 %v4378, %v4362
        %v5515 = vpack.c.b16 %v4379, %v4363
        %v5516 = vpack.c.b16 %v4380, %v4364
        %v5517 = vpack.c.b16 %v4381, %v4365
        %v5518 = vpack.c.b16 %v4382, %v4366
        %v5519 = vpack.c.b16 %v4383, %v4367
        %v5520 = vpack.c.b16 %v4384, %v4368
        %v5521 = vpack.c.b16 %v4385, %v4369
        %v5522 = vpack.c.b16 %v4386, %v4370
        %v5523 = vpack.c.b16 %v4387, %v4371
        %v5524 = vpack.c.b16 %v4388, %v4372
        %v5525 = vpack.c.b16 %v4389, %v4373
        %v5526 = vpack.c.b16 %v4406, %v4390
        %v5527 = vpack.c.b16 %v4407, %v4391
        %v5528 = vpack.c.b16 %v4408, %v4392
        %v5529 = vpack.c.b16 %v4409, %v4393
        %v5530 = vpack.c.b16 %v4410, %v4394
        %v5531 = vpack.c.b16 %v4411, %v4395
        %v5532 = vpack.c.b16 %v4412, %v4396
        %v5533 = vpack.c.b16 %v4413, %v4397
        %v5534 = vpack.c.b16 %v4414, %v4398
        %v5535 = vpack.c.b16 %v4415, %v4399
        %v5536 = vpack.c.b16 %v4416, %v4400
        %v5537 = vpack.c.b16 %v4417, %v4401
        %v5538 = vpack.c.b16 %v4418, %v4402
        %v5539 = vpack.c.b16 %v4419, %v4403
        %v5540 = vpack.c.b16 %v4420, %v4404
        %v5541 = vpack.c.b16 %v4421, %v4405
        %v5542 = vpack.c.b16 %v4438, %v4422
        %v5543 = vpack.c.b16 %v4439, %v4423
        %v5544 = vpack.c.b16 %v4440, %v4424
        %v5545 = vpack.c.b16 %v4441, %v4425
        %v5546 = vpack.c.b16 %v4442, %v4426
        %v5547 = vpack.c.b16 %v4443, %v4427
        %v5548 = vpack.c.b16 %v4444, %v4428
        %v5549 = vpack.c.b16 %v4445, %v4429
        %v5550 = vpack.c.b16 %v4446, %v4430
        %v5551 = vpack.c.b16 %v4447, %v4431
        %v5552 = vpack.c.b16 %v4448, %v4432
        %v5553 = vpack.c.b16 %v4449, %v4433
        %v5554 = vpack.c.b16 %v4450, %v4434
        %v5555 = vpack.c.b16 %v4451, %v4435
        %v5556 = vpack.c.b16 %v4452, %v4436
        %v5557 = vpack.c.b16 %v4453, %v4437
        %v5558 = vpack.c.b16 %v4470, %v4454
        %v5559 = vpack.c.b16 %v4471, %v4455
        %v5560 = vpack.c.b16 %v4472, %v4456
        %v5561 = vpack.c.b16 %v4473, %v4457
        %v5562 = vpack.c.b16 %v4474, %v4458
        %v5563 = vpack.c.b16 %v4475, %v4459
        %v5564 = vpack.c.b16 %v4476, %v4460
        %v5565 = vpack.c.b16 %v4477, %v4461
        %v5566 = vpack.c.b16 %v4478, %v4462
        %v5567 = vpack.c.b16 %v4479, %v4463
        %v5568 = vpack.c.b16 %v4480, %v4464
        %v5569 = vpack.c.b16 %v4481, %v4465
        %v5570 = vpack.c.b16 %v4482, %v4466
        %v5571 = vpack.c.b16 %v4483, %v4467
        %v5572 = vpack.c.b16 %v4484, %v4468
        %v5573 = vpack.c.b16 %v4485, %v4469
        %v5574 = vpack.c.b16 %v4502, %v4486
        %v5575 = vpack.c.b16 %v4503, %v4487
        %v5576 = vpack.c.b16 %v4504, %v4488
        %v5577 = vpack.c.b16 %v4505, %v4489
        %v5578 = vpack.c.b16 %v4506, %v4490
        %v5579 = vpack.c.b16 %v4507, %v4491
        %v5580 = vpack.c.b16 %v4508, %v4492
        %v5581 = vpack.c.b16 %v4509, %v4493
        %v5582 = vpack.c.b16 %v4510, %v4494
        %v5583 = vpack.c.b16 %v4511, %v4495
        %v5584 = vpack.c.b16 %v4512, %v4496
        %v5585 = vpack.c.b16 %v4513, %v4497
        %v5586 = vpack.c.b16 %v4514, %v4498
        %v5587 = vpack.c.b16 %v4515, %v4499
        %v5588 = vpack.c.b16 %v4516, %v4500
        %v5589 = vpack.c.b16 %v4517, %v4501
        %v5590 = vpack.c.b16 %v4534, %v4518
        %v5591 = vpack.c.b16 %v4535, %v4519
        %v5592 = vpack.c.b16 %v4536, %v4520
        %v5593 = vpack.c.b16 %v4537, %v4521
        %v5594 = vpack.c.b16 %v4538, %v4522
        %v5595 = vpack.c.b16 %v4539, %v4523
        %v5596 = vpack.c.b16 %v4540, %v4524
        %v5597 = vpack.c.b16 %v4541, %v4525
        %v5598 = vpack.c.b16 %v4542, %v4526
        %v5599 = vpack.c.b16 %v4543, %v4527
        %v5600 = vpack.c.b16 %v4544, %v4528
        %v5601 = vpack.c.b16 %v4545, %v4529
        %v5602 = vpack.c.b16 %v4546, %v4530
        %v5603 = vpack.c.b16 %v4547, %v4531
        %v5604 = vpack.c.b16 %v4548, %v4532
        %v5605 = vpack.c.b16 %v4549, %v4533
        %v5606 = vpack.c.b16 %v4566, %v4550
        %v5607 = vpack.c.b16 %v4567, %v4551
        %v5608 = vpack.c.b16 %v4568, %v4552
        %v5609 = vpack.c.b16 %v4569, %v4553
        %v5610 = vpack.c.b16 %v4570, %v4554
        %v5611 = vpack.c.b16 %v4571, %v4555
        %v5612 = vpack.c.b16 %v4572, %v4556
        %v5613 = vpack.c.b16 %v4573, %v4557
        %v5614 = vpack.c.b16 %v4574, %v4558
        %v5615 = vpack.c.b16 %v4575, %v4559
        %v5616 = vpack.c.b16 %v4576, %v4560
        %v5617 = vpack.c.b16 %v4577, %v4561
        %v5618 = vpack.c.b16 %v4578, %v4562
        %v5619 = vpack.c.b16 %v4579, %v4563
        %v5620 = vpack.c.b16 %v4580, %v4564
        %v5621 = vpack.c.b16 %v4581, %v4565
        %v5622 = vpack.c.b16 %v4598, %v4582
        %v5623 = vpack.c.b16 %v4599, %v4583
        %v5624 = vpack.c.b16 %v4600, %v4584
        %v5625 = vpack.c.b16 %v4601, %v4585
        %v5626 = vpack.c.b16 %v4602, %v4586
        %v5627 = vpack.c.b16 %v4603, %v4587
        %v5628 = vpack.c.b16 %v4604, %v4588
        %v5629 = vpack.c.b16 %v4605, %v4589
        %v5630 = vpack.c.b16 %v4606, %v4590
        %v5631 = vpack.c.b16 %v4607, %v4591
        %v5632 = vpack.c.b16 %v4608, %v4592
        %v5633 = vpack.c.b16 %v4609, %v4593
        %v5634 = vpack.c.b16 %v4610, %v4594
        %v5635 = vpack.c.b16 %v4611, %v4595
        %v5636 = vpack.c.b16 %v4612, %v4596
        %v5637 = vpack.c.b16 %v4613, %v4597
        %6662 = vmatprep.subr.bf16.mxu0 %v4615
        %6663 = vmatpush1.bf16.msra.mxu0 %v4614
        %6664 = vmatprep.subr.bf16.mxu0 %v4631
        %6665 = vmatpush1.bf16.msra.mxu0 %v4630
        %6666 = vmatprep.subr.bf16.mxu0 %v4647
        %6667 = vmatpush1.bf16.msra.mxu0 %v4646
        %6668 = vmatprep.subr.bf16.mxu0 %v4663
        %6669 = vmatpush1.bf16.msra.mxu0 %v4662
        %6670 = vmatprep.subr.bf16.mxu0 %v4679
        %6671 = vmatpush1.bf16.msra.mxu0 %v4678
        %6672 = vmatprep.subr.bf16.mxu0 %v4695
        %6673 = vmatpush1.bf16.msra.mxu0 %v4694
        %6674 = vmatprep.subr.bf16.mxu0 %v4711
        %6675 = vmatpush1.bf16.msra.mxu0 %v4710
        %6676 = vmatprep.subr.bf16.mxu0 %v4727
        %6677 = vmatpush1.bf16.msra.mxu0 %v4726
        %6678 = vmatprep.subr.bf16.mxu0 %v4743
        %6679 = vmatpush1.bf16.msra.mxu0 %v4742
        %6680 = vmatprep.subr.bf16.mxu0 %v4759
        %6681 = vmatpush1.bf16.msra.mxu0 %v4758
        %6682 = vmatprep.subr.bf16.mxu0 %v4775
        %6683 = vmatpush1.bf16.msra.mxu0 %v4774
        %6684 = vmatprep.subr.bf16.mxu0 %v4791
        %6685 = vmatpush1.bf16.msra.mxu0 %v4790
        %6686 = vmatprep.subr.bf16.mxu0 %v4807
        %6687 = vmatpush1.bf16.msra.mxu0 %v4806
        %6688 = vmatprep.subr.bf16.mxu0 %v4823
        %6689 = vmatpush1.bf16.msra.mxu0 %v4822
        %6690 = vmatprep.subr.bf16.mxu0 %v4839
        %6691 = vmatpush1.bf16.msra.mxu0 %v4838
        %6692 = vmatprep.subr.bf16.mxu0 %v4855
        %6693 = vmatpush1.bf16.msra.mxu0 %v4854
        %6694 = vmatprep.mubr.bf16.mxu0 %v1522
        %6695 = vmatmul.mubr.bf16.gmra.mrb[0].mxu0 %v1508
        %v6696 = vpop.f32.mrb[0].mxu0
        %v6697 = vadd.f32 %v1407, %v6696
        %v6698 = vpop.f32.mrb[0].mxu0
        %v6699 = vadd.f32 %v1411, %v6698
        %v6700 = vpop.f32.mrb[0].mxu0
        %v6701 = vpop.f32.mrb[0].mxu0
        %6702 = vdwg.mxu0
        %6703 = vmatprep.subr.bf16.mxu0 %v4871
        %6704 = vmatpush1.bf16.msra.mxu0 %v4870
        %6705 = vmatprep.subr.bf16.mxu0 %v4887
        %6706 = vmatpush1.bf16.msra.mxu0 %v4886
        %6707 = vmatprep.subr.bf16.mxu0 %v4903
        %6708 = vmatpush1.bf16.msra.mxu0 %v4902
        %6709 = vmatprep.subr.bf16.mxu0 %v4919
        %6710 = vmatpush1.bf16.msra.mxu0 %v4918
        %6711 = vmatprep.subr.bf16.mxu0 %v4935
        %6712 = vmatpush1.bf16.msra.mxu0 %v4934
        %6713 = vmatprep.subr.bf16.mxu0 %v4951
        %6714 = vmatpush1.bf16.msra.mxu0 %v4950
        %6715 = vmatprep.subr.bf16.mxu0 %v4967
        %6716 = vmatpush1.bf16.msra.mxu0 %v4966
        %6717 = vmatprep.subr.bf16.mxu0 %v4983
        %6718 = vmatpush1.bf16.msra.mxu0 %v4982
        %6719 = vmatprep.subr.bf16.mxu0 %v4999
        %6720 = vmatpush1.bf16.msra.mxu0 %v4998
        %6721 = vmatprep.subr.bf16.mxu0 %v5015
        %6722 = vmatpush1.bf16.msra.mxu0 %v5014
        %6723 = vmatprep.subr.bf16.mxu0 %v5031
        %6724 = vmatpush1.bf16.msra.mxu0 %v5030
        %6725 = vmatprep.subr.bf16.mxu0 %v5047
        %6726 = vmatpush1.bf16.msra.mxu0 %v5046
        %6727 = vmatprep.subr.bf16.mxu0 %v5063
        %6728 = vmatpush1.bf16.msra.mxu0 %v5062
        %6729 = vmatprep.subr.bf16.mxu0 %v5079
        %6730 = vmatpush1.bf16.msra.mxu0 %v5078
        %6731 = vmatprep.subr.bf16.mxu0 %v5095
        %6732 = vmatpush1.bf16.msra.mxu0 %v5094
        %6733 = vmatprep.subr.bf16.mxu0 %v5111
        %6734 = vmatpush1.bf16.msra.mxu0 %v5110
        %6735 = vmatprep.mubr.bf16.mxu0 %v1532
        %6736 = vmatmul.mubr.bf16.gmra.mrb[0].mxu0 %v1530
        %v6737 = vpop.f32.mrb[0].mxu0
        %v6738 = vadd.f32 %v6697, %v6737
        %v6739 = vpop.f32.mrb[0].mxu0
        %v6740 = vadd.f32 %v6699, %v6739
        %v6741 = vpop.f32.mrb[0].mxu0
        %v6742 = vpop.f32.mrb[0].mxu0
        %6743 = vdwg.mxu0
        %6744 = vmatprep.subr.bf16.mxu0 %v5127
        %6745 = vmatpush1.bf16.msra.mxu0 %v5126
        %6746 = vmatprep.subr.bf16.mxu0 %v5143
        %6747 = vmatpush1.bf16.msra.mxu0 %v5142
        %6748 = vmatprep.subr.bf16.mxu0 %v5159
        %6749 = vmatpush1.bf16.msra.mxu0 %v5158
        %6750 = vmatprep.subr.bf16.mxu0 %v5175
        %6751 = vmatpush1.bf16.msra.mxu0 %v5174
        %6752 = vmatprep.subr.bf16.mxu0 %v5191
        %6753 = vmatpush1.bf16.msra.mxu0 %v5190
        %6754 = vmatprep.subr.bf16.mxu0 %v5207
        %6755 = vmatpush1.bf16.msra.mxu0 %v5206
        %6756 = vmatprep.subr.bf16.mxu0 %v5223
        %6757 = vmatpush1.bf16.msra.mxu0 %v5222
        %6758 = vmatprep.subr.bf16.mxu0 %v5239
        %6759 = vmatpush1.bf16.msra.mxu0 %v5238
        %6760 = vmatprep.subr.bf16.mxu0 %v5255
        %6761 = vmatpush1.bf16.msra.mxu0 %v5254
        %6762 = vmatprep.subr.bf16.mxu0 %v5271
        %6763 = vmatpush1.bf16.msra.mxu0 %v5270
        %6764 = vmatprep.subr.bf16.mxu0 %v5287
        %6765 = vmatpush1.bf16.msra.mxu0 %v5286
        %6766 = vmatprep.subr.bf16.mxu0 %v5303
        %6767 = vmatpush1.bf16.msra.mxu0 %v5302
        %6768 = vmatprep.subr.bf16.mxu0 %v5319
        %6769 = vmatpush1.bf16.msra.mxu0 %v5318
        %6770 = vmatprep.subr.bf16.mxu0 %v5335
        %6771 = vmatpush1.bf16.msra.mxu0 %v5334
        %6772 = vmatprep.subr.bf16.mxu0 %v5351
        %6773 = vmatpush1.bf16.msra.mxu0 %v5350
        %6774 = vmatprep.subr.bf16.mxu0 %v5367
        %6775 = vmatpush1.bf16.msra.mxu0 %v5366
        %6776 = vmatprep.mubr.bf16.mxu0 %v1529
        %6777 = vmatmul.mubr.bf16.gmra.mrb[0].mxu0 %v1515
        %v6778 = vpop.f32.mrb[0].mxu0
        %v6779 = vadd.f32 %v6738, %v6778
        %v6780 = vpop.f32.mrb[0].mxu0
        %v6781 = vadd.f32 %v6740, %v6780
        %v6782 = vpop.f32.mrb[0].mxu0
        %v6783 = vpop.f32.mrb[0].mxu0
        %6784 = vdwg.mxu0
        %6785 = vmatprep.subr.bf16.mxu0 %v5383
        %6786 = vmatpush1.bf16.msra.mxu0 %v5382
        %6787 = vmatprep.subr.bf16.mxu0 %v5399
        %6788 = vmatpush1.bf16.msra.mxu0 %v5398
        %6789 = vmatprep.subr.bf16.mxu0 %v5415
        %6790 = vmatpush1.bf16.msra.mxu0 %v5414
        %6791 = vmatprep.subr.bf16.mxu0 %v5431
        %6792 = vmatpush1.bf16.msra.mxu0 %v5430
        %6793 = vmatprep.subr.bf16.mxu0 %v5447
        %6794 = vmatpush1.bf16.msra.mxu0 %v5446
        %6795 = vmatprep.subr.bf16.mxu0 %v5463
        %6796 = vmatpush1.bf16.msra.mxu0 %v5462
        %6797 = vmatprep.subr.bf16.mxu0 %v5479
        %6798 = vmatpush1.bf16.msra.mxu0 %v5478
        %6799 = vmatprep.subr.bf16.mxu0 %v5495
        %6800 = vmatpush1.bf16.msra.mxu0 %v5494
        %6801 = vmatprep.subr.bf16.mxu0 %v5511
        %6802 = vmatpush1.bf16.msra.mxu0 %v5510
        %6803 = vmatprep.subr.bf16.mxu0 %v5527
        %6804 = vmatpush1.bf16.msra.mxu0 %v5526
        %6805 = vmatprep.subr.bf16.mxu0 %v5543
        %6806 = vmatpush1.bf16.msra.mxu0 %v5542
        %6807 = vmatprep.subr.bf16.mxu0 %v5559
        %6808 = vmatpush1.bf16.msra.mxu0 %v5558
        %6809 = vmatprep.subr.bf16.mxu0 %v5575
        %6810 = vmatpush1.bf16.msra.mxu0 %v5574
        %6811 = vmatprep.subr.bf16.mxu0 %v5591
        %6812 = vmatpush1.bf16.msra.mxu0 %v5590
        %6813 = vmatprep.subr.bf16.mxu0 %v5607
        %6814 = vmatpush1.bf16.msra.mxu0 %v5606
        %6815 = vmatprep.subr.bf16.mxu0 %v5623
        %6816 = vmatpush1.bf16.msra.mxu0 %v5622
        %6817 = vmatprep.mubr.bf16.mxu0 %v1533
        %6818 = vmatmul.mubr.bf16.gmra.mrb[0].mxu0 %v1531
        %v6819 = vpop.f32.mrb[0].mxu0
        %v6820 = vadd.f32 %v6779, %v6819
        %v6821 = vpop.f32.mrb[0].mxu0
        %v6822 = vadd.f32 %v6781, %v6821
        %v6823 = vpop.f32.mrb[0].mxu0
        %v6824 = vpop.f32.mrb[0].mxu0
        %6825 = vdwg.mxu0
        %6826 = vmatprep.subr.bf16.mxu0 %v4617
        %6827 = vmatpush1.bf16.msra.mxu0 %v4616
        %6828 = vmatprep.subr.bf16.mxu0 %v4633
        %6829 = vmatpush1.bf16.msra.mxu0 %v4632
        %6830 = vmatprep.subr.bf16.mxu0 %v4649
        %6831 = vmatpush1.bf16.msra.mxu0 %v4648
        %6832 = vmatprep.subr.bf16.mxu0 %v4665
        %6833 = vmatpush1.bf16.msra.mxu0 %v4664
        %6834 = vmatprep.subr.bf16.mxu0 %v4681
        %6835 = vmatpush1.bf16.msra.mxu0 %v4680
        %6836 = vmatprep.subr.bf16.mxu0 %v4697
        %6837 = vmatpush1.bf16.msra.mxu0 %v4696
        %6838 = vmatprep.subr.bf16.mxu0 %v4713
        %6839 = vmatpush1.bf16.msra.mxu0 %v4712
        %6840 = vmatprep.subr.bf16.mxu0 %v4729
        %6841 = vmatpush1.bf16.msra.mxu0 %v4728
        %6842 = vmatprep.subr.bf16.mxu0 %v4745
        %6843 = vmatpush1.bf16.msra.mxu0 %v4744
        %6844 = vmatprep.subr.bf16.mxu0 %v4761
        %6845 = vmatpush1.bf16.msra.mxu0 %v4760
        %6846 = vmatprep.subr.bf16.mxu0 %v4777
        %6847 = vmatpush1.bf16.msra.mxu0 %v4776
        %6848 = vmatprep.subr.bf16.mxu0 %v4793
        %6849 = vmatpush1.bf16.msra.mxu0 %v4792
        %6850 = vmatprep.subr.bf16.mxu0 %v4809
        %6851 = vmatpush1.bf16.msra.mxu0 %v4808
        %6852 = vmatprep.subr.bf16.mxu0 %v4825
        %6853 = vmatpush1.bf16.msra.mxu0 %v4824
        %6854 = vmatprep.subr.bf16.mxu0 %v4841
        %6855 = vmatpush1.bf16.msra.mxu0 %v4840
        %6856 = vmatprep.subr.bf16.mxu0 %v4857
        %6857 = vmatpush1.bf16.msra.mxu0 %v4856
        %6858 = vmatprep.mubr.bf16.mxu0 %v1522
        %6859 = vmatmul.mubr.bf16.gmra.mrb[0].mxu0 %v1508
        %v6860 = vpop.f32.mrb[0].mxu0
        %v6861 = vadd.f32 %v1415, %v6860
        %v6862 = vpop.f32.mrb[0].mxu0
        %v6863 = vadd.f32 %v1419, %v6862
        %v6864 = vpop.f32.mrb[0].mxu0
        %v6865 = vpop.f32.mrb[0].mxu0
        %6866 = vdwg.mxu0
        %6867 = vmatprep.subr.bf16.mxu0 %v4873
        %6868 = vmatpush1.bf16.msra.mxu0 %v4872
        %6869 = vmatprep.subr.bf16.mxu0 %v4889
        %6870 = vmatpush1.bf16.msra.mxu0 %v4888
        %6871 = vmatprep.subr.bf16.mxu0 %v4905
        %6872 = vmatpush1.bf16.msra.mxu0 %v4904
        %6873 = vmatprep.subr.bf16.mxu0 %v4921
        %6874 = vmatpush1.bf16.msra.mxu0 %v4920
        %6875 = vmatprep.subr.bf16.mxu0 %v4937
        %6876 = vmatpush1.bf16.msra.mxu0 %v4936
        %6877 = vmatprep.subr.bf16.mxu0 %v4953
        %6878 = vmatpush1.bf16.msra.mxu0 %v4952
        %6879 = vmatprep.subr.bf16.mxu0 %v4969
        %6880 = vmatpush1.bf16.msra.mxu0 %v4968
        %6881 = vmatprep.subr.bf16.mxu0 %v4985
        %6882 = vmatpush1.bf16.msra.mxu0 %v4984
        %6883 = vmatprep.subr.bf16.mxu0 %v5001
        %6884 = vmatpush1.bf16.msra.mxu0 %v5000
        %6885 = vmatprep.subr.bf16.mxu0 %v5017
        %6886 = vmatpush1.bf16.msra.mxu0 %v5016
        %6887 = vmatprep.subr.bf16.mxu0 %v5033
        %6888 = vmatpush1.bf16.msra.mxu0 %v5032
        %6889 = vmatprep.subr.bf16.mxu0 %v5049
        %6890 = vmatpush1.bf16.msra.mxu0 %v5048
        %6891 = vmatprep.subr.bf16.mxu0 %v5065
        %6892 = vmatpush1.bf16.msra.mxu0 %v5064
        %6893 = vmatprep.subr.bf16.mxu0 %v5081
        %6894 = vmatpush1.bf16.msra.mxu0 %v5080
        %6895 = vmatprep.subr.bf16.mxu0 %v5097
        %6896 = vmatpush1.bf16.msra.mxu0 %v5096
        %6897 = vmatprep.subr.bf16.mxu0 %v5113
        %6898 = vmatpush1.bf16.msra.mxu0 %v5112
        %6899 = vmatprep.mubr.bf16.mxu0 %v1532
        %6900 = vmatmul.mubr.bf16.gmra.mrb[0].mxu0 %v1530
        %v6901 = vpop.f32.mrb[0].mxu0
        %v6902 = vadd.f32 %v6861, %v6901
        %v6903 = vpop.f32.mrb[0].mxu0
        %v6904 = vadd.f32 %v6863, %v6903
        %v6905 = vpop.f32.mrb[0].mxu0
        %v6906 = vpop.f32.mrb[0].mxu0
        %6907 = vdwg.mxu0
        %6908 = vmatprep.subr.bf16.mxu0 %v5129
        %6909 = vmatpush1.bf16.msra.mxu0 %v5128
        %6910 = vmatprep.subr.bf16.mxu0 %v5145
        %6911 = vmatpush1.bf16.msra.mxu0 %v5144
        %6912 = vmatprep.subr.bf16.mxu0 %v5161
        %6913 = vmatpush1.bf16.msra.mxu0 %v5160
        %6914 = vmatprep.subr.bf16.mxu0 %v5177
        %6915 = vmatpush1.bf16.msra.mxu0 %v5176
        %6916 = vmatprep.subr.bf16.mxu0 %v5193
        %6917 = vmatpush1.bf16.msra.mxu0 %v5192
        %6918 = vmatprep.subr.bf16.mxu0 %v5209
        %6919 = vmatpush1.bf16.msra.mxu0 %v5208
        %6920 = vmatprep.subr.bf16.mxu0 %v5225
        %6921 = vmatpush1.bf16.msra.mxu0 %v5224
        %6922 = vmatprep.subr.bf16.mxu0 %v5241
        %6923 = vmatpush1.bf16.msra.mxu0 %v5240
        %6924 = vmatprep.subr.bf16.mxu0 %v5257
        %6925 = vmatpush1.bf16.msra.mxu0 %v5256
        %6926 = vmatprep.subr.bf16.mxu0 %v5273
        %6927 = vmatpush1.bf16.msra.mxu0 %v5272
        %6928 = vmatprep.subr.bf16.mxu0 %v5289
        %6929 = vmatpush1.bf16.msra.mxu0 %v5288
        %6930 = vmatprep.subr.bf16.mxu0 %v5305
        %6931 = vmatpush1.bf16.msra.mxu0 %v5304
        %6932 = vmatprep.subr.bf16.mxu0 %v5321
        %6933 = vmatpush1.bf16.msra.mxu0 %v5320
        %6934 = vmatprep.subr.bf16.mxu0 %v5337
        %6935 = vmatpush1.bf16.msra.mxu0 %v5336
        %6936 = vmatprep.subr.bf16.mxu0 %v5353
        %6937 = vmatpush1.bf16.msra.mxu0 %v5352
        %6938 = vmatprep.subr.bf16.mxu0 %v5369
        %6939 = vmatpush1.bf16.msra.mxu0 %v5368
        %6940 = vmatprep.mubr.bf16.mxu0 %v1529
        %6941 = vmatmul.mubr.bf16.gmra.mrb[0].mxu0 %v1515
        %v6942 = vpop.f32.mrb[0].mxu0
        %v6943 = vadd.f32 %v6902, %v6942
        %v6944 = vpop.f32.mrb[0].mxu0
        %v6945 = vadd.f32 %v6904, %v6944
        %v6946 = vpop.f32.mrb[0].mxu0
        %v6947 = vpop.f32.mrb[0].mxu0
        %6948 = vdwg.mxu0
        %6949 = vmatprep.subr.bf16.mxu0 %v5385
        %6950 = vmatpush1.bf16.msra.mxu0 %v5384
        %6951 = vmatprep.subr.bf16.mxu0 %v5401
        %6952 = vmatpush1.bf16.msra.mxu0 %v5400
        %6953 = vmatprep.subr.bf16.mxu0 %v5417
        %6954 = vmatpush1.bf16.msra.mxu0 %v5416
        %6955 = vmatprep.subr.bf16.mxu0 %v5433
        %6956 = vmatpush1.bf16.msra.mxu0 %v5432
        %6957 = vmatprep.subr.bf16.mxu0 %v5449
        %6958 = vmatpush1.bf16.msra.mxu0 %v5448
        %6959 = vmatprep.subr.bf16.mxu0 %v5465
        %6960 = vmatpush1.bf16.msra.mxu0 %v5464
        %6961 = vmatprep.subr.bf16.mxu0 %v5481
        %6962 = vmatpush1.bf16.msra.mxu0 %v5480
        %6963 = vmatprep.subr.bf16.mxu0 %v5497
        %6964 = vmatpush1.bf16.msra.mxu0 %v5496
        %6965 = vmatprep.subr.bf16.mxu0 %v5513
        %6966 = vmatpush1.bf16.msra.mxu0 %v5512
        %6967 = vmatprep.subr.bf16.mxu0 %v5529
        %6968 = vmatpush1.bf16.msra.mxu0 %v5528
        %6969 = vmatprep.subr.bf16.mxu0 %v5545
        %6970 = vmatpush1.bf16.msra.mxu0 %v5544
        %6971 = vmatprep.subr.bf16.mxu0 %v5561
        %6972 = vmatpush1.bf16.msra.mxu0 %v5560
        %6973 = vmatprep.subr.bf16.mxu0 %v5577
        %6974 = vmatpush1.bf16.msra.mxu0 %v5576
        %6975 = vmatprep.subr.bf16.mxu0 %v5593
        %6976 = vmatpush1.bf16.msra.mxu0 %v5592
        %6977 = vmatprep.subr.bf16.mxu0 %v5609
        %6978 = vmatpush1.bf16.msra.mxu0 %v5608
        %6979 = vmatprep.subr.bf16.mxu0 %v5625
        %6980 = vmatpush1.bf16.msra.mxu0 %v5624
        %6981 = vmatprep.mubr.bf16.mxu0 %v1533
        %6982 = vmatmul.mubr.bf16.gmra.mrb[0].mxu0 %v1531
        %v6983 = vpop.f32.mrb[0].mxu0
        %v6984 = vadd.f32 %v6943, %v6983
        %v6985 = vpop.f32.mrb[0].mxu0
        %v6986 = vadd.f32 %v6945, %v6985
        %v6987 = vpop.f32.mrb[0].mxu0
        %v6988 = vpop.f32.mrb[0].mxu0
        %6989 = vdwg.mxu0
        %6990 = vmatprep.subr.bf16.mxu0 %v4619
        %6991 = vmatpush1.bf16.msra.mxu0 %v4618
        %6992 = vmatprep.subr.bf16.mxu0 %v4635
        %6993 = vmatpush1.bf16.msra.mxu0 %v4634
        %6994 = vmatprep.subr.bf16.mxu0 %v4651
        %6995 = vmatpush1.bf16.msra.mxu0 %v4650
        %6996 = vmatprep.subr.bf16.mxu0 %v4667
        %6997 = vmatpush1.bf16.msra.mxu0 %v4666
        %6998 = vmatprep.subr.bf16.mxu0 %v4683
        %6999 = vmatpush1.bf16.msra.mxu0 %v4682
        %7000 = vmatprep.subr.bf16.mxu0 %v4699
        %7001 = vmatpush1.bf16.msra.mxu0 %v4698
        %7002 = vmatprep.subr.bf16.mxu0 %v4715
        %7003 = vmatpush1.bf16.msra.mxu0 %v4714
        %7004 = vmatprep.subr.bf16.mxu0 %v4731
        %7005 = vmatpush1.bf16.msra.mxu0 %v4730
        %7006 = vmatprep.subr.bf16.mxu0 %v4747
        %7007 = vmatpush1.bf16.msra.mxu0 %v4746
        %7008 = vmatprep.subr.bf16.mxu0 %v4763
        %7009 = vmatpush1.bf16.msra.mxu0 %v4762
        %7010 = vmatprep.subr.bf16.mxu0 %v4779
        %7011 = vmatpush1.bf16.msra.mxu0 %v4778
        %7012 = vmatprep.subr.bf16.mxu0 %v4795
        %7013 = vmatpush1.bf16.msra.mxu0 %v4794
        %7014 = vmatprep.subr.bf16.mxu0 %v4811
        %7015 = vmatpush1.bf16.msra.mxu0 %v4810
        %7016 = vmatprep.subr.bf16.mxu0 %v4827
        %7017 = vmatpush1.bf16.msra.mxu0 %v4826
        %7018 = vmatprep.subr.bf16.mxu0 %v4843
        %7019 = vmatpush1.bf16.msra.mxu0 %v4842
        %7020 = vmatprep.subr.bf16.mxu0 %v4859
        %7021 = vmatpush1.bf16.msra.mxu0 %v4858
        %7022 = vmatprep.mubr.bf16.mxu0 %v1522
        %7023 = vmatmul.mubr.bf16.gmra.mrb[0].mxu0 %v1508
        %v7024 = vpop.f32.mrb[0].mxu0
        %v7025 = vadd.f32 %v1423, %v7024
        %v7026 = vpop.f32.mrb[0].mxu0
        %v7027 = vadd.f32 %v1427, %v7026
        %v7028 = vpop.f32.mrb[0].mxu0
        %v7029 = vpop.f32.mrb[0].mxu0
        %7030 = vdwg.mxu0
        %7031 = vmatprep.subr.bf16.mxu0 %v4875
        %7032 = vmatpush1.bf16.msra.mxu0 %v4874
        %7033 = vmatprep.subr.bf16.mxu0 %v4891
        %7034 = vmatpush1.bf16.msra.mxu0 %v4890
        %7035 = vmatprep.subr.bf16.mxu0 %v4907
        %7036 = vmatpush1.bf16.msra.mxu0 %v4906
        %7037 = vmatprep.subr.bf16.mxu0 %v4923
        %7038 = vmatpush1.bf16.msra.mxu0 %v4922
        %7039 = vmatprep.subr.bf16.mxu0 %v4939
        %7040 = vmatpush1.bf16.msra.mxu0 %v4938
        %7041 = vmatprep.subr.bf16.mxu0 %v4955
        %7042 = vmatpush1.bf16.msra.mxu0 %v4954
        %7043 = vmatprep.subr.bf16.mxu0 %v4971
        %7044 = vmatpush1.bf16.msra.mxu0 %v4970
        %7045 = vmatprep.subr.bf16.mxu0 %v4987
        %7046 = vmatpush1.bf16.msra.mxu0 %v4986
        %7047 = vmatprep.subr.bf16.mxu0 %v5003
        %7048 = vmatpush1.bf16.msra.mxu0 %v5002
        %7049 = vmatprep.subr.bf16.mxu0 %v5019
        %7050 = vmatpush1.bf16.msra.mxu0 %v5018
        %7051 = vmatprep.subr.bf16.mxu0 %v5035
        %7052 = vmatpush1.bf16.msra.mxu0 %v5034
        %7053 = vmatprep.subr.bf16.mxu0 %v5051
        %7054 = vmatpush1.bf16.msra.mxu0 %v5050
        %7055 = vmatprep.subr.bf16.mxu0 %v5067
        %7056 = vmatpush1.bf16.msra.mxu0 %v5066
        %7057 = vmatprep.subr.bf16.mxu0 %v5083
        %7058 = vmatpush1.bf16.msra.mxu0 %v5082
        %7059 = vmatprep.subr.bf16.mxu0 %v5099
        %7060 = vmatpush1.bf16.msra.mxu0 %v5098
        %7061 = vmatprep.subr.bf16.mxu0 %v5115
        %7062 = vmatpush1.bf16.msra.mxu0 %v5114
        %7063 = vmatprep.mubr.bf16.mxu0 %v1532
        %7064 = vmatmul.mubr.bf16.gmra.mrb[0].mxu0 %v1530
        %v7065 = vpop.f32.mrb[0].mxu0
        %v7066 = vadd.f32 %v7025, %v7065
        %v7067 = vpop.f32.mrb[0].mxu0
        %v7068 = vadd.f32 %v7027, %v7067
        %v7069 = vpop.f32.mrb[0].mxu0
        %v7070 = vpop.f32.mrb[0].mxu0
        %7071 = vdwg.mxu0
        %7072 = vmatprep.subr.bf16.mxu0 %v5131
        %7073 = vmatpush1.bf16.msra.mxu0 %v5130
        %7074 = vmatprep.subr.bf16.mxu0 %v5147
        %7075 = vmatpush1.bf16.msra.mxu0 %v5146
        %7076 = vmatprep.subr.bf16.mxu0 %v5163
        %7077 = vmatpush1.bf16.msra.mxu0 %v5162
        %7078 = vmatprep.subr.bf16.mxu0 %v5179
        %7079 = vmatpush1.bf16.msra.mxu0 %v5178
        %7080 = vmatprep.subr.bf16.mxu0 %v5195
        %7081 = vmatpush1.bf16.msra.mxu0 %v5194
        %7082 = vmatprep.subr.bf16.mxu0 %v5211
        %7083 = vmatpush1.bf16.msra.mxu0 %v5210
        %7084 = vmatprep.subr.bf16.mxu0 %v5227
        %7085 = vmatpush1.bf16.msra.mxu0 %v5226
        %7086 = vmatprep.subr.bf16.mxu0 %v5243
        %7087 = vmatpush1.bf16.msra.mxu0 %v5242
        %7088 = vmatprep.subr.bf16.mxu0 %v5259
        %7089 = vmatpush1.bf16.msra.mxu0 %v5258
        %7090 = vmatprep.subr.bf16.mxu0 %v5275
        %7091 = vmatpush1.bf16.msra.mxu0 %v5274
        %7092 = vmatprep.subr.bf16.mxu0 %v5291
        %7093 = vmatpush1.bf16.msra.mxu0 %v5290
        %7094 = vmatprep.subr.bf16.mxu0 %v5307
        %7095 = vmatpush1.bf16.msra.mxu0 %v5306
        %7096 = vmatprep.subr.bf16.mxu0 %v5323
        %7097 = vmatpush1.bf16.msra.mxu0 %v5322
        %7098 = vmatprep.subr.bf16.mxu0 %v5339
        %7099 = vmatpush1.bf16.msra.mxu0 %v5338
        %7100 = vmatprep.subr.bf16.mxu0 %v5355
        %7101 = vmatpush1.bf16.msra.mxu0 %v5354
        %7102 = vmatprep.subr.bf16.mxu0 %v5371
        %7103 = vmatpush1.bf16.msra.mxu0 %v5370
        %7104 = vmatprep.mubr.bf16.mxu0 %v1529
        %7105 = vmatmul.mubr.bf16.gmra.mrb[0].mxu0 %v1515
        %v7106 = vpop.f32.mrb[0].mxu0
        %v7107 = vadd.f32 %v7066, %v7106
        %v7108 = vpop.f32.mrb[0].mxu0
        %v7109 = vadd.f32 %v7068, %v7108
        %v7110 = vpop.f32.mrb[0].mxu0
        %v7111 = vpop.f32.mrb[0].mxu0
        %7112 = vdwg.mxu0
        %7113 = vmatprep.subr.bf16.mxu0 %v5387
        %7114 = vmatpush1.bf16.msra.mxu0 %v5386
        %7115 = vmatprep.subr.bf16.mxu0 %v5403
        %7116 = vmatpush1.bf16.msra.mxu0 %v5402
        %7117 = vmatprep.subr.bf16.mxu0 %v5419
        %7118 = vmatpush1.bf16.msra.mxu0 %v5418
        %7119 = vmatprep.subr.bf16.mxu0 %v5435
        %7120 = vmatpush1.bf16.msra.mxu0 %v5434
        %7121 = vmatprep.subr.bf16.mxu0 %v5451
        %7122 = vmatpush1.bf16.msra.mxu0 %v5450
        %7123 = vmatprep.subr.bf16.mxu0 %v5467
        %7124 = vmatpush1.bf16.msra.mxu0 %v5466
        %7125 = vmatprep.subr.bf16.mxu0 %v5483
        %7126 = vmatpush1.bf16.msra.mxu0 %v5482
        %7127 = vmatprep.subr.bf16.mxu0 %v5499
        %7128 = vmatpush1.bf16.msra.mxu0 %v5498
        %7129 = vmatprep.subr.bf16.mxu0 %v5515
        %7130 = vmatpush1.bf16.msra.mxu0 %v5514
        %7131 = vmatprep.subr.bf16.mxu0 %v5531
        %7132 = vmatpush1.bf16.msra.mxu0 %v5530
        %7133 = vmatprep.subr.bf16.mxu0 %v5547
        %7134 = vmatpush1.bf16.msra.mxu0 %v5546
        %7135 = vmatprep.subr.bf16.mxu0 %v5563
        %7136 = vmatpush1.bf16.msra.mxu0 %v5562
        %7137 = vmatprep.subr.bf16.mxu0 %v5579
        %7138 = vmatpush1.bf16.msra.mxu0 %v5578
        %7139 = vmatprep.subr.bf16.mxu0 %v5595
        %7140 = vmatpush1.bf16.msra.mxu0 %v5594
        %7141 = vmatprep.subr.bf16.mxu0 %v5611
        %7142 = vmatpush1.bf16.msra.mxu0 %v5610
        %7143 = vmatprep.subr.bf16.mxu0 %v5627
        %7144 = vmatpush1.bf16.msra.mxu0 %v5626
        %7145 = vmatprep.mubr.bf16.mxu0 %v1533
        %7146 = vmatmul.mubr.bf16.gmra.mrb[0].mxu0 %v1531
        %v7147 = vpop.f32.mrb[0].mxu0
        %v7148 = vadd.f32 %v7107, %v7147
        %v7149 = vpop.f32.mrb[0].mxu0
        %v7150 = vadd.f32 %v7109, %v7149
        %v7151 = vpop.f32.mrb[0].mxu0
        %v7152 = vpop.f32.mrb[0].mxu0
        %7153 = vdwg.mxu0
        %7154 = vmatprep.subr.bf16.mxu0 %v4621
        %7155 = vmatpush1.bf16.msra.mxu0 %v4620
        %7156 = vmatprep.subr.bf16.mxu0 %v4637
        %7157 = vmatpush1.bf16.msra.mxu0 %v4636
        %7158 = vmatprep.subr.bf16.mxu0 %v4653
        %7159 = vmatpush1.bf16.msra.mxu0 %v4652
        %7160 = vmatprep.subr.bf16.mxu0 %v4669
        %7161 = vmatpush1.bf16.msra.mxu0 %v4668
        %7162 = vmatprep.subr.bf16.mxu0 %v4685
        %7163 = vmatpush1.bf16.msra.mxu0 %v4684
        %7164 = vmatprep.subr.bf16.mxu0 %v4701
        %7165 = vmatpush1.bf16.msra.mxu0 %v4700
        %7166 = vmatprep.subr.bf16.mxu0 %v4717
        %7167 = vmatpush1.bf16.msra.mxu0 %v4716
        %7168 = vmatprep.subr.bf16.mxu0 %v4733
        %7169 = vmatpush1.bf16.msra.mxu0 %v4732
        %7170 = vmatprep.subr.bf16.mxu0 %v4749
        %7171 = vmatpush1.bf16.msra.mxu0 %v4748
        %7172 = vmatprep.subr.bf16.mxu0 %v4765
        %7173 = vmatpush1.bf16.msra.mxu0 %v4764
        %7174 = vmatprep.subr.bf16.mxu0 %v4781
        %7175 = vmatpush1.bf16.msra.mxu0 %v4780
        %7176 = vmatprep.subr.bf16.mxu0 %v4797
        %7177 = vmatpush1.bf16.msra.mxu0 %v4796
        %7178 = vmatprep.subr.bf16.mxu0 %v4813
        %7179 = vmatpush1.bf16.msra.mxu0 %v4812
        %7180 = vmatprep.subr.bf16.mxu0 %v4829
        %7181 = vmatpush1.bf16.msra.mxu0 %v4828
        %7182 = vmatprep.subr.bf16.mxu0 %v4845
        %7183 = vmatpush1.bf16.msra.mxu0 %v4844
        %7184 = vmatprep.subr.bf16.mxu0 %v4861
        %7185 = vmatpush1.bf16.msra.mxu0 %v4860
        %7186 = vmatprep.mubr.bf16.mxu0 %v1522
        %7187 = vmatmul.mubr.bf16.gmra.mrb[0].mxu0 %v1508
        %v7188 = vpop.f32.mrb[0].mxu0
        %v7189 = vadd.f32 %v1431, %v7188
        %v7190 = vpop.f32.mrb[0].mxu0
        %v7191 = vadd.f32 %v1435, %v7190
        %v7192 = vpop.f32.mrb[0].mxu0
        %v7193 = vpop.f32.mrb[0].mxu0
        %7194 = vdwg.mxu0
        %7195 = vmatprep.subr.bf16.mxu0 %v4877
        %7196 = vmatpush1.bf16.msra.mxu0 %v4876
        %7197 = vmatprep.subr.bf16.mxu0 %v4893
        %7198 = vmatpush1.bf16.msra.mxu0 %v4892
        %7199 = vmatprep.subr.bf16.mxu0 %v4909
        %7200 = vmatpush1.bf16.msra.mxu0 %v4908
        %7201 = vmatprep.subr.bf16.mxu0 %v4925
        %7202 = vmatpush1.bf16.msra.mxu0 %v4924
        %7203 = vmatprep.subr.bf16.mxu0 %v4941
        %7204 = vmatpush1.bf16.msra.mxu0 %v4940
        %7205 = vmatprep.subr.bf16.mxu0 %v4957
        %7206 = vmatpush1.bf16.msra.mxu0 %v4956
        %7207 = vmatprep.subr.bf16.mxu0 %v4973
        %7208 = vmatpush1.bf16.msra.mxu0 %v4972
        %7209 = vmatprep.subr.bf16.mxu0 %v4989
        %7210 = vmatpush1.bf16.msra.mxu0 %v4988
        %7211 = vmatprep.subr.bf16.mxu0 %v5005
        %7212 = vmatpush1.bf16.msra.mxu0 %v5004
        %7213 = vmatprep.subr.bf16.mxu0 %v5021
        %7214 = vmatpush1.bf16.msra.mxu0 %v5020
        %7215 = vmatprep.subr.bf16.mxu0 %v5037
        %7216 = vmatpush1.bf16.msra.mxu0 %v5036
        %7217 = vmatprep.subr.bf16.mxu0 %v5053
        %7218 = vmatpush1.bf16.msra.mxu0 %v5052
        %7219 = vmatprep.subr.bf16.mxu0 %v5069
        %7220 = vmatpush1.bf16.msra.mxu0 %v5068
        %7221 = vmatprep.subr.bf16.mxu0 %v5085
        %7222 = vmatpush1.bf16.msra.mxu0 %v5084
        %7223 = vmatprep.subr.bf16.mxu0 %v5101
        %7224 = vmatpush1.bf16.msra.mxu0 %v5100
        %7225 = vmatprep.subr.bf16.mxu0 %v5117
        %7226 = vmatpush1.bf16.msra.mxu0 %v5116
        %7227 = vmatprep.mubr.bf16.mxu0 %v1532
        %7228 = vmatmul.mubr.bf16.gmra.mrb[0].mxu0 %v1530
        %v7229 = vpop.f32.mrb[0].mxu0
        %v7230 = vadd.f32 %v7189, %v7229
        %v7231 = vpop.f32.mrb[0].mxu0
        %v7232 = vadd.f32 %v7191, %v7231
        %v7233 = vpop.f32.mrb[0].mxu0
        %v7234 = vpop.f32.mrb[0].mxu0
        %7235 = vdwg.mxu0
        %7236 = vmatprep.subr.bf16.mxu0 %v5133
        %7237 = vmatpush1.bf16.msra.mxu0 %v5132
        %7238 = vmatprep.subr.bf16.mxu0 %v5149
        %7239 = vmatpush1.bf16.msra.mxu0 %v5148
        %7240 = vmatprep.subr.bf16.mxu0 %v5165
        %7241 = vmatpush1.bf16.msra.mxu0 %v5164
        %7242 = vmatprep.subr.bf16.mxu0 %v5181
        %7243 = vmatpush1.bf16.msra.mxu0 %v5180
        %7244 = vmatprep.subr.bf16.mxu0 %v5197
        %7245 = vmatpush1.bf16.msra.mxu0 %v5196
        %7246 = vmatprep.subr.bf16.mxu0 %v5213
        %7247 = vmatpush1.bf16.msra.mxu0 %v5212
        %7248 = vmatprep.subr.bf16.mxu0 %v5229
        %7249 = vmatpush1.bf16.msra.mxu0 %v5228
        %7250 = vmatprep.subr.bf16.mxu0 %v5245
        %7251 = vmatpush1.bf16.msra.mxu0 %v5244
        %7252 = vmatprep.subr.bf16.mxu0 %v5261
        %7253 = vmatpush1.bf16.msra.mxu0 %v5260
        %7254 = vmatprep.subr.bf16.mxu0 %v5277
        %7255 = vmatpush1.bf16.msra.mxu0 %v5276
        %7256 = vmatprep.subr.bf16.mxu0 %v5293
        %7257 = vmatpush1.bf16.msra.mxu0 %v5292
        %7258 = vmatprep.subr.bf16.mxu0 %v5309
        %7259 = vmatpush1.bf16.msra.mxu0 %v5308
        %7260 = vmatprep.subr.bf16.mxu0 %v5325
        %7261 = vmatpush1.bf16.msra.mxu0 %v5324
        %7262 = vmatprep.subr.bf16.mxu0 %v5341
        %7263 = vmatpush1.bf16.msra.mxu0 %v5340
        %7264 = vmatprep.subr.bf16.mxu0 %v5357
        %7265 = vmatpush1.bf16.msra.mxu0 %v5356
        %7266 = vmatprep.subr.bf16.mxu0 %v5373
        %7267 = vmatpush1.bf16.msra.mxu0 %v5372
        %7268 = vmatprep.mubr.bf16.mxu0 %v1529
        %7269 = vmatmul.mubr.bf16.gmra.mrb[0].mxu0 %v1515
        %v7270 = vpop.f32.mrb[0].mxu0
        %v7271 = vadd.f32 %v7230, %v7270
        %v7272 = vpop.f32.mrb[0].mxu0
        %v7273 = vadd.f32 %v7232, %v7272
        %v7274 = vpop.f32.mrb[0].mxu0
        %v7275 = vpop.f32.mrb[0].mxu0
        %7276 = vdwg.mxu0
        %7277 = vmatprep.subr.bf16.mxu0 %v5389
        %7278 = vmatpush1.bf16.msra.mxu0 %v5388
        %7279 = vmatprep.subr.bf16.mxu0 %v5405
        %7280 = vmatpush1.bf16.msra.mxu0 %v5404
        %7281 = vmatprep.subr.bf16.mxu0 %v5421
        %7282 = vmatpush1.bf16.msra.mxu0 %v5420
        %7283 = vmatprep.subr.bf16.mxu0 %v5437
        %7284 = vmatpush1.bf16.msra.mxu0 %v5436
        %7285 = vmatprep.subr.bf16.mxu0 %v5453
        %7286 = vmatpush1.bf16.msra.mxu0 %v5452
        %7287 = vmatprep.subr.bf16.mxu0 %v5469
        %7288 = vmatpush1.bf16.msra.mxu0 %v5468
        %7289 = vmatprep.subr.bf16.mxu0 %v5485
        %7290 = vmatpush1.bf16.msra.mxu0 %v5484
        %7291 = vmatprep.subr.bf16.mxu0 %v5501
        %7292 = vmatpush1.bf16.msra.mxu0 %v5500
        %7293 = vmatprep.subr.bf16.mxu0 %v5517
        %7294 = vmatpush1.bf16.msra.mxu0 %v5516
        %7295 = vmatprep.subr.bf16.mxu0 %v5533
        %7296 = vmatpush1.bf16.msra.mxu0 %v5532
        %7297 = vmatprep.subr.bf16.mxu0 %v5549
        %7298 = vmatpush1.bf16.msra.mxu0 %v5548
        %7299 = vmatprep.subr.bf16.mxu0 %v5565
        %7300 = vmatpush1.bf16.msra.mxu0 %v5564
        %7301 = vmatprep.subr.bf16.mxu0 %v5581
        %7302 = vmatpush1.bf16.msra.mxu0 %v5580
        %7303 = vmatprep.subr.bf16.mxu0 %v5597
        %7304 = vmatpush1.bf16.msra.mxu0 %v5596
        %7305 = vmatprep.subr.bf16.mxu0 %v5613
        %7306 = vmatpush1.bf16.msra.mxu0 %v5612
        %7307 = vmatprep.subr.bf16.mxu0 %v5629
        %7308 = vmatpush1.bf16.msra.mxu0 %v5628
        %7309 = vmatprep.mubr.bf16.mxu0 %v1533
        %7310 = vmatmul.mubr.bf16.gmra.mrb[0].mxu0 %v1531
        %v7311 = vpop.f32.mrb[0].mxu0
        %v7312 = vadd.f32 %v7271, %v7311
        %v7313 = vpop.f32.mrb[0].mxu0
        %v7314 = vadd.f32 %v7273, %v7313
        %v7315 = vpop.f32.mrb[0].mxu0
        %v7316 = vpop.f32.mrb[0].mxu0
        %7317 = vdwg.mxu0
        %7318 = vmatprep.subr.bf16.mxu0 %v4623
        %7319 = vmatpush1.bf16.msra.mxu0 %v4622
        %7320 = vmatprep.subr.bf16.mxu0 %v4639
        %7321 = vmatpush1.bf16.msra.mxu0 %v4638
        %7322 = vmatprep.subr.bf16.mxu0 %v4655
        %7323 = vmatpush1.bf16.msra.mxu0 %v4654
        %7324 = vmatprep.subr.bf16.mxu0 %v4671
        %7325 = vmatpush1.bf16.msra.mxu0 %v4670
        %7326 = vmatprep.subr.bf16.mxu0 %v4687
        %7327 = vmatpush1.bf16.msra.mxu0 %v4686
        %7328 = vmatprep.subr.bf16.mxu0 %v4703
        %7329 = vmatpush1.bf16.msra.mxu0 %v4702
        %7330 = vmatprep.subr.bf16.mxu0 %v4719
        %7331 = vmatpush1.bf16.msra.mxu0 %v4718
        %7332 = vmatprep.subr.bf16.mxu0 %v4735
        %7333 = vmatpush1.bf16.msra.mxu0 %v4734
        %7334 = vmatprep.subr.bf16.mxu0 %v4751
        %7335 = vmatpush1.bf16.msra.mxu0 %v4750
        %7336 = vmatprep.subr.bf16.mxu0 %v4767
        %7337 = vmatpush1.bf16.msra.mxu0 %v4766
        %7338 = vmatprep.subr.bf16.mxu0 %v4783
        %7339 = vmatpush1.bf16.msra.mxu0 %v4782
        %7340 = vmatprep.subr.bf16.mxu0 %v4799
        %7341 = vmatpush1.bf16.msra.mxu0 %v4798
        %7342 = vmatprep.subr.bf16.mxu0 %v4815
        %7343 = vmatpush1.bf16.msra.mxu0 %v4814
        %7344 = vmatprep.subr.bf16.mxu0 %v4831
        %7345 = vmatpush1.bf16.msra.mxu0 %v4830
        %7346 = vmatprep.subr.bf16.mxu0 %v4847
        %7347 = vmatpush1.bf16.msra.mxu0 %v4846
        %7348 = vmatprep.subr.bf16.mxu0 %v4863
        %7349 = vmatpush1.bf16.msra.mxu0 %v4862
        %7350 = vmatprep.mubr.bf16.mxu0 %v1522
        %7351 = vmatmul.mubr.bf16.gmra.mrb[0].mxu0 %v1508
        %v7352 = vpop.f32.mrb[0].mxu0
        %v7353 = vadd.f32 %v1439, %v7352
        %v7354 = vpop.f32.mrb[0].mxu0
        %v7355 = vadd.f32 %v1443, %v7354
        %v7356 = vpop.f32.mrb[0].mxu0
        %v7357 = vpop.f32.mrb[0].mxu0
        %7358 = vdwg.mxu0
        %7359 = vmatprep.subr.bf16.mxu0 %v4879
        %7360 = vmatpush1.bf16.msra.mxu0 %v4878
        %7361 = vmatprep.subr.bf16.mxu0 %v4895
        %7362 = vmatpush1.bf16.msra.mxu0 %v4894
        %7363 = vmatprep.subr.bf16.mxu0 %v4911
        %7364 = vmatpush1.bf16.msra.mxu0 %v4910
        %7365 = vmatprep.subr.bf16.mxu0 %v4927
        %7366 = vmatpush1.bf16.msra.mxu0 %v4926
        %7367 = vmatprep.subr.bf16.mxu0 %v4943
        %7368 = vmatpush1.bf16.msra.mxu0 %v4942
        %7369 = vmatprep.subr.bf16.mxu0 %v4959
        %7370 = vmatpush1.bf16.msra.mxu0 %v4958
        %7371 = vmatprep.subr.bf16.mxu0 %v4975
        %7372 = vmatpush1.bf16.msra.mxu0 %v4974
        %7373 = vmatprep.subr.bf16.mxu0 %v4991
        %7374 = vmatpush1.bf16.msra.mxu0 %v4990
        %7375 = vmatprep.subr.bf16.mxu0 %v5007
        %7376 = vmatpush1.bf16.msra.mxu0 %v5006
        %7377 = vmatprep.subr.bf16.mxu0 %v5023
        %7378 = vmatpush1.bf16.msra.mxu0 %v5022
        %7379 = vmatprep.subr.bf16.mxu0 %v5039
        %7380 = vmatpush1.bf16.msra.mxu0 %v5038
        %7381 = vmatprep.subr.bf16.mxu0 %v5055
        %7382 = vmatpush1.bf16.msra.mxu0 %v5054
        %7383 = vmatprep.subr.bf16.mxu0 %v5071
        %7384 = vmatpush1.bf16.msra.mxu0 %v5070
        %7385 = vmatprep.subr.bf16.mxu0 %v5087
        %7386 = vmatpush1.bf16.msra.mxu0 %v5086
        %7387 = vmatprep.subr.bf16.mxu0 %v5103
        %7388 = vmatpush1.bf16.msra.mxu0 %v5102
        %7389 = vmatprep.subr.bf16.mxu0 %v5119
        %7390 = vmatpush1.bf16.msra.mxu0 %v5118
        %7391 = vmatprep.mubr.bf16.mxu0 %v1532
        %7392 = vmatmul.mubr.bf16.gmra.mrb[0].mxu0 %v1530
        %v7393 = vpop.f32.mrb[0].mxu0
        %v7394 = vadd.f32 %v7353, %v7393
        %v7395 = vpop.f32.mrb[0].mxu0
        %v7396 = vadd.f32 %v7355, %v7395
        %v7397 = vpop.f32.mrb[0].mxu0
        %v7398 = vpop.f32.mrb[0].mxu0
        %7399 = vdwg.mxu0
        %7400 = vmatprep.subr.bf16.mxu0 %v5135
        %7401 = vmatpush1.bf16.msra.mxu0 %v5134
        %7402 = vmatprep.subr.bf16.mxu0 %v5151
        %7403 = vmatpush1.bf16.msra.mxu0 %v5150
        %7404 = vmatprep.subr.bf16.mxu0 %v5167
        %7405 = vmatpush1.bf16.msra.mxu0 %v5166
        %7406 = vmatprep.subr.bf16.mxu0 %v5183
        %7407 = vmatpush1.bf16.msra.mxu0 %v5182
        %7408 = vmatprep.subr.bf16.mxu0 %v5199
        %7409 = vmatpush1.bf16.msra.mxu0 %v5198
        %7410 = vmatprep.subr.bf16.mxu0 %v5215
        %7411 = vmatpush1.bf16.msra.mxu0 %v5214
        %7412 = vmatprep.subr.bf16.mxu0 %v5231
        %7413 = vmatpush1.bf16.msra.mxu0 %v5230
        %7414 = vmatprep.subr.bf16.mxu0 %v5247
        %7415 = vmatpush1.bf16.msra.mxu0 %v5246
        %7416 = vmatprep.subr.bf16.mxu0 %v5263
        %7417 = vmatpush1.bf16.msra.mxu0 %v5262
        %7418 = vmatprep.subr.bf16.mxu0 %v5279
        %7419 = vmatpush1.bf16.msra.mxu0 %v5278
        %7420 = vmatprep.subr.bf16.mxu0 %v5295
        %7421 = vmatpush1.bf16.msra.mxu0 %v5294
        %7422 = vmatprep.subr.bf16.mxu0 %v5311
        %7423 = vmatpush1.bf16.msra.mxu0 %v5310
        %7424 = vmatprep.subr.bf16.mxu0 %v5327
        %7425 = vmatpush1.bf16.msra.mxu0 %v5326
        %7426 = vmatprep.subr.bf16.mxu0 %v5343
        %7427 = vmatpush1.bf16.msra.mxu0 %v5342
        %7428 = vmatprep.subr.bf16.mxu0 %v5359
        %7429 = vmatpush1.bf16.msra.mxu0 %v5358
        %7430 = vmatprep.subr.bf16.mxu0 %v5375
        %7431 = vmatpush1.bf16.msra.mxu0 %v5374
        %7432 = vmatprep.mubr.bf16.mxu0 %v1529
        %7433 = vmatmul.mubr.bf16.gmra.mrb[0].mxu0 %v1515
        %v7434 = vpop.f32.mrb[0].mxu0
        %v7435 = vadd.f32 %v7394, %v7434
        %v7436 = vpop.f32.mrb[0].mxu0
        %v7437 = vadd.f32 %v7396, %v7436
        %v7438 = vpop.f32.mrb[0].mxu0
        %v7439 = vpop.f32.mrb[0].mxu0
        %7440 = vdwg.mxu0
        %7441 = vmatprep.subr.bf16.mxu0 %v5391
        %7442 = vmatpush1.bf16.msra.mxu0 %v5390
        %7443 = vmatprep.subr.bf16.mxu0 %v5407
        %7444 = vmatpush1.bf16.msra.mxu0 %v5406
        %7445 = vmatprep.subr.bf16.mxu0 %v5423
        %7446 = vmatpush1.bf16.msra.mxu0 %v5422
        %7447 = vmatprep.subr.bf16.mxu0 %v5439
        %7448 = vmatpush1.bf16.msra.mxu0 %v5438
        %7449 = vmatprep.subr.bf16.mxu0 %v5455
        %7450 = vmatpush1.bf16.msra.mxu0 %v5454
        %7451 = vmatprep.subr.bf16.mxu0 %v5471
        %7452 = vmatpush1.bf16.msra.mxu0 %v5470
        %7453 = vmatprep.subr.bf16.mxu0 %v5487
        %7454 = vmatpush1.bf16.msra.mxu0 %v5486
        %7455 = vmatprep.subr.bf16.mxu0 %v5503
        %7456 = vmatpush1.bf16.msra.mxu0 %v5502
        %7457 = vmatprep.subr.bf16.mxu0 %v5519
        %7458 = vmatpush1.bf16.msra.mxu0 %v5518
        %7459 = vmatprep.subr.bf16.mxu0 %v5535
        %7460 = vmatpush1.bf16.msra.mxu0 %v5534
        %7461 = vmatprep.subr.bf16.mxu0 %v5551
        %7462 = vmatpush1.bf16.msra.mxu0 %v5550
        %7463 = vmatprep.subr.bf16.mxu0 %v5567
        %7464 = vmatpush1.bf16.msra.mxu0 %v5566
        %7465 = vmatprep.subr.bf16.mxu0 %v5583
        %7466 = vmatpush1.bf16.msra.mxu0 %v5582
        %7467 = vmatprep.subr.bf16.mxu0 %v5599
        %7468 = vmatpush1.bf16.msra.mxu0 %v5598
        %7469 = vmatprep.subr.bf16.mxu0 %v5615
        %7470 = vmatpush1.bf16.msra.mxu0 %v5614
        %7471 = vmatprep.subr.bf16.mxu0 %v5631
        %7472 = vmatpush1.bf16.msra.mxu0 %v5630
        %7473 = vmatprep.mubr.bf16.mxu0 %v1533
        %7474 = vmatmul.mubr.bf16.gmra.mrb[0].mxu0 %v1531
        %v7475 = vpop.f32.mrb[0].mxu0
        %v7476 = vadd.f32 %v7435, %v7475
        %v7477 = vpop.f32.mrb[0].mxu0
        %v7478 = vadd.f32 %v7437, %v7477
        %v7479 = vpop.f32.mrb[0].mxu0
        %v7480 = vpop.f32.mrb[0].mxu0
        %7481 = vdwg.mxu0
        %7482 = vmatprep.subr.bf16.mxu0 %v4625
        %7483 = vmatpush1.bf16.msra.mxu0 %v4624
        %7484 = vmatprep.subr.bf16.mxu0 %v4641
        %7485 = vmatpush1.bf16.msra.mxu0 %v4640
        %7486 = vmatprep.subr.bf16.mxu0 %v4657
        %7487 = vmatpush1.bf16.msra.mxu0 %v4656
        %7488 = vmatprep.subr.bf16.mxu0 %v4673
        %7489 = vmatpush1.bf16.msra.mxu0 %v4672
        %7490 = vmatprep.subr.bf16.mxu0 %v4689
        %7491 = vmatpush1.bf16.msra.mxu0 %v4688
        %7492 = vmatprep.subr.bf16.mxu0 %v4705
        %7493 = vmatpush1.bf16.msra.mxu0 %v4704
        %7494 = vmatprep.subr.bf16.mxu0 %v4721
        %7495 = vmatpush1.bf16.msra.mxu0 %v4720
        %7496 = vmatprep.subr.bf16.mxu0 %v4737
        %7497 = vmatpush1.bf16.msra.mxu0 %v4736
        %7498 = vmatprep.subr.bf16.mxu0 %v4753
        %7499 = vmatpush1.bf16.msra.mxu0 %v4752
        %7500 = vmatprep.subr.bf16.mxu0 %v4769
        %7501 = vmatpush1.bf16.msra.mxu0 %v4768
        %7502 = vmatprep.subr.bf16.mxu0 %v4785
        %7503 = vmatpush1.bf16.msra.mxu0 %v4784
        %7504 = vmatprep.subr.bf16.mxu0 %v4801
        %7505 = vmatpush1.bf16.msra.mxu0 %v4800
        %7506 = vmatprep.subr.bf16.mxu0 %v4817
        %7507 = vmatpush1.bf16.msra.mxu0 %v4816
        %7508 = vmatprep.subr.bf16.mxu0 %v4833
        %7509 = vmatpush1.bf16.msra.mxu0 %v4832
        %7510 = vmatprep.subr.bf16.mxu0 %v4849
        %7511 = vmatpush1.bf16.msra.mxu0 %v4848
        %7512 = vmatprep.subr.bf16.mxu0 %v4865
        %7513 = vmatpush1.bf16.msra.mxu0 %v4864
        %7514 = vmatprep.mubr.bf16.mxu0 %v1522
        %7515 = vmatmul.mubr.bf16.gmra.mrb[0].mxu0 %v1508
        %v7516 = vpop.f32.mrb[0].mxu0
        %v7517 = vadd.f32 %v1447, %v7516
        %v7518 = vpop.f32.mrb[0].mxu0
        %v7519 = vadd.f32 %v1451, %v7518
        %v7520 = vpop.f32.mrb[0].mxu0
        %v7521 = vpop.f32.mrb[0].mxu0
        %7522 = vdwg.mxu0
        %7523 = vmatprep.subr.bf16.mxu0 %v4881
        %7524 = vmatpush1.bf16.msra.mxu0 %v4880
        %7525 = vmatprep.subr.bf16.mxu0 %v4897
        %7526 = vmatpush1.bf16.msra.mxu0 %v4896
        %7527 = vmatprep.subr.bf16.mxu0 %v4913
        %7528 = vmatpush1.bf16.msra.mxu0 %v4912
        %7529 = vmatprep.subr.bf16.mxu0 %v4929
        %7530 = vmatpush1.bf16.msra.mxu0 %v4928
        %7531 = vmatprep.subr.bf16.mxu0 %v4945
        %7532 = vmatpush1.bf16.msra.mxu0 %v4944
        %7533 = vmatprep.subr.bf16.mxu0 %v4961
        %7534 = vmatpush1.bf16.msra.mxu0 %v4960
        %7535 = vmatprep.subr.bf16.mxu0 %v4977
        %7536 = vmatpush1.bf16.msra.mxu0 %v4976
        %7537 = vmatprep.subr.bf16.mxu0 %v4993
        %7538 = vmatpush1.bf16.msra.mxu0 %v4992
        %7539 = vmatprep.subr.bf16.mxu0 %v5009
        %7540 = vmatpush1.bf16.msra.mxu0 %v5008
        %7541 = vmatprep.subr.bf16.mxu0 %v5025
        %7542 = vmatpush1.bf16.msra.mxu0 %v5024
        %7543 = vmatprep.subr.bf16.mxu0 %v5041
        %7544 = vmatpush1.bf16.msra.mxu0 %v5040
        %7545 = vmatprep.subr.bf16.mxu0 %v5057
        %7546 = vmatpush1.bf16.msra.mxu0 %v5056
        %7547 = vmatprep.subr.bf16.mxu0 %v5073
        %7548 = vmatpush1.bf16.msra.mxu0 %v5072
        %7549 = vmatprep.subr.bf16.mxu0 %v5089
        %7550 = vmatpush1.bf16.msra.mxu0 %v5088
        %7551 = vmatprep.subr.bf16.mxu0 %v5105
        %7552 = vmatpush1.bf16.msra.mxu0 %v5104
        %7553 = vmatprep.subr.bf16.mxu0 %v5121
        %7554 = vmatpush1.bf16.msra.mxu0 %v5120
        %7555 = vmatprep.mubr.bf16.mxu0 %v1532
        %7556 = vmatmul.mubr.bf16.gmra.mrb[0].mxu0 %v1530
        %v7557 = vpop.f32.mrb[0].mxu0
        %v7558 = vadd.f32 %v7517, %v7557
        %v7559 = vpop.f32.mrb[0].mxu0
        %v7560 = vadd.f32 %v7519, %v7559
        %v7561 = vpop.f32.mrb[0].mxu0
        %v7562 = vpop.f32.mrb[0].mxu0
        %7563 = vdwg.mxu0
        %7564 = vmatprep.subr.bf16.mxu0 %v5137
        %7565 = vmatpush1.bf16.msra.mxu0 %v5136
        %7566 = vmatprep.subr.bf16.mxu0 %v5153
        %7567 = vmatpush1.bf16.msra.mxu0 %v5152
        %7568 = vmatprep.subr.bf16.mxu0 %v5169
        %7569 = vmatpush1.bf16.msra.mxu0 %v5168
        %7570 = vmatprep.subr.bf16.mxu0 %v5185
        %7571 = vmatpush1.bf16.msra.mxu0 %v5184
        %7572 = vmatprep.subr.bf16.mxu0 %v5201
        %7573 = vmatpush1.bf16.msra.mxu0 %v5200
        %7574 = vmatprep.subr.bf16.mxu0 %v5217
        %7575 = vmatpush1.bf16.msra.mxu0 %v5216
        %7576 = vmatprep.subr.bf16.mxu0 %v5233
        %7577 = vmatpush1.bf16.msra.mxu0 %v5232
        %7578 = vmatprep.subr.bf16.mxu0 %v5249
        %7579 = vmatpush1.bf16.msra.mxu0 %v5248
        %7580 = vmatprep.subr.bf16.mxu0 %v5265
        %7581 = vmatpush1.bf16.msra.mxu0 %v5264
        %7582 = vmatprep.subr.bf16.mxu0 %v5281
        %7583 = vmatpush1.bf16.msra.mxu0 %v5280
        %7584 = vmatprep.subr.bf16.mxu0 %v5297
        %7585 = vmatpush1.bf16.msra.mxu0 %v5296
        %7586 = vmatprep.subr.bf16.mxu0 %v5313
        %7587 = vmatpush1.bf16.msra.mxu0 %v5312
        %7588 = vmatprep.subr.bf16.mxu0 %v5329
        %7589 = vmatpush1.bf16.msra.mxu0 %v5328
        %7590 = vmatprep.subr.bf16.mxu0 %v5345
        %7591 = vmatpush1.bf16.msra.mxu0 %v5344
        %7592 = vmatprep.subr.bf16.mxu0 %v5361
        %7593 = vmatpush1.bf16.msra.mxu0 %v5360
        %7594 = vmatprep.subr.bf16.mxu0 %v5377
        %7595 = vmatpush1.bf16.msra.mxu0 %v5376
        %7596 = vmatprep.mubr.bf16.mxu0 %v1529
        %7597 = vmatmul.mubr.bf16.gmra.mrb[0].mxu0 %v1515
        %v7598 = vpop.f32.mrb[0].mxu0
        %v7599 = vadd.f32 %v7558, %v7598
        %v7600 = vpop.f32.mrb[0].mxu0
        %v7601 = vadd.f32 %v7560, %v7600
        %v7602 = vpop.f32.mrb[0].mxu0
        %v7603 = vpop.f32.mrb[0].mxu0
        %7604 = vdwg.mxu0
        %7605 = vmatprep.subr.bf16.mxu0 %v5393
        %7606 = vmatpush1.bf16.msra.mxu0 %v5392
        %7607 = vmatprep.subr.bf16.mxu0 %v5409
        %7608 = vmatpush1.bf16.msra.mxu0 %v5408
        %7609 = vmatprep.subr.bf16.mxu0 %v5425
        %7610 = vmatpush1.bf16.msra.mxu0 %v5424
        %7611 = vmatprep.subr.bf16.mxu0 %v5441
        %7612 = vmatpush1.bf16.msra.mxu0 %v5440
        %7613 = vmatprep.subr.bf16.mxu0 %v5457
        %7614 = vmatpush1.bf16.msra.mxu0 %v5456
        %7615 = vmatprep.subr.bf16.mxu0 %v5473
        %7616 = vmatpush1.bf16.msra.mxu0 %v5472
        %7617 = vmatprep.subr.bf16.mxu0 %v5489
        %7618 = vmatpush1.bf16.msra.mxu0 %v5488
        %7619 = vmatprep.subr.bf16.mxu0 %v5505
        %7620 = vmatpush1.bf16.msra.mxu0 %v5504
        %7621 = vmatprep.subr.bf16.mxu0 %v5521
        %7622 = vmatpush1.bf16.msra.mxu0 %v5520
        %7623 = vmatprep.subr.bf16.mxu0 %v5537
        %7624 = vmatpush1.bf16.msra.mxu0 %v5536
        %7625 = vmatprep.subr.bf16.mxu0 %v5553
        %7626 = vmatpush1.bf16.msra.mxu0 %v5552
        %7627 = vmatprep.subr.bf16.mxu0 %v5569
        %7628 = vmatpush1.bf16.msra.mxu0 %v5568
        %7629 = vmatprep.subr.bf16.mxu0 %v5585
        %7630 = vmatpush1.bf16.msra.mxu0 %v5584
        %7631 = vmatprep.subr.bf16.mxu0 %v5601
        %7632 = vmatpush1.bf16.msra.mxu0 %v5600
        %7633 = vmatprep.subr.bf16.mxu0 %v5617
        %7634 = vmatpush1.bf16.msra.mxu0 %v5616
        %7635 = vmatprep.subr.bf16.mxu0 %v5633
        %7636 = vmatpush1.bf16.msra.mxu0 %v5632
        %7637 = vmatprep.mubr.bf16.mxu0 %v1533
        %7638 = vmatmul.mubr.bf16.gmra.mrb[0].mxu0 %v1531
        %v7639 = vpop.f32.mrb[0].mxu0
        %v7640 = vadd.f32 %v7599, %v7639
        %v7641 = vpop.f32.mrb[0].mxu0
        %v7642 = vadd.f32 %v7601, %v7641
        %v7643 = vpop.f32.mrb[0].mxu0
        %v7644 = vpop.f32.mrb[0].mxu0
        %7645 = vdwg.mxu0
        %7646 = vmatprep.subr.bf16.mxu0 %v4627
        %7647 = vmatpush1.bf16.msra.mxu0 %v4626
        %7648 = vmatprep.subr.bf16.mxu0 %v4643
        %7649 = vmatpush1.bf16.msra.mxu0 %v4642
        %7650 = vmatprep.subr.bf16.mxu0 %v4659
        %7651 = vmatpush1.bf16.msra.mxu0 %v4658
        %7652 = vmatprep.subr.bf16.mxu0 %v4675
        %7653 = vmatpush1.bf16.msra.mxu0 %v4674
        %7654 = vmatprep.subr.bf16.mxu0 %v4691
        %7655 = vmatpush1.bf16.msra.mxu0 %v4690
        %7656 = vmatprep.subr.bf16.mxu0 %v4707
        %7657 = vmatpush1.bf16.msra.mxu0 %v4706
        %7658 = vmatprep.subr.bf16.mxu0 %v4723
        %7659 = vmatpush1.bf16.msra.mxu0 %v4722
        %7660 = vmatprep.subr.bf16.mxu0 %v4739
        %7661 = vmatpush1.bf16.msra.mxu0 %v4738
        %7662 = vmatprep.subr.bf16.mxu0 %v4755
        %7663 = vmatpush1.bf16.msra.mxu0 %v4754
        %7664 = vmatprep.subr.bf16.mxu0 %v4771
        %7665 = vmatpush1.bf16.msra.mxu0 %v4770
        %7666 = vmatprep.subr.bf16.mxu0 %v4787
        %7667 = vmatpush1.bf16.msra.mxu0 %v4786
        %7668 = vmatprep.subr.bf16.mxu0 %v4803
        %7669 = vmatpush1.bf16.msra.mxu0 %v4802
        %7670 = vmatprep.subr.bf16.mxu0 %v4819
        %7671 = vmatpush1.bf16.msra.mxu0 %v4818
        %7672 = vmatprep.subr.bf16.mxu0 %v4835
        %7673 = vmatpush1.bf16.msra.mxu0 %v4834
        %7674 = vmatprep.subr.bf16.mxu0 %v4851
        %7675 = vmatpush1.bf16.msra.mxu0 %v4850
        %7676 = vmatprep.subr.bf16.mxu0 %v4867
        %7677 = vmatpush1.bf16.msra.mxu0 %v4866
        %7678 = vmatprep.mubr.bf16.mxu0 %v1522
        %7679 = vmatmul.mubr.bf16.gmra.mrb[0].mxu0 %v1508
        %v7680 = vpop.f32.mrb[0].mxu0
        %v7681 = vadd.f32 %v1455, %v7680
        %v7682 = vpop.f32.mrb[0].mxu0
        %v7683 = vadd.f32 %v1459, %v7682
        %v7684 = vpop.f32.mrb[0].mxu0
        %v7685 = vpop.f32.mrb[0].mxu0
        %7686 = vdwg.mxu0
        %7687 = vmatprep.subr.bf16.mxu0 %v4883
        %7688 = vmatpush1.bf16.msra.mxu0 %v4882
        %7689 = vmatprep.subr.bf16.mxu0 %v4899
        %7690 = vmatpush1.bf16.msra.mxu0 %v4898
        %7691 = vmatprep.subr.bf16.mxu0 %v4915
        %7692 = vmatpush1.bf16.msra.mxu0 %v4914
        %7693 = vmatprep.subr.bf16.mxu0 %v4931
        %7694 = vmatpush1.bf16.msra.mxu0 %v4930
        %7695 = vmatprep.subr.bf16.mxu0 %v4947
        %7696 = vmatpush1.bf16.msra.mxu0 %v4946
        %7697 = vmatprep.subr.bf16.mxu0 %v4963
        %7698 = vmatpush1.bf16.msra.mxu0 %v4962
        %7699 = vmatprep.subr.bf16.mxu0 %v4979
        %7700 = vmatpush1.bf16.msra.mxu0 %v4978
        %7701 = vmatprep.subr.bf16.mxu0 %v4995
        %7702 = vmatpush1.bf16.msra.mxu0 %v4994
        %7703 = vmatprep.subr.bf16.mxu0 %v5011
        %7704 = vmatpush1.bf16.msra.mxu0 %v5010
        %7705 = vmatprep.subr.bf16.mxu0 %v5027
        %7706 = vmatpush1.bf16.msra.mxu0 %v5026
        %7707 = vmatprep.subr.bf16.mxu0 %v5043
        %7708 = vmatpush1.bf16.msra.mxu0 %v5042
        %7709 = vmatprep.subr.bf16.mxu0 %v5059
        %7710 = vmatpush1.bf16.msra.mxu0 %v5058
        %7711 = vmatprep.subr.bf16.mxu0 %v5075
        %7712 = vmatpush1.bf16.msra.mxu0 %v5074
        %7713 = vmatprep.subr.bf16.mxu0 %v5091
        %7714 = vmatpush1.bf16.msra.mxu0 %v5090
        %7715 = vmatprep.subr.bf16.mxu0 %v5107
        %7716 = vmatpush1.bf16.msra.mxu0 %v5106
        %7717 = vmatprep.subr.bf16.mxu0 %v5123
        %7718 = vmatpush1.bf16.msra.mxu0 %v5122
        %7719 = vmatprep.mubr.bf16.mxu0 %v1532
        %7720 = vmatmul.mubr.bf16.gmra.mrb[0].mxu0 %v1530
        %v7721 = vpop.f32.mrb[0].mxu0
        %v7722 = vadd.f32 %v7681, %v7721
        %v7723 = vpop.f32.mrb[0].mxu0
        %v7724 = vadd.f32 %v7683, %v7723
        %v7725 = vpop.f32.mrb[0].mxu0
        %v7726 = vpop.f32.mrb[0].mxu0
        %7727 = vdwg.mxu0
        %7728 = vmatprep.subr.bf16.mxu0 %v5139
        %7729 = vmatpush1.bf16.msra.mxu0 %v5138
        %7730 = vmatprep.subr.bf16.mxu0 %v5155
        %7731 = vmatpush1.bf16.msra.mxu0 %v5154
        %7732 = vmatprep.subr.bf16.mxu0 %v5171
        %7733 = vmatpush1.bf16.msra.mxu0 %v5170
        %7734 = vmatprep.subr.bf16.mxu0 %v5187
        %7735 = vmatpush1.bf16.msra.mxu0 %v5186
        %7736 = vmatprep.subr.bf16.mxu0 %v5203
        %7737 = vmatpush1.bf16.msra.mxu0 %v5202
        %7738 = vmatprep.subr.bf16.mxu0 %v5219
        %7739 = vmatpush1.bf16.msra.mxu0 %v5218
        %7740 = vmatprep.subr.bf16.mxu0 %v5235
        %7741 = vmatpush1.bf16.msra.mxu0 %v5234
        %7742 = vmatprep.subr.bf16.mxu0 %v5251
        %7743 = vmatpush1.bf16.msra.mxu0 %v5250
        %7744 = vmatprep.subr.bf16.mxu0 %v5267
        %7745 = vmatpush1.bf16.msra.mxu0 %v5266
        %7746 = vmatprep.subr.bf16.mxu0 %v5283
        %7747 = vmatpush1.bf16.msra.mxu0 %v5282
        %7748 = vmatprep.subr.bf16.mxu0 %v5299
        %7749 = vmatpush1.bf16.msra.mxu0 %v5298
        %7750 = vmatprep.subr.bf16.mxu0 %v5315
        %7751 = vmatpush1.bf16.msra.mxu0 %v5314
        %7752 = vmatprep.subr.bf16.mxu0 %v5331
        %7753 = vmatpush1.bf16.msra.mxu0 %v5330
        %7754 = vmatprep.subr.bf16.mxu0 %v5347
        %7755 = vmatpush1.bf16.msra.mxu0 %v5346
        %7756 = vmatprep.subr.bf16.mxu0 %v5363
        %7757 = vmatpush1.bf16.msra.mxu0 %v5362
        %7758 = vmatprep.subr.bf16.mxu0 %v5379
        %7759 = vmatpush1.bf16.msra.mxu0 %v5378
        %7760 = vmatprep.mubr.bf16.mxu0 %v1529
        %7761 = vmatmul.mubr.bf16.gmra.mrb[0].mxu0 %v1515
        %v7762 = vpop.f32.mrb[0].mxu0
        %v7763 = vadd.f32 %v7722, %v7762
        %v7764 = vpop.f32.mrb[0].mxu0
        %v7765 = vadd.f32 %v7724, %v7764
        %v7766 = vpop.f32.mrb[0].mxu0
        %v7767 = vpop.f32.mrb[0].mxu0
        %7768 = vdwg.mxu0
        %7769 = vmatprep.subr.bf16.mxu0 %v5395
        %7770 = vmatpush1.bf16.msra.mxu0 %v5394
        %7771 = vmatprep.subr.bf16.mxu0 %v5411
        %7772 = vmatpush1.bf16.msra.mxu0 %v5410
        %7773 = vmatprep.subr.bf16.mxu0 %v5427
        %7774 = vmatpush1.bf16.msra.mxu0 %v5426
        %7775 = vmatprep.subr.bf16.mxu0 %v5443
        %7776 = vmatpush1.bf16.msra.mxu0 %v5442
        %7777 = vmatprep.subr.bf16.mxu0 %v5459
        %7778 = vmatpush1.bf16.msra.mxu0 %v5458
        %7779 = vmatprep.subr.bf16.mxu0 %v5475
        %7780 = vmatpush1.bf16.msra.mxu0 %v5474
        %7781 = vmatprep.subr.bf16.mxu0 %v5491
        %7782 = vmatpush1.bf16.msra.mxu0 %v5490
        %7783 = vmatprep.subr.bf16.mxu0 %v5507
        %7784 = vmatpush1.bf16.msra.mxu0 %v5506
        %7785 = vmatprep.subr.bf16.mxu0 %v5523
        %7786 = vmatpush1.bf16.msra.mxu0 %v5522
        %7787 = vmatprep.subr.bf16.mxu0 %v5539
        %7788 = vmatpush1.bf16.msra.mxu0 %v5538
        %7789 = vmatprep.subr.bf16.mxu0 %v5555
        %7790 = vmatpush1.bf16.msra.mxu0 %v5554
        %7791 = vmatprep.subr.bf16.mxu0 %v5571
        %7792 = vmatpush1.bf16.msra.mxu0 %v5570
        %7793 = vmatprep.subr.bf16.mxu0 %v5587
        %7794 = vmatpush1.bf16.msra.mxu0 %v5586
        %7795 = vmatprep.subr.bf16.mxu0 %v5603
        %7796 = vmatpush1.bf16.msra.mxu0 %v5602
        %7797 = vmatprep.subr.bf16.mxu0 %v5619
        %7798 = vmatpush1.bf16.msra.mxu0 %v5618
        %7799 = vmatprep.subr.bf16.mxu0 %v5635
        %7800 = vmatpush1.bf16.msra.mxu0 %v5634
        %7801 = vmatprep.mubr.bf16.mxu0 %v1533
        %7802 = vmatmul.mubr.bf16.gmra.mrb[0].mxu0 %v1531
        %v7803 = vpop.f32.mrb[0].mxu0
        %v7804 = vadd.f32 %v7763, %v7803
        %v7805 = vpop.f32.mrb[0].mxu0
        %v7806 = vadd.f32 %v7765, %v7805
        %v7807 = vpop.f32.mrb[0].mxu0
        %v7808 = vpop.f32.mrb[0].mxu0
        %7809 = vdwg.mxu0
        %7810 = vmatprep.subr.bf16.mxu0 %v4629
        %7811 = vmatpush1.bf16.msra.mxu0 %v4628
        %7812 = vmatprep.subr.bf16.mxu0 %v4645
        %7813 = vmatpush1.bf16.msra.mxu0 %v4644
        %7814 = vmatprep.subr.bf16.mxu0 %v4661
        %7815 = vmatpush1.bf16.msra.mxu0 %v4660
        %7816 = vmatprep.subr.bf16.mxu0 %v4677
        %7817 = vmatpush1.bf16.msra.mxu0 %v4676
        %7818 = vmatprep.subr.bf16.mxu0 %v4693
        %7819 = vmatpush1.bf16.msra.mxu0 %v4692
        %7820 = vmatprep.subr.bf16.mxu0 %v4709
        %7821 = vmatpush1.bf16.msra.mxu0 %v4708
        %7822 = vmatprep.subr.bf16.mxu0 %v4725
        %7823 = vmatpush1.bf16.msra.mxu0 %v4724
        %7824 = vmatprep.subr.bf16.mxu0 %v4741
        %7825 = vmatpush1.bf16.msra.mxu0 %v4740
        %7826 = vmatprep.subr.bf16.mxu0 %v4757
        %7827 = vmatpush1.bf16.msra.mxu0 %v4756
        %7828 = vmatprep.subr.bf16.mxu0 %v4773
        %7829 = vmatpush1.bf16.msra.mxu0 %v4772
        %7830 = vmatprep.subr.bf16.mxu0 %v4789
        %7831 = vmatpush1.bf16.msra.mxu0 %v4788
        %7832 = vmatprep.subr.bf16.mxu0 %v4805
        %7833 = vmatpush1.bf16.msra.mxu0 %v4804
        %7834 = vmatprep.subr.bf16.mxu0 %v4821
        %7835 = vmatpush1.bf16.msra.mxu0 %v4820
        %7836 = vmatprep.subr.bf16.mxu0 %v4837
        %7837 = vmatpush1.bf16.msra.mxu0 %v4836
        %7838 = vmatprep.subr.bf16.mxu0 %v4853
        %7839 = vmatpush1.bf16.msra.mxu0 %v4852
        %7840 = vmatprep.subr.bf16.mxu0 %v4869
        %7841 = vmatpush1.bf16.msra.mxu0 %v4868
        %7842 = vmatprep.mubr.bf16.mxu0 %v1522
        %7843 = vmatmul.mubr.bf16.gmra.mrb[0].mxu0 %v1508
        %v7844 = vpop.f32.mrb[0].mxu0
        %v7845 = vadd.f32 %v1463, %v7844
        %v7846 = vpop.f32.mrb[0].mxu0
        %v7847 = vadd.f32 %v1467, %v7846
        %v7848 = vpop.f32.mrb[0].mxu0
        %v7849 = vpop.f32.mrb[0].mxu0
        %7850 = vdwg.mxu0
        %7851 = vmatprep.subr.bf16.mxu0 %v4885
        %7852 = vmatpush1.bf16.msra.mxu0 %v4884
        %7853 = vmatprep.subr.bf16.mxu0 %v4901
        %7854 = vmatpush1.bf16.msra.mxu0 %v4900
        %7855 = vmatprep.subr.bf16.mxu0 %v4917
        %7856 = vmatpush1.bf16.msra.mxu0 %v4916
        %7857 = vmatprep.subr.bf16.mxu0 %v4933
        %7858 = vmatpush1.bf16.msra.mxu0 %v4932
        %7859 = vmatprep.subr.bf16.mxu0 %v4949
        %7860 = vmatpush1.bf16.msra.mxu0 %v4948
        %7861 = vmatprep.subr.bf16.mxu0 %v4965
        %7862 = vmatpush1.bf16.msra.mxu0 %v4964
        %7863 = vmatprep.subr.bf16.mxu0 %v4981
        %7864 = vmatpush1.bf16.msra.mxu0 %v4980
        %7865 = vmatprep.subr.bf16.mxu0 %v4997
        %7866 = vmatpush1.bf16.msra.mxu0 %v4996
        %7867 = vmatprep.subr.bf16.mxu0 %v5013
        %7868 = vmatpush1.bf16.msra.mxu0 %v5012
        %7869 = vmatprep.subr.bf16.mxu0 %v5029
        %7870 = vmatpush1.bf16.msra.mxu0 %v5028
        %7871 = vmatprep.subr.bf16.mxu0 %v5045
        %7872 = vmatpush1.bf16.msra.mxu0 %v5044
        %7873 = vmatprep.subr.bf16.mxu0 %v5061
        %7874 = vmatpush1.bf16.msra.mxu0 %v5060
        %7875 = vmatprep.subr.bf16.mxu0 %v5077
        %7876 = vmatpush1.bf16.msra.mxu0 %v5076
        %7877 = vmatprep.subr.bf16.mxu0 %v5093
        %7878 = vmatpush1.bf16.msra.mxu0 %v5092
        %7879 = vmatprep.subr.bf16.mxu0 %v5109
        %7880 = vmatpush1.bf16.msra.mxu0 %v5108
        %7881 = vmatprep.subr.bf16.mxu0 %v5125
        %7882 = vmatpush1.bf16.msra.mxu0 %v5124
        %7883 = vmatprep.mubr.bf16.mxu0 %v1532
        %7884 = vmatmul.mubr.bf16.gmra.mrb[0].mxu0 %v1530
        %v7885 = vpop.f32.mrb[0].mxu0
        %v7886 = vadd.f32 %v7845, %v7885
        %v7887 = vpop.f32.mrb[0].mxu0
        %v7888 = vadd.f32 %v7847, %v7887
        %v7889 = vpop.f32.mrb[0].mxu0
        %v7890 = vpop.f32.mrb[0].mxu0
        %7891 = vdwg.mxu0
        %7892 = vmatprep.subr.bf16.mxu0 %v5141
        %7893 = vmatpush1.bf16.msra.mxu0 %v5140
        %7894 = vmatprep.subr.bf16.mxu0 %v5157
        %7895 = vmatpush1.bf16.msra.mxu0 %v5156
        %7896 = vmatprep.subr.bf16.mxu0 %v5173
        %7897 = vmatpush1.bf16.msra.mxu0 %v5172
        %7898 = vmatprep.subr.bf16.mxu0 %v5189
        %7899 = vmatpush1.bf16.msra.mxu0 %v5188
        %7900 = vmatprep.subr.bf16.mxu0 %v5205
        %7901 = vmatpush1.bf16.msra.mxu0 %v5204
        %7902 = vmatprep.subr.bf16.mxu0 %v5221
        %7903 = vmatpush1.bf16.msra.mxu0 %v5220
        %7904 = vmatprep.subr.bf16.mxu0 %v5237
        %7905 = vmatpush1.bf16.msra.mxu0 %v5236
        %7906 = vmatprep.subr.bf16.mxu0 %v5253
        %7907 = vmatpush1.bf16.msra.mxu0 %v5252
        %7908 = vmatprep.subr.bf16.mxu0 %v5269
        %7909 = vmatpush1.bf16.msra.mxu0 %v5268
        %7910 = vmatprep.subr.bf16.mxu0 %v5285
        %7911 = vmatpush1.bf16.msra.mxu0 %v5284
        %7912 = vmatprep.subr.bf16.mxu0 %v5301
        %7913 = vmatpush1.bf16.msra.mxu0 %v5300
        %7914 = vmatprep.subr.bf16.mxu0 %v5317
        %7915 = vmatpush1.bf16.msra.mxu0 %v5316
        %7916 = vmatprep.subr.bf16.mxu0 %v5333
        %7917 = vmatpush1.bf16.msra.mxu0 %v5332
        %7918 = vmatprep.subr.bf16.mxu0 %v5349
        %7919 = vmatpush1.bf16.msra.mxu0 %v5348
        %7920 = vmatprep.subr.bf16.mxu0 %v5365
        %7921 = vmatpush1.bf16.msra.mxu0 %v5364
        %7922 = vmatprep.subr.bf16.mxu0 %v5381
        %7923 = vmatpush1.bf16.msra.mxu0 %v5380
        %7924 = vmatprep.mubr.bf16.mxu0 %v1529
        %7925 = vmatmul.mubr.bf16.gmra.mrb[0].mxu0 %v1515
        %v7926 = vpop.f32.mrb[0].mxu0
        %v7927 = vadd.f32 %v7886, %v7926
        %v7928 = vpop.f32.mrb[0].mxu0
        %v7929 = vadd.f32 %v7888, %v7928
        %v7930 = vpop.f32.mrb[0].mxu0
        %v7931 = vpop.f32.mrb[0].mxu0
        %7932 = vdwg.mxu0
        %7933 = vmatprep.subr.bf16.mxu0 %v5397
        %7934 = vmatpush1.bf16.msra.mxu0 %v5396
        %7935 = vmatprep.subr.bf16.mxu0 %v5413
        %7936 = vmatpush1.bf16.msra.mxu0 %v5412
        %7937 = vmatprep.subr.bf16.mxu0 %v5429
        %7938 = vmatpush1.bf16.msra.mxu0 %v5428
        %7939 = vmatprep.subr.bf16.mxu0 %v5445
        %7940 = vmatpush1.bf16.msra.mxu0 %v5444
        %7941 = vmatprep.subr.bf16.mxu0 %v5461
        %7942 = vmatpush1.bf16.msra.mxu0 %v5460
        %7943 = vmatprep.subr.bf16.mxu0 %v5477
        %7944 = vmatpush1.bf16.msra.mxu0 %v5476
        %7945 = vmatprep.subr.bf16.mxu0 %v5493
        %7946 = vmatpush1.bf16.msra.mxu0 %v5492
        %7947 = vmatprep.subr.bf16.mxu0 %v5509
        %7948 = vmatpush1.bf16.msra.mxu0 %v5508
        %7949 = vmatprep.subr.bf16.mxu0 %v5525
        %7950 = vmatpush1.bf16.msra.mxu0 %v5524
        %7951 = vmatprep.subr.bf16.mxu0 %v5541
        %7952 = vmatpush1.bf16.msra.mxu0 %v5540
        %7953 = vmatprep.subr.bf16.mxu0 %v5557
        %7954 = vmatpush1.bf16.msra.mxu0 %v5556
        %7955 = vmatprep.subr.bf16.mxu0 %v5573
        %7956 = vmatpush1.bf16.msra.mxu0 %v5572
        %7957 = vmatprep.subr.bf16.mxu0 %v5589
        %7958 = vmatpush1.bf16.msra.mxu0 %v5588
        %7959 = vmatprep.subr.bf16.mxu0 %v5605
        %7960 = vmatpush1.bf16.msra.mxu0 %v5604
        %7961 = vmatprep.subr.bf16.mxu0 %v5621
        %7962 = vmatpush1.bf16.msra.mxu0 %v5620
        %7963 = vmatprep.subr.bf16.mxu0 %v5637
        %7964 = vmatpush1.bf16.msra.mxu0 %v5636
        %7965 = vmatprep.mubr.bf16.mxu0 %v1533
        %7966 = vmatmul.mubr.bf16.gmra.mrb[0].mxu0 %v1531
        %v7967 = vpop.f32.mrb[0].mxu0
        %v7968 = vadd.f32 %v7927, %v7967
        %v7969 = vpop.f32.mrb[0].mxu0
        %v7970 = vadd.f32 %v7929, %v7969
        %v7971 = vpop.f32.mrb[0].mxu0
        %v7972 = vpop.f32.mrb[0].mxu0
        %7973 = vdwg.mxu0
        %v7974 = vmax.f32 %v6820, 0.0
        %v7975 = vmax.f32 %v6822, 0.0
        %v7976 = vmax.f32 %v6984, 0.0
        %v7977 = vmax.f32 %v6986, 0.0
        %v7978 = vmax.f32 %v7148, 0.0
        %v7979 = vmax.f32 %v7150, 0.0
        %v7980 = vmax.f32 %v7312, 0.0
        %v7981 = vmax.f32 %v7314, 0.0
        %v7982 = vmax.f32 %v7476, 0.0
        %v7983 = vmax.f32 %v7478, 0.0
        %v7984 = vmax.f32 %v7640, 0.0
        %v7985 = vmax.f32 %v7642, 0.0
        %v7986 = vmax.f32 %v7804, 0.0
        %v7987 = vmax.f32 %v7806, 0.0
        %v7988 = vmax.f32 %v7968, 0.0
        %v7989 = vmax.f32 %v7970, 0.0
        %v7990 = vld [vmem:[%s308] sm:$0xff]
        %v7991 = vld [vmem:[%s308 + $0x8] sm:$0xff]
        %v7994 = vlaneseq
        %v7995 = vshrl.u32 %v7994, 7
        %v7996 = vsub.s32 0, %v7995
        %v7997 = vrot.slane %v7990, %v7996
        %v7998 = vlaneseq
        %v7999 = vshrl.u32 %v7998, 7
        %v8000 = vsub.s32 1, %v7999
        %v8001 = vrot.slane %v7990, %v8000
        %v8002 = vlaneseq
        %v8003 = vshrl.u32 %v8002, 7
        %v8004 = vsub.s32 2, %v8003
        %v8005 = vrot.slane %v7990, %v8004
        %v8006 = vlaneseq
        %v8007 = vshrl.u32 %v8006, 7
        %v8008 = vsub.s32 3, %v8007
        %v8009 = vrot.slane %v7990, %v8008
        %v8010 = vlaneseq
        %v8011 = vshrl.u32 %v8010, 7
        %v8012 = vsub.s32 4, %v8011
        %v8013 = vrot.slane %v7990, %v8012
        %v8014 = vlaneseq
        %v8015 = vshrl.u32 %v8014, 7
        %v8016 = vsub.s32 5, %v8015
        %v8017 = vrot.slane %v7990, %v8016
        %v8018 = vlaneseq
        %v8019 = vshrl.u32 %v8018, 7
        %v8020 = vsub.s32 6, %v8019
        %v8021 = vrot.slane %v7990, %v8020
        %v8022 = vlaneseq
        %v8023 = vshrl.u32 %v8022, 7
        %v8024 = vsub.s32 7, %v8023
        %v8025 = vrot.slane %v7990, %v8024
        %v8026 = vlaneseq
        %v8027 = vshrl.u32 %v8026, 7
        %v8028 = vsub.s32 0, %v8027
        %v8029 = vrot.slane %v7991, %v8028
        %v8030 = vlaneseq
        %v8031 = vshrl.u32 %v8030, 7
        %v8032 = vsub.s32 1, %v8031
        %v8033 = vrot.slane %v7991, %v8032
        %v8034 = vlaneseq
        %v8035 = vshrl.u32 %v8034, 7
        %v8036 = vsub.s32 2, %v8035
        %v8037 = vrot.slane %v7991, %v8036
        %v8038 = vlaneseq
        %v8039 = vshrl.u32 %v8038, 7
        %v8040 = vsub.s32 3, %v8039
        %v8041 = vrot.slane %v7991, %v8040
        %v8042 = vlaneseq
        %v8043 = vshrl.u32 %v8042, 7
        %v8044 = vsub.s32 4, %v8043
        %v8045 = vrot.slane %v7991, %v8044
        %v8046 = vlaneseq
        %v8047 = vshrl.u32 %v8046, 7
        %v8048 = vsub.s32 5, %v8047
        %v8049 = vrot.slane %v7991, %v8048
        %v8050 = vlaneseq
        %v8051 = vshrl.u32 %v8050, 7
        %v8052 = vsub.s32 6, %v8051
        %v8053 = vrot.slane %v7991, %v8052
        %v8054 = vlaneseq
        %v8055 = vshrl.u32 %v8054, 7
        %v8056 = vsub.s32 7, %v8055
        %v8057 = vrot.slane %v7991, %v8056
        %v8074 = vmul.f32 %v7974, %v7997
        %v8075 = vmul.f32 %v7975, %v8001
        %v8076 = vmul.f32 %v7976, %v8005
        %v8077 = vmul.f32 %v7977, %v8009
        %v8078 = vmul.f32 %v7978, %v8013
        %v8079 = vmul.f32 %v7979, %v8017
        %v8080 = vmul.f32 %v7980, %v8021
        %v8081 = vmul.f32 %v7981, %v8025
        %v8082 = vmul.f32 %v7982, %v8029
        %v8083 = vmul.f32 %v7983, %v8033
        %v8084 = vmul.f32 %v7984, %v8037
        %v8085 = vmul.f32 %v7985, %v8041
        %v8086 = vmul.f32 %v7986, %v8045
        %v8087 = vmul.f32 %v7987, %v8049
        %v8088 = vmul.f32 %v7988, %v8053
        %v8089 = vmul.f32 %v7989, %v8057
        %vm8090 = vcmask 1041408
        %v8091 = vsel %vm8090, %v8074, 0.0
        %v8092 = vsel %vm8090, %v8075, 0.0
        %v8093 = vadd.f32 %v8091, %v8092
        %v8094 = vsel %vm8090, %v8076, 0.0
        %v8095 = vadd.f32 %v8093, %v8094
        %v8096 = vsel %vm8090, %v8077, 0.0
        %v8097 = vadd.f32 %v8095, %v8096
        %v8098 = vsel %vm8090, %v8078, 0.0
        %v8099 = vadd.f32 %v8097, %v8098
        %v8100 = vsel %vm8090, %v8079, 0.0
        %v8101 = vadd.f32 %v8099, %v8100
        %v8102 = vsel %vm8090, %v8080, 0.0
        %v8103 = vadd.f32 %v8101, %v8102
        %v8104 = vsel %vm8090, %v8081, 0.0
        %v8105 = vadd.f32 %v8103, %v8104
        %v8106 = vsel %vm8090, %v8082, 0.0
        %v8107 = vadd.f32 %v8105, %v8106
        %v8108 = vsel %vm8090, %v8083, 0.0
        %v8109 = vadd.f32 %v8107, %v8108
        %v8110 = vsel %vm8090, %v8084, 0.0
        %v8111 = vadd.f32 %v8109, %v8110
        %v8112 = vsel %vm8090, %v8085, 0.0
        %v8113 = vadd.f32 %v8111, %v8112
        %v8114 = vsel %vm8090, %v8086, 0.0
        %v8115 = vadd.f32 %v8113, %v8114
        %v8116 = vsel %vm8090, %v8087, 0.0
        %v8117 = vadd.f32 %v8115, %v8116
        %v8118 = vsel %vm8090, %v8088, 0.0
        %v8119 = vadd.f32 %v8117, %v8118
        %v8120 = vsel %vm8090, %v8089, 0.0
        %v8121 = vadd.f32 %v8119, %v8120
        %8122 = vadd.xlane.f32.xlu0 %v8121
        %v8123 = vpop.xlane.xlu0 %8122
        %v8124 = vld [vmem:[%s355] sm:$0x3]
        %v8125 = vadd.f32 %v8124, %v8123
        %vm8126 = vcmask 1024
        %8127 = vst.msk [vmem:[%s355] sm:$0x3] %vm8126, %v8125
        %p8128 = scmp.lt.s32.totalorder %s28, 0
        %s8129 = scalar_select %p8128, %s28, 0
        %s8130 = smul.addr %s8129, 2
        %s8131 = scalar_lea.vmem %s5, %s8130
        // Predicated region
        $region57: #{_mlp_forward_impl.1} parent=39 // pred_check
          %p8132 = pneg %p186
        $region58: #{_mlp_forward_impl.1} parent=39 // pred_check_branch
          %8134 = sbr.rel (%p8132) target = $region60
        $region59: #{_mlp_forward_impl.1} parent=39 // pred_region
          _
        $region60: #{_mlp_forward_impl.1} parent=39 // pred_fallthru
          _
        // Predicated region
        $region61: #{_mlp_forward_impl.1} parent=39 // pred_check
          %p8135 = pneg %p186
        $region62: #{_mlp_forward_impl.1} parent=39 // pred_check_branch
          %8137 = sbr.rel (%p8135) target = $region64
        $region63: #{_mlp_forward_impl.1} parent=39 // pred_region
          %p8138 = scmp.lt.s32.totalorder %s28, 0
          %s8139 = scalar_select %p8138, %s28, 0
          %s8140 = smul.addr %s8139, 2
          %s8141 = scalar_lea.vmem %s5, %s8140
        $region64: #{_mlp_forward_impl.1} parent=39 // pred_fallthru
          _
      $region40: #{_mlp_forward_impl.1} parent=5 // pred_fallthru
        _
      %p8142 = scmp.le.s32.totalorder 2, %s19
      // Predicated region
      $region65: #{_mlp_forward_impl.1} parent=5 // pred_check
        %p8143 = pneg %p8142
      $region66: #{_mlp_forward_impl.1} parent=5 // pred_check_branch
        %8145 = sbr.rel (%p8143) target = $region68
      $region67: #{_mlp_forward_impl.1} parent=5 // pred_region
        %s8146 = ssub.s32 %s19, 2
      $region68: #{_mlp_forward_impl.1} parent=5 // pred_fallthru
        _
    $region6: #{_mlp_forward_impl.1} parent=1 // loop_footer
      %s23 = sadd.s32 1, %s19
    $region7: #{_mlp_forward_impl.1} parent=1 // loop_footer_branch
      %18 = sbr.rel target = $region3
    $region8: #{_mlp_forward_impl.1} parent=1 // loop_exit
      _
    %8147 = vsyncpa [#allocation4], 1
    %s8148 = scalar_lea.sflag [#allocation4], 1
    %8149 = vsyncpa %s8148, 1
    %8150 = vsyncpa [#allocation6], 1
    %s8151 = scalar_lea.sflag [#allocation6], 1
    %8152 = vsyncpa %s8151, 1

</llo_original>
